<compile_context>
chip_gen: v7x
topology: tpu7x:2x2x1
jax: 0.10.0
libtpu: 0.0.40
codegen_flags: <defaults>
</compile_context>

<pallas_src>
import jax
import jax.numpy as jnp
from jax import lax
from jax.experimental import pallas as pl
from jax.experimental.pallas import tpu as pltpu


def _round_up(x, m):
    return (x + m - 1) // m * m


def _full_spec(shape):
    nd = len(shape)
    return pl.BlockSpec(shape, lambda i, nd=nd: (0,) * nd)


# -----------------------------------------------------------------------------
# Kernel 1: the full decoder recurrence (LSTM + location-aware attention) in one
# kernel invocation, looping over decoder timesteps with pl.loop.
# -----------------------------------------------------------------------------
def _decoder_loop_kernel(
    emb_ref,       # (Sd, B, D) bf16  time-major embedded targets (already * sqrt(D))
    enc_ref,       # (B, Se, D) bf16  encoder outputs (padded)
    vproj_ref,     # (B, Se, A) bf16  enc @ Wv  (hoisted, time-invariant)
    maskadd_ref,   # (B, Se)    f32   additive attention mask (0 valid / -1e30 pad)
    wih0_ref, whh0_ref, b0_ref,    # LSTM layer 0: (D,4D) bf16, (D,4D) bf16, (1,4D) f32
    wih1_ref, whh1_ref, b1_ref,    # LSTM layer 1
    wcu_ref,       # (K, A) f32   fused location-conv weights: Wconv @ Wu
    wq_ref,        # (D, A) bf16  query projection
    battn_ref,     # (1, A) f32   fused bias: bq + battn + bconv @ Wu
    wscore_ref,    # (1, A) f32   score vector
    dec_ref,       # (Sd, B, D) f32  OUT: ctx_t + h_t (vocab projection done outside)
    h_scr, c_scr,  # (2, B, D) f32   LSTM state per layer
    ctx_scr,       # (B, D)    f32   attention context carry
    attn_scr,      # (B, Se)   f32   attention weights carry
):
    Sd = emb_ref.shape[0]
    B, Se, D = enc_ref.shape
    A = wq_ref.shape[1]
    K = wcu_ref.shape[0]
    pad = K // 2   # PyTorch Conv1d(padding=K//2); requires odd K for same-length output

    # Zero initial state (single grid step; the recurrence lives in the loop below).
    h_scr[...] = jnp.zeros(h_scr.shape, h_scr.dtype)
    c_scr[...] = jnp.zeros(c_scr.shape, c_scr.dtype)
    ctx_scr[...] = jnp.zeros(ctx_scr.shape, ctx_scr.dtype)
    attn_scr[...] = jnp.zeros(attn_scr.shape, attn_scr.dtype)

    # Loop-invariant conv-window validity masks (hoisted out of the time loop).
    pos = lax.broadcasted_iota(jnp.int32, (B, Se), 1)
    valid = [((pos + (o - pad)) >= 0) & ((pos + (o - pad)) < Se) for o in range(K)]

    def lstm_step(x, h, c, wih_ref, whh_ref, b_ref):
        # bf16 operands into the MXU, f32 accumulation / gate math.
        gates = (jnp.dot(x.astype(wih_ref.dtype), wih_ref[...],
                         preferred_element_type=jnp.float32)
                 + jnp.dot(h.astype(whh_ref.dtype), whh_ref[...],
                           preferred_element_type=jnp.float32)
                 + b_ref[...])                               # (B, 4D) f32
        # D is a multiple of 128 -> each gate slice is lane-tile aligned.
        i = jax.nn.sigmoid(gates[:, 0 * D:1 * D])
        f = jax.nn.sigmoid(gates[:, 1 * D:2 * D])
        g = jnp.tanh(gates[:, 2 * D:3 * D])
        o = jax.nn.sigmoid(gates[:, 3 * D:4 * D])
        c_new = f * c + i * g
        h_new = o * jnp.tanh(c_new)
        return h_new, c_new

    @pl.loop(0, Sd)
    def _step(t):
        # ---- embedding (+ previous attention context), as in Decoder.forward ---
        x = emb_ref[t].astype(jnp.float32) + ctx_scr[...]     # (B, D)

        # ---- 2-layer LSTM step (PyTorch gate order i,f,g,o; inference: no dropout)
        h0, c0 = lstm_step(x, h_scr[0], c_scr[0], wih0_ref, whh0_ref, b0_ref)
        h1, c1 = lstm_step(h0, h_scr[1], c_scr[1], wih1_ref, whh1_ref, b1_ref)
        h_scr[0] = h0
        c_scr[0] = c0
        h_scr[1] = h1
        c_scr[1] = c1

        # ---- location feature: Conv1d over previous attention, fused with Wu ---
        # u[b,s,:] = sum_o attn_prev[b, s+o-pad] * (Wconv @ Wu)[o, :]
        attn_prev = attn_scr[...]                             # (B, Se) f32
        u = jnp.zeros((B, Se, A), jnp.float32)
        for o in range(K):                                    # K is small, unrolled
            shift = o - pad
            if shift == 0:
                rolled = attn_prev
            else:
                rolled = pltpu.roll(attn_prev, (-shift) % Se, axis=1)
            a_s = jnp.where(valid[o], rolled, 0.0)            # zero-pad conv boundary
            u = u + a_s[:, :, None] * wcu_ref[o:o + 1][:, None, :]

        # ---- score: wscore . tanh(Wq h + (enc Wv) + u + bias) -------------------
        q = (jnp.dot(h1.astype(wq_ref.dtype), wq_ref[...],
                     preferred_element_type=jnp.float32)
             + battn_ref[...])                                # (B, A)
        s = jnp.tanh(q[:, None, :] + vproj_ref[...].astype(jnp.float32) + u)  # (B,Se,A)
        ws3 = jnp.broadcast_to(wscore_ref[...][None], (B, 1, A))
        e = jnp.einsum('bqa,bsa->bqs', ws3, s,
                       preferred_element_type=jnp.float32).reshape(B, Se)
        e = e + maskadd_ref[...]                              # additive -1e30 mask

        # ---- masked softmax over encoder positions ------------------------------
        e_max = jnp.max(e, axis=-1, keepdims=True)
        p = jnp.exp(e - e_max)
        attn_new = p / jnp.sum(p, axis=-1, keepdims=True)     # (B, Se)

        # ---- context = attn @ enc  (batched MXU contraction) --------------------
        ctx = jnp.einsum('bqs,bsd->bqd',
                         attn_new[:, None, :].astype(enc_ref.dtype), enc_ref[...],
                         preferred_element_type=jnp.float32).reshape(B, D)

        attn_scr[...] = attn_new
        ctx_scr[...] = ctx

        # ---- decoder feature; vocab projection happens in a separate kernel -----
        dec_ref[t] = ctx + h1


# -----------------------------------------------------------------------------
# Kernel 2: batched vocab projection (Sd*B, D) @ (D, V), vocab axis tiled.
# -----------------------------------------------------------------------------
def _vocab_proj_kernel(dec_ref, w_ref, out_ref):
    out_ref[...] = jnp.dot(dec_ref[...].astype(w_ref.dtype), w_ref[...],
                           preferred_element_type=jnp.float32)


def _vocab_project(dec_seq, wout):
    Sd, Bp, D = dec_seq.shape
    V = wout.shape[1]
    Vp = _round_up(V, 128)
    tn = 512 if Vp % 512 == 0 else (256 if Vp % 256 == 0 else 128)
    M = Sd * Bp                                            # multiple of 8 (Bp is)
    dec2 = dec_seq.reshape(M, D)
    w_pad = jnp.pad(wout, ((0, 0), (0, Vp - V)))

    logits = pl.pallas_call(
        _vocab_proj_kernel,
        out_shape=jax.ShapeDtypeStruct((M, Vp), jnp.float32),
        grid_spec=pltpu.PrefetchScalarGridSpec(
            num_scalar_prefetch=0,
            grid=(Vp // tn,),
            in_specs=[pl.BlockSpec((M, D), lambda j: (0, 0)),
                      pl.BlockSpec((D, tn), lambda j: (0, j))],
            out_specs=pl.BlockSpec((M, tn), lambda j: (0, j)),
        ),
        compiler_params=pltpu.CompilerParams(dimension_semantics=("parallel",)),
    )(dec2, w_pad)
    return logits.reshape(Sd, Bp, Vp)


def init_params(key, n_vocab, d_model, d_attn, n_filt, k_conv):
    ks = jax.random.split(key, 16)

    def u(k, shape, s=0.1):
        return jax.random.uniform(k, shape, jnp.float32, minval=-s, maxval=s)

    p = {}
    emb = u(ks[0], (n_vocab, d_model))
    p['emb'] = emb.at[0].set(0.0)                       # padding_idx=0
    p['wih0'] = u(ks[1], (d_model, 4 * d_model))
    p['whh0'] = u(ks[2], (d_model, 4 * d_model))
    p['b0'] = u(ks[3], (1, 4 * d_model))                # b_ih + b_hh combined
    p['wih1'] = u(ks[4], (d_model, 4 * d_model))
    p['whh1'] = u(ks[5], (d_model, 4 * d_model))
    p['b1'] = u(ks[6], (1, 4 * d_model))
    p['wconv'] = u(ks[7], (k_conv, n_filt))
    p['bconv'] = u(ks[8], (1, n_filt))
    p['wq'] = u(ks[9], (d_model, d_attn))
    p['bq'] = u(ks[10], (1, d_attn))
    p['wv'] = u(ks[11], (d_model, d_attn))
    p['wu'] = u(ks[12], (n_filt, d_attn))
    p['battn'] = u(ks[13], (1, d_attn))
    p['wscore'] = u(ks[14], (1, d_attn))
    p['wout'] = u(ks[15], (d_model, n_vocab))           # nn.Linear(d_model, n_vocab, bias=False)
    return p


def seq2seq_forward(params, src_seq, src_mask, tgt_seq):
    """Seq2Seq.forward with encoding=False: src_seq == enc_out, src_mask == enc_mask."""
    enc_out, enc_mask = src_seq, src_mask
    enc = enc_out                                       # transform is None (d_dec == d_enc)
    B, Se, D = enc.shape
    Sd = tgt_seq.shape[1]
    A = params['wq'].shape[1]
    V = params['wout'].shape[1]
    K = params['wconv'].shape[0]
    assert K % 2 == 1, "location conv kernel must be odd (PyTorch padding=K//2 semantics)"

    Bp = _round_up(B, 8)                                # sublane padding
    Sep = _round_up(Se, 128)                            # lane padding (attention axis)
    storage = jnp.bfloat16                              # bf16 storage, f32 math

    # ---- wrapper-side, time-invariant precomputation (hoisted out of recurrence)
    enc_p = jnp.zeros((Bp, Sep, D), jnp.float32).at[:B, :Se, :].set(enc)
    validm = jnp.zeros((Bp, Sep), bool).at[:B, :Se].set(enc_mask != 0)
    mask_add = jnp.where(validm, 0.0, -1e30).astype(jnp.float32)          # additive mask
    vproj = jnp.einsum('bsd,da->bsa', enc_p, params['wv'])                # enc @ Wv, hoisted
    wcu = params['wconv'] @ params['wu']                                  # (K, A) fused conv*Wu
    bias_all = params['bq'] + params['battn'] + params['bconv'] @ params['wu']  # (1, A)

    # Embedding lookup + scale (glue), time-major, batch-padded.
    scale = float(D) ** 0.5
    emb = params['emb'][tgt_seq] * scale                                  # (B, Sd, D)
    emb_tm = jnp.zeros((Sd, Bp, D), jnp.float32).at[:, :B, :].set(
        jnp.transpose(emb, (1, 0, 2)))

    args = (
        emb_tm.astype(storage), enc_p.astype(storage), vproj.astype(storage), mask_add,
        params['wih0'].astype(storage), params['whh0'].astype(storage), params['b0'],
        params['wih1'].astype(storage), params['whh1'].astype(storage), params['b1'],
        wcu.astype(jnp.float32), params['wq'].astype(storage),
        bias_all.astype(jnp.float32), params['wscore'].astype(jnp.float32),
    )

    grid_spec = pltpu.PrefetchScalarGridSpec(
        num_scalar_prefetch=0,
        grid=(1,),   # single grid step: recurrence is an in-kernel pl.loop; every
                     # operand is DMA'd into VMEM exactly once.
        in_specs=[_full_spec(a.shape) for a in args],
        out_specs=_full_spec((Sd, Bp, D)),
        scratch_shapes=[pltpu.VMEM((2, Bp, D), jnp.float32),   # h per layer
                        pltpu.VMEM((2, Bp, D), jnp.float32),   # c per layer
                        pltpu.VMEM((Bp, D), jnp.float32),      # ctx carry
                        pltpu.VMEM((Bp, Sep), jnp.float32)],   # attn carry
    )

    dec_seq = pl.pallas_call(
        _decoder_loop_kernel,
        out_shape=jax.ShapeDtypeStruct((Sd, Bp, D), jnp.float32),
        grid_spec=grid_spec,
        compiler_params=pltpu.CompilerParams(dimension_semantics=("arbitrary",)),
    )(*args)

    # ---- one big vocab projection over all (t, b) rows -------------------------
    logits = _vocab_project(dec_seq, params['wout'].astype(storage))      # (Sd, Bp, Vp)
    dec_out = jnp.transpose(logits, (1, 0, 2))[:B, :, :V]                 # (B, Sd, V)
    return dec_out, enc_out, enc_mask


if __name__ == "__main__":
    B, Se, Sd = 2, 16, 8                # batch, encoder steps, decoder steps
    D, V, A, F, K = 128, 1000, 256, 8, 3  # d_model (mult of 128), vocab, d_attn, conv filters/kernel

    key = jax.random.PRNGKey(0)
    k_param, k_enc, k_tgt = jax.random.split(key, 3)

    params = init_params(k_param, n_vocab=V, d_model=D, d_attn=A, n_filt=F, k_conv=K)

    enc_out = jax.random.normal(k_enc, (B, Se, D), jnp.float32)           # acts as encoder output
    lengths = jnp.array([Se, 12], dtype=jnp.int32)
    enc_mask = (jnp.arange(Se)[None, :] < lengths[:, None]).astype(jnp.int32)  # 1=valid, 0=pad
    tgt_seq = jax.random.randint(k_tgt, (B, Sd), 1, V, dtype=jnp.int32)

    fwd = jax.jit(seq2seq_forward)
    dec_out, e_out, e_mask = fwd(params, enc_out, enc_mask, tgt_seq)
    jax.block_until_ready(dec_out)

    assert dec_out.shape == (B, Sd, V)
    assert bool(jnp.all(jnp.isfinite(dec_out)))
    print("KERNEL_OK")
</pallas_src>

<mosaic_0001>
module attributes {stable_mosaic.version = 11 : i64} {
  func.func @_vocab_proj_kernel(%arg0: i32, %arg1: memref<64x128xf32, #tpu.memory_space<vmem>>, %arg2: memref<128x512xbf16, #tpu.memory_space<vmem>>, %arg3: memref<64x512xf32, #tpu.memory_space<vmem>>) attributes {dimension_semantics = [#tpu.dimension_semantics<parallel>], iteration_bounds = array<i64: 2>, scalar_prefetch = 0 : i64, scratch_operands = 0 : i64, tpu.core_type = #tpu.core_type<tc>, window_params = [{pipeline_mode = #tpu.pipeline_mode<synchronous>, transform_indices = @transform_0, window_bounds = array<i64: 64, 128>}, {transform_indices = @transform_1, window_bounds = array<i64: 128, 512>}, {transform_indices = @transform_2, window_bounds = array<i64: 64, 512>}]} {
    %c0 = arith.constant 0 : index
    %c0_0 = arith.constant 0 : index
    %0 = vector.load %arg1[%c0, %c0_0] : memref<64x128xf32, #tpu.memory_space<vmem>>, vector<64x128xf32>
    %1 = arith.truncf %0 : vector<64x128xf32> to vector<64x128xbf16>
    %c0_1 = arith.constant 0 : index
    %c0_2 = arith.constant 0 : index
    %2 = vector.load %arg2[%c0_1, %c0_2] : memref<128x512xbf16, #tpu.memory_space<vmem>>, vector<128x512xbf16>
    %cst = arith.constant dense<0.000000e+00> : vector<64x512xf32>
    %3 = tpu.matmul %1, %2, %cst {dimension_numbers = #tpu.dot_dimension_numbers<[1], [0], [0], [1], [0, 0, 1, 1], [], []>} : vector<64x128xbf16>, vector<128x512xbf16>, vector<64x512xf32> -> vector<64x512xf32>
    %c0_3 = arith.constant 0 : index
    %c0_4 = arith.constant 0 : index
    %4 = vector.load %arg3[%c0_3, %c0_4] : memref<64x512xf32, #tpu.memory_space<vmem>>, vector<64x512xf32>
    tpu.vector_store %arg3[%c0_3, %c0_4], %3 {strides = array<i32>} : memref<64x512xf32, #tpu.memory_space<vmem>>, vector<64x512xf32>,
    return
  }
  func.func @transform_0(%arg0: i32) -> (i32, i32) {
    %c0_i32 = arith.constant 0 : i32
    %c0_i32_0 = arith.constant 0 : i32
    %c0_i32_1 = arith.constant 0 : i32
    return %c0_i32, %c0_i32_0 : i32, i32
  }
  func.func @transform_1(%arg0: i32) -> (i32, i32) {
    %c0_i32 = arith.constant 0 : i32
    %c0_i32_0 = arith.constant 0 : i32
    return %c0_i32, %arg0 : i32, i32
  }
  func.func @transform_2(%arg0: i32) -> (i32, i32) {
    %c0_i32 = arith.constant 0 : i32
    %c0_i32_0 = arith.constant 0 : i32
    return %c0_i32, %arg0 : i32, i32
  }
}

module attributes {stable_mosaic.version = 11 : i64} {
  func.func @_decoder_loop_kernel(%arg0: i32, %arg1: memref<8x8x128xbf16, #tpu.memory_space<vmem>>, %arg2: memref<8x128x128xbf16, #tpu.memory_space<vmem>>, %arg3: memref<8x128x256xbf16, #tpu.memory_space<vmem>>, %arg4: memref<8x128xf32, #tpu.memory_space<vmem>>, %arg5: memref<128x512xbf16, #tpu.memory_space<vmem>>, %arg6: memref<128x512xbf16, #tpu.memory_space<vmem>>, %arg7: memref<1x512xf32, #tpu.memory_space<vmem>>, %arg8: memref<128x512xbf16, #tpu.memory_space<vmem>>, %arg9: memref<128x512xbf16, #tpu.memory_space<vmem>>, %arg10: memref<1x512xf32, #tpu.memory_space<vmem>>, %arg11: memref<3x256xf32, #tpu.memory_space<vmem>>, %arg12: memref<128x256xbf16, #tpu.memory_space<vmem>>, %arg13: memref<1x256xf32, #tpu.memory_space<vmem>>, %arg14: memref<1x256xf32, #tpu.memory_space<vmem>>, %arg15: memref<8x8x128xf32, #tpu.memory_space<vmem>>, %arg16: memref<2x8x128xf32, #tpu.memory_space<vmem>>, %arg17: memref<2x8x128xf32, #tpu.memory_space<vmem>>, %arg18: memref<8x128xf32, #tpu.memory_space<vmem>>, %arg19: memref<8x128xf32, #tpu.memory_space<vmem>>) attributes {dimension_semantics = [#tpu.dimension_semantics<arbitrary>], iteration_bounds = array<i64: 1>, scalar_prefetch = 0 : i64, scratch_operands = 4 : i64, tpu.core_type = #tpu.core_type<tc>, window_params = [{pipeline_mode = #tpu.pipeline_mode<synchronous>, transform_indices = @transform_0, window_bounds = array<i64: 8, 8, 128>}, {pipeline_mode = #tpu.pipeline_mode<synchronous>, transform_indices = @transform_1, window_bounds = array<i64: 8, 128, 128>}, {pipeline_mode = #tpu.pipeline_mode<synchronous>, transform_indices = @transform_2, window_bounds = array<i64: 8, 128, 256>}, {pipeline_mode = #tpu.pipeline_mode<synchronous>, transform_indices = @transform_3, window_bounds = array<i64: 8, 128>}, {pipeline_mode = #tpu.pipeline_mode<synchronous>, transform_indices = @transform_4, window_bounds = array<i64: 128, 512>}, {pipeline_mode = #tpu.pipeline_mode<synchronous>, transform_indices = @transform_5, window_bounds = array<i64: 128, 512>}, {pipeline_mode = #tpu.pipeline_mode<synchronous>, transform_indices = @transform_6, window_bounds = array<i64: 1, 512>}, {pipeline_mode = #tpu.pipeline_mode<synchronous>, transform_indices = @transform_7, window_bounds = array<i64: 128, 512>}, {pipeline_mode = #tpu.pipeline_mode<synchronous>, transform_indices = @transform_8, window_bounds = array<i64: 128, 512>}, {pipeline_mode = #tpu.pipeline_mode<synchronous>, transform_indices = @transform_9, window_bounds = array<i64: 1, 512>}, {pipeline_mode = #tpu.pipeline_mode<synchronous>, transform_indices = @transform_10, window_bounds = array<i64: 3, 256>}, {pipeline_mode = #tpu.pipeline_mode<synchronous>, transform_indices = @transform_11, window_bounds = array<i64: 128, 256>}, {pipeline_mode = #tpu.pipeline_mode<synchronous>, transform_indices = @transform_12, window_bounds = array<i64: 1, 256>}, {pipeline_mode = #tpu.pipeline_mode<synchronous>, transform_indices = @transform_13, window_bounds = array<i64: 1, 256>}, {pipeline_mode = #tpu.pipeline_mode<synchronous>, transform_indices = @transform_14, window_bounds = array<i64: 8, 8, 128>}]} {
    %cst = arith.constant 0.000000e+00 : f32
    %0 = vector.broadcast %cst : f32 to vector<2x8x128xf32>
    %c0 = arith.constant 0 : index
    %c0_0 = arith.constant 0 : index
    %c0_1 = arith.constant 0 : index
    %1 = vector.load %arg16[%c0, %c0_0, %c0_1] : memref<2x8x128xf32, #tpu.memory_space<vmem>>, vector<2x8x128xf32>
    tpu.vector_store %arg16[%c0, %c0_0, %c0_1], %0 {strides = array<i32>} : memref<2x8x128xf32, #tpu.memory_space<vmem>>, vector<2x8x128xf32>,
    %cst_2 = arith.constant 0.000000e+00 : f32
    %2 = vector.broadcast %cst_2 : f32 to vector<2x8x128xf32>
    %c0_3 = arith.constant 0 : index
    %c0_4 = arith.constant 0 : index
    %c0_5 = arith.constant 0 : index
    %3 = vector.load %arg17[%c0_3, %c0_4, %c0_5] : memref<2x8x128xf32, #tpu.memory_space<vmem>>, vector<2x8x128xf32>
    tpu.vector_store %arg17[%c0_3, %c0_4, %c0_5], %2 {strides = array<i32>} : memref<2x8x128xf32, #tpu.memory_space<vmem>>, vector<2x8x128xf32>,
    %cst_6 = arith.constant 0.000000e+00 : f32
    %4 = vector.broadcast %cst_6 : f32 to vector<8x128xf32>
    %c0_7 = arith.constant 0 : index
    %c0_8 = arith.constant 0 : index
    %5 = vector.load %arg18[%c0_7, %c0_8] : memref<8x128xf32, #tpu.memory_space<vmem>>, vector<8x128xf32>
    tpu.vector_store %arg18[%c0_7, %c0_8], %4 {strides = array<i32>} : memref<8x128xf32, #tpu.memory_space<vmem>>, vector<8x128xf32>,
    %cst_9 = arith.constant 0.000000e+00 : f32
    %6 = vector.broadcast %cst_9 : f32 to vector<8x128xf32>
    %c0_10 = arith.constant 0 : index
    %c0_11 = arith.constant 0 : index
    %7 = vector.load %arg19[%c0_10, %c0_11] : memref<8x128xf32, #tpu.memory_space<vmem>>, vector<8x128xf32>
    tpu.vector_store %arg19[%c0_10, %c0_11], %6 {strides = array<i32>} : memref<8x128xf32, #tpu.memory_space<vmem>>, vector<8x128xf32>,
    %8 = tpu.iota {dimensions = array<i32: 1>} : vector<8x128xi32>
    %c-1_i32 = arith.constant -1 : i32
    %9 = vector.broadcast %c-1_i32 : i32 to vector<8x128xi32>
    %10 = arith.addi %8, %9 : vector<8x128xi32>
    %c0_i32 = arith.constant 0 : i32
    %11 = vector.broadcast %c0_i32 : i32 to vector<8x128xi32>
    %12 = arith.cmpi sge, %10, %11 : vector<8x128xi32>
    %c-1_i32_12 = arith.constant -1 : i32
    %13 = vector.broadcast %c-1_i32_12 : i32 to vector<8x128xi32>
    %14 = arith.addi %8, %13 : vector<8x128xi32>
    %c128_i32 = arith.constant 128 : i32
    %15 = vector.broadcast %c128_i32 : i32 to vector<8x128xi32>
    %16 = arith.cmpi slt, %14, %15 : vector<8x128xi32>
    %17 = arith.andi %12, %16 : vector<8x128xi1>
    %c0_i32_13 = arith.constant 0 : i32
    %18 = vector.broadcast %c0_i32_13 : i32 to vector<8x128xi32>
    %19 = arith.addi %8, %18 : vector<8x128xi32>
    %c0_i32_14 = arith.constant 0 : i32
    %20 = vector.broadcast %c0_i32_14 : i32 to vector<8x128xi32>
    %21 = arith.cmpi sge, %19, %20 : vector<8x128xi32>
    %c0_i32_15 = arith.constant 0 : i32
    %22 = vector.broadcast %c0_i32_15 : i32 to vector<8x128xi32>
    %23 = arith.addi %8, %22 : vector<8x128xi32>
    %c128_i32_16 = arith.constant 128 : i32
    %24 = vector.broadcast %c128_i32_16 : i32 to vector<8x128xi32>
    %25 = arith.cmpi slt, %23, %24 : vector<8x128xi32>
    %26 = arith.andi %21, %25 : vector<8x128xi1>
    %c1_i32 = arith.constant 1 : i32
    %27 = vector.broadcast %c1_i32 : i32 to vector<8x128xi32>
    %28 = arith.addi %8, %27 : vector<8x128xi32>
    %c0_i32_17 = arith.constant 0 : i32
    %29 = vector.broadcast %c0_i32_17 : i32 to vector<8x128xi32>
    %30 = arith.cmpi sge, %28, %29 : vector<8x128xi32>
    %c1_i32_18 = arith.constant 1 : i32
    %31 = vector.broadcast %c1_i32_18 : i32 to vector<8x128xi32>
    %32 = arith.addi %8, %31 : vector<8x128xi32>
    %c128_i32_19 = arith.constant 128 : i32
    %33 = vector.broadcast %c128_i32_19 : i32 to vector<8x128xi32>
    %34 = arith.cmpi slt, %32, %33 : vector<8x128xi32>
    %35 = arith.andi %30, %34 : vector<8x128xi1>
    %c0_i32_20 = arith.constant 0 : i32
    %c8_i32 = arith.constant 8 : i32
    %36 = arith.addi %c0_i32_20, %c8_i32 : i32
    %c1_i32_21 = arith.constant 1 : i32
    scf.for %arg20 = %c0_i32_20 to %36 step %c1_i32_21  : i32 {
      %c1_i32_23 = arith.constant 1 : i32
      %37 = arith.muli %arg20, %c1_i32_23 : i32
      %c0_i32_24 = arith.constant 0 : i32
      %38 = arith.addi %c0_i32_24, %37 : i32
      %39 = arith.index_cast %38 : i32 to index
      %c0_25 = arith.constant 0 : index
      %c0_26 = arith.constant 0 : index
      %40 = vector.load %arg1[%39, %c0_25, %c0_26] : memref<8x8x128xbf16, #tpu.memory_space<vmem>>, vector<1x8x128xbf16>
      %41 = vector.shape_cast %40 : vector<1x8x128xbf16> to vector<8x128xbf16>
      %42 = arith.extf %41 : vector<8x128xbf16> to vector<8x128xf32>
      %c0_27 = arith.constant 0 : index
      %c0_28 = arith.constant 0 : index
      %43 = vector.load %arg18[%c0_27, %c0_28] : memref<8x128xf32, #tpu.memory_space<vmem>>, vector<8x128xf32>
      %44 = arith.addf %42, %43 : vector<8x128xf32>
      %c0_29 = arith.constant 0 : index
      %c0_30 = arith.constant 0 : index
      %c0_31 = arith.constant 0 : index
      %45 = vector.load %arg16[%c0_29, %c0_30, %c0_31] : memref<2x8x128xf32, #tpu.memory_space<vmem>>, vector<1x8x128xf32>
      %46 = vector.shape_cast %45 : vector<1x8x128xf32> to vector<8x128xf32>
      %c0_32 = arith.constant 0 : index
      %c0_33 = arith.constant 0 : index
      %c0_34 = arith.constant 0 : index
      %47 = vector.load %arg17[%c0_32, %c0_33, %c0_34] : memref<2x8x128xf32, #tpu.memory_space<vmem>>, vector<1x8x128xf32>
      %48 = vector.shape_cast %47 : vector<1x8x128xf32> to vector<8x128xf32>
      %49 = arith.truncf %44 : vector<8x128xf32> to vector<8x128xbf16>
      %c0_35 = arith.constant 0 : index
      %c0_36 = arith.constant 0 : index
      %50 = vector.load %arg5[%c0_35, %c0_36] : memref<128x512xbf16, #tpu.memory_space<vmem>>, vector<128x512xbf16>
      %cst_37 = arith.constant dense<0.000000e+00> : vector<8x512xf32>
      %51 = tpu.matmul %49, %50, %cst_37 {dimension_numbers = #tpu.dot_dimension_numbers<[1], [0], [0], [1], [0, 0, 1, 1], [], []>} : vector<8x128xbf16>, vector<128x512xbf16>, vector<8x512xf32> -> vector<8x512xf32>
      %52 = arith.truncf %46 : vector<8x128xf32> to vector<8x128xbf16>
      %c0_38 = arith.constant 0 : index
      %c0_39 = arith.constant 0 : index
      %53 = vector.load %arg6[%c0_38, %c0_39] : memref<128x512xbf16, #tpu.memory_space<vmem>>, vector<128x512xbf16>
      %cst_40 = arith.constant dense<0.000000e+00> : vector<8x512xf32>
      %54 = tpu.matmul %52, %53, %cst_40 {dimension_numbers = #tpu.dot_dimension_numbers<[1], [0], [0], [1], [0, 0, 1, 1], [], []>} : vector<8x128xbf16>, vector<128x512xbf16>, vector<8x512xf32> -> vector<8x512xf32>
      %55 = arith.addf %51, %54 : vector<8x512xf32>
      %c0_41 = arith.constant 0 : index
      %c0_42 = arith.constant 0 : index
      %56 = vector.load %arg7[%c0_41, %c0_42] : memref<1x512xf32, #tpu.memory_space<vmem>>, vector<1x512xf32>
      %57 = vector.broadcast %56 : vector<1x512xf32> to vector<8x512xf32>
      %58 = arith.addf %55, %57 : vector<8x512xf32>
      %59 = vector.extract_strided_slice %58 {offsets = [0, 0], sizes = [8, 128], strides = [1, 1]} : vector<8x512xf32> to vector<8x128xf32>
      %60 = arith.negf %59 : vector<8x128xf32>
      %61 = math.exp %60 : vector<8x128xf32>
      %cst_43 = arith.constant 1.000000e+00 : f32
      %62 = vector.broadcast %cst_43 : f32 to vector<8x128xf32>
      %63 = arith.addf %62, %61 : vector<8x128xf32>
      %64 = arith.divf %62, %63 : vector<8x128xf32>
      %65 = vector.extract_strided_slice %58 {offsets = [0, 128], sizes = [8, 128], strides = [1, 1]} : vector<8x512xf32> to vector<8x128xf32>
      %66 = arith.negf %65 : vector<8x128xf32>
      %67 = math.exp %66 : vector<8x128xf32>
      %cst_44 = arith.constant 1.000000e+00 : f32
      %68 = vector.broadcast %cst_44 : f32 to vector<8x128xf32>
      %69 = arith.addf %68, %67 : vector<8x128xf32>
      %70 = arith.divf %68, %69 : vector<8x128xf32>
      %71 = vector.extract_strided_slice %58 {offsets = [0, 256], sizes = [8, 128], strides = [1, 1]} : vector<8x512xf32> to vector<8x128xf32>
      %72 = math.tanh %71 : vector<8x128xf32>
      %73 = vector.extract_strided_slice %58 {offsets = [0, 384], sizes = [8, 128], strides = [1, 1]} : vector<8x512xf32> to vector<8x128xf32>
      %74 = arith.negf %73 : vector<8x128xf32>
      %75 = math.exp %74 : vector<8x128xf32>
      %cst_45 = arith.constant 1.000000e+00 : f32
      %76 = vector.broadcast %cst_45 : f32 to vector<8x128xf32>
      %77 = arith.addf %76, %75 : vector<8x128xf32>
      %78 = arith.divf %76, %77 : vector<8x128xf32>
      %79 = arith.mulf %70, %48 : vector<8x128xf32>
      %80 = arith.mulf %64, %72 : vector<8x128xf32>
      %81 = arith.addf %79, %80 : vector<8x128xf32>
      %82 = math.tanh %81 : vector<8x128xf32>
      %83 = arith.mulf %78, %82 : vector<8x128xf32>
      %c1 = arith.constant 1 : index
      %c0_46 = arith.constant 0 : index
      %c0_47 = arith.constant 0 : index
      %84 = vector.load %arg16[%c1, %c0_46, %c0_47] : memref<2x8x128xf32, #tpu.memory_space<vmem>>, vector<1x8x128xf32>
      %85 = vector.shape_cast %84 : vector<1x8x128xf32> to vector<8x128xf32>
      %c1_48 = arith.constant 1 : index
      %c0_49 = arith.constant 0 : index
      %c0_50 = arith.constant 0 : index
      %86 = vector.load %arg17[%c1_48, %c0_49, %c0_50] : memref<2x8x128xf32, #tpu.memory_space<vmem>>, vector<1x8x128xf32>
      %87 = vector.shape_cast %86 : vector<1x8x128xf32> to vector<8x128xf32>
      %88 = arith.truncf %83 : vector<8x128xf32> to vector<8x128xbf16>
      %c0_51 = arith.constant 0 : index
      %c0_52 = arith.constant 0 : index
      %89 = vector.load %arg8[%c0_51, %c0_52] : memref<128x512xbf16, #tpu.memory_space<vmem>>, vector<128x512xbf16>
      %cst_53 = arith.constant dense<0.000000e+00> : vector<8x512xf32>
      %90 = tpu.matmul %88, %89, %cst_53 {dimension_numbers = #tpu.dot_dimension_numbers<[1], [0], [0], [1], [0, 0, 1, 1], [], []>} : vector<8x128xbf16>, vector<128x512xbf16>, vector<8x512xf32> -> vector<8x512xf32>
      %91 = arith.truncf %85 : vector<8x128xf32> to vector<8x128xbf16>
      %c0_54 = arith.constant 0 : index
      %c0_55 = arith.constant 0 : index
      %92 = vector.load %arg9[%c0_54, %c0_55] : memref<128x512xbf16, #tpu.memory_space<vmem>>, vector<128x512xbf16>
      %cst_56 = arith.constant dense<0.000000e+00> : vector<8x512xf32>
      %93 = tpu.matmul %91, %92, %cst_56 {dimension_numbers = #tpu.dot_dimension_numbers<[1], [0], [0], [1], [0, 0, 1, 1], [], []>} : vector<8x128xbf16>, vector<128x512xbf16>, vector<8x512xf32> -> vector<8x512xf32>
      %94 = arith.addf %90, %93 : vector<8x512xf32>
      %c0_57 = arith.constant 0 : index
      %c0_58 = arith.constant 0 : index
      %95 = vector.load %arg10[%c0_57, %c0_58] : memref<1x512xf32, #tpu.memory_space<vmem>>, vector<1x512xf32>
      %96 = vector.broadcast %95 : vector<1x512xf32> to vector<8x512xf32>
      %97 = arith.addf %94, %96 : vector<8x512xf32>
      %98 = vector.extract_strided_slice %97 {offsets = [0, 0], sizes = [8, 128], strides = [1, 1]} : vector<8x512xf32> to vector<8x128xf32>
      %99 = arith.negf %98 : vector<8x128xf32>
      %100 = math.exp %99 : vector<8x128xf32>
      %cst_59 = arith.constant 1.000000e+00 : f32
      %101 = vector.broadcast %cst_59 : f32 to vector<8x128xf32>
      %102 = arith.addf %101, %100 : vector<8x128xf32>
      %103 = arith.divf %101, %102 : vector<8x128xf32>
      %104 = vector.extract_strided_slice %97 {offsets = [0, 128], sizes = [8, 128], strides = [1, 1]} : vector<8x512xf32> to vector<8x128xf32>
      %105 = arith.negf %104 : vector<8x128xf32>
      %106 = math.exp %105 : vector<8x128xf32>
      %cst_60 = arith.constant 1.000000e+00 : f32
      %107 = vector.broadcast %cst_60 : f32 to vector<8x128xf32>
      %108 = arith.addf %107, %106 : vector<8x128xf32>
      %109 = arith.divf %107, %108 : vector<8x128xf32>
      %110 = vector.extract_strided_slice %97 {offsets = [0, 256], sizes = [8, 128], strides = [1, 1]} : vector<8x512xf32> to vector<8x128xf32>
      %111 = math.tanh %110 : vector<8x128xf32>
      %112 = vector.extract_strided_slice %97 {offsets = [0, 384], sizes = [8, 128], strides = [1, 1]} : vector<8x512xf32> to vector<8x128xf32>
      %113 = arith.negf %112 : vector<8x128xf32>
      %114 = math.exp %113 : vector<8x128xf32>
      %cst_61 = arith.constant 1.000000e+00 : f32
      %115 = vector.broadcast %cst_61 : f32 to vector<8x128xf32>
      %116 = arith.addf %115, %114 : vector<8x128xf32>
      %117 = arith.divf %115, %116 : vector<8x128xf32>
      %118 = arith.mulf %109, %87 : vector<8x128xf32>
      %119 = arith.mulf %103, %111 : vector<8x128xf32>
      %120 = arith.addf %118, %119 : vector<8x128xf32>
      %121 = math.tanh %120 : vector<8x128xf32>
      %122 = arith.mulf %117, %121 : vector<8x128xf32>
      %c0_62 = arith.constant 0 : index
      %c0_63 = arith.constant 0 : index
      %c0_64 = arith.constant 0 : index
      %123 = vector.load %arg16[%c0_62, %c0_63, %c0_64] : memref<2x8x128xf32, #tpu.memory_space<vmem>>, vector<1x8x128xf32>
      %124 = vector.shape_cast %123 : vector<1x8x128xf32> to vector<8x128xf32>
      %125 = vector.shape_cast %83 : vector<8x128xf32> to vector<1x8x128xf32>
      tpu.vector_store %arg16[%c0_62, %c0_63, %c0_64], %125 {strides = array<i32>} : memref<2x8x128xf32, #tpu.memory_space<vmem>>, vector<1x8x128xf32>,
      %c0_65 = arith.constant 0 : index
      %c0_66 = arith.constant 0 : index
      %c0_67 = arith.constant 0 : index
      %126 = vector.load %arg17[%c0_65, %c0_66, %c0_67] : memref<2x8x128xf32, #tpu.memory_space<vmem>>, vector<1x8x128xf32>
      %127 = vector.shape_cast %126 : vector<1x8x128xf32> to vector<8x128xf32>
      %128 = vector.shape_cast %81 : vector<8x128xf32> to vector<1x8x128xf32>
      tpu.vector_store %arg17[%c0_65, %c0_66, %c0_67], %128 {strides = array<i32>} : memref<2x8x128xf32, #tpu.memory_space<vmem>>, vector<1x8x128xf32>,
      %c1_68 = arith.constant 1 : index
      %c0_69 = arith.constant 0 : index
      %c0_70 = arith.constant 0 : index
      %129 = vector.load %arg16[%c1_68, %c0_69, %c0_70] : memref<2x8x128xf32, #tpu.memory_space<vmem>>, vector<1x8x128xf32>
      %130 = vector.shape_cast %129 : vector<1x8x128xf32> to vector<8x128xf32>
      %131 = vector.shape_cast %122 : vector<8x128xf32> to vector<1x8x128xf32>
      tpu.vector_store %arg16[%c1_68, %c0_69, %c0_70], %131 {strides = array<i32>} : memref<2x8x128xf32, #tpu.memory_space<vmem>>, vector<1x8x128xf32>,
      %c1_71 = arith.constant 1 : index
      %c0_72 = arith.constant 0 : index
      %c0_73 = arith.constant 0 : index
      %132 = vector.load %arg17[%c1_71, %c0_72, %c0_73] : memref<2x8x128xf32, #tpu.memory_space<vmem>>, vector<1x8x128xf32>
      %133 = vector.shape_cast %132 : vector<1x8x128xf32> to vector<8x128xf32>
      %134 = vector.shape_cast %120 : vector<8x128xf32> to vector<1x8x128xf32>
      tpu.vector_store %arg17[%c1_71, %c0_72, %c0_73], %134 {strides = array<i32>} : memref<2x8x128xf32, #tpu.memory_space<vmem>>, vector<1x8x128xf32>,
      %c0_74 = arith.constant 0 : index
      %c0_75 = arith.constant 0 : index
      %135 = vector.load %arg19[%c0_74, %c0_75] : memref<8x128xf32, #tpu.memory_space<vmem>>, vector<8x128xf32>
      %cst_76 = arith.constant 0.000000e+00 : f32
      %136 = vector.broadcast %cst_76 : f32 to vector<8x128x256xf32>
      %c1_i32_77 = arith.constant 1 : i32
      %137 = tpu.dynamic_rotate %135 by %c1_i32_77 dim 1 : vector<8x128xf32>, i32 -> vector<8x128xf32>
      %cst_78 = arith.constant 0.000000e+00 : f32
      %138 = vector.broadcast %cst_78 : f32 to vector<8x128xf32>
      %139 = arith.select %17, %137, %138 : vector<8x128xi1>, vector<8x128xf32>
      %140 = vector.shape_cast %139 : vector<8x128xf32> to vector<8x128x1xf32>
      %c0_79 = arith.constant 0 : index
      %c0_80 = arith.constant 0 : index
      %141 = vector.load %arg11[%c0_79, %c0_80] : memref<3x256xf32, #tpu.memory_space<vmem>>, vector<1x256xf32>
      %142 = vector.shape_cast %141 : vector<1x256xf32> to vector<1x1x256xf32>
      %143 = vector.broadcast %140 : vector<8x128x1xf32> to vector<8x128x256xf32>
      %144 = vector.broadcast %142 : vector<1x1x256xf32> to vector<8x128x256xf32>
      %145 = arith.mulf %143, %144 : vector<8x128x256xf32>
      %146 = arith.addf %136, %145 : vector<8x128x256xf32>
      %cst_81 = arith.constant 0.000000e+00 : f32
      %147 = vector.broadcast %cst_81 : f32 to vector<8x128xf32>
      %148 = arith.select %26, %135, %147 : vector<8x128xi1>, vector<8x128xf32>
      %149 = vector.shape_cast %148 : vector<8x128xf32> to vector<8x128x1xf32>
      %c1_82 = arith.constant 1 : index
      %c0_83 = arith.constant 0 : index
      %150 = vector.load %arg11[%c1_82, %c0_83] : memref<3x256xf32, #tpu.memory_space<vmem>>, vector<1x256xf32>
      %151 = vector.shape_cast %150 : vector<1x256xf32> to vector<1x1x256xf32>
      %152 = vector.broadcast %149 : vector<8x128x1xf32> to vector<8x128x256xf32>
      %153 = vector.broadcast %151 : vector<1x1x256xf32> to vector<8x128x256xf32>
      %154 = arith.mulf %152, %153 : vector<8x128x256xf32>
      %155 = arith.addf %146, %154 : vector<8x128x256xf32>
      %c127_i32 = arith.constant 127 : i32
      %156 = tpu.dynamic_rotate %135 by %c127_i32 dim 1 : vector<8x128xf32>, i32 -> vector<8x128xf32>
      %cst_84 = arith.constant 0.000000e+00 : f32
      %157 = vector.broadcast %cst_84 : f32 to vector<8x128xf32>
      %158 = arith.select %35, %156, %157 : vector<8x128xi1>, vector<8x128xf32>
      %159 = vector.shape_cast %158 : vector<8x128xf32> to vector<8x128x1xf32>
      %c2 = arith.constant 2 : index
      %c0_85 = arith.constant 0 : index
      %160 = vector.load %arg11[%c2, %c0_85] : memref<3x256xf32, #tpu.memory_space<vmem>>, vector<1x256xf32>
      %161 = vector.shape_cast %160 : vector<1x256xf32> to vector<1x1x256xf32>
      %162 = vector.broadcast %159 : vector<8x128x1xf32> to vector<8x128x256xf32>
      %163 = vector.broadcast %161 : vector<1x1x256xf32> to vector<8x128x256xf32>
      %164 = arith.mulf %162, %163 : vector<8x128x256xf32>
      %165 = arith.addf %155, %164 : vector<8x128x256xf32>
      %166 = arith.truncf %122 : vector<8x128xf32> to vector<8x128xbf16>
      %c0_86 = arith.constant 0 : index
      %c0_87 = arith.constant 0 : index
      %167 = vector.load %arg12[%c0_86, %c0_87] : memref<128x256xbf16, #tpu.memory_space<vmem>>, vector<128x256xbf16>
      %cst_88 = arith.constant dense<0.000000e+00> : vector<8x256xf32>
      %168 = tpu.matmul %166, %167, %cst_88 {dimension_numbers = #tpu.dot_dimension_numbers<[1], [0], [0], [1], [0, 0, 1, 1], [], []>} : vector<8x128xbf16>, vector<128x256xbf16>, vector<8x256xf32> -> vector<8x256xf32>
      %c0_89 = arith.constant 0 : index
      %c0_90 = arith.constant 0 : index
      %169 = vector.load %arg13[%c0_89, %c0_90] : memref<1x256xf32, #tpu.memory_space<vmem>>, vector<1x256xf32>
      %170 = vector.broadcast %169 : vector<1x256xf32> to vector<8x256xf32>
      %171 = arith.addf %168, %170 : vector<8x256xf32>
      %172 = vector.shape_cast %171 : vector<8x256xf32> to vector<8x1x256xf32>
      %c0_91 = arith.constant 0 : index
      %c0_92 = arith.constant 0 : index
      %c0_93 = arith.constant 0 : index
      %173 = vector.load %arg3[%c0_91, %c0_92, %c0_93] : memref<8x128x256xbf16, #tpu.memory_space<vmem>>, vector<8x128x256xbf16>
      %174 = arith.extf %173 : vector<8x128x256xbf16> to vector<8x128x256xf32>
      %175 = vector.broadcast %172 : vector<8x1x256xf32> to vector<8x128x256xf32>
      %176 = arith.addf %175, %174 : vector<8x128x256xf32>
      %177 = arith.addf %176, %165 : vector<8x128x256xf32>
      %178 = math.tanh %177 : vector<8x128x256xf32>
      %c0_94 = arith.constant 0 : index
      %c0_95 = arith.constant 0 : index
      %179 = vector.load %arg14[%c0_94, %c0_95] : memref<1x256xf32, #tpu.memory_space<vmem>>, vector<1x256xf32>
      %180 = vector.shape_cast %179 : vector<1x256xf32> to vector<1x1x256xf32>
      %181 = vector.shape_cast %180 : vector<1x1x256xf32> to vector<1x1x256xf32>
      %182 = vector.broadcast %181 : vector<1x1x256xf32> to vector<8x1x256xf32>
      "tpu.trace_start"() <{level = 10 : i32, message = "bqa,bsa->bqs"}> : () -> ()
      %cst_96 = arith.constant dense<0.000000e+00> : vector<8x1x128xf32>
      %183 = tpu.matmul %182, %178, %cst_96 {dimension_numbers = #tpu.dot_dimension_numbers<[2], [2], [1], [1], [0, 0, 0, 1, 1, 1], [0], [0]>} : vector<8x1x256xf32>, vector<8x128x256xf32>, vector<8x1x128xf32> -> vector<8x1x128xf32>
      "tpu.trace_stop"() : () -> ()
      %184 = vector.shape_cast %183 : vector<8x1x128xf32> to vector<8x128xf32>
      %c0_97 = arith.constant 0 : index
      %c0_98 = arith.constant 0 : index
      %185 = vector.load %arg4[%c0_97, %c0_98] : memref<8x128xf32, #tpu.memory_space<vmem>>, vector<8x128xf32>
      %186 = arith.addf %184, %185 : vector<8x128xf32>
      %cst_99 = arith.constant dense<0xFF800000> : vector<8xf32>
      %187 = vector.multi_reduction <maximumf>, %186, %cst_99 [1] : vector<8x128xf32> to vector<8xf32>
      %188 = vector.shape_cast %187 : vector<8xf32> to vector<8x1xf32>
      %189 = vector.broadcast %188 : vector<8x1xf32> to vector<8x128xf32>
      %190 = arith.subf %186, %189 : vector<8x128xf32>
      %191 = math.exp %190 : vector<8x128xf32>
      %cst_100 = arith.constant dense<0.000000e+00> : vector<8xf32>
      %192 = vector.multi_reduction <add>, %191, %cst_100 [1] : vector<8x128xf32> to vector<8xf32>
      %193 = vector.shape_cast %192 : vector<8xf32> to vector<8x1xf32>
      %194 = vector.broadcast %193 : vector<8x1xf32> to vector<8x128xf32>
      %195 = arith.divf %191, %194 : vector<8x128xf32>
      %196 = vector.shape_cast %195 : vector<8x128xf32> to vector<8x1x128xf32>
      %197 = arith.truncf %196 : vector<8x1x128xf32> to vector<8x1x128xbf16>
      %c0_101 = arith.constant 0 : index
      %c0_102 = arith.constant 0 : index
      %c0_103 = arith.constant 0 : index
      %198 = vector.load %arg2[%c0_101, %c0_102, %c0_103] : memref<8x128x128xbf16, #tpu.memory_space<vmem>>, vector<8x128x128xbf16>
      "tpu.trace_start"() <{level = 10 : i32, message = "bqs,bsd->bqd"}> : () -> ()
      %cst_104 = arith.constant dense<0.000000e+00> : vector<8x1x128xf32>
      %199 = tpu.matmul %197, %198, %cst_104 {dimension_numbers = #tpu.dot_dimension_numbers<[2], [1], [1], [2], [0, 0, 0, 1, 1, 2], [0], [0]>} : vector<8x1x128xbf16>, vector<8x128x128xbf16>, vector<8x1x128xf32> -> vector<8x1x128xf32>
      "tpu.trace_stop"() : () -> ()
      %200 = vector.shape_cast %199 : vector<8x1x128xf32> to vector<8x128xf32>
      %c0_105 = arith.constant 0 : index
      %c0_106 = arith.constant 0 : index
      %201 = vector.load %arg19[%c0_105, %c0_106] : memref<8x128xf32, #tpu.memory_space<vmem>>, vector<8x128xf32>
      tpu.vector_store %arg19[%c0_105, %c0_106], %195 {strides = array<i32>} : memref<8x128xf32, #tpu.memory_space<vmem>>, vector<8x128xf32>,
      %c0_107 = arith.constant 0 : index
      %c0_108 = arith.constant 0 : index
      %202 = vector.load %arg18[%c0_107, %c0_108] : memref<8x128xf32, #tpu.memory_space<vmem>>, vector<8x128xf32>
      tpu.vector_store %arg18[%c0_107, %c0_108], %200 {strides = array<i32>} : memref<8x128xf32, #tpu.memory_space<vmem>>, vector<8x128xf32>,
      %203 = arith.addf %200, %122 : vector<8x128xf32>
      %204 = arith.index_cast %38 : i32 to index
      %c0_109 = arith.constant 0 : index
      %c0_110 = arith.constant 0 : index
      %205 = vector.load %arg15[%204, %c0_109, %c0_110] : memref<8x8x128xf32, #tpu.memory_space<vmem>>, vector<1x8x128xf32>
      %206 = vector.shape_cast %205 : vector<1x8x128xf32> to vector<8x128xf32>
      %207 = vector.shape_cast %203 : vector<8x128xf32> to vector<1x8x128xf32>
      tpu.vector_store %arg15[%204, %c0_109, %c0_110], %207 {strides = array<i32>} : memref<8x8x128xf32, #tpu.memory_space<vmem>>, vector<1x8x128xf32>,
    }
    %c8_i32_22 = arith.constant 8 : i32
    return
  }
  func.func @transform_0(%arg0: i32) -> (i32, i32, i32) {
    %c0_i32 = arith.constant 0 : i32
    %c0_i32_0 = arith.constant 0 : i32
    %c0_i32_1 = arith.constant 0 : i32
    %c0_i32_2 = arith.constant 0 : i32
    return %c0_i32, %c0_i32_0, %c0_i32_1 : i32, i32, i32
  }
  func.func @transform_1(%arg0: i32) -> (i32, i32, i32) {
    %c0_i32 = arith.constant 0 : i32
    %c0_i32_0 = arith.constant 0 : i32
    %c0_i32_1 = arith.constant 0 : i32
    %c0_i32_2 = arith.constant 0 : i32
    return %c0_i32, %c0_i32_0, %c0_i32_1 : i32, i32, i32
  }
  func.func @transform_2(%arg0: i32) -> (i32, i32, i32) {
    %c0_i32 = arith.constant 0 : i32
    %c0_i32_0 = arith.constant 0 : i32
    %c0_i32_1 = arith.constant 0 : i32
    %c0_i32_2 = arith.constant 0 : i32
    return %c0_i32, %c0_i32_0, %c0_i32_1 : i32, i32, i32
  }
  func.func @transform_3(%arg0: i32) -> (i32, i32) {
    %c0_i32 = arith.constant 0 : i32
    %c0_i32_0 = arith.constant 0 : i32
    %c0_i32_1 = arith.constant 0 : i32
    return %c0_i32, %c0_i32_0 : i32, i32
  }
  func.func @transform_4(%arg0: i32) -> (i32, i32) {
    %c0_i32 = arith.constant 0 : i32
    %c0_i32_0 = arith.constant 0 : i32
    %c0_i32_1 = arith.constant 0 : i32
    return %c0_i32, %c0_i32_0 : i32, i32
  }
  func.func @transform_5(%arg0: i32) -> (i32, i32) {
    %c0_i32 = arith.constant 0 : i32
    %c0_i32_0 = arith.constant 0 : i32
    %c0_i32_1 = arith.constant 0 : i32
    return %c0_i32, %c0_i32_0 : i32, i32
  }
  func.func @transform_6(%arg0: i32) -> (i32, i32) {
    %c0_i32 = arith.constant 0 : i32
    %c0_i32_0 = arith.constant 0 : i32
    %c0_i32_1 = arith.constant 0 : i32
    return %c0_i32, %c0_i32_0 : i32, i32
  }
  func.func @transform_7(%arg0: i32) -> (i32, i32) {
    %c0_i32 = arith.constant 0 : i32
    %c0_i32_0 = arith.constant 0 : i32
    %c0_i32_1 = arith.constant 0 : i32
    return %c0_i32, %c0_i32_0 : i32, i32
  }
  func.func @transform_8(%arg0: i32) -> (i32, i32) {
    %c0_i32 = arith.constant 0 : i32
    %c0_i32_0 = arith.constant 0 : i32
    %c0_i32_1 = arith.constant 0 : i32
    return %c0_i32, %c0_i32_0 : i32, i32
  }
  func.func @transform_9(%arg0: i32) -> (i32, i32) {
    %c0_i32 = arith.constant 0 : i32
    %c0_i32_0 = arith.constant 0 : i32
    %c0_i32_1 = arith.constant 0 : i32
    return %c0_i32, %c0_i32_0 : i32, i32
  }
  func.func @transform_10(%arg0: i32) -> (i32, i32) {
    %c0_i32 = arith.constant 0 : i32
    %c0_i32_0 = arith.constant 0 : i32
    %c0_i32_1 = arith.constant 0 : i32
    return %c0_i32, %c0_i32_0 : i32, i32
  }
  func.func @transform_11(%arg0: i32) -> (i32, i32) {
    %c0_i32 = arith.constant 0 : i32
    %c0_i32_0 = arith.constant 0 : i32
    %c0_i32_1 = arith.constant 0 : i32
    return %c0_i32, %c0_i32_0 : i32, i32
  }
  func.func @transform_12(%arg0: i32) -> (i32, i32) {
    %c0_i32 = arith.constant 0 : i32
    %c0_i32_0 = arith.constant 0 : i32
    %c0_i32_1 = arith.constant 0 : i32
    return %c0_i32, %c0_i32_0 : i32, i32
  }
  func.func @transform_13(%arg0: i32) -> (i32, i32) {
    %c0_i32 = arith.constant 0 : i32
    %c0_i32_0 = arith.constant 0 : i32
    %c0_i32_1 = arith.constant 0 : i32
    return %c0_i32, %c0_i32_0 : i32, i32
  }
  func.func @transform_14(%arg0: i32) -> (i32, i32, i32) {
    %c0_i32 = arith.constant 0 : i32
    %c0_i32_0 = arith.constant 0 : i32
    %c0_i32_1 = arith.constant 0 : i32
    %c0_i32_2 = arith.constant 0 : i32
    return %c0_i32, %c0_i32_0, %c0_i32_1 : i32, i32, i32
  }
}

</mosaic_0001>

<llo_original>
// kernel: seq2seq_forward.3
$region0: #{seq2seq_forward.3}
  #allocation0 [shape = 'u32[]', space=smem, size = 0x4, offset = 0x4, fixed_abs, tag = 'smem constant byte address 0x4 - core index']
  #allocation1 [shape = 'u32[144,128]{1,0:T(1,128)}', space=vmem, size = 0x12000, scoped, tag = 'internal scratch']
  %s0 = inlined_call_operand.vmem [shape: f32[64,128], index: 0, kind: input, shape index: {}]
  %s1 = inlined_call_operand.vmem [shape: bf16[128,1024], index: 1, kind: input, shape index: {}]
  %s2 = inlined_call_operand.vmem [shape: f32[64,1024], index: 2, kind: output, shape index: {}]
  %s3 = sld [smem:[#allocation0]]
  $region83: #{seq2seq_forward.3} parent=0
    _
  %s5 = ssub.s32 1, %s3
  %s6 = scalar_select 0, %s5, %s3
  $region1: #{seq2seq_forward.3} parent=0
    #allocation2 [shape = 'u8[262144]{0}', space=vmem, size = 0x40000, scoped, tag = 'input window, operand 1']
    #allocation3 [shape = 'u8[262144]{0}', space=vmem, size = 0x40000, scoped, tag = 'output window, operand 0']
    loop: start=0, step=1, limit=4
    $region2: #{seq2seq_forward.3} parent=1 // loop_pre_header
      _
    $region3: #{seq2seq_forward.3} parent=1 // loop_header
      %s8 = sphi 0, %s12
      %p9 = scmp.ge.s32.totalorder %s8, 4
      %s16 = sphi 0, %s16
      %s18 = sphi 0, %s16
      %s19 = sphi 0, %s18
      %s33 = sphi 0, %s19
      %s39 = sphi 0, %s41
      %s42 = sphi 0, %s39
      %s43 = sphi 0, %s42
      %s59 = sphi 0, %s43
      %s65 = sphi 0, %s67
      %s68 = sphi 0, %s65
      %s69 = sphi 0, %s68
      %s85 = sphi 0, %s69
    $region4: #{seq2seq_forward.3} parent=1 // loop_header_branch
      %11 = sbr.rel (%p9) target = $region8
    $region5: #{seq2seq_forward.3} parent=1 // loop_body
      %s13 = ssub.s32 %s8, 1
      %s14 = ssub.s32 %s8, 2
      %s15 = sadd.s32 %s8, 1
      %s17 = sadd.s32 %s16, 1
      %p20 = scmp.eq.s32.totalorder %s8, 1
      %p21 = scmp.ne.s32.totalorder %s16, %s18
      %p22 = scmp.eq.s32.totalorder %s8, 0
      %p23 = por %p21, %p22
      %p24 = scmp.ne.s32.totalorder %s16, %s18
      %p25 = scmp.eq.s32.totalorder %s13, 1
      %p26 = por %p24, %p25
      %p27 = scmp.ne.s32.totalorder %s18, %s19
      %p28 = scmp.eq.s32.totalorder %s13, 0
      %p29 = por %p27, %p28
      %p30 = scmp.ne.s32.totalorder %s18, %s19
      %p31 = scmp.eq.s32.totalorder %s14, 1
      %p32 = por %p30, %p31
      %p34 = scmp.ne.s32.totalorder %s19, %s33
      %p35 = scmp.eq.s32.totalorder %s14, 0
      %p36 = por %p34, %p35
      %s37 = ssub.s32 %s8, %s15
      %p38 = scmp.eq.s32.totalorder %s37, 0
      %s40 = sadd.s32 %s39, 1
      %s41 = scalar_select %p38, %s39, %s40
      %p44 = pneg %p38
      %p45 = scmp.eq.s32.totalorder %s8, 1
      %p46 = por %p44, %p45
      %p47 = scmp.ne.s32.totalorder %s39, %s42
      %p48 = scmp.eq.s32.totalorder %s8, 0
      %p49 = por %p47, %p48
      %p50 = scmp.ne.s32.totalorder %s39, %s42
      %p51 = scmp.eq.s32.totalorder %s13, 1
      %p52 = por %p50, %p51
      %p53 = scmp.ne.s32.totalorder %s42, %s43
      %p54 = scmp.eq.s32.totalorder %s13, 0
      %p55 = por %p53, %p54
      %p56 = scmp.ne.s32.totalorder %s42, %s43
      %p57 = scmp.eq.s32.totalorder %s14, 1
      %p58 = por %p56, %p57
      %p60 = scmp.ne.s32.totalorder %s43, %s59
      %p61 = scmp.eq.s32.totalorder %s14, 0
      %p62 = por %p60, %p61
      %s63 = ssub.s32 %s8, %s15
      %p64 = scmp.eq.s32.totalorder %s63, 0
      %s66 = sadd.s32 %s65, 1
      %s67 = scalar_select %p64, %s65, %s66
      %p70 = pneg %p64
      %p71 = scmp.eq.s32.totalorder %s8, 1
      %p72 = por %p70, %p71
      %p73 = scmp.ne.s32.totalorder %s65, %s68
      %p74 = scmp.eq.s32.totalorder %s8, 0
      %p75 = por %p73, %p74
      %p76 = scmp.ne.s32.totalorder %s65, %s68
      %p77 = scmp.eq.s32.totalorder %s13, 1
      %p78 = por %p76, %p77
      %p79 = scmp.ne.s32.totalorder %s68, %s69
      %p80 = scmp.eq.s32.totalorder %s13, 0
      %p81 = por %p79, %p80
      %p82 = scmp.ne.s32.totalorder %s68, %s69
      %p83 = scmp.eq.s32.totalorder %s14, 1
      %p84 = por %p82, %p83
      %p86 = scmp.ne.s32.totalorder %s69, %s85
      %p87 = scmp.eq.s32.totalorder %s14, 0
      %p88 = por %p86, %p87
      %p89 = scmp.le.s32.totalorder 1, %s8
      %p90 = scmp.lt.s32.totalorder %s8, 3
      %p91 = pnand %p89, %p90
      %p92 = pneg %p91
      // Predicated region
      $region9: #{seq2seq_forward.3} parent=5 // pred_check
        _
      $region10: #{seq2seq_forward.3} parent=5 // pred_check_branch
        %94 = sbr.rel (%p91) target = $region12
      $region11: #{seq2seq_forward.3} parent=5 // pred_region
        %s95 = ssub.s32 %s8, 1
        // Predicated region
        $region13: #{seq2seq_forward.3} parent=11 // pred_check
          %p96 = pneg %p29
        $region14: #{seq2seq_forward.3} parent=11 // pred_check_branch
          %98 = sbr.rel (%p96) target = $region16
        $region15: #{seq2seq_forward.3} parent=11 // pred_region
          _
        $region16: #{seq2seq_forward.3} parent=11 // pred_fallthru
          _
      $region12: #{seq2seq_forward.3} parent=5 // pred_fallthru
        _
      %p99 = scmp.lt.s32.totalorder %s8, 2
      // Predicated region
      $region17: #{seq2seq_forward.3} parent=5 // pred_check
        %p100 = pneg %p99
      $region18: #{seq2seq_forward.3} parent=5 // pred_check_branch
        %102 = sbr.rel (%p100) target = $region20
      $region19: #{seq2seq_forward.3} parent=5 // pred_region
        // Predicated region
        $region21: #{seq2seq_forward.3} parent=19 // pred_check
          %p103 = pneg %p49
        $region22: #{seq2seq_forward.3} parent=19 // pred_check_branch
          %105 = sbr.rel (%p103) target = $region24
        $region23: #{seq2seq_forward.3} parent=19 // pred_region
          %s106 = sand.u32 %s39, 1
          %s107 = sand.u32 %s39, 1
          %s108 = smul.addr %s107, 256
          %s109 = scalar_lea.vmem [#allocation2], %s108
          %s110 = smul.u32 4, %s8
          %s111 = smul.addr %s110, 4
          %s112 = scalar_lea.vmem %s1, %s111
          // Predicated region
          $region25: #{seq2seq_forward.3} parent=23 // pred_check
            _
          $region26: #{seq2seq_forward.3} parent=23 // pred_check_branch
            %114 = sbr.rel (0) target = $region28
          $region27: #{seq2seq_forward.3} parent=23 // pred_region
            // Predicated region
            $region29: #{seq2seq_forward.3} parent=27 // pred_check
              _
            $region30: #{seq2seq_forward.3} parent=27 // pred_check_branch
              %116 = sbr.rel (0) target = $region32
            $region31: #{seq2seq_forward.3} parent=27 // pred_region
              loop: start=0, step=1, limit=1
              $region33: #{seq2seq_forward.3} parent=31 // loop_pre_header
                _
              $region34: #{seq2seq_forward.3} parent=31 // loop_header
                %s118 = sphi 0, %s122
                %p119 = scmp.ge.s32.totalorder %s118, 1
                %s123 = sphi %s112, %s112
                %s124 = sphi %s109, %s109
              $region35: #{seq2seq_forward.3} parent=31 // loop_header_branch
                %121 = sbr.rel (%p119) target = $region39
              $region36: #{seq2seq_forward.3} parent=31 // loop_body
                %v125 = vld [vmem:[%s123] sm:$0xff]
                %126 = vst [vmem:[%s124] sm:$0xff] %v125
                %v127 = vld [vmem:[%s123 + $0x8] sm:$0xff]
                %128 = vst [vmem:[%s124 + $0x8] sm:$0xff] %v127
                %v129 = vld [vmem:[%s123 + $0x20] sm:$0xff]
                %130 = vst [vmem:[%s124 + $0x10] sm:$0xff] %v129
                %v131 = vld [vmem:[%s123 + $0x28] sm:$0xff]
                %132 = vst [vmem:[%s124 + $0x18] sm:$0xff] %v131
                %v133 = vld [vmem:[%s123 + $0x40] sm:$0xff]
                %134 = vst [vmem:[%s124 + $0x20] sm:$0xff] %v133
                %v135 = vld [vmem:[%s123 + $0x48] sm:$0xff]
                %136 = vst [vmem:[%s124 + $0x28] sm:$0xff] %v135
                %v137 = vld [vmem:[%s123 + $0x60] sm:$0xff]
                %138 = vst [vmem:[%s124 + $0x30] sm:$0xff] %v137
                %v139 = vld [vmem:[%s123 + $0x68] sm:$0xff]
                %140 = vst [vmem:[%s124 + $0x38] sm:$0xff] %v139
                %v141 = vld [vmem:[%s123 + $0x80] sm:$0xff]
                %142 = vst [vmem:[%s124 + $0x40] sm:$0xff] %v141
                %v143 = vld [vmem:[%s123 + $0x88] sm:$0xff]
                %144 = vst [vmem:[%s124 + $0x48] sm:$0xff] %v143
                %v145 = vld [vmem:[%s123 + $0xa0] sm:$0xff]
                %146 = vst [vmem:[%s124 + $0x50] sm:$0xff] %v145
                %v147 = vld [vmem:[%s123 + $0xa8] sm:$0xff]
                %148 = vst [vmem:[%s124 + $0x58] sm:$0xff] %v147
                %v149 = vld [vmem:[%s123 + $0xc0] sm:$0xff]
                %150 = vst [vmem:[%s124 + $0x60] sm:$0xff] %v149
                %v151 = vld [vmem:[%s123 + $0xc8] sm:$0xff]
                %152 = vst [vmem:[%s124 + $0x68] sm:$0xff] %v151
                %v153 = vld [vmem:[%s123 + $0xe0] sm:$0xff]
                %154 = vst [vmem:[%s124 + $0x70] sm:$0xff] %v153
                %v155 = vld [vmem:[%s123 + $0xe8] sm:$0xff]
                %156 = vst [vmem:[%s124 + $0x78] sm:$0xff] %v155
                %v157 = vld [vmem:[%s123 + $0x100] sm:$0xff]
                %158 = vst [vmem:[%s124 + $0x80] sm:$0xff] %v157
                %v159 = vld [vmem:[%s123 + $0x108] sm:$0xff]
                %160 = vst [vmem:[%s124 + $0x88] sm:$0xff] %v159
                %v161 = vld [vmem:[%s123 + $0x120] sm:$0xff]
                %162 = vst [vmem:[%s124 + $0x90] sm:$0xff] %v161
                %v163 = vld [vmem:[%s123 + $0x128] sm:$0xff]
                %164 = vst [vmem:[%s124 + $0x98] sm:$0xff] %v163
                %v165 = vld [vmem:[%s123 + $0x140] sm:$0xff]
                %166 = vst [vmem:[%s124 + $0xa0] sm:$0xff] %v165
                %v167 = vld [vmem:[%s123 + $0x148] sm:$0xff]
                %168 = vst [vmem:[%s124 + $0xa8] sm:$0xff] %v167
                %v169 = vld [vmem:[%s123 + $0x160] sm:$0xff]
                %170 = vst [vmem:[%s124 + $0xb0] sm:$0xff] %v169
                %v171 = vld [vmem:[%s123 + $0x168] sm:$0xff]
                %172 = vst [vmem:[%s124 + $0xb8] sm:$0xff] %v171
                %v173 = vld [vmem:[%s123 + $0x180] sm:$0xff]
                %174 = vst [vmem:[%s124 + $0xc0] sm:$0xff] %v173
                %v175 = vld [vmem:[%s123 + $0x188] sm:$0xff]
                %176 = vst [vmem:[%s124 + $0xc8] sm:$0xff] %v175
                %v177 = vld [vmem:[%s123 + $0x1a0] sm:$0xff]
                %178 = vst [vmem:[%s124 + $0xd0] sm:$0xff] %v177
                %v179 = vld [vmem:[%s123 + $0x1a8] sm:$0xff]
                %180 = vst [vmem:[%s124 + $0xd8] sm:$0xff] %v179
                %v181 = vld [vmem:[%s123 + $0x1c0] sm:$0xff]
                %182 = vst [vmem:[%s124 + $0xe0] sm:$0xff] %v181
                %v183 = vld [vmem:[%s123 + $0x1c8] sm:$0xff]
                %184 = vst [vmem:[%s124 + $0xe8] sm:$0xff] %v183
                %v185 = vld [vmem:[%s123 + $0x1e0] sm:$0xff]
                %186 = vst [vmem:[%s124 + $0xf0] sm:$0xff] %v185
                %v187 = vld [vmem:[%s123 + $0x1e8] sm:$0xff]
                %188 = vst [vmem:[%s124 + $0xf8] sm:$0xff] %v187
              $region37: #{seq2seq_forward.3} parent=31 // loop_footer
                %s122 = sadd.s32 1, %s118
              $region38: #{seq2seq_forward.3} parent=31 // loop_footer_branch
                %117 = sbr.rel target = $region34
              $region39: #{seq2seq_forward.3} parent=31 // loop_exit
                _
            $region32: #{seq2seq_forward.3} parent=27 // pred_fallthru
              _
            // Predicated region
            $region40: #{seq2seq_forward.3} parent=27 // pred_check
              _
            $region41: #{seq2seq_forward.3} parent=27 // pred_check_branch
              %190 = sbr.rel target = $region43
            $region42: #{seq2seq_forward.3} parent=27 // pred_region
              _
            $region43: #{seq2seq_forward.3} parent=27 // pred_fallthru
              _
          $region28: #{seq2seq_forward.3} parent=23 // pred_fallthru
            _
          %191 = vnop
        $region24: #{seq2seq_forward.3} parent=19 // pred_fallthru
          _
      $region20: #{seq2seq_forward.3} parent=5 // pred_fallthru
        _
      %p192 = scmp.le.s32.totalorder 1, %s8
      %p193 = scmp.lt.s32.totalorder %s8, 3
      %p194 = pnand %p192, %p193
      %p195 = pneg %p194
      // Predicated region
      $region44: #{seq2seq_forward.3} parent=5 // pred_check
        _
      $region45: #{seq2seq_forward.3} parent=5 // pred_check_branch
        %197 = sbr.rel (%p194) target = $region47
      $region46: #{seq2seq_forward.3} parent=5 // pred_region
        %s198 = ssub.s32 %s8, 1
        %s199 = sand.u32 %s42, 1
        %s200 = sand.u32 %s42, 1
        %s201 = smul.addr %s200, 256
        %s202 = scalar_lea.vmem [#allocation2], %s201
        // Predicated region
        $region48: #{seq2seq_forward.3} parent=46 // pred_check
          %p203 = pneg %p55
        $region49: #{seq2seq_forward.3} parent=46 // pred_check_branch
          %205 = sbr.rel (%p203) target = $region51
        $region50: #{seq2seq_forward.3} parent=46 // pred_region
          _
        $region51: #{seq2seq_forward.3} parent=46 // pred_fallthru
          _
        %p206 = pneg %p29
        %p207 = pneg %p26
        %s208 = sand.u32 %s42, 1
        %s209 = sand.u32 %s42, 1
        %s210 = smul.addr %s209, 256
        %s211 = scalar_lea.vmem [#allocation2], %s210
        %p212 = pneg %p55
        %p213 = pneg %p52
        %p214 = pneg %p81
        %p215 = pneg %p78
        %s216 = sand.u32 %s68, 1
        %s217 = sand.u32 %s68, 1
        %s218 = smul.addr %s217, 256
        %s219 = scalar_lea.vmem [#allocation3], %s218
        %s220 = smul.u32 4, %s13
        %s221 = smul.u32 4, %s13
        %v223 = vld [vmem:[%s0] sm:$0xff]
        %v224 = vld [vmem:[%s0 + $0x8] sm:$0xff]
        %v225 = vld [vmem:[%s0 + $0x10] sm:$0xff]
        %v226 = vld [vmem:[%s0 + $0x18] sm:$0xff]
        %v227 = vld [vmem:[%s0 + $0x20] sm:$0xff]
        %v228 = vld [vmem:[%s0 + $0x28] sm:$0xff]
        %v229 = vld [vmem:[%s0 + $0x30] sm:$0xff]
        %v230 = vld [vmem:[%s0 + $0x38] sm:$0xff]
        %v231 = vpack.c.bf16 %v224, %v223
        %v232 = vpack.c.bf16 %v226, %v225
        %v233 = vpack.c.bf16 %v228, %v227
        %v234 = vpack.c.bf16 %v230, %v229
        %v235 = vld [vmem:[%s202] sm:$0xff]
        %v236 = vld [vmem:[%s202 + $0x8] sm:$0xff]
        %v237 = vld [vmem:[%s202 + $0x10] sm:$0xff]
        %v238 = vld [vmem:[%s202 + $0x18] sm:$0xff]
        %v239 = vld [vmem:[%s202 + $0x20] sm:$0xff]
        %v240 = vld [vmem:[%s202 + $0x28] sm:$0xff]
        %v241 = vld [vmem:[%s202 + $0x30] sm:$0xff]
        %v242 = vld [vmem:[%s202 + $0x38] sm:$0xff]
        %v243 = vld [vmem:[%s202 + $0x40] sm:$0xff]
        %v244 = vld [vmem:[%s202 + $0x48] sm:$0xff]
        %v245 = vld [vmem:[%s202 + $0x50] sm:$0xff]
        %v246 = vld [vmem:[%s202 + $0x58] sm:$0xff]
        %v247 = vld [vmem:[%s202 + $0x60] sm:$0xff]
        %v248 = vld [vmem:[%s202 + $0x68] sm:$0xff]
        %v249 = vld [vmem:[%s202 + $0x70] sm:$0xff]
        %v250 = vld [vmem:[%s202 + $0x78] sm:$0xff]
        %v251 = vld [vmem:[%s202 + $0x80] sm:$0xff]
        %v252 = vld [vmem:[%s202 + $0x88] sm:$0xff]
        %v253 = vld [vmem:[%s202 + $0x90] sm:$0xff]
        %v254 = vld [vmem:[%s202 + $0x98] sm:$0xff]
        %v255 = vld [vmem:[%s202 + $0xa0] sm:$0xff]
        %v256 = vld [vmem:[%s202 + $0xa8] sm:$0xff]
        %v257 = vld [vmem:[%s202 + $0xb0] sm:$0xff]
        %v258 = vld [vmem:[%s202 + $0xb8] sm:$0xff]
        %v259 = vld [vmem:[%s202 + $0xc0] sm:$0xff]
        %v260 = vld [vmem:[%s202 + $0xc8] sm:$0xff]
        %v261 = vld [vmem:[%s202 + $0xd0] sm:$0xff]
        %v262 = vld [vmem:[%s202 + $0xd8] sm:$0xff]
        %v263 = vld [vmem:[%s202 + $0xe0] sm:$0xff]
        %v264 = vld [vmem:[%s202 + $0xe8] sm:$0xff]
        %v265 = vld [vmem:[%s202 + $0xf0] sm:$0xff]
        %v266 = vld [vmem:[%s202 + $0xf8] sm:$0xff]
        %v299 = vunpack.c.l.b16 %v235
        %v300 = vunpack.c.h.b16 %v235
        %v301 = vunpack.c.l.b16 %v236
        %v302 = vunpack.c.h.b16 %v236
        %v303 = vunpack.c.l.b16 %v237
        %v304 = vunpack.c.h.b16 %v237
        %v305 = vunpack.c.l.b16 %v238
        %v306 = vunpack.c.h.b16 %v238
        %v307 = vunpack.c.l.b16 %v239
        %v308 = vunpack.c.h.b16 %v239
        %v309 = vunpack.c.l.b16 %v240
        %v310 = vunpack.c.h.b16 %v240
        %v311 = vunpack.c.l.b16 %v241
        %v312 = vunpack.c.h.b16 %v241
        %v313 = vunpack.c.l.b16 %v242
        %v314 = vunpack.c.h.b16 %v242
        %v315 = vunpack.c.l.b16 %v243
        %v316 = vunpack.c.h.b16 %v243
        %v317 = vunpack.c.l.b16 %v244
        %v318 = vunpack.c.h.b16 %v244
        %v319 = vunpack.c.l.b16 %v245
        %v320 = vunpack.c.h.b16 %v245
        %v321 = vunpack.c.l.b16 %v246
        %v322 = vunpack.c.h.b16 %v246
        %v323 = vunpack.c.l.b16 %v247
        %v324 = vunpack.c.h.b16 %v247
        %v325 = vunpack.c.l.b16 %v248
        %v326 = vunpack.c.h.b16 %v248
        %v327 = vunpack.c.l.b16 %v249
        %v328 = vunpack.c.h.b16 %v249
        %v329 = vunpack.c.l.b16 %v250
        %v330 = vunpack.c.h.b16 %v250
        %v331 = vunpack.c.l.b16 %v251
        %v332 = vunpack.c.h.b16 %v251
        %v333 = vunpack.c.l.b16 %v252
        %v334 = vunpack.c.h.b16 %v252
        %v335 = vunpack.c.l.b16 %v253
        %v336 = vunpack.c.h.b16 %v253
        %v337 = vunpack.c.l.b16 %v254
        %v338 = vunpack.c.h.b16 %v254
        %v339 = vunpack.c.l.b16 %v255
        %v340 = vunpack.c.h.b16 %v255
        %v341 = vunpack.c.l.b16 %v256
        %v342 = vunpack.c.h.b16 %v256
        %v343 = vunpack.c.l.b16 %v257
        %v344 = vunpack.c.h.b16 %v257
        %v345 = vunpack.c.l.b16 %v258
        %v346 = vunpack.c.h.b16 %v258
        %v347 = vunpack.c.l.b16 %v259
        %v348 = vunpack.c.h.b16 %v259
        %v349 = vunpack.c.l.b16 %v260
        %v350 = vunpack.c.h.b16 %v260
        %v351 = vunpack.c.l.b16 %v261
        %v352 = vunpack.c.h.b16 %v261
        %v353 = vunpack.c.l.b16 %v262
        %v354 = vunpack.c.h.b16 %v262
        %v355 = vunpack.c.l.b16 %v263
        %v356 = vunpack.c.h.b16 %v263
        %v357 = vunpack.c.l.b16 %v264
        %v358 = vunpack.c.h.b16 %v264
        %v359 = vunpack.c.l.b16 %v265
        %v360 = vunpack.c.h.b16 %v265
        %v361 = vunpack.c.l.b16 %v266
        %v362 = vunpack.c.h.b16 %v266
        %v363 = vpack.c.b16 %v303, %v299
        %v364 = vpack.c.b16 %v304, %v300
        %v365 = vpack.c.b16 %v305, %v301
        %v366 = vpack.c.b16 %v306, %v302
        %v367 = vpack.c.b16 %v311, %v307
        %v368 = vpack.c.b16 %v312, %v308
        %v369 = vpack.c.b16 %v313, %v309
        %v370 = vpack.c.b16 %v314, %v310
        %v371 = vpack.c.b16 %v319, %v315
        %v372 = vpack.c.b16 %v320, %v316
        %v373 = vpack.c.b16 %v321, %v317
        %v374 = vpack.c.b16 %v322, %v318
        %v375 = vpack.c.b16 %v327, %v323
        %v376 = vpack.c.b16 %v328, %v324
        %v377 = vpack.c.b16 %v329, %v325
        %v378 = vpack.c.b16 %v330, %v326
        %v379 = vpack.c.b16 %v335, %v331
        %v380 = vpack.c.b16 %v336, %v332
        %v381 = vpack.c.b16 %v337, %v333
        %v382 = vpack.c.b16 %v338, %v334
        %v383 = vpack.c.b16 %v343, %v339
        %v384 = vpack.c.b16 %v344, %v340
        %v385 = vpack.c.b16 %v345, %v341
        %v386 = vpack.c.b16 %v346, %v342
        %v387 = vpack.c.b16 %v351, %v347
        %v388 = vpack.c.b16 %v352, %v348
        %v389 = vpack.c.b16 %v353, %v349
        %v390 = vpack.c.b16 %v354, %v350
        %v391 = vpack.c.b16 %v359, %v355
        %v392 = vpack.c.b16 %v360, %v356
        %v393 = vpack.c.b16 %v361, %v357
        %v394 = vpack.c.b16 %v362, %v358
        %427 = vmatprep.subr.bf16.mxu0 %v364
        %428 = vmatpush1.bf16.msra.mxu0 %v363
        %429 = vmatprep.subr.bf16.mxu0 %v368
        %430 = vmatpush1.bf16.msra.mxu0 %v367
        %431 = vmatprep.subr.bf16.mxu0 %v372
        %432 = vmatpush1.bf16.msra.mxu0 %v371
        %433 = vmatprep.subr.bf16.mxu0 %v376
        %434 = vmatpush1.bf16.msra.mxu0 %v375
        %435 = vmatprep.subr.bf16.mxu0 %v380
        %436 = vmatpush1.bf16.msra.mxu0 %v379
        %437 = vmatprep.subr.bf16.mxu0 %v384
        %438 = vmatpush1.bf16.msra.mxu0 %v383
        %439 = vmatprep.subr.bf16.mxu0 %v388
        %440 = vmatpush1.bf16.msra.mxu0 %v387
        %441 = vmatprep.subr.bf16.mxu0 %v392
        %442 = vmatpush1.bf16.msra.mxu0 %v391
        %443 = vmatprep.subr.bf16.mxu0 0
        %444 = vmatpush1.bf16.msra.mxu0 0
        %445 = vmatprep.subr.bf16.mxu0 0
        %446 = vmatpush1.bf16.msra.mxu0 0
        %447 = vmatprep.subr.bf16.mxu0 0
        %448 = vmatpush1.bf16.msra.mxu0 0
        %449 = vmatprep.subr.bf16.mxu0 0
        %450 = vmatpush1.bf16.msra.mxu0 0
        %451 = vmatprep.subr.bf16.mxu0 0
        %452 = vmatpush1.bf16.msra.mxu0 0
        %453 = vmatprep.subr.bf16.mxu0 0
        %454 = vmatpush1.bf16.msra.mxu0 0
        %455 = vmatprep.subr.bf16.mxu0 0
        %456 = vmatpush1.bf16.msra.mxu0 0
        %457 = vmatprep.subr.bf16.mxu0 0
        %458 = vmatpush1.bf16.msra.mxu0 0
        %459 = vmatprep.mubr.bf16.mxu0 0
        %460 = vmatmul.mubr.bf16.gmra.mrb[0].mxu0 %v231
        %v461 = vpop.f32.mrb[0].mxu0
        %v462 = vadd.f32 0.0, %v461
        %v463 = vpop.f32.mrb[0].mxu0
        %v464 = vadd.f32 0.0, %v463
        %v465 = vpop.f32.mrb[0].mxu0
        %v466 = vadd.f32 0.0, %v465
        %v467 = vpop.f32.mrb[0].mxu0
        %v468 = vadd.f32 0.0, %v467
        %469 = vmatprep.mubr.bf16.mxu0 0
        %470 = vmatmul.mubr.bf16.gmra.mrb[0].mxu0 %v232
        %v471 = vpop.f32.mrb[0].mxu0
        %v472 = vadd.f32 0.0, %v471
        %v473 = vpop.f32.mrb[0].mxu0
        %v474 = vadd.f32 0.0, %v473
        %v475 = vpop.f32.mrb[0].mxu0
        %v476 = vadd.f32 0.0, %v475
        %v477 = vpop.f32.mrb[0].mxu0
        %v478 = vadd.f32 0.0, %v477
        %479 = vmatprep.mubr.bf16.mxu0 0
        %480 = vmatmul.mubr.bf16.gmra.mrb[0].mxu0 %v233
        %v481 = vpop.f32.mrb[0].mxu0
        %v482 = vadd.f32 0.0, %v481
        %v483 = vpop.f32.mrb[0].mxu0
        %v484 = vadd.f32 0.0, %v483
        %v485 = vpop.f32.mrb[0].mxu0
        %v486 = vadd.f32 0.0, %v485
        %v487 = vpop.f32.mrb[0].mxu0
        %v488 = vadd.f32 0.0, %v487
        %489 = vmatprep.mubr.bf16.mxu0 0
        %490 = vmatmul.mubr.bf16.gmra.mrb[0].mxu0 %v234
        %v491 = vpop.f32.mrb[0].mxu0
        %v492 = vadd.f32 0.0, %v491
        %v493 = vpop.f32.mrb[0].mxu0
        %v494 = vadd.f32 0.0, %v493
        %v495 = vpop.f32.mrb[0].mxu0
        %v496 = vadd.f32 0.0, %v495
        %v497 = vpop.f32.mrb[0].mxu0
        %v498 = vadd.f32 0.0, %v497
        %499 = vdwg.mxu0
        %500 = vmatprep.subr.bf16.mxu0 %v366
        %501 = vmatpush1.bf16.msra.mxu0 %v365
        %502 = vmatprep.subr.bf16.mxu0 %v370
        %503 = vmatpush1.bf16.msra.mxu0 %v369
        %504 = vmatprep.subr.bf16.mxu0 %v374
        %505 = vmatpush1.bf16.msra.mxu0 %v373
        %506 = vmatprep.subr.bf16.mxu0 %v378
        %507 = vmatpush1.bf16.msra.mxu0 %v377
        %508 = vmatprep.subr.bf16.mxu0 %v382
        %509 = vmatpush1.bf16.msra.mxu0 %v381
        %510 = vmatprep.subr.bf16.mxu0 %v386
        %511 = vmatpush1.bf16.msra.mxu0 %v385
        %512 = vmatprep.subr.bf16.mxu0 %v390
        %513 = vmatpush1.bf16.msra.mxu0 %v389
        %514 = vmatprep.subr.bf16.mxu0 %v394
        %515 = vmatpush1.bf16.msra.mxu0 %v393
        %516 = vmatprep.subr.bf16.mxu0 0
        %517 = vmatpush1.bf16.msra.mxu0 0
        %518 = vmatprep.subr.bf16.mxu0 0
        %519 = vmatpush1.bf16.msra.mxu0 0
        %520 = vmatprep.subr.bf16.mxu0 0
        %521 = vmatpush1.bf16.msra.mxu0 0
        %522 = vmatprep.subr.bf16.mxu0 0
        %523 = vmatpush1.bf16.msra.mxu0 0
        %524 = vmatprep.subr.bf16.mxu0 0
        %525 = vmatpush1.bf16.msra.mxu0 0
        %526 = vmatprep.subr.bf16.mxu0 0
        %527 = vmatpush1.bf16.msra.mxu0 0
        %528 = vmatprep.subr.bf16.mxu0 0
        %529 = vmatpush1.bf16.msra.mxu0 0
        %530 = vmatprep.subr.bf16.mxu0 0
        %531 = vmatpush1.bf16.msra.mxu0 0
        %532 = vmatprep.mubr.bf16.mxu0 0
        %533 = vmatmul.mubr.bf16.gmra.mrb[0].mxu0 %v231
        %v534 = vpop.f32.mrb[0].mxu0
        %v535 = vadd.f32 0.0, %v534
        %v536 = vpop.f32.mrb[0].mxu0
        %v537 = vadd.f32 0.0, %v536
        %v538 = vpop.f32.mrb[0].mxu0
        %v539 = vadd.f32 0.0, %v538
        %v540 = vpop.f32.mrb[0].mxu0
        %v541 = vadd.f32 0.0, %v540
        %542 = vmatprep.mubr.bf16.mxu0 0
        %543 = vmatmul.mubr.bf16.gmra.mrb[0].mxu0 %v232
        %v544 = vpop.f32.mrb[0].mxu0
        %v545 = vadd.f32 0.0, %v544
        %v546 = vpop.f32.mrb[0].mxu0
        %v547 = vadd.f32 0.0, %v546
        %v548 = vpop.f32.mrb[0].mxu0
        %v549 = vadd.f32 0.0, %v548
        %v550 = vpop.f32.mrb[0].mxu0
        %v551 = vadd.f32 0.0, %v550
        %552 = vmatprep.mubr.bf16.mxu0 0
        %553 = vmatmul.mubr.bf16.gmra.mrb[0].mxu0 %v233
        %v554 = vpop.f32.mrb[0].mxu0
        %v555 = vadd.f32 0.0, %v554
        %v556 = vpop.f32.mrb[0].mxu0
        %v557 = vadd.f32 0.0, %v556
        %v558 = vpop.f32.mrb[0].mxu0
        %v559 = vadd.f32 0.0, %v558
        %v560 = vpop.f32.mrb[0].mxu0
        %v561 = vadd.f32 0.0, %v560
        %562 = vmatprep.mubr.bf16.mxu0 0
        %563 = vmatmul.mubr.bf16.gmra.mrb[0].mxu0 %v234
        %v564 = vpop.f32.mrb[0].mxu0
        %v565 = vadd.f32 0.0, %v564
        %v566 = vpop.f32.mrb[0].mxu0
        %v567 = vadd.f32 0.0, %v566
        %v568 = vpop.f32.mrb[0].mxu0
        %v569 = vadd.f32 0.0, %v568
        %v570 = vpop.f32.mrb[0].mxu0
        %v571 = vadd.f32 0.0, %v570
        %572 = vdwg.mxu0
        %573 = vst [vmem:[%s219] sm:$0xff] %v462
        %574 = vst [vmem:[%s219 + $0x8] sm:$0xff] %v464
        %575 = vst [vmem:[%s219 + $0x10] sm:$0xff] %v535
        %576 = vst [vmem:[%s219 + $0x18] sm:$0xff] %v537
        %577 = vst [vmem:[%s219 + $0x20] sm:$0xff] %v466
        %578 = vst [vmem:[%s219 + $0x28] sm:$0xff] %v468
        %579 = vst [vmem:[%s219 + $0x30] sm:$0xff] %v539
        %580 = vst [vmem:[%s219 + $0x38] sm:$0xff] %v541
        %581 = vst [vmem:[%s219 + $0x40] sm:$0xff] %v472
        %582 = vst [vmem:[%s219 + $0x48] sm:$0xff] %v474
        %583 = vst [vmem:[%s219 + $0x50] sm:$0xff] %v545
        %584 = vst [vmem:[%s219 + $0x58] sm:$0xff] %v547
        %585 = vst [vmem:[%s219 + $0x60] sm:$0xff] %v476
        %586 = vst [vmem:[%s219 + $0x68] sm:$0xff] %v478
        %587 = vst [vmem:[%s219 + $0x70] sm:$0xff] %v549
        %588 = vst [vmem:[%s219 + $0x78] sm:$0xff] %v551
        %589 = vst [vmem:[%s219 + $0x80] sm:$0xff] %v482
        %590 = vst [vmem:[%s219 + $0x88] sm:$0xff] %v484
        %591 = vst [vmem:[%s219 + $0x90] sm:$0xff] %v555
        %592 = vst [vmem:[%s219 + $0x98] sm:$0xff] %v557
        %593 = vst [vmem:[%s219 + $0xa0] sm:$0xff] %v486
        %594 = vst [vmem:[%s219 + $0xa8] sm:$0xff] %v488
        %595 = vst [vmem:[%s219 + $0xb0] sm:$0xff] %v559
        %596 = vst [vmem:[%s219 + $0xb8] sm:$0xff] %v561
        %597 = vst [vmem:[%s219 + $0xc0] sm:$0xff] %v492
        %598 = vst [vmem:[%s219 + $0xc8] sm:$0xff] %v494
        %599 = vst [vmem:[%s219 + $0xd0] sm:$0xff] %v565
        %600 = vst [vmem:[%s219 + $0xd8] sm:$0xff] %v567
        %601 = vst [vmem:[%s219 + $0xe0] sm:$0xff] %v496
        %602 = vst [vmem:[%s219 + $0xe8] sm:$0xff] %v498
        %603 = vst [vmem:[%s219 + $0xf0] sm:$0xff] %v569
        %604 = vst [vmem:[%s219 + $0xf8] sm:$0xff] %v571
        %s605 = sand.u32 %s68, 1
        %s606 = sand.u32 %s68, 1
        %s607 = smul.addr %s606, 256
        %s608 = scalar_lea.vmem [#allocation3], %s607
        // Predicated region
        $region52: #{seq2seq_forward.3} parent=46 // pred_check
          %p609 = pneg %p78
        $region53: #{seq2seq_forward.3} parent=46 // pred_check_branch
          %611 = sbr.rel (%p609) target = $region55
        $region54: #{seq2seq_forward.3} parent=46 // pred_region
          %s612 = smul.u32 4, %s13
          %s613 = smul.addr %s612, 8
          %s614 = scalar_lea.vmem %s2, %s613
          // Predicated region
          $region56: #{seq2seq_forward.3} parent=54 // pred_check
            _
          $region57: #{seq2seq_forward.3} parent=54 // pred_check_branch
            %616 = sbr.rel (0) target = $region59
          $region58: #{seq2seq_forward.3} parent=54 // pred_region
            // Predicated region
            $region60: #{seq2seq_forward.3} parent=58 // pred_check
              _
            $region61: #{seq2seq_forward.3} parent=58 // pred_check_branch
              %618 = sbr.rel (0) target = $region63
            $region62: #{seq2seq_forward.3} parent=58 // pred_region
              loop: start=0, step=1, limit=1
              $region64: #{seq2seq_forward.3} parent=62 // loop_pre_header
                _
              $region65: #{seq2seq_forward.3} parent=62 // loop_header
                %s620 = sphi 0, %s624
                %p621 = scmp.ge.s32.totalorder %s620, 1
                %s625 = sphi %s608, %s608
                %s626 = sphi %s614, %s614
              $region66: #{seq2seq_forward.3} parent=62 // loop_header_branch
                %623 = sbr.rel (%p621) target = $region70
              $region67: #{seq2seq_forward.3} parent=62 // loop_body
                %v627 = vld [vmem:[%s625] sm:$0xff]
                %628 = vst [vmem:[%s626] sm:$0xff] %v627
                %v629 = vld [vmem:[%s625 + $0x8] sm:$0xff]
                %630 = vst [vmem:[%s626 + $0x8] sm:$0xff] %v629
                %v631 = vld [vmem:[%s625 + $0x10] sm:$0xff]
                %632 = vst [vmem:[%s626 + $0x10] sm:$0xff] %v631
                %v633 = vld [vmem:[%s625 + $0x18] sm:$0xff]
                %634 = vst [vmem:[%s626 + $0x18] sm:$0xff] %v633
                %v635 = vld [vmem:[%s625 + $0x20] sm:$0xff]
                %636 = vst [vmem:[%s626 + $0x40] sm:$0xff] %v635
                %v637 = vld [vmem:[%s625 + $0x28] sm:$0xff]
                %638 = vst [vmem:[%s626 + $0x48] sm:$0xff] %v637
                %v639 = vld [vmem:[%s625 + $0x30] sm:$0xff]
                %640 = vst [vmem:[%s626 + $0x50] sm:$0xff] %v639
                %v641 = vld [vmem:[%s625 + $0x38] sm:$0xff]
                %642 = vst [vmem:[%s626 + $0x58] sm:$0xff] %v641
                %v643 = vld [vmem:[%s625 + $0x40] sm:$0xff]
                %644 = vst [vmem:[%s626 + $0x80] sm:$0xff] %v643
                %v645 = vld [vmem:[%s625 + $0x48] sm:$0xff]
                %646 = vst [vmem:[%s626 + $0x88] sm:$0xff] %v645
                %v647 = vld [vmem:[%s625 + $0x50] sm:$0xff]
                %648 = vst [vmem:[%s626 + $0x90] sm:$0xff] %v647
                %v649 = vld [vmem:[%s625 + $0x58] sm:$0xff]
                %650 = vst [vmem:[%s626 + $0x98] sm:$0xff] %v649
                %v651 = vld [vmem:[%s625 + $0x60] sm:$0xff]
                %652 = vst [vmem:[%s626 + $0xc0] sm:$0xff] %v651
                %v653 = vld [vmem:[%s625 + $0x68] sm:$0xff]
                %654 = vst [vmem:[%s626 + $0xc8] sm:$0xff] %v653
                %v655 = vld [vmem:[%s625 + $0x70] sm:$0xff]
                %656 = vst [vmem:[%s626 + $0xd0] sm:$0xff] %v655
                %v657 = vld [vmem:[%s625 + $0x78] sm:$0xff]
                %658 = vst [vmem:[%s626 + $0xd8] sm:$0xff] %v657
                %v659 = vld [vmem:[%s625 + $0x80] sm:$0xff]
                %660 = vst [vmem:[%s626 + $0x100] sm:$0xff] %v659
                %v661 = vld [vmem:[%s625 + $0x88] sm:$0xff]
                %662 = vst [vmem:[%s626 + $0x108] sm:$0xff] %v661
                %v663 = vld [vmem:[%s625 + $0x90] sm:$0xff]
                %664 = vst [vmem:[%s626 + $0x110] sm:$0xff] %v663
                %v665 = vld [vmem:[%s625 + $0x98] sm:$0xff]
                %666 = vst [vmem:[%s626 + $0x118] sm:$0xff] %v665
                %v667 = vld [vmem:[%s625 + $0xa0] sm:$0xff]
                %668 = vst [vmem:[%s626 + $0x140] sm:$0xff] %v667
                %v669 = vld [vmem:[%s625 + $0xa8] sm:$0xff]
                %670 = vst [vmem:[%s626 + $0x148] sm:$0xff] %v669
                %v671 = vld [vmem:[%s625 + $0xb0] sm:$0xff]
                %672 = vst [vmem:[%s626 + $0x150] sm:$0xff] %v671
                %v673 = vld [vmem:[%s625 + $0xb8] sm:$0xff]
                %674 = vst [vmem:[%s626 + $0x158] sm:$0xff] %v673
                %v675 = vld [vmem:[%s625 + $0xc0] sm:$0xff]
                %676 = vst [vmem:[%s626 + $0x180] sm:$0xff] %v675
                %v677 = vld [vmem:[%s625 + $0xc8] sm:$0xff]
                %678 = vst [vmem:[%s626 + $0x188] sm:$0xff] %v677
                %v679 = vld [vmem:[%s625 + $0xd0] sm:$0xff]
                %680 = vst [vmem:[%s626 + $0x190] sm:$0xff] %v679
                %v681 = vld [vmem:[%s625 + $0xd8] sm:$0xff]
                %682 = vst [vmem:[%s626 + $0x198] sm:$0xff] %v681
                %v683 = vld [vmem:[%s625 + $0xe0] sm:$0xff]
                %684 = vst [vmem:[%s626 + $0x1c0] sm:$0xff] %v683
                %v685 = vld [vmem:[%s625 + $0xe8] sm:$0xff]
                %686 = vst [vmem:[%s626 + $0x1c8] sm:$0xff] %v685
                %v687 = vld [vmem:[%s625 + $0xf0] sm:$0xff]
                %688 = vst [vmem:[%s626 + $0x1d0] sm:$0xff] %v687
                %v689 = vld [vmem:[%s625 + $0xf8] sm:$0xff]
                %690 = vst [vmem:[%s626 + $0x1d8] sm:$0xff] %v689
              $region68: #{seq2seq_forward.3} parent=62 // loop_footer
                %s624 = sadd.s32 1, %s620
              $region69: #{seq2seq_forward.3} parent=62 // loop_footer_branch
                %619 = sbr.rel target = $region65
              $region70: #{seq2seq_forward.3} parent=62 // loop_exit
                _
            $region63: #{seq2seq_forward.3} parent=58 // pred_fallthru
              _
            // Predicated region
            $region71: #{seq2seq_forward.3} parent=58 // pred_check
              _
            $region72: #{seq2seq_forward.3} parent=58 // pred_check_branch
              %692 = sbr.rel target = $region74
            $region73: #{seq2seq_forward.3} parent=58 // pred_region
              _
            $region74: #{seq2seq_forward.3} parent=58 // pred_fallthru
              _
          $region59: #{seq2seq_forward.3} parent=54 // pred_fallthru
            _
          %693 = vnop
        $region55: #{seq2seq_forward.3} parent=46 // pred_fallthru
          _
      $region47: #{seq2seq_forward.3} parent=5 // pred_fallthru
        _
      %p694 = scmp.le.s32.totalorder 2, %s8
      // Predicated region
      $region75: #{seq2seq_forward.3} parent=5 // pred_check
        %p695 = pneg %p694
      $region76: #{seq2seq_forward.3} parent=5 // pred_check_branch
        %697 = sbr.rel (%p695) target = $region78
      $region77: #{seq2seq_forward.3} parent=5 // pred_region
        %s698 = ssub.s32 %s8, 2
        // Predicated region
        $region79: #{seq2seq_forward.3} parent=77 // pred_check
          %p699 = pneg %p84
        $region80: #{seq2seq_forward.3} parent=77 // pred_check_branch
          %701 = sbr.rel (%p699) target = $region82
        $region81: #{seq2seq_forward.3} parent=77 // pred_region
          %s702 = sand.u32 %s69, 1
          %s703 = sand.u32 %s69, 1
          %s704 = smul.addr %s703, 256
          %s705 = scalar_lea.vmem [#allocation3], %s704
        $region82: #{seq2seq_forward.3} parent=77 // pred_fallthru
          _
      $region78: #{seq2seq_forward.3} parent=5 // pred_fallthru
        _
    $region6: #{seq2seq_forward.3} parent=1 // loop_footer
      %s12 = sadd.s32 1, %s8
    $region7: #{seq2seq_forward.3} parent=1 // loop_footer_branch
      %7 = sbr.rel target = $region3
    $region8: #{seq2seq_forward.3} parent=1 // loop_exit
      _

// kernel: seq2seq_forward.2
$region0: #{seq2seq_forward.2}
  #allocation0 [shape = 'u32[]', space=smem, size = 0x4, offset = 0x4, fixed_abs, tag = 'smem constant byte address 0x4 - core index']
  #allocation1 [shape = 'u32[144,128]{1,0:T(1,128)}', space=vmem, size = 0x12000, scoped, tag = 'internal scratch']
  #allocation2 [shape = 'f32[2,8,128]{2,1,0:T(8,128)}', space=vmem, size = 0x2000, scoped, tag = 'scratch operand']
  #allocation3 [shape = 'f32[2,8,128]{2,1,0:T(8,128)}', space=vmem, size = 0x2000, scoped, tag = 'scratch operand']
  #allocation4 [shape = 'f32[8,128]{1,0:T(8,128)}', space=vmem, size = 0x1000, scoped, tag = 'scratch operand']
  #allocation5 [shape = 'f32[8,128]{1,0:T(8,128)}', space=vmem, size = 0x1000, scoped, tag = 'scratch operand']
  %s0 = inlined_call_operand.vmem [shape: bf16[8,8,128], index: 0, kind: input, shape index: {}]
  %s1 = inlined_call_operand.vmem [shape: bf16[8,128,128], index: 1, kind: input, shape index: {}]
  %s2 = inlined_call_operand.vmem [shape: bf16[8,128,256], index: 2, kind: input, shape index: {}]
  %s3 = inlined_call_operand.vmem [shape: f32[8,128], index: 3, kind: input, shape index: {}]
  %s4 = inlined_call_operand.vmem [shape: bf16[128,512], index: 4, kind: input, shape index: {}]
  %s5 = inlined_call_operand.vmem [shape: bf16[128,512], index: 5, kind: input, shape index: {}]
  %s6 = inlined_call_operand.vmem [shape: f32[1,512], index: 6, kind: input, shape index: {}]
  %s7 = inlined_call_operand.vmem [shape: bf16[128,512], index: 7, kind: input, shape index: {}]
  %s8 = inlined_call_operand.vmem [shape: bf16[128,512], index: 8, kind: input, shape index: {}]
  %s9 = inlined_call_operand.vmem [shape: f32[1,512], index: 9, kind: input, shape index: {}]
  %s10 = inlined_call_operand.vmem [shape: f32[3,256], index: 10, kind: input, shape index: {}]
  %s11 = inlined_call_operand.vmem [shape: bf16[128,256], index: 11, kind: input, shape index: {}]
  %s12 = inlined_call_operand.vmem [shape: f32[1,256], index: 12, kind: input, shape index: {}]
  %s13 = inlined_call_operand.vmem [shape: f32[1,256], index: 13, kind: input, shape index: {}]
  %s14 = inlined_call_operand.vmem [shape: f32[8,8,128], index: 14, kind: output, shape index: {}]
  %s15 = sld [smem:[#allocation0]]
  $region73: #{seq2seq_forward.2} parent=0
    _
  %s17 = ssub.s32 1, %s15
  %s18 = scalar_select 0, %s17, %s15
  // Predicated region
  $region2: #{seq2seq_forward.2} parent=0 // pred_check
    _
  $region3: #{seq2seq_forward.2} parent=0 // pred_check_branch
    %20 = sbr.rel (0) target = $region5
  $region4: #{seq2seq_forward.2} parent=0 // pred_region
    _
  $region5: #{seq2seq_forward.2} parent=0 // pred_fallthru
    _
  // Predicated region
  $region6: #{seq2seq_forward.2} parent=0 // pred_check
    _
  $region7: #{seq2seq_forward.2} parent=0 // pred_check_branch
    %22 = sbr.rel (0) target = $region9
  $region8: #{seq2seq_forward.2} parent=0 // pred_region
    _
  $region9: #{seq2seq_forward.2} parent=0 // pred_fallthru
    _
  // Predicated region
  $region10: #{seq2seq_forward.2} parent=0 // pred_check
    _
  $region11: #{seq2seq_forward.2} parent=0 // pred_check_branch
    %24 = sbr.rel (0) target = $region13
  $region12: #{seq2seq_forward.2} parent=0 // pred_region
    _
  $region13: #{seq2seq_forward.2} parent=0 // pred_fallthru
    _
  // Predicated region
  $region14: #{seq2seq_forward.2} parent=0 // pred_check
    _
  $region15: #{seq2seq_forward.2} parent=0 // pred_check_branch
    %26 = sbr.rel (0) target = $region17
  $region16: #{seq2seq_forward.2} parent=0 // pred_region
    _
  $region17: #{seq2seq_forward.2} parent=0 // pred_fallthru
    _
  // Predicated region
  $region18: #{seq2seq_forward.2} parent=0 // pred_check
    _
  $region19: #{seq2seq_forward.2} parent=0 // pred_check_branch
    %28 = sbr.rel (0) target = $region21
  $region20: #{seq2seq_forward.2} parent=0 // pred_region
    _
  $region21: #{seq2seq_forward.2} parent=0 // pred_fallthru
    _
  // Predicated region
  $region22: #{seq2seq_forward.2} parent=0 // pred_check
    _
  $region23: #{seq2seq_forward.2} parent=0 // pred_check_branch
    %30 = sbr.rel (0) target = $region25
  $region24: #{seq2seq_forward.2} parent=0 // pred_region
    _
  $region25: #{seq2seq_forward.2} parent=0 // pred_fallthru
    _
  // Predicated region
  $region26: #{seq2seq_forward.2} parent=0 // pred_check
    _
  $region27: #{seq2seq_forward.2} parent=0 // pred_check_branch
    %32 = sbr.rel (0) target = $region29
  $region28: #{seq2seq_forward.2} parent=0 // pred_region
    _
  $region29: #{seq2seq_forward.2} parent=0 // pred_fallthru
    _
  // Predicated region
  $region30: #{seq2seq_forward.2} parent=0 // pred_check
    _
  $region31: #{seq2seq_forward.2} parent=0 // pred_check_branch
    %34 = sbr.rel (0) target = $region33
  $region32: #{seq2seq_forward.2} parent=0 // pred_region
    _
  $region33: #{seq2seq_forward.2} parent=0 // pred_fallthru
    _
  // Predicated region
  $region34: #{seq2seq_forward.2} parent=0 // pred_check
    _
  $region35: #{seq2seq_forward.2} parent=0 // pred_check_branch
    %36 = sbr.rel (0) target = $region37
  $region36: #{seq2seq_forward.2} parent=0 // pred_region
    _
  $region37: #{seq2seq_forward.2} parent=0 // pred_fallthru
    _
  // Predicated region
  $region38: #{seq2seq_forward.2} parent=0 // pred_check
    _
  $region39: #{seq2seq_forward.2} parent=0 // pred_check_branch
    %38 = sbr.rel (0) target = $region41
  $region40: #{seq2seq_forward.2} parent=0 // pred_region
    _
  $region41: #{seq2seq_forward.2} parent=0 // pred_fallthru
    _
  // Predicated region
  $region42: #{seq2seq_forward.2} parent=0 // pred_check
    _
  $region43: #{seq2seq_forward.2} parent=0 // pred_check_branch
    %40 = sbr.rel (0) target = $region45
  $region44: #{seq2seq_forward.2} parent=0 // pred_region
    _
  $region45: #{seq2seq_forward.2} parent=0 // pred_fallthru
    _
  // Predicated region
  $region46: #{seq2seq_forward.2} parent=0 // pred_check
    _
  $region47: #{seq2seq_forward.2} parent=0 // pred_check_branch
    %42 = sbr.rel (0) target = $region49
  $region48: #{seq2seq_forward.2} parent=0 // pred_region
    _
  $region49: #{seq2seq_forward.2} parent=0 // pred_fallthru
    _
  // Predicated region
  $region50: #{seq2seq_forward.2} parent=0 // pred_check
    _
  $region51: #{seq2seq_forward.2} parent=0 // pred_check_branch
    %44 = sbr.rel (0) target = $region53
  $region52: #{seq2seq_forward.2} parent=0 // pred_region
    _
  $region53: #{seq2seq_forward.2} parent=0 // pred_fallthru
    _
  // Predicated region
  $region54: #{seq2seq_forward.2} parent=0 // pred_check
    _
  $region55: #{seq2seq_forward.2} parent=0 // pred_check_branch
    %46 = sbr.rel (0) target = $region57
  $region56: #{seq2seq_forward.2} parent=0 // pred_region
    _
  $region57: #{seq2seq_forward.2} parent=0 // pred_fallthru
    _
  %48 = vst [vmem:[#allocation2] sm:$0xff] 0.0
  %49 = vst [vmem:[#allocation2 + $0x8] sm:$0xff] 0.0
  %50 = vst [vmem:[#allocation3] sm:$0xff] 0.0
  %51 = vst [vmem:[#allocation3 + $0x8] sm:$0xff] 0.0
  %52 = vst [vmem:[#allocation4] sm:$0xff] 0.0
  %53 = vst [vmem:[#allocation5] sm:$0xff] 0.0
  %v54 = vlaneseq
  %v55 = vand.u32 %v54, 127
  %v56 = vadd.s32 %v55, 4294967295
  %vm57 = vcmp.ge.s32.totalorder %v56, 0
  %vm58 = vcmp.lt.s32.totalorder %v56, 128
  %vm59 = vmand %vm57, %vm58
  %vm60 = vcmp.ge.s32.totalorder %v55, 0
  %vm61 = vcmp.lt.s32.totalorder %v55, 128
  %vm62 = vmand %vm60, %vm61
  %v63 = vadd.s32 %v55, 1
  %vm64 = vcmp.ge.s32.totalorder %v63, 0
  %vm65 = vcmp.lt.s32.totalorder %v63, 128
  %vm66 = vmand %vm64, %vm65
  loop: start=0, step=1, limit=8
  $region58: #{seq2seq_forward.2} parent=0 // loop_pre_header
    _
  $region59: #{seq2seq_forward.2} parent=0 // loop_header
    %s68 = sphi 0, %s72
    %p69 = scmp.ge.s32.totalorder %s68, 8
  $region60: #{seq2seq_forward.2} parent=0 // loop_header_branch
    %71 = sbr.rel (%p69) target = $region64
  $region61: #{seq2seq_forward.2} parent=0 // loop_body
    %s73 = smul.addr %s68, 4
    %s74 = scalar_lea.vmem %s0, %s73
    %v75 = vld [vmem:[%s74] sm:$0xf]
    %v76 = vunpack.c.l.bf16 %v75
    %v77 = vld [vmem:[#allocation4] sm:$0xff]
    %v78 = vadd.f32 %v76, %v77
    %v79 = vld [vmem:[#allocation2] sm:$0xff]
    %v80 = vld [vmem:[#allocation3] sm:$0xff]
    %v81 = vpack.c.bf16 %v78, %v78
    %v82 = vld [vmem:[%s4] sm:$0xff]
    %v83 = vld [vmem:[%s4 + $0x8] sm:$0xff]
    %v84 = vld [vmem:[%s4 + $0x10] sm:$0xff]
    %v85 = vld [vmem:[%s4 + $0x18] sm:$0xff]
    %v86 = vld [vmem:[%s4 + $0x20] sm:$0xff]
    %v87 = vld [vmem:[%s4 + $0x28] sm:$0xff]
    %v88 = vld [vmem:[%s4 + $0x30] sm:$0xff]
    %v89 = vld [vmem:[%s4 + $0x38] sm:$0xff]
    %v90 = vld [vmem:[%s4 + $0x40] sm:$0xff]
    %v91 = vld [vmem:[%s4 + $0x48] sm:$0xff]
    %v92 = vld [vmem:[%s4 + $0x50] sm:$0xff]
    %v93 = vld [vmem:[%s4 + $0x58] sm:$0xff]
    %v94 = vld [vmem:[%s4 + $0x60] sm:$0xff]
    %v95 = vld [vmem:[%s4 + $0x68] sm:$0xff]
    %v96 = vld [vmem:[%s4 + $0x70] sm:$0xff]
    %v97 = vld [vmem:[%s4 + $0x78] sm:$0xff]
    %v98 = vld [vmem:[%s4 + $0x80] sm:$0xff]
    %v99 = vld [vmem:[%s4 + $0x88] sm:$0xff]
    %v100 = vld [vmem:[%s4 + $0x90] sm:$0xff]
    %v101 = vld [vmem:[%s4 + $0x98] sm:$0xff]
    %v102 = vld [vmem:[%s4 + $0xa0] sm:$0xff]
    %v103 = vld [vmem:[%s4 + $0xa8] sm:$0xff]
    %v104 = vld [vmem:[%s4 + $0xb0] sm:$0xff]
    %v105 = vld [vmem:[%s4 + $0xb8] sm:$0xff]
    %v106 = vld [vmem:[%s4 + $0xc0] sm:$0xff]
    %v107 = vld [vmem:[%s4 + $0xc8] sm:$0xff]
    %v108 = vld [vmem:[%s4 + $0xd0] sm:$0xff]
    %v109 = vld [vmem:[%s4 + $0xd8] sm:$0xff]
    %v110 = vld [vmem:[%s4 + $0xe0] sm:$0xff]
    %v111 = vld [vmem:[%s4 + $0xe8] sm:$0xff]
    %v112 = vld [vmem:[%s4 + $0xf0] sm:$0xff]
    %v113 = vld [vmem:[%s4 + $0xf8] sm:$0xff]
    %v114 = vpack.c.bf16 %v79, %v79
    %v115 = vld [vmem:[%s5] sm:$0xff]
    %v116 = vld [vmem:[%s5 + $0x8] sm:$0xff]
    %v117 = vld [vmem:[%s5 + $0x10] sm:$0xff]
    %v118 = vld [vmem:[%s5 + $0x18] sm:$0xff]
    %v119 = vld [vmem:[%s5 + $0x20] sm:$0xff]
    %v120 = vld [vmem:[%s5 + $0x28] sm:$0xff]
    %v121 = vld [vmem:[%s5 + $0x30] sm:$0xff]
    %v122 = vld [vmem:[%s5 + $0x38] sm:$0xff]
    %v123 = vld [vmem:[%s5 + $0x40] sm:$0xff]
    %v124 = vld [vmem:[%s5 + $0x48] sm:$0xff]
    %v125 = vld [vmem:[%s5 + $0x50] sm:$0xff]
    %v126 = vld [vmem:[%s5 + $0x58] sm:$0xff]
    %v127 = vld [vmem:[%s5 + $0x60] sm:$0xff]
    %v128 = vld [vmem:[%s5 + $0x68] sm:$0xff]
    %v129 = vld [vmem:[%s5 + $0x70] sm:$0xff]
    %v130 = vld [vmem:[%s5 + $0x78] sm:$0xff]
    %v131 = vld [vmem:[%s5 + $0x80] sm:$0xff]
    %v132 = vld [vmem:[%s5 + $0x88] sm:$0xff]
    %v133 = vld [vmem:[%s5 + $0x90] sm:$0xff]
    %v134 = vld [vmem:[%s5 + $0x98] sm:$0xff]
    %v135 = vld [vmem:[%s5 + $0xa0] sm:$0xff]
    %v136 = vld [vmem:[%s5 + $0xa8] sm:$0xff]
    %v137 = vld [vmem:[%s5 + $0xb0] sm:$0xff]
    %v138 = vld [vmem:[%s5 + $0xb8] sm:$0xff]
    %v139 = vld [vmem:[%s5 + $0xc0] sm:$0xff]
    %v140 = vld [vmem:[%s5 + $0xc8] sm:$0xff]
    %v141 = vld [vmem:[%s5 + $0xd0] sm:$0xff]
    %v142 = vld [vmem:[%s5 + $0xd8] sm:$0xff]
    %v143 = vld [vmem:[%s5 + $0xe0] sm:$0xff]
    %v144 = vld [vmem:[%s5 + $0xe8] sm:$0xff]
    %v145 = vld [vmem:[%s5 + $0xf0] sm:$0xff]
    %v146 = vld [vmem:[%s5 + $0xf8] sm:$0xff]
    %v179 = vunpack.c.l.b16 %v115
    %v180 = vunpack.c.h.b16 %v115
    %v181 = vunpack.c.l.b16 %v116
    %v182 = vunpack.c.h.b16 %v116
    %v183 = vunpack.c.l.b16 %v117
    %v184 = vunpack.c.h.b16 %v117
    %v185 = vunpack.c.l.b16 %v118
    %v186 = vunpack.c.h.b16 %v118
    %v187 = vunpack.c.l.b16 %v119
    %v188 = vunpack.c.h.b16 %v119
    %v189 = vunpack.c.l.b16 %v120
    %v190 = vunpack.c.h.b16 %v120
    %v191 = vunpack.c.l.b16 %v121
    %v192 = vunpack.c.h.b16 %v121
    %v193 = vunpack.c.l.b16 %v122
    %v194 = vunpack.c.h.b16 %v122
    %v195 = vunpack.c.l.b16 %v123
    %v196 = vunpack.c.h.b16 %v123
    %v197 = vunpack.c.l.b16 %v124
    %v198 = vunpack.c.h.b16 %v124
    %v199 = vunpack.c.l.b16 %v125
    %v200 = vunpack.c.h.b16 %v125
    %v201 = vunpack.c.l.b16 %v126
    %v202 = vunpack.c.h.b16 %v126
    %v203 = vunpack.c.l.b16 %v127
    %v204 = vunpack.c.h.b16 %v127
    %v205 = vunpack.c.l.b16 %v128
    %v206 = vunpack.c.h.b16 %v128
    %v207 = vunpack.c.l.b16 %v129
    %v208 = vunpack.c.h.b16 %v129
    %v209 = vunpack.c.l.b16 %v130
    %v210 = vunpack.c.h.b16 %v130
    %v211 = vunpack.c.l.b16 %v131
    %v212 = vunpack.c.h.b16 %v131
    %v213 = vunpack.c.l.b16 %v132
    %v214 = vunpack.c.h.b16 %v132
    %v215 = vunpack.c.l.b16 %v133
    %v216 = vunpack.c.h.b16 %v133
    %v217 = vunpack.c.l.b16 %v134
    %v218 = vunpack.c.h.b16 %v134
    %v219 = vunpack.c.l.b16 %v135
    %v220 = vunpack.c.h.b16 %v135
    %v221 = vunpack.c.l.b16 %v136
    %v222 = vunpack.c.h.b16 %v136
    %v223 = vunpack.c.l.b16 %v137
    %v224 = vunpack.c.h.b16 %v137
    %v225 = vunpack.c.l.b16 %v138
    %v226 = vunpack.c.h.b16 %v138
    %v227 = vunpack.c.l.b16 %v139
    %v228 = vunpack.c.h.b16 %v139
    %v229 = vunpack.c.l.b16 %v140
    %v230 = vunpack.c.h.b16 %v140
    %v231 = vunpack.c.l.b16 %v141
    %v232 = vunpack.c.h.b16 %v141
    %v233 = vunpack.c.l.b16 %v142
    %v234 = vunpack.c.h.b16 %v142
    %v235 = vunpack.c.l.b16 %v143
    %v236 = vunpack.c.h.b16 %v143
    %v237 = vunpack.c.l.b16 %v144
    %v238 = vunpack.c.h.b16 %v144
    %v239 = vunpack.c.l.b16 %v145
    %v240 = vunpack.c.h.b16 %v145
    %v241 = vunpack.c.l.b16 %v146
    %v242 = vunpack.c.h.b16 %v146
    %v243 = vpack.c.b16 %v183, %v179
    %v244 = vpack.c.b16 %v184, %v180
    %v245 = vpack.c.b16 %v185, %v181
    %v246 = vpack.c.b16 %v186, %v182
    %v247 = vpack.c.b16 %v191, %v187
    %v248 = vpack.c.b16 %v192, %v188
    %v249 = vpack.c.b16 %v193, %v189
    %v250 = vpack.c.b16 %v194, %v190
    %v251 = vpack.c.b16 %v199, %v195
    %v252 = vpack.c.b16 %v200, %v196
    %v253 = vpack.c.b16 %v201, %v197
    %v254 = vpack.c.b16 %v202, %v198
    %v255 = vpack.c.b16 %v207, %v203
    %v256 = vpack.c.b16 %v208, %v204
    %v257 = vpack.c.b16 %v209, %v205
    %v258 = vpack.c.b16 %v210, %v206
    %v259 = vpack.c.b16 %v215, %v211
    %v260 = vpack.c.b16 %v216, %v212
    %v261 = vpack.c.b16 %v217, %v213
    %v262 = vpack.c.b16 %v218, %v214
    %v263 = vpack.c.b16 %v223, %v219
    %v264 = vpack.c.b16 %v224, %v220
    %v265 = vpack.c.b16 %v225, %v221
    %v266 = vpack.c.b16 %v226, %v222
    %v267 = vpack.c.b16 %v231, %v227
    %v268 = vpack.c.b16 %v232, %v228
    %v269 = vpack.c.b16 %v233, %v229
    %v270 = vpack.c.b16 %v234, %v230
    %v271 = vpack.c.b16 %v239, %v235
    %v272 = vpack.c.b16 %v240, %v236
    %v273 = vpack.c.b16 %v241, %v237
    %v274 = vpack.c.b16 %v242, %v238
    %307 = vmatprep.subr.bf16.mxu0 %v244
    %308 = vmatpush1.bf16.msra.mxu0 %v243
    %309 = vmatprep.subr.bf16.mxu0 %v248
    %310 = vmatpush1.bf16.msra.mxu0 %v247
    %311 = vmatprep.subr.bf16.mxu0 %v252
    %312 = vmatpush1.bf16.msra.mxu0 %v251
    %313 = vmatprep.subr.bf16.mxu0 %v256
    %314 = vmatpush1.bf16.msra.mxu0 %v255
    %315 = vmatprep.subr.bf16.mxu0 %v260
    %316 = vmatpush1.bf16.msra.mxu0 %v259
    %317 = vmatprep.subr.bf16.mxu0 %v264
    %318 = vmatpush1.bf16.msra.mxu0 %v263
    %319 = vmatprep.subr.bf16.mxu0 %v268
    %320 = vmatpush1.bf16.msra.mxu0 %v267
    %321 = vmatprep.subr.bf16.mxu0 %v272
    %322 = vmatpush1.bf16.msra.mxu0 %v271
    %323 = vmatprep.subr.bf16.mxu0 0
    %324 = vmatpush1.bf16.msra.mxu0 0
    %325 = vmatprep.subr.bf16.mxu0 0
    %326 = vmatpush1.bf16.msra.mxu0 0
    %327 = vmatprep.subr.bf16.mxu0 0
    %328 = vmatpush1.bf16.msra.mxu0 0
    %329 = vmatprep.subr.bf16.mxu0 0
    %330 = vmatpush1.bf16.msra.mxu0 0
    %331 = vmatprep.subr.bf16.mxu0 0
    %332 = vmatpush1.bf16.msra.mxu0 0
    %333 = vmatprep.subr.bf16.mxu0 0
    %334 = vmatpush1.bf16.msra.mxu0 0
    %335 = vmatprep.subr.bf16.mxu0 0
    %336 = vmatpush1.bf16.msra.mxu0 0
    %337 = vmatprep.subr.bf16.mxu0 0
    %338 = vmatpush1.bf16.msra.mxu0 0
    %339 = vmatprep.mubr.bf16.mxu0 0
    %340 = vmatmul.mubr.bf16.gmra.mrb[0].mxu0 %v114
    %v341 = vpop.f32.mrb[0].mxu0
    %v342 = vadd.f32 0.0, %v341
    %v343 = vpop.f32.mrb[0].mxu0
    %v344 = vadd.f32 0.0, %v343
    %v345 = vpop.f32.mrb[0].mxu0
    %v346 = vpop.f32.mrb[0].mxu0
    %347 = vdwg.mxu0
    %348 = vmatprep.subr.bf16.mxu0 %v246
    %349 = vmatpush1.bf16.msra.mxu0 %v245
    %350 = vmatprep.subr.bf16.mxu0 %v250
    %351 = vmatpush1.bf16.msra.mxu0 %v249
    %352 = vmatprep.subr.bf16.mxu0 %v254
    %353 = vmatpush1.bf16.msra.mxu0 %v253
    %354 = vmatprep.subr.bf16.mxu0 %v258
    %355 = vmatpush1.bf16.msra.mxu0 %v257
    %356 = vmatprep.subr.bf16.mxu0 %v262
    %357 = vmatpush1.bf16.msra.mxu0 %v261
    %358 = vmatprep.subr.bf16.mxu0 %v266
    %359 = vmatpush1.bf16.msra.mxu0 %v265
    %360 = vmatprep.subr.bf16.mxu0 %v270
    %361 = vmatpush1.bf16.msra.mxu0 %v269
    %362 = vmatprep.subr.bf16.mxu0 %v274
    %363 = vmatpush1.bf16.msra.mxu0 %v273
    %364 = vmatprep.subr.bf16.mxu0 0
    %365 = vmatpush1.bf16.msra.mxu0 0
    %366 = vmatprep.subr.bf16.mxu0 0
    %367 = vmatpush1.bf16.msra.mxu0 0
    %368 = vmatprep.subr.bf16.mxu0 0
    %369 = vmatpush1.bf16.msra.mxu0 0
    %370 = vmatprep.subr.bf16.mxu0 0
    %371 = vmatpush1.bf16.msra.mxu0 0
    %372 = vmatprep.subr.bf16.mxu0 0
    %373 = vmatpush1.bf16.msra.mxu0 0
    %374 = vmatprep.subr.bf16.mxu0 0
    %375 = vmatpush1.bf16.msra.mxu0 0
    %376 = vmatprep.subr.bf16.mxu0 0
    %377 = vmatpush1.bf16.msra.mxu0 0
    %378 = vmatprep.subr.bf16.mxu0 0
    %379 = vmatpush1.bf16.msra.mxu0 0
    %380 = vmatprep.mubr.bf16.mxu0 0
    %381 = vmatmul.mubr.bf16.gmra.mrb[0].mxu0 %v114
    %v382 = vpop.f32.mrb[0].mxu0
    %v383 = vadd.f32 0.0, %v382
    %v384 = vpop.f32.mrb[0].mxu0
    %v385 = vadd.f32 0.0, %v384
    %v386 = vpop.f32.mrb[0].mxu0
    %v387 = vpop.f32.mrb[0].mxu0
    %388 = vdwg.mxu0
    %v421 = vunpack.c.l.b16 %v82
    %v422 = vunpack.c.h.b16 %v82
    %v423 = vunpack.c.l.b16 %v83
    %v424 = vunpack.c.h.b16 %v83
    %v425 = vunpack.c.l.b16 %v84
    %v426 = vunpack.c.h.b16 %v84
    %v427 = vunpack.c.l.b16 %v85
    %v428 = vunpack.c.h.b16 %v85
    %v429 = vunpack.c.l.b16 %v86
    %v430 = vunpack.c.h.b16 %v86
    %v431 = vunpack.c.l.b16 %v87
    %v432 = vunpack.c.h.b16 %v87
    %v433 = vunpack.c.l.b16 %v88
    %v434 = vunpack.c.h.b16 %v88
    %v435 = vunpack.c.l.b16 %v89
    %v436 = vunpack.c.h.b16 %v89
    %v437 = vunpack.c.l.b16 %v90
    %v438 = vunpack.c.h.b16 %v90
    %v439 = vunpack.c.l.b16 %v91
    %v440 = vunpack.c.h.b16 %v91
    %v441 = vunpack.c.l.b16 %v92
    %v442 = vunpack.c.h.b16 %v92
    %v443 = vunpack.c.l.b16 %v93
    %v444 = vunpack.c.h.b16 %v93
    %v445 = vunpack.c.l.b16 %v94
    %v446 = vunpack.c.h.b16 %v94
    %v447 = vunpack.c.l.b16 %v95
    %v448 = vunpack.c.h.b16 %v95
    %v449 = vunpack.c.l.b16 %v96
    %v450 = vunpack.c.h.b16 %v96
    %v451 = vunpack.c.l.b16 %v97
    %v452 = vunpack.c.h.b16 %v97
    %v453 = vunpack.c.l.b16 %v98
    %v454 = vunpack.c.h.b16 %v98
    %v455 = vunpack.c.l.b16 %v99
    %v456 = vunpack.c.h.b16 %v99
    %v457 = vunpack.c.l.b16 %v100
    %v458 = vunpack.c.h.b16 %v100
    %v459 = vunpack.c.l.b16 %v101
    %v460 = vunpack.c.h.b16 %v101
    %v461 = vunpack.c.l.b16 %v102
    %v462 = vunpack.c.h.b16 %v102
    %v463 = vunpack.c.l.b16 %v103
    %v464 = vunpack.c.h.b16 %v103
    %v465 = vunpack.c.l.b16 %v104
    %v466 = vunpack.c.h.b16 %v104
    %v467 = vunpack.c.l.b16 %v105
    %v468 = vunpack.c.h.b16 %v105
    %v469 = vunpack.c.l.b16 %v106
    %v470 = vunpack.c.h.b16 %v106
    %v471 = vunpack.c.l.b16 %v107
    %v472 = vunpack.c.h.b16 %v107
    %v473 = vunpack.c.l.b16 %v108
    %v474 = vunpack.c.h.b16 %v108
    %v475 = vunpack.c.l.b16 %v109
    %v476 = vunpack.c.h.b16 %v109
    %v477 = vunpack.c.l.b16 %v110
    %v478 = vunpack.c.h.b16 %v110
    %v479 = vunpack.c.l.b16 %v111
    %v480 = vunpack.c.h.b16 %v111
    %v481 = vunpack.c.l.b16 %v112
    %v482 = vunpack.c.h.b16 %v112
    %v483 = vunpack.c.l.b16 %v113
    %v484 = vunpack.c.h.b16 %v113
    %v485 = vpack.c.b16 %v425, %v421
    %v486 = vpack.c.b16 %v426, %v422
    %v487 = vpack.c.b16 %v427, %v423
    %v488 = vpack.c.b16 %v428, %v424
    %v489 = vpack.c.b16 %v433, %v429
    %v490 = vpack.c.b16 %v434, %v430
    %v491 = vpack.c.b16 %v435, %v431
    %v492 = vpack.c.b16 %v436, %v432
    %v493 = vpack.c.b16 %v441, %v437
    %v494 = vpack.c.b16 %v442, %v438
    %v495 = vpack.c.b16 %v443, %v439
    %v496 = vpack.c.b16 %v444, %v440
    %v497 = vpack.c.b16 %v449, %v445
    %v498 = vpack.c.b16 %v450, %v446
    %v499 = vpack.c.b16 %v451, %v447
    %v500 = vpack.c.b16 %v452, %v448
    %v501 = vpack.c.b16 %v457, %v453
    %v502 = vpack.c.b16 %v458, %v454
    %v503 = vpack.c.b16 %v459, %v455
    %v504 = vpack.c.b16 %v460, %v456
    %v505 = vpack.c.b16 %v465, %v461
    %v506 = vpack.c.b16 %v466, %v462
    %v507 = vpack.c.b16 %v467, %v463
    %v508 = vpack.c.b16 %v468, %v464
    %v509 = vpack.c.b16 %v473, %v469
    %v510 = vpack.c.b16 %v474, %v470
    %v511 = vpack.c.b16 %v475, %v471
    %v512 = vpack.c.b16 %v476, %v472
    %v513 = vpack.c.b16 %v481, %v477
    %v514 = vpack.c.b16 %v482, %v478
    %v515 = vpack.c.b16 %v483, %v479
    %v516 = vpack.c.b16 %v484, %v480
    %549 = vmatprep.subr.bf16.mxu0 %v486
    %550 = vmatpush1.bf16.msra.mxu0 %v485
    %551 = vmatprep.subr.bf16.mxu0 %v490
    %552 = vmatpush1.bf16.msra.mxu0 %v489
    %553 = vmatprep.subr.bf16.mxu0 %v494
    %554 = vmatpush1.bf16.msra.mxu0 %v493
    %555 = vmatprep.subr.bf16.mxu0 %v498
    %556 = vmatpush1.bf16.msra.mxu0 %v497
    %557 = vmatprep.subr.bf16.mxu0 %v502
    %558 = vmatpush1.bf16.msra.mxu0 %v501
    %559 = vmatprep.subr.bf16.mxu0 %v506
    %560 = vmatpush1.bf16.msra.mxu0 %v505
    %561 = vmatprep.subr.bf16.mxu0 %v510
    %562 = vmatpush1.bf16.msra.mxu0 %v509
    %563 = vmatprep.subr.bf16.mxu0 %v514
    %564 = vmatpush1.bf16.msra.mxu0 %v513
    %565 = vmatprep.subr.bf16.mxu0 0
    %566 = vmatpush1.bf16.msra.mxu0 0
    %567 = vmatprep.subr.bf16.mxu0 0
    %568 = vmatpush1.bf16.msra.mxu0 0
    %569 = vmatprep.subr.bf16.mxu0 0
    %570 = vmatpush1.bf16.msra.mxu0 0
    %571 = vmatprep.subr.bf16.mxu0 0
    %572 = vmatpush1.bf16.msra.mxu0 0
    %573 = vmatprep.subr.bf16.mxu0 0
    %574 = vmatpush1.bf16.msra.mxu0 0
    %575 = vmatprep.subr.bf16.mxu0 0
    %576 = vmatpush1.bf16.msra.mxu0 0
    %577 = vmatprep.subr.bf16.mxu0 0
    %578 = vmatpush1.bf16.msra.mxu0 0
    %579 = vmatprep.subr.bf16.mxu0 0
    %580 = vmatpush1.bf16.msra.mxu0 0
    %581 = vmatprep.mubr.bf16.mxu0 0
    %582 = vmatmul.mubr.bf16.gmra.mrb[0].mxu0 %v81
    %v583 = vpop.f32.mrb[0].mxu0
    %v584 = vadd.f32 %v342, %v583
    %v585 = vpop.f32.mrb[0].mxu0
    %v586 = vadd.f32 %v344, %v585
    %v587 = vpop.f32.mrb[0].mxu0
    %v588 = vpop.f32.mrb[0].mxu0
    %589 = vdwg.mxu0
    %590 = vmatprep.subr.bf16.mxu0 %v488
    %591 = vmatpush1.bf16.msra.mxu0 %v487
    %592 = vmatprep.subr.bf16.mxu0 %v492
    %593 = vmatpush1.bf16.msra.mxu0 %v491
    %594 = vmatprep.subr.bf16.mxu0 %v496
    %595 = vmatpush1.bf16.msra.mxu0 %v495
    %596 = vmatprep.subr.bf16.mxu0 %v500
    %597 = vmatpush1.bf16.msra.mxu0 %v499
    %598 = vmatprep.subr.bf16.mxu0 %v504
    %599 = vmatpush1.bf16.msra.mxu0 %v503
    %600 = vmatprep.subr.bf16.mxu0 %v508
    %601 = vmatpush1.bf16.msra.mxu0 %v507
    %602 = vmatprep.subr.bf16.mxu0 %v512
    %603 = vmatpush1.bf16.msra.mxu0 %v511
    %604 = vmatprep.subr.bf16.mxu0 %v516
    %605 = vmatpush1.bf16.msra.mxu0 %v515
    %606 = vmatprep.subr.bf16.mxu0 0
    %607 = vmatpush1.bf16.msra.mxu0 0
    %608 = vmatprep.subr.bf16.mxu0 0
    %609 = vmatpush1.bf16.msra.mxu0 0
    %610 = vmatprep.subr.bf16.mxu0 0
    %611 = vmatpush1.bf16.msra.mxu0 0
    %612 = vmatprep.subr.bf16.mxu0 0
    %613 = vmatpush1.bf16.msra.mxu0 0
    %614 = vmatprep.subr.bf16.mxu0 0
    %615 = vmatpush1.bf16.msra.mxu0 0
    %616 = vmatprep.subr.bf16.mxu0 0
    %617 = vmatpush1.bf16.msra.mxu0 0
    %618 = vmatprep.subr.bf16.mxu0 0
    %619 = vmatpush1.bf16.msra.mxu0 0
    %620 = vmatprep.subr.bf16.mxu0 0
    %621 = vmatpush1.bf16.msra.mxu0 0
    %622 = vmatprep.mubr.bf16.mxu0 0
    %623 = vmatmul.mubr.bf16.gmra.mrb[0].mxu0 %v81
    %v624 = vpop.f32.mrb[0].mxu0
    %v625 = vadd.f32 %v383, %v624
    %v626 = vpop.f32.mrb[0].mxu0
    %v627 = vadd.f32 %v385, %v626
    %v628 = vpop.f32.mrb[0].mxu0
    %v629 = vpop.f32.mrb[0].mxu0
    %630 = vdwg.mxu0
    %v631 = vld [vmem:[%s6] sm:$0xf]
    %v633 = vlaneseq
    %v634 = vshrl.u32 %v633, 7
    %v635 = vsub.s32 0, %v634
    %v636 = vrot.slane %v631, %v635
    %v637 = vlaneseq
    %v638 = vshrl.u32 %v637, 7
    %v639 = vsub.s32 1, %v638
    %v640 = vrot.slane %v631, %v639
    %v641 = vlaneseq
    %v642 = vshrl.u32 %v641, 7
    %v643 = vsub.s32 2, %v642
    %v644 = vrot.slane %v631, %v643
    %v645 = vlaneseq
    %v646 = vshrl.u32 %v645, 7
    %v647 = vsub.s32 3, %v646
    %v648 = vrot.slane %v631, %v647
    %v653 = vadd.f32 %v584, %v636
    %v654 = vadd.f32 %v586, %v640
    %v655 = vadd.f32 %v625, %v644
    %v656 = vadd.f32 %v627, %v648
    %v657 = vxor.u32 %v653, 2147483648
    %v658 = vmul.f32 %v657, 1.442695
    %v659 = vpow.pop %v658
    %v660 = vadd.f32 %v659, 1.0
    %v661 = vrcp.pop %v660
    %v662 = vmul.f32 1.0, %v661
    %v663 = vxor.u32 %v654, 2147483648
    %v664 = vmul.f32 %v663, 1.442695
    %v665 = vpow.pop %v664
    %v666 = vadd.f32 %v665, 1.0
    %v667 = vrcp.pop %v666
    %v668 = vmul.f32 1.0, %v667
    %v669 = vtanh.pop %v655
    %v670 = vxor.u32 %v656, 2147483648
    %v671 = vmul.f32 %v670, 1.442695
    %v672 = vpow.pop %v671
    %v673 = vadd.f32 %v672, 1.0
    %v674 = vrcp.pop %v673
    %v675 = vmul.f32 1.0, %v674
    %v676 = vmul.f32 %v668, %v80
    %v677 = vmul.f32 %v662, %v669
    %v678 = vadd.f32 %v676, %v677
    %v679 = vtanh.pop %v678
    %v680 = vmul.f32 %v675, %v679
    %s681 = scalar_lea.vmem [#allocation2], 8
    %v682 = vld [vmem:[%s681] sm:$0xff]
    %s683 = scalar_lea.vmem [#allocation3], 8
    %v684 = vld [vmem:[%s683] sm:$0xff]
    %v685 = vpack.c.bf16 %v680, %v680
    %v686 = vld [vmem:[%s7] sm:$0xff]
    %v687 = vld [vmem:[%s7 + $0x8] sm:$0xff]
    %v688 = vld [vmem:[%s7 + $0x10] sm:$0xff]
    %v689 = vld [vmem:[%s7 + $0x18] sm:$0xff]
    %v690 = vld [vmem:[%s7 + $0x20] sm:$0xff]
    %v691 = vld [vmem:[%s7 + $0x28] sm:$0xff]
    %v692 = vld [vmem:[%s7 + $0x30] sm:$0xff]
    %v693 = vld [vmem:[%s7 + $0x38] sm:$0xff]
    %v694 = vld [vmem:[%s7 + $0x40] sm:$0xff]
    %v695 = vld [vmem:[%s7 + $0x48] sm:$0xff]
    %v696 = vld [vmem:[%s7 + $0x50] sm:$0xff]
    %v697 = vld [vmem:[%s7 + $0x58] sm:$0xff]
    %v698 = vld [vmem:[%s7 + $0x60] sm:$0xff]
    %v699 = vld [vmem:[%s7 + $0x68] sm:$0xff]
    %v700 = vld [vmem:[%s7 + $0x70] sm:$0xff]
    %v701 = vld [vmem:[%s7 + $0x78] sm:$0xff]
    %v702 = vld [vmem:[%s7 + $0x80] sm:$0xff]
    %v703 = vld [vmem:[%s7 + $0x88] sm:$0xff]
    %v704 = vld [vmem:[%s7 + $0x90] sm:$0xff]
    %v705 = vld [vmem:[%s7 + $0x98] sm:$0xff]
    %v706 = vld [vmem:[%s7 + $0xa0] sm:$0xff]
    %v707 = vld [vmem:[%s7 + $0xa8] sm:$0xff]
    %v708 = vld [vmem:[%s7 + $0xb0] sm:$0xff]
    %v709 = vld [vmem:[%s7 + $0xb8] sm:$0xff]
    %v710 = vld [vmem:[%s7 + $0xc0] sm:$0xff]
    %v711 = vld [vmem:[%s7 + $0xc8] sm:$0xff]
    %v712 = vld [vmem:[%s7 + $0xd0] sm:$0xff]
    %v713 = vld [vmem:[%s7 + $0xd8] sm:$0xff]
    %v714 = vld [vmem:[%s7 + $0xe0] sm:$0xff]
    %v715 = vld [vmem:[%s7 + $0xe8] sm:$0xff]
    %v716 = vld [vmem:[%s7 + $0xf0] sm:$0xff]
    %v717 = vld [vmem:[%s7 + $0xf8] sm:$0xff]
    %v718 = vpack.c.bf16 %v682, %v682
    %v719 = vld [vmem:[%s8] sm:$0xff]
    %v720 = vld [vmem:[%s8 + $0x8] sm:$0xff]
    %v721 = vld [vmem:[%s8 + $0x10] sm:$0xff]
    %v722 = vld [vmem:[%s8 + $0x18] sm:$0xff]
    %v723 = vld [vmem:[%s8 + $0x20] sm:$0xff]
    %v724 = vld [vmem:[%s8 + $0x28] sm:$0xff]
    %v725 = vld [vmem:[%s8 + $0x30] sm:$0xff]
    %v726 = vld [vmem:[%s8 + $0x38] sm:$0xff]
    %v727 = vld [vmem:[%s8 + $0x40] sm:$0xff]
    %v728 = vld [vmem:[%s8 + $0x48] sm:$0xff]
    %v729 = vld [vmem:[%s8 + $0x50] sm:$0xff]
    %v730 = vld [vmem:[%s8 + $0x58] sm:$0xff]
    %v731 = vld [vmem:[%s8 + $0x60] sm:$0xff]
    %v732 = vld [vmem:[%s8 + $0x68] sm:$0xff]
    %v733 = vld [vmem:[%s8 + $0x70] sm:$0xff]
    %v734 = vld [vmem:[%s8 + $0x78] sm:$0xff]
    %v735 = vld [vmem:[%s8 + $0x80] sm:$0xff]
    %v736 = vld [vmem:[%s8 + $0x88] sm:$0xff]
    %v737 = vld [vmem:[%s8 + $0x90] sm:$0xff]
    %v738 = vld [vmem:[%s8 + $0x98] sm:$0xff]
    %v739 = vld [vmem:[%s8 + $0xa0] sm:$0xff]
    %v740 = vld [vmem:[%s8 + $0xa8] sm:$0xff]
    %v741 = vld [vmem:[%s8 + $0xb0] sm:$0xff]
    %v742 = vld [vmem:[%s8 + $0xb8] sm:$0xff]
    %v743 = vld [vmem:[%s8 + $0xc0] sm:$0xff]
    %v744 = vld [vmem:[%s8 + $0xc8] sm:$0xff]
    %v745 = vld [vmem:[%s8 + $0xd0] sm:$0xff]
    %v746 = vld [vmem:[%s8 + $0xd8] sm:$0xff]
    %v747 = vld [vmem:[%s8 + $0xe0] sm:$0xff]
    %v748 = vld [vmem:[%s8 + $0xe8] sm:$0xff]
    %v749 = vld [vmem:[%s8 + $0xf0] sm:$0xff]
    %v750 = vld [vmem:[%s8 + $0xf8] sm:$0xff]
    %v783 = vunpack.c.l.b16 %v719
    %v784 = vunpack.c.h.b16 %v719
    %v785 = vunpack.c.l.b16 %v720
    %v786 = vunpack.c.h.b16 %v720
    %v787 = vunpack.c.l.b16 %v721
    %v788 = vunpack.c.h.b16 %v721
    %v789 = vunpack.c.l.b16 %v722
    %v790 = vunpack.c.h.b16 %v722
    %v791 = vunpack.c.l.b16 %v723
    %v792 = vunpack.c.h.b16 %v723
    %v793 = vunpack.c.l.b16 %v724
    %v794 = vunpack.c.h.b16 %v724
    %v795 = vunpack.c.l.b16 %v725
    %v796 = vunpack.c.h.b16 %v725
    %v797 = vunpack.c.l.b16 %v726
    %v798 = vunpack.c.h.b16 %v726
    %v799 = vunpack.c.l.b16 %v727
    %v800 = vunpack.c.h.b16 %v727
    %v801 = vunpack.c.l.b16 %v728
    %v802 = vunpack.c.h.b16 %v728
    %v803 = vunpack.c.l.b16 %v729
    %v804 = vunpack.c.h.b16 %v729
    %v805 = vunpack.c.l.b16 %v730
    %v806 = vunpack.c.h.b16 %v730
    %v807 = vunpack.c.l.b16 %v731
    %v808 = vunpack.c.h.b16 %v731
    %v809 = vunpack.c.l.b16 %v732
    %v810 = vunpack.c.h.b16 %v732
    %v811 = vunpack.c.l.b16 %v733
    %v812 = vunpack.c.h.b16 %v733
    %v813 = vunpack.c.l.b16 %v734
    %v814 = vunpack.c.h.b16 %v734
    %v815 = vunpack.c.l.b16 %v735
    %v816 = vunpack.c.h.b16 %v735
    %v817 = vunpack.c.l.b16 %v736
    %v818 = vunpack.c.h.b16 %v736
    %v819 = vunpack.c.l.b16 %v737
    %v820 = vunpack.c.h.b16 %v737
    %v821 = vunpack.c.l.b16 %v738
    %v822 = vunpack.c.h.b16 %v738
    %v823 = vunpack.c.l.b16 %v739
    %v824 = vunpack.c.h.b16 %v739
    %v825 = vunpack.c.l.b16 %v740
    %v826 = vunpack.c.h.b16 %v740
    %v827 = vunpack.c.l.b16 %v741
    %v828 = vunpack.c.h.b16 %v741
    %v829 = vunpack.c.l.b16 %v742
    %v830 = vunpack.c.h.b16 %v742
    %v831 = vunpack.c.l.b16 %v743
    %v832 = vunpack.c.h.b16 %v743
    %v833 = vunpack.c.l.b16 %v744
    %v834 = vunpack.c.h.b16 %v744
    %v835 = vunpack.c.l.b16 %v745
    %v836 = vunpack.c.h.b16 %v745
    %v837 = vunpack.c.l.b16 %v746
    %v838 = vunpack.c.h.b16 %v746
    %v839 = vunpack.c.l.b16 %v747
    %v840 = vunpack.c.h.b16 %v747
    %v841 = vunpack.c.l.b16 %v748
    %v842 = vunpack.c.h.b16 %v748
    %v843 = vunpack.c.l.b16 %v749
    %v844 = vunpack.c.h.b16 %v749
    %v845 = vunpack.c.l.b16 %v750
    %v846 = vunpack.c.h.b16 %v750
    %v847 = vpack.c.b16 %v787, %v783
    %v848 = vpack.c.b16 %v788, %v784
    %v849 = vpack.c.b16 %v789, %v785
    %v850 = vpack.c.b16 %v790, %v786
    %v851 = vpack.c.b16 %v795, %v791
    %v852 = vpack.c.b16 %v796, %v792
    %v853 = vpack.c.b16 %v797, %v793
    %v854 = vpack.c.b16 %v798, %v794
    %v855 = vpack.c.b16 %v803, %v799
    %v856 = vpack.c.b16 %v804, %v800
    %v857 = vpack.c.b16 %v805, %v801
    %v858 = vpack.c.b16 %v806, %v802
    %v859 = vpack.c.b16 %v811, %v807
    %v860 = vpack.c.b16 %v812, %v808
    %v861 = vpack.c.b16 %v813, %v809
    %v862 = vpack.c.b16 %v814, %v810
    %v863 = vpack.c.b16 %v819, %v815
    %v864 = vpack.c.b16 %v820, %v816
    %v865 = vpack.c.b16 %v821, %v817
    %v866 = vpack.c.b16 %v822, %v818
    %v867 = vpack.c.b16 %v827, %v823
    %v868 = vpack.c.b16 %v828, %v824
    %v869 = vpack.c.b16 %v829, %v825
    %v870 = vpack.c.b16 %v830, %v826
    %v871 = vpack.c.b16 %v835, %v831
    %v872 = vpack.c.b16 %v836, %v832
    %v873 = vpack.c.b16 %v837, %v833
    %v874 = vpack.c.b16 %v838, %v834
    %v875 = vpack.c.b16 %v843, %v839
    %v876 = vpack.c.b16 %v844, %v840
    %v877 = vpack.c.b16 %v845, %v841
    %v878 = vpack.c.b16 %v846, %v842
    %911 = vmatprep.subr.bf16.mxu0 %v848
    %912 = vmatpush1.bf16.msra.mxu0 %v847
    %913 = vmatprep.subr.bf16.mxu0 %v852
    %914 = vmatpush1.bf16.msra.mxu0 %v851
    %915 = vmatprep.subr.bf16.mxu0 %v856
    %916 = vmatpush1.bf16.msra.mxu0 %v855
    %917 = vmatprep.subr.bf16.mxu0 %v860
    %918 = vmatpush1.bf16.msra.mxu0 %v859
    %919 = vmatprep.subr.bf16.mxu0 %v864
    %920 = vmatpush1.bf16.msra.mxu0 %v863
    %921 = vmatprep.subr.bf16.mxu0 %v868
    %922 = vmatpush1.bf16.msra.mxu0 %v867
    %923 = vmatprep.subr.bf16.mxu0 %v872
    %924 = vmatpush1.bf16.msra.mxu0 %v871
    %925 = vmatprep.subr.bf16.mxu0 %v876
    %926 = vmatpush1.bf16.msra.mxu0 %v875
    %927 = vmatprep.subr.bf16.mxu0 0
    %928 = vmatpush1.bf16.msra.mxu0 0
    %929 = vmatprep.subr.bf16.mxu0 0
    %930 = vmatpush1.bf16.msra.mxu0 0
    %931 = vmatprep.subr.bf16.mxu0 0
    %932 = vmatpush1.bf16.msra.mxu0 0
    %933 = vmatprep.subr.bf16.mxu0 0
    %934 = vmatpush1.bf16.msra.mxu0 0
    %935 = vmatprep.subr.bf16.mxu0 0
    %936 = vmatpush1.bf16.msra.mxu0 0
    %937 = vmatprep.subr.bf16.mxu0 0
    %938 = vmatpush1.bf16.msra.mxu0 0
    %939 = vmatprep.subr.bf16.mxu0 0
    %940 = vmatpush1.bf16.msra.mxu0 0
    %941 = vmatprep.subr.bf16.mxu0 0
    %942 = vmatpush1.bf16.msra.mxu0 0
    %943 = vmatprep.mubr.bf16.mxu0 0
    %944 = vmatmul.mubr.bf16.gmra.mrb[0].mxu0 %v718
    %v945 = vpop.f32.mrb[0].mxu0
    %v946 = vadd.f32 0.0, %v945
    %v947 = vpop.f32.mrb[0].mxu0
    %v948 = vadd.f32 0.0, %v947
    %v949 = vpop.f32.mrb[0].mxu0
    %v950 = vpop.f32.mrb[0].mxu0
    %951 = vdwg.mxu0
    %952 = vmatprep.subr.bf16.mxu0 %v850
    %953 = vmatpush1.bf16.msra.mxu0 %v849
    %954 = vmatprep.subr.bf16.mxu0 %v854
    %955 = vmatpush1.bf16.msra.mxu0 %v853
    %956 = vmatprep.subr.bf16.mxu0 %v858
    %957 = vmatpush1.bf16.msra.mxu0 %v857
    %958 = vmatprep.subr.bf16.mxu0 %v862
    %959 = vmatpush1.bf16.msra.mxu0 %v861
    %960 = vmatprep.subr.bf16.mxu0 %v866
    %961 = vmatpush1.bf16.msra.mxu0 %v865
    %962 = vmatprep.subr.bf16.mxu0 %v870
    %963 = vmatpush1.bf16.msra.mxu0 %v869
    %964 = vmatprep.subr.bf16.mxu0 %v874
    %965 = vmatpush1.bf16.msra.mxu0 %v873
    %966 = vmatprep.subr.bf16.mxu0 %v878
    %967 = vmatpush1.bf16.msra.mxu0 %v877
    %968 = vmatprep.subr.bf16.mxu0 0
    %969 = vmatpush1.bf16.msra.mxu0 0
    %970 = vmatprep.subr.bf16.mxu0 0
    %971 = vmatpush1.bf16.msra.mxu0 0
    %972 = vmatprep.subr.bf16.mxu0 0
    %973 = vmatpush1.bf16.msra.mxu0 0
    %974 = vmatprep.subr.bf16.mxu0 0
    %975 = vmatpush1.bf16.msra.mxu0 0
    %976 = vmatprep.subr.bf16.mxu0 0
    %977 = vmatpush1.bf16.msra.mxu0 0
    %978 = vmatprep.subr.bf16.mxu0 0
    %979 = vmatpush1.bf16.msra.mxu0 0
    %980 = vmatprep.subr.bf16.mxu0 0
    %981 = vmatpush1.bf16.msra.mxu0 0
    %982 = vmatprep.subr.bf16.mxu0 0
    %983 = vmatpush1.bf16.msra.mxu0 0
    %984 = vmatprep.mubr.bf16.mxu0 0
    %985 = vmatmul.mubr.bf16.gmra.mrb[0].mxu0 %v718
    %v986 = vpop.f32.mrb[0].mxu0
    %v987 = vadd.f32 0.0, %v986
    %v988 = vpop.f32.mrb[0].mxu0
    %v989 = vadd.f32 0.0, %v988
    %v990 = vpop.f32.mrb[0].mxu0
    %v991 = vpop.f32.mrb[0].mxu0
    %992 = vdwg.mxu0
    %v1025 = vunpack.c.l.b16 %v686
    %v1026 = vunpack.c.h.b16 %v686
    %v1027 = vunpack.c.l.b16 %v687
    %v1028 = vunpack.c.h.b16 %v687
    %v1029 = vunpack.c.l.b16 %v688
    %v1030 = vunpack.c.h.b16 %v688
    %v1031 = vunpack.c.l.b16 %v689
    %v1032 = vunpack.c.h.b16 %v689
    %v1033 = vunpack.c.l.b16 %v690
    %v1034 = vunpack.c.h.b16 %v690
    %v1035 = vunpack.c.l.b16 %v691
    %v1036 = vunpack.c.h.b16 %v691
    %v1037 = vunpack.c.l.b16 %v692
    %v1038 = vunpack.c.h.b16 %v692
    %v1039 = vunpack.c.l.b16 %v693
    %v1040 = vunpack.c.h.b16 %v693
    %v1041 = vunpack.c.l.b16 %v694
    %v1042 = vunpack.c.h.b16 %v694
    %v1043 = vunpack.c.l.b16 %v695
    %v1044 = vunpack.c.h.b16 %v695
    %v1045 = vunpack.c.l.b16 %v696
    %v1046 = vunpack.c.h.b16 %v696
    %v1047 = vunpack.c.l.b16 %v697
    %v1048 = vunpack.c.h.b16 %v697
    %v1049 = vunpack.c.l.b16 %v698
    %v1050 = vunpack.c.h.b16 %v698
    %v1051 = vunpack.c.l.b16 %v699
    %v1052 = vunpack.c.h.b16 %v699
    %v1053 = vunpack.c.l.b16 %v700
    %v1054 = vunpack.c.h.b16 %v700
    %v1055 = vunpack.c.l.b16 %v701
    %v1056 = vunpack.c.h.b16 %v701
    %v1057 = vunpack.c.l.b16 %v702
    %v1058 = vunpack.c.h.b16 %v702
    %v1059 = vunpack.c.l.b16 %v703
    %v1060 = vunpack.c.h.b16 %v703
    %v1061 = vunpack.c.l.b16 %v704
    %v1062 = vunpack.c.h.b16 %v704
    %v1063 = vunpack.c.l.b16 %v705
    %v1064 = vunpack.c.h.b16 %v705
    %v1065 = vunpack.c.l.b16 %v706
    %v1066 = vunpack.c.h.b16 %v706
    %v1067 = vunpack.c.l.b16 %v707
    %v1068 = vunpack.c.h.b16 %v707
    %v1069 = vunpack.c.l.b16 %v708
    %v1070 = vunpack.c.h.b16 %v708
    %v1071 = vunpack.c.l.b16 %v709
    %v1072 = vunpack.c.h.b16 %v709
    %v1073 = vunpack.c.l.b16 %v710
    %v1074 = vunpack.c.h.b16 %v710
    %v1075 = vunpack.c.l.b16 %v711
    %v1076 = vunpack.c.h.b16 %v711
    %v1077 = vunpack.c.l.b16 %v712
    %v1078 = vunpack.c.h.b16 %v712
    %v1079 = vunpack.c.l.b16 %v713
    %v1080 = vunpack.c.h.b16 %v713
    %v1081 = vunpack.c.l.b16 %v714
    %v1082 = vunpack.c.h.b16 %v714
    %v1083 = vunpack.c.l.b16 %v715
    %v1084 = vunpack.c.h.b16 %v715
    %v1085 = vunpack.c.l.b16 %v716
    %v1086 = vunpack.c.h.b16 %v716
    %v1087 = vunpack.c.l.b16 %v717
    %v1088 = vunpack.c.h.b16 %v717
    %v1089 = vpack.c.b16 %v1029, %v1025
    %v1090 = vpack.c.b16 %v1030, %v1026
    %v1091 = vpack.c.b16 %v1031, %v1027
    %v1092 = vpack.c.b16 %v1032, %v1028
    %v1093 = vpack.c.b16 %v1037, %v1033
    %v1094 = vpack.c.b16 %v1038, %v1034
    %v1095 = vpack.c.b16 %v1039, %v1035
    %v1096 = vpack.c.b16 %v1040, %v1036
    %v1097 = vpack.c.b16 %v1045, %v1041
    %v1098 = vpack.c.b16 %v1046, %v1042
    %v1099 = vpack.c.b16 %v1047, %v1043
    %v1100 = vpack.c.b16 %v1048, %v1044
    %v1101 = vpack.c.b16 %v1053, %v1049
    %v1102 = vpack.c.b16 %v1054, %v1050
    %v1103 = vpack.c.b16 %v1055, %v1051
    %v1104 = vpack.c.b16 %v1056, %v1052
    %v1105 = vpack.c.b16 %v1061, %v1057
    %v1106 = vpack.c.b16 %v1062, %v1058
    %v1107 = vpack.c.b16 %v1063, %v1059
    %v1108 = vpack.c.b16 %v1064, %v1060
    %v1109 = vpack.c.b16 %v1069, %v1065
    %v1110 = vpack.c.b16 %v1070, %v1066
    %v1111 = vpack.c.b16 %v1071, %v1067
    %v1112 = vpack.c.b16 %v1072, %v1068
    %v1113 = vpack.c.b16 %v1077, %v1073
    %v1114 = vpack.c.b16 %v1078, %v1074
    %v1115 = vpack.c.b16 %v1079, %v1075
    %v1116 = vpack.c.b16 %v1080, %v1076
    %v1117 = vpack.c.b16 %v1085, %v1081
    %v1118 = vpack.c.b16 %v1086, %v1082
    %v1119 = vpack.c.b16 %v1087, %v1083
    %v1120 = vpack.c.b16 %v1088, %v1084
    %1153 = vmatprep.subr.bf16.mxu0 %v1090
    %1154 = vmatpush1.bf16.msra.mxu0 %v1089
    %1155 = vmatprep.subr.bf16.mxu0 %v1094
    %1156 = vmatpush1.bf16.msra.mxu0 %v1093
    %1157 = vmatprep.subr.bf16.mxu0 %v1098
    %1158 = vmatpush1.bf16.msra.mxu0 %v1097
    %1159 = vmatprep.subr.bf16.mxu0 %v1102
    %1160 = vmatpush1.bf16.msra.mxu0 %v1101
    %1161 = vmatprep.subr.bf16.mxu0 %v1106
    %1162 = vmatpush1.bf16.msra.mxu0 %v1105
    %1163 = vmatprep.subr.bf16.mxu0 %v1110
    %1164 = vmatpush1.bf16.msra.mxu0 %v1109
    %1165 = vmatprep.subr.bf16.mxu0 %v1114
    %1166 = vmatpush1.bf16.msra.mxu0 %v1113
    %1167 = vmatprep.subr.bf16.mxu0 %v1118
    %1168 = vmatpush1.bf16.msra.mxu0 %v1117
    %1169 = vmatprep.subr.bf16.mxu0 0
    %1170 = vmatpush1.bf16.msra.mxu0 0
    %1171 = vmatprep.subr.bf16.mxu0 0
    %1172 = vmatpush1.bf16.msra.mxu0 0
    %1173 = vmatprep.subr.bf16.mxu0 0
    %1174 = vmatpush1.bf16.msra.mxu0 0
    %1175 = vmatprep.subr.bf16.mxu0 0
    %1176 = vmatpush1.bf16.msra.mxu0 0
    %1177 = vmatprep.subr.bf16.mxu0 0
    %1178 = vmatpush1.bf16.msra.mxu0 0
    %1179 = vmatprep.subr.bf16.mxu0 0
    %1180 = vmatpush1.bf16.msra.mxu0 0
    %1181 = vmatprep.subr.bf16.mxu0 0
    %1182 = vmatpush1.bf16.msra.mxu0 0
    %1183 = vmatprep.subr.bf16.mxu0 0
    %1184 = vmatpush1.bf16.msra.mxu0 0
    %1185 = vmatprep.mubr.bf16.mxu0 0
    %1186 = vmatmul.mubr.bf16.gmra.mrb[0].mxu0 %v685
    %v1187 = vpop.f32.mrb[0].mxu0
    %v1188 = vadd.f32 %v946, %v1187
    %v1189 = vpop.f32.mrb[0].mxu0
    %v1190 = vadd.f32 %v948, %v1189
    %v1191 = vpop.f32.mrb[0].mxu0
    %v1192 = vpop.f32.mrb[0].mxu0
    %1193 = vdwg.mxu0
    %1194 = vmatprep.subr.bf16.mxu0 %v1092
    %1195 = vmatpush1.bf16.msra.mxu0 %v1091
    %1196 = vmatprep.subr.bf16.mxu0 %v1096
    %1197 = vmatpush1.bf16.msra.mxu0 %v1095
    %1198 = vmatprep.subr.bf16.mxu0 %v1100
    %1199 = vmatpush1.bf16.msra.mxu0 %v1099
    %1200 = vmatprep.subr.bf16.mxu0 %v1104
    %1201 = vmatpush1.bf16.msra.mxu0 %v1103
    %1202 = vmatprep.subr.bf16.mxu0 %v1108
    %1203 = vmatpush1.bf16.msra.mxu0 %v1107
    %1204 = vmatprep.subr.bf16.mxu0 %v1112
    %1205 = vmatpush1.bf16.msra.mxu0 %v1111
    %1206 = vmatprep.subr.bf16.mxu0 %v1116
    %1207 = vmatpush1.bf16.msra.mxu0 %v1115
    %1208 = vmatprep.subr.bf16.mxu0 %v1120
    %1209 = vmatpush1.bf16.msra.mxu0 %v1119
    %1210 = vmatprep.subr.bf16.mxu0 0
    %1211 = vmatpush1.bf16.msra.mxu0 0
    %1212 = vmatprep.subr.bf16.mxu0 0
    %1213 = vmatpush1.bf16.msra.mxu0 0
    %1214 = vmatprep.subr.bf16.mxu0 0
    %1215 = vmatpush1.bf16.msra.mxu0 0
    %1216 = vmatprep.subr.bf16.mxu0 0
    %1217 = vmatpush1.bf16.msra.mxu0 0
    %1218 = vmatprep.subr.bf16.mxu0 0
    %1219 = vmatpush1.bf16.msra.mxu0 0
    %1220 = vmatprep.subr.bf16.mxu0 0
    %1221 = vmatpush1.bf16.msra.mxu0 0
    %1222 = vmatprep.subr.bf16.mxu0 0
    %1223 = vmatpush1.bf16.msra.mxu0 0
    %1224 = vmatprep.subr.bf16.mxu0 0
    %1225 = vmatpush1.bf16.msra.mxu0 0
    %1226 = vmatprep.mubr.bf16.mxu0 0
    %1227 = vmatmul.mubr.bf16.gmra.mrb[0].mxu0 %v685
    %v1228 = vpop.f32.mrb[0].mxu0
    %v1229 = vadd.f32 %v987, %v1228
    %v1230 = vpop.f32.mrb[0].mxu0
    %v1231 = vadd.f32 %v989, %v1230
    %v1232 = vpop.f32.mrb[0].mxu0
    %v1233 = vpop.f32.mrb[0].mxu0
    %1234 = vdwg.mxu0
    %v1235 = vld [vmem:[%s9] sm:$0xf]
    %v1237 = vlaneseq
    %v1238 = vshrl.u32 %v1237, 7
    %v1239 = vsub.s32 0, %v1238
    %v1240 = vrot.slane %v1235, %v1239
    %v1241 = vlaneseq
    %v1242 = vshrl.u32 %v1241, 7
    %v1243 = vsub.s32 1, %v1242
    %v1244 = vrot.slane %v1235, %v1243
    %v1245 = vlaneseq
    %v1246 = vshrl.u32 %v1245, 7
    %v1247 = vsub.s32 2, %v1246
    %v1248 = vrot.slane %v1235, %v1247
    %v1249 = vlaneseq
    %v1250 = vshrl.u32 %v1249, 7
    %v1251 = vsub.s32 3, %v1250
    %v1252 = vrot.slane %v1235, %v1251
    %v1257 = vadd.f32 %v1188, %v1240
    %v1258 = vadd.f32 %v1190, %v1244
    %v1259 = vadd.f32 %v1229, %v1248
    %v1260 = vadd.f32 %v1231, %v1252
    %v1261 = vxor.u32 %v1257, 2147483648
    %v1262 = vmul.f32 %v1261, 1.442695
    %v1263 = vpow.pop %v1262
    %v1264 = vadd.f32 %v1263, 1.0
    %v1265 = vrcp.pop %v1264
    %v1266 = vmul.f32 1.0, %v1265
    %v1267 = vxor.u32 %v1258, 2147483648
    %v1268 = vmul.f32 %v1267, 1.442695
    %v1269 = vpow.pop %v1268
    %v1270 = vadd.f32 %v1269, 1.0
    %v1271 = vrcp.pop %v1270
    %v1272 = vmul.f32 1.0, %v1271
    %v1273 = vtanh.pop %v1259
    %v1274 = vxor.u32 %v1260, 2147483648
    %v1275 = vmul.f32 %v1274, 1.442695
    %v1276 = vpow.pop %v1275
    %v1277 = vadd.f32 %v1276, 1.0
    %v1278 = vrcp.pop %v1277
    %v1279 = vmul.f32 1.0, %v1278
    %v1280 = vmul.f32 %v1272, %v684
    %v1281 = vmul.f32 %v1266, %v1273
    %v1282 = vadd.f32 %v1280, %v1281
    %v1283 = vtanh.pop %v1282
    %v1284 = vmul.f32 %v1279, %v1283
    %1285 = vst [vmem:[#allocation2] sm:$0xff] %v680
    %1286 = vst [vmem:[#allocation3] sm:$0xff] %v678
    %1287 = vst [vmem:[%s681] sm:$0xff] %v1284
    %1288 = vst [vmem:[%s683] sm:$0xff] %v1282
    %v1289 = vld [vmem:[#allocation5] sm:$0xff]
    %1290 = vrot.lane.b32.xlu0 %v1289, 1
    %v1291 = vpop.permute.xlu0 %1290
    %v1292 = vsel %vm59, %v1291, 0.0
    %v1293 = vlaneseq
    %v1294 = vshrl.u32 %v1293, 7
    %v1295 = vsub.s32 0, %v1294
    %v1296 = vrot.slane %v1292, %v1295
    %1298 = vbcast.lane.b32.xlu0 %v1296, 256
    %v1299 = vpop.permute.xlu0 %1298
    %s1301 = sor.u32 256, 8
    %1302 = vbcast.lane.b32.xlu0 %v1296, %s1301
    %v1303 = vpop.permute.xlu0 %1302
    %s1305 = sor.u32 256, 16
    %1306 = vbcast.lane.b32.xlu0 %v1296, %s1305
    %v1307 = vpop.permute.xlu0 %1306
    %s1309 = sor.u32 256, 24
    %1310 = vbcast.lane.b32.xlu0 %v1296, %s1309
    %v1311 = vpop.permute.xlu0 %1310
    %s1313 = sor.u32 256, 32
    %1314 = vbcast.lane.b32.xlu0 %v1296, %s1313
    %v1315 = vpop.permute.xlu0 %1314
    %s1317 = sor.u32 256, 40
    %1318 = vbcast.lane.b32.xlu0 %v1296, %s1317
    %v1319 = vpop.permute.xlu0 %1318
    %s1321 = sor.u32 256, 48
    %1322 = vbcast.lane.b32.xlu0 %v1296, %s1321
    %v1323 = vpop.permute.xlu0 %1322
    %s1325 = sor.u32 256, 56
    %1326 = vbcast.lane.b32.xlu0 %v1296, %s1325
    %v1327 = vpop.permute.xlu0 %1326
    %s1329 = sor.u32 256, 64
    %1330 = vbcast.lane.b32.xlu0 %v1296, %s1329
    %v1331 = vpop.permute.xlu0 %1330
    %s1333 = sor.u32 256, 72
    %1334 = vbcast.lane.b32.xlu0 %v1296, %s1333
    %v1335 = vpop.permute.xlu0 %1334
    %s1337 = sor.u32 256, 80
    %1338 = vbcast.lane.b32.xlu0 %v1296, %s1337
    %v1339 = vpop.permute.xlu0 %1338
    %s1341 = sor.u32 256, 88
    %1342 = vbcast.lane.b32.xlu0 %v1296, %s1341
    %v1343 = vpop.permute.xlu0 %1342
    %s1345 = sor.u32 256, 96
    %1346 = vbcast.lane.b32.xlu0 %v1296, %s1345
    %v1347 = vpop.permute.xlu0 %1346
    %s1349 = sor.u32 256, 104
    %1350 = vbcast.lane.b32.xlu0 %v1296, %s1349
    %v1351 = vpop.permute.xlu0 %1350
    %s1353 = sor.u32 256, 112
    %1354 = vbcast.lane.b32.xlu0 %v1296, %s1353
    %v1355 = vpop.permute.xlu0 %1354
    %s1357 = sor.u32 256, 120
    %1358 = vbcast.lane.b32.xlu0 %v1296, %s1357
    %v1359 = vpop.permute.xlu0 %1358
    %v1360 = vlaneseq
    %v1361 = vshrl.u32 %v1360, 7
    %v1362 = vsub.s32 1, %v1361
    %v1363 = vrot.slane %v1292, %v1362
    %1365 = vbcast.lane.b32.xlu0 %v1363, 256
    %v1366 = vpop.permute.xlu0 %1365
    %s1368 = sor.u32 256, 8
    %1369 = vbcast.lane.b32.xlu0 %v1363, %s1368
    %v1370 = vpop.permute.xlu0 %1369
    %s1372 = sor.u32 256, 16
    %1373 = vbcast.lane.b32.xlu0 %v1363, %s1372
    %v1374 = vpop.permute.xlu0 %1373
    %s1376 = sor.u32 256, 24
    %1377 = vbcast.lane.b32.xlu0 %v1363, %s1376
    %v1378 = vpop.permute.xlu0 %1377
    %s1380 = sor.u32 256, 32
    %1381 = vbcast.lane.b32.xlu0 %v1363, %s1380
    %v1382 = vpop.permute.xlu0 %1381
    %s1384 = sor.u32 256, 40
    %1385 = vbcast.lane.b32.xlu0 %v1363, %s1384
    %v1386 = vpop.permute.xlu0 %1385
    %s1388 = sor.u32 256, 48
    %1389 = vbcast.lane.b32.xlu0 %v1363, %s1388
    %v1390 = vpop.permute.xlu0 %1389
    %s1392 = sor.u32 256, 56
    %1393 = vbcast.lane.b32.xlu0 %v1363, %s1392
    %v1394 = vpop.permute.xlu0 %1393
    %s1396 = sor.u32 256, 64
    %1397 = vbcast.lane.b32.xlu0 %v1363, %s1396
    %v1398 = vpop.permute.xlu0 %1397
    %s1400 = sor.u32 256, 72
    %1401 = vbcast.lane.b32.xlu0 %v1363, %s1400
    %v1402 = vpop.permute.xlu0 %1401
    %s1404 = sor.u32 256, 80
    %1405 = vbcast.lane.b32.xlu0 %v1363, %s1404
    %v1406 = vpop.permute.xlu0 %1405
    %s1408 = sor.u32 256, 88
    %1409 = vbcast.lane.b32.xlu0 %v1363, %s1408
    %v1410 = vpop.permute.xlu0 %1409
    %s1412 = sor.u32 256, 96
    %1413 = vbcast.lane.b32.xlu0 %v1363, %s1412
    %v1414 = vpop.permute.xlu0 %1413
    %s1416 = sor.u32 256, 104
    %1417 = vbcast.lane.b32.xlu0 %v1363, %s1416
    %v1418 = vpop.permute.xlu0 %1417
    %s1420 = sor.u32 256, 112
    %1421 = vbcast.lane.b32.xlu0 %v1363, %s1420
    %v1422 = vpop.permute.xlu0 %1421
    %s1424 = sor.u32 256, 120
    %1425 = vbcast.lane.b32.xlu0 %v1363, %s1424
    %v1426 = vpop.permute.xlu0 %1425
    %v1427 = vlaneseq
    %v1428 = vshrl.u32 %v1427, 7
    %v1429 = vsub.s32 2, %v1428
    %v1430 = vrot.slane %v1292, %v1429
    %1432 = vbcast.lane.b32.xlu0 %v1430, 256
    %v1433 = vpop.permute.xlu0 %1432
    %s1435 = sor.u32 256, 8
    %1436 = vbcast.lane.b32.xlu0 %v1430, %s1435
    %v1437 = vpop.permute.xlu0 %1436
    %s1439 = sor.u32 256, 16
    %1440 = vbcast.lane.b32.xlu0 %v1430, %s1439
    %v1441 = vpop.permute.xlu0 %1440
    %s1443 = sor.u32 256, 24
    %1444 = vbcast.lane.b32.xlu0 %v1430, %s1443
    %v1445 = vpop.permute.xlu0 %1444
    %s1447 = sor.u32 256, 32
    %1448 = vbcast.lane.b32.xlu0 %v1430, %s1447
    %v1449 = vpop.permute.xlu0 %1448
    %s1451 = sor.u32 256, 40
    %1452 = vbcast.lane.b32.xlu0 %v1430, %s1451
    %v1453 = vpop.permute.xlu0 %1452
    %s1455 = sor.u32 256, 48
    %1456 = vbcast.lane.b32.xlu0 %v1430, %s1455
    %v1457 = vpop.permute.xlu0 %1456
    %s1459 = sor.u32 256, 56
    %1460 = vbcast.lane.b32.xlu0 %v1430, %s1459
    %v1461 = vpop.permute.xlu0 %1460
    %s1463 = sor.u32 256, 64
    %1464 = vbcast.lane.b32.xlu0 %v1430, %s1463
    %v1465 = vpop.permute.xlu0 %1464
    %s1467 = sor.u32 256, 72
    %1468 = vbcast.lane.b32.xlu0 %v1430, %s1467
    %v1469 = vpop.permute.xlu0 %1468
    %s1471 = sor.u32 256, 80
    %1472 = vbcast.lane.b32.xlu0 %v1430, %s1471
    %v1473 = vpop.permute.xlu0 %1472
    %s1475 = sor.u32 256, 88
    %1476 = vbcast.lane.b32.xlu0 %v1430, %s1475
    %v1477 = vpop.permute.xlu0 %1476
    %s1479 = sor.u32 256, 96
    %1480 = vbcast.lane.b32.xlu0 %v1430, %s1479
    %v1481 = vpop.permute.xlu0 %1480
    %s1483 = sor.u32 256, 104
    %1484 = vbcast.lane.b32.xlu0 %v1430, %s1483
    %v1485 = vpop.permute.xlu0 %1484
    %s1487 = sor.u32 256, 112
    %1488 = vbcast.lane.b32.xlu0 %v1430, %s1487
    %v1489 = vpop.permute.xlu0 %1488
    %s1491 = sor.u32 256, 120
    %1492 = vbcast.lane.b32.xlu0 %v1430, %s1491
    %v1493 = vpop.permute.xlu0 %1492
    %v1494 = vlaneseq
    %v1495 = vshrl.u32 %v1494, 7
    %v1496 = vsub.s32 3, %v1495
    %v1497 = vrot.slane %v1292, %v1496
    %1499 = vbcast.lane.b32.xlu0 %v1497, 256
    %v1500 = vpop.permute.xlu0 %1499
    %s1502 = sor.u32 256, 8
    %1503 = vbcast.lane.b32.xlu0 %v1497, %s1502
    %v1504 = vpop.permute.xlu0 %1503
    %s1506 = sor.u32 256, 16
    %1507 = vbcast.lane.b32.xlu0 %v1497, %s1506
    %v1508 = vpop.permute.xlu0 %1507
    %s1510 = sor.u32 256, 24
    %1511 = vbcast.lane.b32.xlu0 %v1497, %s1510
    %v1512 = vpop.permute.xlu0 %1511
    %s1514 = sor.u32 256, 32
    %1515 = vbcast.lane.b32.xlu0 %v1497, %s1514
    %v1516 = vpop.permute.xlu0 %1515
    %s1518 = sor.u32 256, 40
    %1519 = vbcast.lane.b32.xlu0 %v1497, %s1518
    %v1520 = vpop.permute.xlu0 %1519
    %s1522 = sor.u32 256, 48
    %1523 = vbcast.lane.b32.xlu0 %v1497, %s1522
    %v1524 = vpop.permute.xlu0 %1523
    %s1526 = sor.u32 256, 56
    %1527 = vbcast.lane.b32.xlu0 %v1497, %s1526
    %v1528 = vpop.permute.xlu0 %1527
    %s1530 = sor.u32 256, 64
    %1531 = vbcast.lane.b32.xlu0 %v1497, %s1530
    %v1532 = vpop.permute.xlu0 %1531
    %s1534 = sor.u32 256, 72
    %1535 = vbcast.lane.b32.xlu0 %v1497, %s1534
    %v1536 = vpop.permute.xlu0 %1535
    %s1538 = sor.u32 256, 80
    %1539 = vbcast.lane.b32.xlu0 %v1497, %s1538
    %v1540 = vpop.permute.xlu0 %1539
    %s1542 = sor.u32 256, 88
    %1543 = vbcast.lane.b32.xlu0 %v1497, %s1542
    %v1544 = vpop.permute.xlu0 %1543
    %s1546 = sor.u32 256, 96
    %1547 = vbcast.lane.b32.xlu0 %v1497, %s1546
    %v1548 = vpop.permute.xlu0 %1547
    %s1550 = sor.u32 256, 104
    %1551 = vbcast.lane.b32.xlu0 %v1497, %s1550
    %v1552 = vpop.permute.xlu0 %1551
    %s1554 = sor.u32 256, 112
    %1555 = vbcast.lane.b32.xlu0 %v1497, %s1554
    %v1556 = vpop.permute.xlu0 %1555
    %s1558 = sor.u32 256, 120
    %1559 = vbcast.lane.b32.xlu0 %v1497, %s1558
    %v1560 = vpop.permute.xlu0 %1559
    %v1561 = vlaneseq
    %v1562 = vshrl.u32 %v1561, 7
    %v1563 = vsub.s32 4, %v1562
    %v1564 = vrot.slane %v1292, %v1563
    %1566 = vbcast.lane.b32.xlu0 %v1564, 256
    %v1567 = vpop.permute.xlu0 %1566
    %s1569 = sor.u32 256, 8
    %1570 = vbcast.lane.b32.xlu0 %v1564, %s1569
    %v1571 = vpop.permute.xlu0 %1570
    %s1573 = sor.u32 256, 16
    %1574 = vbcast.lane.b32.xlu0 %v1564, %s1573
    %v1575 = vpop.permute.xlu0 %1574
    %s1577 = sor.u32 256, 24
    %1578 = vbcast.lane.b32.xlu0 %v1564, %s1577
    %v1579 = vpop.permute.xlu0 %1578
    %s1581 = sor.u32 256, 32
    %1582 = vbcast.lane.b32.xlu0 %v1564, %s1581
    %v1583 = vpop.permute.xlu0 %1582
    %s1585 = sor.u32 256, 40
    %1586 = vbcast.lane.b32.xlu0 %v1564, %s1585
    %v1587 = vpop.permute.xlu0 %1586
    %s1589 = sor.u32 256, 48
    %1590 = vbcast.lane.b32.xlu0 %v1564, %s1589
    %v1591 = vpop.permute.xlu0 %1590
    %s1593 = sor.u32 256, 56
    %1594 = vbcast.lane.b32.xlu0 %v1564, %s1593
    %v1595 = vpop.permute.xlu0 %1594
    %s1597 = sor.u32 256, 64
    %1598 = vbcast.lane.b32.xlu0 %v1564, %s1597
    %v1599 = vpop.permute.xlu0 %1598
    %s1601 = sor.u32 256, 72
    %1602 = vbcast.lane.b32.xlu0 %v1564, %s1601
    %v1603 = vpop.permute.xlu0 %1602
    %s1605 = sor.u32 256, 80
    %1606 = vbcast.lane.b32.xlu0 %v1564, %s1605
    %v1607 = vpop.permute.xlu0 %1606
    %s1609 = sor.u32 256, 88
    %1610 = vbcast.lane.b32.xlu0 %v1564, %s1609
    %v1611 = vpop.permute.xlu0 %1610
    %s1613 = sor.u32 256, 96
    %1614 = vbcast.lane.b32.xlu0 %v1564, %s1613
    %v1615 = vpop.permute.xlu0 %1614
    %s1617 = sor.u32 256, 104
    %1618 = vbcast.lane.b32.xlu0 %v1564, %s1617
    %v1619 = vpop.permute.xlu0 %1618
    %s1621 = sor.u32 256, 112
    %1622 = vbcast.lane.b32.xlu0 %v1564, %s1621
    %v1623 = vpop.permute.xlu0 %1622
    %s1625 = sor.u32 256, 120
    %1626 = vbcast.lane.b32.xlu0 %v1564, %s1625
    %v1627 = vpop.permute.xlu0 %1626
    %v1628 = vlaneseq
    %v1629 = vshrl.u32 %v1628, 7
    %v1630 = vsub.s32 5, %v1629
    %v1631 = vrot.slane %v1292, %v1630
    %1633 = vbcast.lane.b32.xlu0 %v1631, 256
    %v1634 = vpop.permute.xlu0 %1633
    %s1636 = sor.u32 256, 8
    %1637 = vbcast.lane.b32.xlu0 %v1631, %s1636
    %v1638 = vpop.permute.xlu0 %1637
    %s1640 = sor.u32 256, 16
    %1641 = vbcast.lane.b32.xlu0 %v1631, %s1640
    %v1642 = vpop.permute.xlu0 %1641
    %s1644 = sor.u32 256, 24
    %1645 = vbcast.lane.b32.xlu0 %v1631, %s1644
    %v1646 = vpop.permute.xlu0 %1645
    %s1648 = sor.u32 256, 32
    %1649 = vbcast.lane.b32.xlu0 %v1631, %s1648
    %v1650 = vpop.permute.xlu0 %1649
    %s1652 = sor.u32 256, 40
    %1653 = vbcast.lane.b32.xlu0 %v1631, %s1652
    %v1654 = vpop.permute.xlu0 %1653
    %s1656 = sor.u32 256, 48
    %1657 = vbcast.lane.b32.xlu0 %v1631, %s1656
    %v1658 = vpop.permute.xlu0 %1657
    %s1660 = sor.u32 256, 56
    %1661 = vbcast.lane.b32.xlu0 %v1631, %s1660
    %v1662 = vpop.permute.xlu0 %1661
    %s1664 = sor.u32 256, 64
    %1665 = vbcast.lane.b32.xlu0 %v1631, %s1664
    %v1666 = vpop.permute.xlu0 %1665
    %s1668 = sor.u32 256, 72
    %1669 = vbcast.lane.b32.xlu0 %v1631, %s1668
    %v1670 = vpop.permute.xlu0 %1669
    %s1672 = sor.u32 256, 80
    %1673 = vbcast.lane.b32.xlu0 %v1631, %s1672
    %v1674 = vpop.permute.xlu0 %1673
    %s1676 = sor.u32 256, 88
    %1677 = vbcast.lane.b32.xlu0 %v1631, %s1676
    %v1678 = vpop.permute.xlu0 %1677
    %s1680 = sor.u32 256, 96
    %1681 = vbcast.lane.b32.xlu0 %v1631, %s1680
    %v1682 = vpop.permute.xlu0 %1681
    %s1684 = sor.u32 256, 104
    %1685 = vbcast.lane.b32.xlu0 %v1631, %s1684
    %v1686 = vpop.permute.xlu0 %1685
    %s1688 = sor.u32 256, 112
    %1689 = vbcast.lane.b32.xlu0 %v1631, %s1688
    %v1690 = vpop.permute.xlu0 %1689
    %s1692 = sor.u32 256, 120
    %1693 = vbcast.lane.b32.xlu0 %v1631, %s1692
    %v1694 = vpop.permute.xlu0 %1693
    %v1695 = vlaneseq
    %v1696 = vshrl.u32 %v1695, 7
    %v1697 = vsub.s32 6, %v1696
    %v1698 = vrot.slane %v1292, %v1697
    %1700 = vbcast.lane.b32.xlu0 %v1698, 256
    %v1701 = vpop.permute.xlu0 %1700
    %s1703 = sor.u32 256, 8
    %1704 = vbcast.lane.b32.xlu0 %v1698, %s1703
    %v1705 = vpop.permute.xlu0 %1704
    %s1707 = sor.u32 256, 16
    %1708 = vbcast.lane.b32.xlu0 %v1698, %s1707
    %v1709 = vpop.permute.xlu0 %1708
    %s1711 = sor.u32 256, 24
    %1712 = vbcast.lane.b32.xlu0 %v1698, %s1711
    %v1713 = vpop.permute.xlu0 %1712
    %s1715 = sor.u32 256, 32
    %1716 = vbcast.lane.b32.xlu0 %v1698, %s1715
    %v1717 = vpop.permute.xlu0 %1716
    %s1719 = sor.u32 256, 40
    %1720 = vbcast.lane.b32.xlu0 %v1698, %s1719
    %v1721 = vpop.permute.xlu0 %1720
    %s1723 = sor.u32 256, 48
    %1724 = vbcast.lane.b32.xlu0 %v1698, %s1723
    %v1725 = vpop.permute.xlu0 %1724
    %s1727 = sor.u32 256, 56
    %1728 = vbcast.lane.b32.xlu0 %v1698, %s1727
    %v1729 = vpop.permute.xlu0 %1728
    %s1731 = sor.u32 256, 64
    %1732 = vbcast.lane.b32.xlu0 %v1698, %s1731
    %v1733 = vpop.permute.xlu0 %1732
    %s1735 = sor.u32 256, 72
    %1736 = vbcast.lane.b32.xlu0 %v1698, %s1735
    %v1737 = vpop.permute.xlu0 %1736
    %s1739 = sor.u32 256, 80
    %1740 = vbcast.lane.b32.xlu0 %v1698, %s1739
    %v1741 = vpop.permute.xlu0 %1740
    %s1743 = sor.u32 256, 88
    %1744 = vbcast.lane.b32.xlu0 %v1698, %s1743
    %v1745 = vpop.permute.xlu0 %1744
    %s1747 = sor.u32 256, 96
    %1748 = vbcast.lane.b32.xlu0 %v1698, %s1747
    %v1749 = vpop.permute.xlu0 %1748
    %s1751 = sor.u32 256, 104
    %1752 = vbcast.lane.b32.xlu0 %v1698, %s1751
    %v1753 = vpop.permute.xlu0 %1752
    %s1755 = sor.u32 256, 112
    %1756 = vbcast.lane.b32.xlu0 %v1698, %s1755
    %v1757 = vpop.permute.xlu0 %1756
    %s1759 = sor.u32 256, 120
    %1760 = vbcast.lane.b32.xlu0 %v1698, %s1759
    %v1761 = vpop.permute.xlu0 %1760
    %v1762 = vlaneseq
    %v1763 = vshrl.u32 %v1762, 7
    %v1764 = vsub.s32 7, %v1763
    %v1765 = vrot.slane %v1292, %v1764
    %1767 = vbcast.lane.b32.xlu0 %v1765, 256
    %v1768 = vpop.permute.xlu0 %1767
    %s1770 = sor.u32 256, 8
    %1771 = vbcast.lane.b32.xlu0 %v1765, %s1770
    %v1772 = vpop.permute.xlu0 %1771
    %s1774 = sor.u32 256, 16
    %1775 = vbcast.lane.b32.xlu0 %v1765, %s1774
    %v1776 = vpop.permute.xlu0 %1775
    %s1778 = sor.u32 256, 24
    %1779 = vbcast.lane.b32.xlu0 %v1765, %s1778
    %v1780 = vpop.permute.xlu0 %1779
    %s1782 = sor.u32 256, 32
    %1783 = vbcast.lane.b32.xlu0 %v1765, %s1782
    %v1784 = vpop.permute.xlu0 %1783
    %s1786 = sor.u32 256, 40
    %1787 = vbcast.lane.b32.xlu0 %v1765, %s1786
    %v1788 = vpop.permute.xlu0 %1787
    %s1790 = sor.u32 256, 48
    %1791 = vbcast.lane.b32.xlu0 %v1765, %s1790
    %v1792 = vpop.permute.xlu0 %1791
    %s1794 = sor.u32 256, 56
    %1795 = vbcast.lane.b32.xlu0 %v1765, %s1794
    %v1796 = vpop.permute.xlu0 %1795
    %s1798 = sor.u32 256, 64
    %1799 = vbcast.lane.b32.xlu0 %v1765, %s1798
    %v1800 = vpop.permute.xlu0 %1799
    %s1802 = sor.u32 256, 72
    %1803 = vbcast.lane.b32.xlu0 %v1765, %s1802
    %v1804 = vpop.permute.xlu0 %1803
    %s1806 = sor.u32 256, 80
    %1807 = vbcast.lane.b32.xlu0 %v1765, %s1806
    %v1808 = vpop.permute.xlu0 %1807
    %s1810 = sor.u32 256, 88
    %1811 = vbcast.lane.b32.xlu0 %v1765, %s1810
    %v1812 = vpop.permute.xlu0 %1811
    %s1814 = sor.u32 256, 96
    %1815 = vbcast.lane.b32.xlu0 %v1765, %s1814
    %v1816 = vpop.permute.xlu0 %1815
    %s1818 = sor.u32 256, 104
    %1819 = vbcast.lane.b32.xlu0 %v1765, %s1818
    %v1820 = vpop.permute.xlu0 %1819
    %s1822 = sor.u32 256, 112
    %1823 = vbcast.lane.b32.xlu0 %v1765, %s1822
    %v1824 = vpop.permute.xlu0 %1823
    %s1826 = sor.u32 256, 120
    %1827 = vbcast.lane.b32.xlu0 %v1765, %s1826
    %v1828 = vpop.permute.xlu0 %1827
    %v1829 = vld [vmem:[%s10] ss:$4 sm:$0x3]
    %v1831 = vlaneseq
    %v1832 = vshrl.u32 %v1831, 7
    %v1833 = vsub.s32 0, %v1832
    %v1834 = vrot.slane %v1829, %v1833
    %v1835 = vlaneseq
    %v1836 = vshrl.u32 %v1835, 7
    %v1837 = vsub.s32 1, %v1836
    %v1838 = vrot.slane %v1829, %v1837
    %v1841 = vmul.f32 %v1299, %v1834
    %v1842 = vmul.f32 %v1299, %v1838
    %v1843 = vmul.f32 %v1303, %v1834
    %v1844 = vmul.f32 %v1303, %v1838
    %v1845 = vmul.f32 %v1307, %v1834
    %v1846 = vmul.f32 %v1307, %v1838
    %v1847 = vmul.f32 %v1311, %v1834
    %v1848 = vmul.f32 %v1311, %v1838
    %v1849 = vmul.f32 %v1315, %v1834
    %v1850 = vmul.f32 %v1315, %v1838
    %v1851 = vmul.f32 %v1319, %v1834
    %v1852 = vmul.f32 %v1319, %v1838
    %v1853 = vmul.f32 %v1323, %v1834
    %v1854 = vmul.f32 %v1323, %v1838
    %v1855 = vmul.f32 %v1327, %v1834
    %v1856 = vmul.f32 %v1327, %v1838
    %v1857 = vmul.f32 %v1331, %v1834
    %v1858 = vmul.f32 %v1331, %v1838
    %v1859 = vmul.f32 %v1335, %v1834
    %v1860 = vmul.f32 %v1335, %v1838
    %v1861 = vmul.f32 %v1339, %v1834
    %v1862 = vmul.f32 %v1339, %v1838
    %v1863 = vmul.f32 %v1343, %v1834
    %v1864 = vmul.f32 %v1343, %v1838
    %v1865 = vmul.f32 %v1347, %v1834
    %v1866 = vmul.f32 %v1347, %v1838
    %v1867 = vmul.f32 %v1351, %v1834
    %v1868 = vmul.f32 %v1351, %v1838
    %v1869 = vmul.f32 %v1355, %v1834
    %v1870 = vmul.f32 %v1355, %v1838
    %v1871 = vmul.f32 %v1359, %v1834
    %v1872 = vmul.f32 %v1359, %v1838
    %v1873 = vmul.f32 %v1366, %v1834
    %v1874 = vmul.f32 %v1366, %v1838
    %v1875 = vmul.f32 %v1370, %v1834
    %v1876 = vmul.f32 %v1370, %v1838
    %v1877 = vmul.f32 %v1374, %v1834
    %v1878 = vmul.f32 %v1374, %v1838
    %v1879 = vmul.f32 %v1378, %v1834
    %v1880 = vmul.f32 %v1378, %v1838
    %v1881 = vmul.f32 %v1382, %v1834
    %v1882 = vmul.f32 %v1382, %v1838
    %v1883 = vmul.f32 %v1386, %v1834
    %v1884 = vmul.f32 %v1386, %v1838
    %v1885 = vmul.f32 %v1390, %v1834
    %v1886 = vmul.f32 %v1390, %v1838
    %v1887 = vmul.f32 %v1394, %v1834
    %v1888 = vmul.f32 %v1394, %v1838
    %v1889 = vmul.f32 %v1398, %v1834
    %v1890 = vmul.f32 %v1398, %v1838
    %v1891 = vmul.f32 %v1402, %v1834
    %v1892 = vmul.f32 %v1402, %v1838
    %v1893 = vmul.f32 %v1406, %v1834
    %v1894 = vmul.f32 %v1406, %v1838
    %v1895 = vmul.f32 %v1410, %v1834
    %v1896 = vmul.f32 %v1410, %v1838
    %v1897 = vmul.f32 %v1414, %v1834
    %v1898 = vmul.f32 %v1414, %v1838
    %v1899 = vmul.f32 %v1418, %v1834
    %v1900 = vmul.f32 %v1418, %v1838
    %v1901 = vmul.f32 %v1422, %v1834
    %v1902 = vmul.f32 %v1422, %v1838
    %v1903 = vmul.f32 %v1426, %v1834
    %v1904 = vmul.f32 %v1426, %v1838
    %v1905 = vmul.f32 %v1433, %v1834
    %v1906 = vmul.f32 %v1433, %v1838
    %v1907 = vmul.f32 %v1437, %v1834
    %v1908 = vmul.f32 %v1437, %v1838
    %v1909 = vmul.f32 %v1441, %v1834
    %v1910 = vmul.f32 %v1441, %v1838
    %v1911 = vmul.f32 %v1445, %v1834
    %v1912 = vmul.f32 %v1445, %v1838
    %v1913 = vmul.f32 %v1449, %v1834
    %v1914 = vmul.f32 %v1449, %v1838
    %v1915 = vmul.f32 %v1453, %v1834
    %v1916 = vmul.f32 %v1453, %v1838
    %v1917 = vmul.f32 %v1457, %v1834
    %v1918 = vmul.f32 %v1457, %v1838
    %v1919 = vmul.f32 %v1461, %v1834
    %v1920 = vmul.f32 %v1461, %v1838
    %v1921 = vmul.f32 %v1465, %v1834
    %v1922 = vmul.f32 %v1465, %v1838
    %v1923 = vmul.f32 %v1469, %v1834
    %v1924 = vmul.f32 %v1469, %v1838
    %v1925 = vmul.f32 %v1473, %v1834
    %v1926 = vmul.f32 %v1473, %v1838
    %v1927 = vmul.f32 %v1477, %v1834
    %v1928 = vmul.f32 %v1477, %v1838
    %v1929 = vmul.f32 %v1481, %v1834
    %v1930 = vmul.f32 %v1481, %v1838
    %v1931 = vmul.f32 %v1485, %v1834
    %v1932 = vmul.f32 %v1485, %v1838
    %v1933 = vmul.f32 %v1489, %v1834
    %v1934 = vmul.f32 %v1489, %v1838
    %v1935 = vmul.f32 %v1493, %v1834
    %v1936 = vmul.f32 %v1493, %v1838
    %v1937 = vmul.f32 %v1500, %v1834
    %v1938 = vmul.f32 %v1500, %v1838
    %v1939 = vmul.f32 %v1504, %v1834
    %v1940 = vmul.f32 %v1504, %v1838
    %v1941 = vmul.f32 %v1508, %v1834
    %v1942 = vmul.f32 %v1508, %v1838
    %v1943 = vmul.f32 %v1512, %v1834
    %v1944 = vmul.f32 %v1512, %v1838
    %v1945 = vmul.f32 %v1516, %v1834
    %v1946 = vmul.f32 %v1516, %v1838
    %v1947 = vmul.f32 %v1520, %v1834
    %v1948 = vmul.f32 %v1520, %v1838
    %v1949 = vmul.f32 %v1524, %v1834
    %v1950 = vmul.f32 %v1524, %v1838
    %v1951 = vmul.f32 %v1528, %v1834
    %v1952 = vmul.f32 %v1528, %v1838
    %v1953 = vmul.f32 %v1532, %v1834
    %v1954 = vmul.f32 %v1532, %v1838
    %v1955 = vmul.f32 %v1536, %v1834
    %v1956 = vmul.f32 %v1536, %v1838
    %v1957 = vmul.f32 %v1540, %v1834
    %v1958 = vmul.f32 %v1540, %v1838
    %v1959 = vmul.f32 %v1544, %v1834
    %v1960 = vmul.f32 %v1544, %v1838
    %v1961 = vmul.f32 %v1548, %v1834
    %v1962 = vmul.f32 %v1548, %v1838
    %v1963 = vmul.f32 %v1552, %v1834
    %v1964 = vmul.f32 %v1552, %v1838
    %v1965 = vmul.f32 %v1556, %v1834
    %v1966 = vmul.f32 %v1556, %v1838
    %v1967 = vmul.f32 %v1560, %v1834
    %v1968 = vmul.f32 %v1560, %v1838
    %v1969 = vmul.f32 %v1567, %v1834
    %v1970 = vmul.f32 %v1567, %v1838
    %v1971 = vmul.f32 %v1571, %v1834
    %v1972 = vmul.f32 %v1571, %v1838
    %v1973 = vmul.f32 %v1575, %v1834
    %v1974 = vmul.f32 %v1575, %v1838
    %v1975 = vmul.f32 %v1579, %v1834
    %v1976 = vmul.f32 %v1579, %v1838
    %v1977 = vmul.f32 %v1583, %v1834
    %v1978 = vmul.f32 %v1583, %v1838
    %v1979 = vmul.f32 %v1587, %v1834
    %v1980 = vmul.f32 %v1587, %v1838
    %v1981 = vmul.f32 %v1591, %v1834
    %v1982 = vmul.f32 %v1591, %v1838
    %v1983 = vmul.f32 %v1595, %v1834
    %v1984 = vmul.f32 %v1595, %v1838
    %v1985 = vmul.f32 %v1599, %v1834
    %v1986 = vmul.f32 %v1599, %v1838
    %v1987 = vmul.f32 %v1603, %v1834
    %v1988 = vmul.f32 %v1603, %v1838
    %v1989 = vmul.f32 %v1607, %v1834
    %v1990 = vmul.f32 %v1607, %v1838
    %v1991 = vmul.f32 %v1611, %v1834
    %v1992 = vmul.f32 %v1611, %v1838
    %v1993 = vmul.f32 %v1615, %v1834
    %v1994 = vmul.f32 %v1615, %v1838
    %v1995 = vmul.f32 %v1619, %v1834
    %v1996 = vmul.f32 %v1619, %v1838
    %v1997 = vmul.f32 %v1623, %v1834
    %v1998 = vmul.f32 %v1623, %v1838
    %v1999 = vmul.f32 %v1627, %v1834
    %v2000 = vmul.f32 %v1627, %v1838
    %v2001 = vmul.f32 %v1634, %v1834
    %v2002 = vmul.f32 %v1634, %v1838
    %v2003 = vmul.f32 %v1638, %v1834
    %v2004 = vmul.f32 %v1638, %v1838
    %v2005 = vmul.f32 %v1642, %v1834
    %v2006 = vmul.f32 %v1642, %v1838
    %v2007 = vmul.f32 %v1646, %v1834
    %v2008 = vmul.f32 %v1646, %v1838
    %v2009 = vmul.f32 %v1650, %v1834
    %v2010 = vmul.f32 %v1650, %v1838
    %v2011 = vmul.f32 %v1654, %v1834
    %v2012 = vmul.f32 %v1654, %v1838
    %v2013 = vmul.f32 %v1658, %v1834
    %v2014 = vmul.f32 %v1658, %v1838
    %v2015 = vmul.f32 %v1662, %v1834
    %v2016 = vmul.f32 %v1662, %v1838
    %v2017 = vmul.f32 %v1666, %v1834
    %v2018 = vmul.f32 %v1666, %v1838
    %v2019 = vmul.f32 %v1670, %v1834
    %v2020 = vmul.f32 %v1670, %v1838
    %v2021 = vmul.f32 %v1674, %v1834
    %v2022 = vmul.f32 %v1674, %v1838
    %v2023 = vmul.f32 %v1678, %v1834
    %v2024 = vmul.f32 %v1678, %v1838
    %v2025 = vmul.f32 %v1682, %v1834
    %v2026 = vmul.f32 %v1682, %v1838
    %v2027 = vmul.f32 %v1686, %v1834
    %v2028 = vmul.f32 %v1686, %v1838
    %v2029 = vmul.f32 %v1690, %v1834
    %v2030 = vmul.f32 %v1690, %v1838
    %v2031 = vmul.f32 %v1694, %v1834
    %v2032 = vmul.f32 %v1694, %v1838
    %v2033 = vmul.f32 %v1701, %v1834
    %v2034 = vmul.f32 %v1701, %v1838
    %v2035 = vmul.f32 %v1705, %v1834
    %v2036 = vmul.f32 %v1705, %v1838
    %v2037 = vmul.f32 %v1709, %v1834
    %v2038 = vmul.f32 %v1709, %v1838
    %v2039 = vmul.f32 %v1713, %v1834
    %v2040 = vmul.f32 %v1713, %v1838
    %v2041 = vmul.f32 %v1717, %v1834
    %v2042 = vmul.f32 %v1717, %v1838
    %v2043 = vmul.f32 %v1721, %v1834
    %v2044 = vmul.f32 %v1721, %v1838
    %v2045 = vmul.f32 %v1725, %v1834
    %v2046 = vmul.f32 %v1725, %v1838
    %v2047 = vmul.f32 %v1729, %v1834
    %v2048 = vmul.f32 %v1729, %v1838
    %v2049 = vmul.f32 %v1733, %v1834
    %v2050 = vmul.f32 %v1733, %v1838
    %v2051 = vmul.f32 %v1737, %v1834
    %v2052 = vmul.f32 %v1737, %v1838
    %v2053 = vmul.f32 %v1741, %v1834
    %v2054 = vmul.f32 %v1741, %v1838
    %v2055 = vmul.f32 %v1745, %v1834
    %v2056 = vmul.f32 %v1745, %v1838
    %v2057 = vmul.f32 %v1749, %v1834
    %v2058 = vmul.f32 %v1749, %v1838
    %v2059 = vmul.f32 %v1753, %v1834
    %v2060 = vmul.f32 %v1753, %v1838
    %v2061 = vmul.f32 %v1757, %v1834
    %v2062 = vmul.f32 %v1757, %v1838
    %v2063 = vmul.f32 %v1761, %v1834
    %v2064 = vmul.f32 %v1761, %v1838
    %v2065 = vmul.f32 %v1768, %v1834
    %v2066 = vmul.f32 %v1768, %v1838
    %v2067 = vmul.f32 %v1772, %v1834
    %v2068 = vmul.f32 %v1772, %v1838
    %v2069 = vmul.f32 %v1776, %v1834
    %v2070 = vmul.f32 %v1776, %v1838
    %v2071 = vmul.f32 %v1780, %v1834
    %v2072 = vmul.f32 %v1780, %v1838
    %v2073 = vmul.f32 %v1784, %v1834
    %v2074 = vmul.f32 %v1784, %v1838
    %v2075 = vmul.f32 %v1788, %v1834
    %v2076 = vmul.f32 %v1788, %v1838
    %v2077 = vmul.f32 %v1792, %v1834
    %v2078 = vmul.f32 %v1792, %v1838
    %v2079 = vmul.f32 %v1796, %v1834
    %v2080 = vmul.f32 %v1796, %v1838
    %v2081 = vmul.f32 %v1800, %v1834
    %v2082 = vmul.f32 %v1800, %v1838
    %v2083 = vmul.f32 %v1804, %v1834
    %v2084 = vmul.f32 %v1804, %v1838
    %v2085 = vmul.f32 %v1808, %v1834
    %v2086 = vmul.f32 %v1808, %v1838
    %v2087 = vmul.f32 %v1812, %v1834
    %v2088 = vmul.f32 %v1812, %v1838
    %v2089 = vmul.f32 %v1816, %v1834
    %v2090 = vmul.f32 %v1816, %v1838
    %v2091 = vmul.f32 %v1820, %v1834
    %v2092 = vmul.f32 %v1820, %v1838
    %v2093 = vmul.f32 %v1824, %v1834
    %v2094 = vmul.f32 %v1824, %v1838
    %v2095 = vmul.f32 %v1828, %v1834
    %v2096 = vmul.f32 %v1828, %v1838
    %v2097 = vadd.f32 %v1841, 0.0
    %v2098 = vadd.f32 %v1842, 0.0
    %v2099 = vadd.f32 %v1843, 0.0
    %v2100 = vadd.f32 %v1844, 0.0
    %v2101 = vadd.f32 %v1845, 0.0
    %v2102 = vadd.f32 %v1846, 0.0
    %v2103 = vadd.f32 %v1847, 0.0
    %v2104 = vadd.f32 %v1848, 0.0
    %v2105 = vadd.f32 %v1849, 0.0
    %v2106 = vadd.f32 %v1850, 0.0
    %v2107 = vadd.f32 %v1851, 0.0
    %v2108 = vadd.f32 %v1852, 0.0
    %v2109 = vadd.f32 %v1853, 0.0
    %v2110 = vadd.f32 %v1854, 0.0
    %v2111 = vadd.f32 %v1855, 0.0
    %v2112 = vadd.f32 %v1856, 0.0
    %v2113 = vadd.f32 %v1857, 0.0
    %v2114 = vadd.f32 %v1858, 0.0
    %v2115 = vadd.f32 %v1859, 0.0
    %v2116 = vadd.f32 %v1860, 0.0
    %v2117 = vadd.f32 %v1861, 0.0
    %v2118 = vadd.f32 %v1862, 0.0
    %v2119 = vadd.f32 %v1863, 0.0
    %v2120 = vadd.f32 %v1864, 0.0
    %v2121 = vadd.f32 %v1865, 0.0
    %v2122 = vadd.f32 %v1866, 0.0
    %v2123 = vadd.f32 %v1867, 0.0
    %v2124 = vadd.f32 %v1868, 0.0
    %v2125 = vadd.f32 %v1869, 0.0
    %v2126 = vadd.f32 %v1870, 0.0
    %v2127 = vadd.f32 %v1871, 0.0
    %v2128 = vadd.f32 %v1872, 0.0
    %v2129 = vadd.f32 %v1873, 0.0
    %v2130 = vadd.f32 %v1874, 0.0
    %v2131 = vadd.f32 %v1875, 0.0
    %v2132 = vadd.f32 %v1876, 0.0
    %v2133 = vadd.f32 %v1877, 0.0
    %v2134 = vadd.f32 %v1878, 0.0
    %v2135 = vadd.f32 %v1879, 0.0
    %v2136 = vadd.f32 %v1880, 0.0
    %v2137 = vadd.f32 %v1881, 0.0
    %v2138 = vadd.f32 %v1882, 0.0
    %v2139 = vadd.f32 %v1883, 0.0
    %v2140 = vadd.f32 %v1884, 0.0
    %v2141 = vadd.f32 %v1885, 0.0
    %v2142 = vadd.f32 %v1886, 0.0
    %v2143 = vadd.f32 %v1887, 0.0
    %v2144 = vadd.f32 %v1888, 0.0
    %v2145 = vadd.f32 %v1889, 0.0
    %v2146 = vadd.f32 %v1890, 0.0
    %v2147 = vadd.f32 %v1891, 0.0
    %v2148 = vadd.f32 %v1892, 0.0
    %v2149 = vadd.f32 %v1893, 0.0
    %v2150 = vadd.f32 %v1894, 0.0
    %v2151 = vadd.f32 %v1895, 0.0
    %v2152 = vadd.f32 %v1896, 0.0
    %v2153 = vadd.f32 %v1897, 0.0
    %v2154 = vadd.f32 %v1898, 0.0
    %v2155 = vadd.f32 %v1899, 0.0
    %v2156 = vadd.f32 %v1900, 0.0
    %v2157 = vadd.f32 %v1901, 0.0
    %v2158 = vadd.f32 %v1902, 0.0
    %v2159 = vadd.f32 %v1903, 0.0
    %v2160 = vadd.f32 %v1904, 0.0
    %v2161 = vadd.f32 %v1905, 0.0
    %v2162 = vadd.f32 %v1906, 0.0
    %v2163 = vadd.f32 %v1907, 0.0
    %v2164 = vadd.f32 %v1908, 0.0
    %v2165 = vadd.f32 %v1909, 0.0
    %v2166 = vadd.f32 %v1910, 0.0
    %v2167 = vadd.f32 %v1911, 0.0
    %v2168 = vadd.f32 %v1912, 0.0
    %v2169 = vadd.f32 %v1913, 0.0
    %v2170 = vadd.f32 %v1914, 0.0
    %v2171 = vadd.f32 %v1915, 0.0
    %v2172 = vadd.f32 %v1916, 0.0
    %v2173 = vadd.f32 %v1917, 0.0
    %v2174 = vadd.f32 %v1918, 0.0
    %v2175 = vadd.f32 %v1919, 0.0
    %v2176 = vadd.f32 %v1920, 0.0
    %v2177 = vadd.f32 %v1921, 0.0
    %v2178 = vadd.f32 %v1922, 0.0
    %v2179 = vadd.f32 %v1923, 0.0
    %v2180 = vadd.f32 %v1924, 0.0
    %v2181 = vadd.f32 %v1925, 0.0
    %v2182 = vadd.f32 %v1926, 0.0
    %v2183 = vadd.f32 %v1927, 0.0
    %v2184 = vadd.f32 %v1928, 0.0
    %v2185 = vadd.f32 %v1929, 0.0
    %v2186 = vadd.f32 %v1930, 0.0
    %v2187 = vadd.f32 %v1931, 0.0
    %v2188 = vadd.f32 %v1932, 0.0
    %v2189 = vadd.f32 %v1933, 0.0
    %v2190 = vadd.f32 %v1934, 0.0
    %v2191 = vadd.f32 %v1935, 0.0
    %v2192 = vadd.f32 %v1936, 0.0
    %v2193 = vadd.f32 %v1937, 0.0
    %v2194 = vadd.f32 %v1938, 0.0
    %v2195 = vadd.f32 %v1939, 0.0
    %v2196 = vadd.f32 %v1940, 0.0
    %v2197 = vadd.f32 %v1941, 0.0
    %v2198 = vadd.f32 %v1942, 0.0
    %v2199 = vadd.f32 %v1943, 0.0
    %v2200 = vadd.f32 %v1944, 0.0
    %v2201 = vadd.f32 %v1945, 0.0
    %v2202 = vadd.f32 %v1946, 0.0
    %v2203 = vadd.f32 %v1947, 0.0
    %v2204 = vadd.f32 %v1948, 0.0
    %v2205 = vadd.f32 %v1949, 0.0
    %v2206 = vadd.f32 %v1950, 0.0
    %v2207 = vadd.f32 %v1951, 0.0
    %v2208 = vadd.f32 %v1952, 0.0
    %v2209 = vadd.f32 %v1953, 0.0
    %v2210 = vadd.f32 %v1954, 0.0
    %v2211 = vadd.f32 %v1955, 0.0
    %v2212 = vadd.f32 %v1956, 0.0
    %v2213 = vadd.f32 %v1957, 0.0
    %v2214 = vadd.f32 %v1958, 0.0
    %v2215 = vadd.f32 %v1959, 0.0
    %v2216 = vadd.f32 %v1960, 0.0
    %v2217 = vadd.f32 %v1961, 0.0
    %v2218 = vadd.f32 %v1962, 0.0
    %v2219 = vadd.f32 %v1963, 0.0
    %v2220 = vadd.f32 %v1964, 0.0
    %v2221 = vadd.f32 %v1965, 0.0
    %v2222 = vadd.f32 %v1966, 0.0
    %v2223 = vadd.f32 %v1967, 0.0
    %v2224 = vadd.f32 %v1968, 0.0
    %v2225 = vadd.f32 %v1969, 0.0
    %v2226 = vadd.f32 %v1970, 0.0
    %v2227 = vadd.f32 %v1971, 0.0
    %v2228 = vadd.f32 %v1972, 0.0
    %v2229 = vadd.f32 %v1973, 0.0
    %v2230 = vadd.f32 %v1974, 0.0
    %v2231 = vadd.f32 %v1975, 0.0
    %v2232 = vadd.f32 %v1976, 0.0
    %v2233 = vadd.f32 %v1977, 0.0
    %v2234 = vadd.f32 %v1978, 0.0
    %v2235 = vadd.f32 %v1979, 0.0
    %v2236 = vadd.f32 %v1980, 0.0
    %v2237 = vadd.f32 %v1981, 0.0
    %v2238 = vadd.f32 %v1982, 0.0
    %v2239 = vadd.f32 %v1983, 0.0
    %v2240 = vadd.f32 %v1984, 0.0
    %v2241 = vadd.f32 %v1985, 0.0
    %v2242 = vadd.f32 %v1986, 0.0
    %v2243 = vadd.f32 %v1987, 0.0
    %v2244 = vadd.f32 %v1988, 0.0
    %v2245 = vadd.f32 %v1989, 0.0
    %v2246 = vadd.f32 %v1990, 0.0
    %v2247 = vadd.f32 %v1991, 0.0
    %v2248 = vadd.f32 %v1992, 0.0
    %v2249 = vadd.f32 %v1993, 0.0
    %v2250 = vadd.f32 %v1994, 0.0
    %v2251 = vadd.f32 %v1995, 0.0
    %v2252 = vadd.f32 %v1996, 0.0
    %v2253 = vadd.f32 %v1997, 0.0
    %v2254 = vadd.f32 %v1998, 0.0
    %v2255 = vadd.f32 %v1999, 0.0
    %v2256 = vadd.f32 %v2000, 0.0
    %v2257 = vadd.f32 %v2001, 0.0
    %v2258 = vadd.f32 %v2002, 0.0
    %v2259 = vadd.f32 %v2003, 0.0
    %v2260 = vadd.f32 %v2004, 0.0
    %v2261 = vadd.f32 %v2005, 0.0
    %v2262 = vadd.f32 %v2006, 0.0
    %v2263 = vadd.f32 %v2007, 0.0
    %v2264 = vadd.f32 %v2008, 0.0
    %v2265 = vadd.f32 %v2009, 0.0
    %v2266 = vadd.f32 %v2010, 0.0
    %v2267 = vadd.f32 %v2011, 0.0
    %v2268 = vadd.f32 %v2012, 0.0
    %v2269 = vadd.f32 %v2013, 0.0
    %v2270 = vadd.f32 %v2014, 0.0
    %v2271 = vadd.f32 %v2015, 0.0
    %v2272 = vadd.f32 %v2016, 0.0
    %v2273 = vadd.f32 %v2017, 0.0
    %v2274 = vadd.f32 %v2018, 0.0
    %v2275 = vadd.f32 %v2019, 0.0
    %v2276 = vadd.f32 %v2020, 0.0
    %v2277 = vadd.f32 %v2021, 0.0
    %v2278 = vadd.f32 %v2022, 0.0
    %v2279 = vadd.f32 %v2023, 0.0
    %v2280 = vadd.f32 %v2024, 0.0
    %v2281 = vadd.f32 %v2025, 0.0
    %v2282 = vadd.f32 %v2026, 0.0
    %v2283 = vadd.f32 %v2027, 0.0
    %v2284 = vadd.f32 %v2028, 0.0
    %v2285 = vadd.f32 %v2029, 0.0
    %v2286 = vadd.f32 %v2030, 0.0
    %v2287 = vadd.f32 %v2031, 0.0
    %v2288 = vadd.f32 %v2032, 0.0
    %v2289 = vadd.f32 %v2033, 0.0
    %v2290 = vadd.f32 %v2034, 0.0
    %v2291 = vadd.f32 %v2035, 0.0
    %v2292 = vadd.f32 %v2036, 0.0
    %v2293 = vadd.f32 %v2037, 0.0
    %v2294 = vadd.f32 %v2038, 0.0
    %v2295 = vadd.f32 %v2039, 0.0
    %v2296 = vadd.f32 %v2040, 0.0
    %v2297 = vadd.f32 %v2041, 0.0
    %v2298 = vadd.f32 %v2042, 0.0
    %v2299 = vadd.f32 %v2043, 0.0
    %v2300 = vadd.f32 %v2044, 0.0
    %v2301 = vadd.f32 %v2045, 0.0
    %v2302 = vadd.f32 %v2046, 0.0
    %v2303 = vadd.f32 %v2047, 0.0
    %v2304 = vadd.f32 %v2048, 0.0
    %v2305 = vadd.f32 %v2049, 0.0
    %v2306 = vadd.f32 %v2050, 0.0
    %v2307 = vadd.f32 %v2051, 0.0
    %v2308 = vadd.f32 %v2052, 0.0
    %v2309 = vadd.f32 %v2053, 0.0
    %v2310 = vadd.f32 %v2054, 0.0
    %v2311 = vadd.f32 %v2055, 0.0
    %v2312 = vadd.f32 %v2056, 0.0
    %v2313 = vadd.f32 %v2057, 0.0
    %v2314 = vadd.f32 %v2058, 0.0
    %v2315 = vadd.f32 %v2059, 0.0
    %v2316 = vadd.f32 %v2060, 0.0
    %v2317 = vadd.f32 %v2061, 0.0
    %v2318 = vadd.f32 %v2062, 0.0
    %v2319 = vadd.f32 %v2063, 0.0
    %v2320 = vadd.f32 %v2064, 0.0
    %v2321 = vadd.f32 %v2065, 0.0
    %v2322 = vadd.f32 %v2066, 0.0
    %v2323 = vadd.f32 %v2067, 0.0
    %v2324 = vadd.f32 %v2068, 0.0
    %v2325 = vadd.f32 %v2069, 0.0
    %v2326 = vadd.f32 %v2070, 0.0
    %v2327 = vadd.f32 %v2071, 0.0
    %v2328 = vadd.f32 %v2072, 0.0
    %v2329 = vadd.f32 %v2073, 0.0
    %v2330 = vadd.f32 %v2074, 0.0
    %v2331 = vadd.f32 %v2075, 0.0
    %v2332 = vadd.f32 %v2076, 0.0
    %v2333 = vadd.f32 %v2077, 0.0
    %v2334 = vadd.f32 %v2078, 0.0
    %v2335 = vadd.f32 %v2079, 0.0
    %v2336 = vadd.f32 %v2080, 0.0
    %v2337 = vadd.f32 %v2081, 0.0
    %v2338 = vadd.f32 %v2082, 0.0
    %v2339 = vadd.f32 %v2083, 0.0
    %v2340 = vadd.f32 %v2084, 0.0
    %v2341 = vadd.f32 %v2085, 0.0
    %v2342 = vadd.f32 %v2086, 0.0
    %v2343 = vadd.f32 %v2087, 0.0
    %v2344 = vadd.f32 %v2088, 0.0
    %v2345 = vadd.f32 %v2089, 0.0
    %v2346 = vadd.f32 %v2090, 0.0
    %v2347 = vadd.f32 %v2091, 0.0
    %v2348 = vadd.f32 %v2092, 0.0
    %v2349 = vadd.f32 %v2093, 0.0
    %v2350 = vadd.f32 %v2094, 0.0
    %v2351 = vadd.f32 %v2095, 0.0
    %v2352 = vadd.f32 %v2096, 0.0
    %v2353 = vsel %vm62, %v1289, 0.0
    %v2354 = vlaneseq
    %v2355 = vshrl.u32 %v2354, 7
    %v2356 = vsub.s32 0, %v2355
    %v2357 = vrot.slane %v2353, %v2356
    %2359 = vbcast.lane.b32.xlu0 %v2357, 256
    %v2360 = vpop.permute.xlu0 %2359
    %s2362 = sor.u32 256, 8
    %2363 = vbcast.lane.b32.xlu0 %v2357, %s2362
    %v2364 = vpop.permute.xlu0 %2363
    %s2366 = sor.u32 256, 16
    %2367 = vbcast.lane.b32.xlu0 %v2357, %s2366
    %v2368 = vpop.permute.xlu0 %2367
    %s2370 = sor.u32 256, 24
    %2371 = vbcast.lane.b32.xlu0 %v2357, %s2370
    %v2372 = vpop.permute.xlu0 %2371
    %s2374 = sor.u32 256, 32
    %2375 = vbcast.lane.b32.xlu0 %v2357, %s2374
    %v2376 = vpop.permute.xlu0 %2375
    %s2378 = sor.u32 256, 40
    %2379 = vbcast.lane.b32.xlu0 %v2357, %s2378
    %v2380 = vpop.permute.xlu0 %2379
    %s2382 = sor.u32 256, 48
    %2383 = vbcast.lane.b32.xlu0 %v2357, %s2382
    %v2384 = vpop.permute.xlu0 %2383
    %s2386 = sor.u32 256, 56
    %2387 = vbcast.lane.b32.xlu0 %v2357, %s2386
    %v2388 = vpop.permute.xlu0 %2387
    %s2390 = sor.u32 256, 64
    %2391 = vbcast.lane.b32.xlu0 %v2357, %s2390
    %v2392 = vpop.permute.xlu0 %2391
    %s2394 = sor.u32 256, 72
    %2395 = vbcast.lane.b32.xlu0 %v2357, %s2394
    %v2396 = vpop.permute.xlu0 %2395
    %s2398 = sor.u32 256, 80
    %2399 = vbcast.lane.b32.xlu0 %v2357, %s2398
    %v2400 = vpop.permute.xlu0 %2399
    %s2402 = sor.u32 256, 88
    %2403 = vbcast.lane.b32.xlu0 %v2357, %s2402
    %v2404 = vpop.permute.xlu0 %2403
    %s2406 = sor.u32 256, 96
    %2407 = vbcast.lane.b32.xlu0 %v2357, %s2406
    %v2408 = vpop.permute.xlu0 %2407
    %s2410 = sor.u32 256, 104
    %2411 = vbcast.lane.b32.xlu0 %v2357, %s2410
    %v2412 = vpop.permute.xlu0 %2411
    %s2414 = sor.u32 256, 112
    %2415 = vbcast.lane.b32.xlu0 %v2357, %s2414
    %v2416 = vpop.permute.xlu0 %2415
    %s2418 = sor.u32 256, 120
    %2419 = vbcast.lane.b32.xlu0 %v2357, %s2418
    %v2420 = vpop.permute.xlu0 %2419
    %v2421 = vlaneseq
    %v2422 = vshrl.u32 %v2421, 7
    %v2423 = vsub.s32 1, %v2422
    %v2424 = vrot.slane %v2353, %v2423
    %2426 = vbcast.lane.b32.xlu0 %v2424, 256
    %v2427 = vpop.permute.xlu0 %2426
    %s2429 = sor.u32 256, 8
    %2430 = vbcast.lane.b32.xlu0 %v2424, %s2429
    %v2431 = vpop.permute.xlu0 %2430
    %s2433 = sor.u32 256, 16
    %2434 = vbcast.lane.b32.xlu0 %v2424, %s2433
    %v2435 = vpop.permute.xlu0 %2434
    %s2437 = sor.u32 256, 24
    %2438 = vbcast.lane.b32.xlu0 %v2424, %s2437
    %v2439 = vpop.permute.xlu0 %2438
    %s2441 = sor.u32 256, 32
    %2442 = vbcast.lane.b32.xlu0 %v2424, %s2441
    %v2443 = vpop.permute.xlu0 %2442
    %s2445 = sor.u32 256, 40
    %2446 = vbcast.lane.b32.xlu0 %v2424, %s2445
    %v2447 = vpop.permute.xlu0 %2446
    %s2449 = sor.u32 256, 48
    %2450 = vbcast.lane.b32.xlu0 %v2424, %s2449
    %v2451 = vpop.permute.xlu0 %2450
    %s2453 = sor.u32 256, 56
    %2454 = vbcast.lane.b32.xlu0 %v2424, %s2453
    %v2455 = vpop.permute.xlu0 %2454
    %s2457 = sor.u32 256, 64
    %2458 = vbcast.lane.b32.xlu0 %v2424, %s2457
    %v2459 = vpop.permute.xlu0 %2458
    %s2461 = sor.u32 256, 72
    %2462 = vbcast.lane.b32.xlu0 %v2424, %s2461
    %v2463 = vpop.permute.xlu0 %2462
    %s2465 = sor.u32 256, 80
    %2466 = vbcast.lane.b32.xlu0 %v2424, %s2465
    %v2467 = vpop.permute.xlu0 %2466
    %s2469 = sor.u32 256, 88
    %2470 = vbcast.lane.b32.xlu0 %v2424, %s2469
    %v2471 = vpop.permute.xlu0 %2470
    %s2473 = sor.u32 256, 96
    %2474 = vbcast.lane.b32.xlu0 %v2424, %s2473
    %v2475 = vpop.permute.xlu0 %2474
    %s2477 = sor.u32 256, 104
    %2478 = vbcast.lane.b32.xlu0 %v2424, %s2477
    %v2479 = vpop.permute.xlu0 %2478
    %s2481 = sor.u32 256, 112
    %2482 = vbcast.lane.b32.xlu0 %v2424, %s2481
    %v2483 = vpop.permute.xlu0 %2482
    %s2485 = sor.u32 256, 120
    %2486 = vbcast.lane.b32.xlu0 %v2424, %s2485
    %v2487 = vpop.permute.xlu0 %2486
    %v2488 = vlaneseq
    %v2489 = vshrl.u32 %v2488, 7
    %v2490 = vsub.s32 2, %v2489
    %v2491 = vrot.slane %v2353, %v2490
    %2493 = vbcast.lane.b32.xlu0 %v2491, 256
    %v2494 = vpop.permute.xlu0 %2493
    %s2496 = sor.u32 256, 8
    %2497 = vbcast.lane.b32.xlu0 %v2491, %s2496
    %v2498 = vpop.permute.xlu0 %2497
    %s2500 = sor.u32 256, 16
    %2501 = vbcast.lane.b32.xlu0 %v2491, %s2500
    %v2502 = vpop.permute.xlu0 %2501
    %s2504 = sor.u32 256, 24
    %2505 = vbcast.lane.b32.xlu0 %v2491, %s2504
    %v2506 = vpop.permute.xlu0 %2505
    %s2508 = sor.u32 256, 32
    %2509 = vbcast.lane.b32.xlu0 %v2491, %s2508
    %v2510 = vpop.permute.xlu0 %2509
    %s2512 = sor.u32 256, 40
    %2513 = vbcast.lane.b32.xlu0 %v2491, %s2512
    %v2514 = vpop.permute.xlu0 %2513
    %s2516 = sor.u32 256, 48
    %2517 = vbcast.lane.b32.xlu0 %v2491, %s2516
    %v2518 = vpop.permute.xlu0 %2517
    %s2520 = sor.u32 256, 56
    %2521 = vbcast.lane.b32.xlu0 %v2491, %s2520
    %v2522 = vpop.permute.xlu0 %2521
    %s2524 = sor.u32 256, 64
    %2525 = vbcast.lane.b32.xlu0 %v2491, %s2524
    %v2526 = vpop.permute.xlu0 %2525
    %s2528 = sor.u32 256, 72
    %2529 = vbcast.lane.b32.xlu0 %v2491, %s2528
    %v2530 = vpop.permute.xlu0 %2529
    %s2532 = sor.u32 256, 80
    %2533 = vbcast.lane.b32.xlu0 %v2491, %s2532
    %v2534 = vpop.permute.xlu0 %2533
    %s2536 = sor.u32 256, 88
    %2537 = vbcast.lane.b32.xlu0 %v2491, %s2536
    %v2538 = vpop.permute.xlu0 %2537
    %s2540 = sor.u32 256, 96
    %2541 = vbcast.lane.b32.xlu0 %v2491, %s2540
    %v2542 = vpop.permute.xlu0 %2541
    %s2544 = sor.u32 256, 104
    %2545 = vbcast.lane.b32.xlu0 %v2491, %s2544
    %v2546 = vpop.permute.xlu0 %2545
    %s2548 = sor.u32 256, 112
    %2549 = vbcast.lane.b32.xlu0 %v2491, %s2548
    %v2550 = vpop.permute.xlu0 %2549
    %s2552 = sor.u32 256, 120
    %2553 = vbcast.lane.b32.xlu0 %v2491, %s2552
    %v2554 = vpop.permute.xlu0 %2553
    %v2555 = vlaneseq
    %v2556 = vshrl.u32 %v2555, 7
    %v2557 = vsub.s32 3, %v2556
    %v2558 = vrot.slane %v2353, %v2557
    %2560 = vbcast.lane.b32.xlu0 %v2558, 256
    %v2561 = vpop.permute.xlu0 %2560
    %s2563 = sor.u32 256, 8
    %2564 = vbcast.lane.b32.xlu0 %v2558, %s2563
    %v2565 = vpop.permute.xlu0 %2564
    %s2567 = sor.u32 256, 16
    %2568 = vbcast.lane.b32.xlu0 %v2558, %s2567
    %v2569 = vpop.permute.xlu0 %2568
    %s2571 = sor.u32 256, 24
    %2572 = vbcast.lane.b32.xlu0 %v2558, %s2571
    %v2573 = vpop.permute.xlu0 %2572
    %s2575 = sor.u32 256, 32
    %2576 = vbcast.lane.b32.xlu0 %v2558, %s2575
    %v2577 = vpop.permute.xlu0 %2576
    %s2579 = sor.u32 256, 40
    %2580 = vbcast.lane.b32.xlu0 %v2558, %s2579
    %v2581 = vpop.permute.xlu0 %2580
    %s2583 = sor.u32 256, 48
    %2584 = vbcast.lane.b32.xlu0 %v2558, %s2583
    %v2585 = vpop.permute.xlu0 %2584
    %s2587 = sor.u32 256, 56
    %2588 = vbcast.lane.b32.xlu0 %v2558, %s2587
    %v2589 = vpop.permute.xlu0 %2588
    %s2591 = sor.u32 256, 64
    %2592 = vbcast.lane.b32.xlu0 %v2558, %s2591
    %v2593 = vpop.permute.xlu0 %2592
    %s2595 = sor.u32 256, 72
    %2596 = vbcast.lane.b32.xlu0 %v2558, %s2595
    %v2597 = vpop.permute.xlu0 %2596
    %s2599 = sor.u32 256, 80
    %2600 = vbcast.lane.b32.xlu0 %v2558, %s2599
    %v2601 = vpop.permute.xlu0 %2600
    %s2603 = sor.u32 256, 88
    %2604 = vbcast.lane.b32.xlu0 %v2558, %s2603
    %v2605 = vpop.permute.xlu0 %2604
    %s2607 = sor.u32 256, 96
    %2608 = vbcast.lane.b32.xlu0 %v2558, %s2607
    %v2609 = vpop.permute.xlu0 %2608
    %s2611 = sor.u32 256, 104
    %2612 = vbcast.lane.b32.xlu0 %v2558, %s2611
    %v2613 = vpop.permute.xlu0 %2612
    %s2615 = sor.u32 256, 112
    %2616 = vbcast.lane.b32.xlu0 %v2558, %s2615
    %v2617 = vpop.permute.xlu0 %2616
    %s2619 = sor.u32 256, 120
    %2620 = vbcast.lane.b32.xlu0 %v2558, %s2619
    %v2621 = vpop.permute.xlu0 %2620
    %v2622 = vlaneseq
    %v2623 = vshrl.u32 %v2622, 7
    %v2624 = vsub.s32 4, %v2623
    %v2625 = vrot.slane %v2353, %v2624
    %2627 = vbcast.lane.b32.xlu0 %v2625, 256
    %v2628 = vpop.permute.xlu0 %2627
    %s2630 = sor.u32 256, 8
    %2631 = vbcast.lane.b32.xlu0 %v2625, %s2630
    %v2632 = vpop.permute.xlu0 %2631
    %s2634 = sor.u32 256, 16
    %2635 = vbcast.lane.b32.xlu0 %v2625, %s2634
    %v2636 = vpop.permute.xlu0 %2635
    %s2638 = sor.u32 256, 24
    %2639 = vbcast.lane.b32.xlu0 %v2625, %s2638
    %v2640 = vpop.permute.xlu0 %2639
    %s2642 = sor.u32 256, 32
    %2643 = vbcast.lane.b32.xlu0 %v2625, %s2642
    %v2644 = vpop.permute.xlu0 %2643
    %s2646 = sor.u32 256, 40
    %2647 = vbcast.lane.b32.xlu0 %v2625, %s2646
    %v2648 = vpop.permute.xlu0 %2647
    %s2650 = sor.u32 256, 48
    %2651 = vbcast.lane.b32.xlu0 %v2625, %s2650
    %v2652 = vpop.permute.xlu0 %2651
    %s2654 = sor.u32 256, 56
    %2655 = vbcast.lane.b32.xlu0 %v2625, %s2654
    %v2656 = vpop.permute.xlu0 %2655
    %s2658 = sor.u32 256, 64
    %2659 = vbcast.lane.b32.xlu0 %v2625, %s2658
    %v2660 = vpop.permute.xlu0 %2659
    %s2662 = sor.u32 256, 72
    %2663 = vbcast.lane.b32.xlu0 %v2625, %s2662
    %v2664 = vpop.permute.xlu0 %2663
    %s2666 = sor.u32 256, 80
    %2667 = vbcast.lane.b32.xlu0 %v2625, %s2666
    %v2668 = vpop.permute.xlu0 %2667
    %s2670 = sor.u32 256, 88
    %2671 = vbcast.lane.b32.xlu0 %v2625, %s2670
    %v2672 = vpop.permute.xlu0 %2671
    %s2674 = sor.u32 256, 96
    %2675 = vbcast.lane.b32.xlu0 %v2625, %s2674
    %v2676 = vpop.permute.xlu0 %2675
    %s2678 = sor.u32 256, 104
    %2679 = vbcast.lane.b32.xlu0 %v2625, %s2678
    %v2680 = vpop.permute.xlu0 %2679
    %s2682 = sor.u32 256, 112
    %2683 = vbcast.lane.b32.xlu0 %v2625, %s2682
    %v2684 = vpop.permute.xlu0 %2683
    %s2686 = sor.u32 256, 120
    %2687 = vbcast.lane.b32.xlu0 %v2625, %s2686
    %v2688 = vpop.permute.xlu0 %2687
    %v2689 = vlaneseq
    %v2690 = vshrl.u32 %v2689, 7
    %v2691 = vsub.s32 5, %v2690
    %v2692 = vrot.slane %v2353, %v2691
    %2694 = vbcast.lane.b32.xlu0 %v2692, 256
    %v2695 = vpop.permute.xlu0 %2694
    %s2697 = sor.u32 256, 8
    %2698 = vbcast.lane.b32.xlu0 %v2692, %s2697
    %v2699 = vpop.permute.xlu0 %2698
    %s2701 = sor.u32 256, 16
    %2702 = vbcast.lane.b32.xlu0 %v2692, %s2701
    %v2703 = vpop.permute.xlu0 %2702
    %s2705 = sor.u32 256, 24
    %2706 = vbcast.lane.b32.xlu0 %v2692, %s2705
    %v2707 = vpop.permute.xlu0 %2706
    %s2709 = sor.u32 256, 32
    %2710 = vbcast.lane.b32.xlu0 %v2692, %s2709
    %v2711 = vpop.permute.xlu0 %2710
    %s2713 = sor.u32 256, 40
    %2714 = vbcast.lane.b32.xlu0 %v2692, %s2713
    %v2715 = vpop.permute.xlu0 %2714
    %s2717 = sor.u32 256, 48
    %2718 = vbcast.lane.b32.xlu0 %v2692, %s2717
    %v2719 = vpop.permute.xlu0 %2718
    %s2721 = sor.u32 256, 56
    %2722 = vbcast.lane.b32.xlu0 %v2692, %s2721
    %v2723 = vpop.permute.xlu0 %2722
    %s2725 = sor.u32 256, 64
    %2726 = vbcast.lane.b32.xlu0 %v2692, %s2725
    %v2727 = vpop.permute.xlu0 %2726
    %s2729 = sor.u32 256, 72
    %2730 = vbcast.lane.b32.xlu0 %v2692, %s2729
    %v2731 = vpop.permute.xlu0 %2730
    %s2733 = sor.u32 256, 80
    %2734 = vbcast.lane.b32.xlu0 %v2692, %s2733
    %v2735 = vpop.permute.xlu0 %2734
    %s2737 = sor.u32 256, 88
    %2738 = vbcast.lane.b32.xlu0 %v2692, %s2737
    %v2739 = vpop.permute.xlu0 %2738
    %s2741 = sor.u32 256, 96
    %2742 = vbcast.lane.b32.xlu0 %v2692, %s2741
    %v2743 = vpop.permute.xlu0 %2742
    %s2745 = sor.u32 256, 104
    %2746 = vbcast.lane.b32.xlu0 %v2692, %s2745
    %v2747 = vpop.permute.xlu0 %2746
    %s2749 = sor.u32 256, 112
    %2750 = vbcast.lane.b32.xlu0 %v2692, %s2749
    %v2751 = vpop.permute.xlu0 %2750
    %s2753 = sor.u32 256, 120
    %2754 = vbcast.lane.b32.xlu0 %v2692, %s2753
    %v2755 = vpop.permute.xlu0 %2754
    %v2756 = vlaneseq
    %v2757 = vshrl.u32 %v2756, 7
    %v2758 = vsub.s32 6, %v2757
    %v2759 = vrot.slane %v2353, %v2758
    %2761 = vbcast.lane.b32.xlu0 %v2759, 256
    %v2762 = vpop.permute.xlu0 %2761
    %s2764 = sor.u32 256, 8
    %2765 = vbcast.lane.b32.xlu0 %v2759, %s2764
    %v2766 = vpop.permute.xlu0 %2765
    %s2768 = sor.u32 256, 16
    %2769 = vbcast.lane.b32.xlu0 %v2759, %s2768
    %v2770 = vpop.permute.xlu0 %2769
    %s2772 = sor.u32 256, 24
    %2773 = vbcast.lane.b32.xlu0 %v2759, %s2772
    %v2774 = vpop.permute.xlu0 %2773
    %s2776 = sor.u32 256, 32
    %2777 = vbcast.lane.b32.xlu0 %v2759, %s2776
    %v2778 = vpop.permute.xlu0 %2777
    %s2780 = sor.u32 256, 40
    %2781 = vbcast.lane.b32.xlu0 %v2759, %s2780
    %v2782 = vpop.permute.xlu0 %2781
    %s2784 = sor.u32 256, 48
    %2785 = vbcast.lane.b32.xlu0 %v2759, %s2784
    %v2786 = vpop.permute.xlu0 %2785
    %s2788 = sor.u32 256, 56
    %2789 = vbcast.lane.b32.xlu0 %v2759, %s2788
    %v2790 = vpop.permute.xlu0 %2789
    %s2792 = sor.u32 256, 64
    %2793 = vbcast.lane.b32.xlu0 %v2759, %s2792
    %v2794 = vpop.permute.xlu0 %2793
    %s2796 = sor.u32 256, 72
    %2797 = vbcast.lane.b32.xlu0 %v2759, %s2796
    %v2798 = vpop.permute.xlu0 %2797
    %s2800 = sor.u32 256, 80
    %2801 = vbcast.lane.b32.xlu0 %v2759, %s2800
    %v2802 = vpop.permute.xlu0 %2801
    %s2804 = sor.u32 256, 88
    %2805 = vbcast.lane.b32.xlu0 %v2759, %s2804
    %v2806 = vpop.permute.xlu0 %2805
    %s2808 = sor.u32 256, 96
    %2809 = vbcast.lane.b32.xlu0 %v2759, %s2808
    %v2810 = vpop.permute.xlu0 %2809
    %s2812 = sor.u32 256, 104
    %2813 = vbcast.lane.b32.xlu0 %v2759, %s2812
    %v2814 = vpop.permute.xlu0 %2813
    %s2816 = sor.u32 256, 112
    %2817 = vbcast.lane.b32.xlu0 %v2759, %s2816
    %v2818 = vpop.permute.xlu0 %2817
    %s2820 = sor.u32 256, 120
    %2821 = vbcast.lane.b32.xlu0 %v2759, %s2820
    %v2822 = vpop.permute.xlu0 %2821
    %v2823 = vlaneseq
    %v2824 = vshrl.u32 %v2823, 7
    %v2825 = vsub.s32 7, %v2824
    %v2826 = vrot.slane %v2353, %v2825
    %2828 = vbcast.lane.b32.xlu0 %v2826, 256
    %v2829 = vpop.permute.xlu0 %2828
    %s2831 = sor.u32 256, 8
    %2832 = vbcast.lane.b32.xlu0 %v2826, %s2831
    %v2833 = vpop.permute.xlu0 %2832
    %s2835 = sor.u32 256, 16
    %2836 = vbcast.lane.b32.xlu0 %v2826, %s2835
    %v2837 = vpop.permute.xlu0 %2836
    %s2839 = sor.u32 256, 24
    %2840 = vbcast.lane.b32.xlu0 %v2826, %s2839
    %v2841 = vpop.permute.xlu0 %2840
    %s2843 = sor.u32 256, 32
    %2844 = vbcast.lane.b32.xlu0 %v2826, %s2843
    %v2845 = vpop.permute.xlu0 %2844
    %s2847 = sor.u32 256, 40
    %2848 = vbcast.lane.b32.xlu0 %v2826, %s2847
    %v2849 = vpop.permute.xlu0 %2848
    %s2851 = sor.u32 256, 48
    %2852 = vbcast.lane.b32.xlu0 %v2826, %s2851
    %v2853 = vpop.permute.xlu0 %2852
    %s2855 = sor.u32 256, 56
    %2856 = vbcast.lane.b32.xlu0 %v2826, %s2855
    %v2857 = vpop.permute.xlu0 %2856
    %s2859 = sor.u32 256, 64
    %2860 = vbcast.lane.b32.xlu0 %v2826, %s2859
    %v2861 = vpop.permute.xlu0 %2860
    %s2863 = sor.u32 256, 72
    %2864 = vbcast.lane.b32.xlu0 %v2826, %s2863
    %v2865 = vpop.permute.xlu0 %2864
    %s2867 = sor.u32 256, 80
    %2868 = vbcast.lane.b32.xlu0 %v2826, %s2867
    %v2869 = vpop.permute.xlu0 %2868
    %s2871 = sor.u32 256, 88
    %2872 = vbcast.lane.b32.xlu0 %v2826, %s2871
    %v2873 = vpop.permute.xlu0 %2872
    %s2875 = sor.u32 256, 96
    %2876 = vbcast.lane.b32.xlu0 %v2826, %s2875
    %v2877 = vpop.permute.xlu0 %2876
    %s2879 = sor.u32 256, 104
    %2880 = vbcast.lane.b32.xlu0 %v2826, %s2879
    %v2881 = vpop.permute.xlu0 %2880
    %s2883 = sor.u32 256, 112
    %2884 = vbcast.lane.b32.xlu0 %v2826, %s2883
    %v2885 = vpop.permute.xlu0 %2884
    %s2887 = sor.u32 256, 120
    %2888 = vbcast.lane.b32.xlu0 %v2826, %s2887
    %v2889 = vpop.permute.xlu0 %2888
    %s2890 = scalar_lea.vmem %s10, 1
    %v2891 = vld [vmem:[%s2890] ss:$4 sm:$0x3]
    %v2893 = vlaneseq
    %v2894 = vshrl.u32 %v2893, 7
    %v2895 = vsub.s32 0, %v2894
    %v2896 = vrot.slane %v2891, %v2895
    %v2897 = vlaneseq
    %v2898 = vshrl.u32 %v2897, 7
    %v2899 = vsub.s32 1, %v2898
    %v2900 = vrot.slane %v2891, %v2899
    %v2903 = vmul.f32 %v2360, %v2896
    %v2904 = vmul.f32 %v2360, %v2900
    %v2905 = vmul.f32 %v2364, %v2896
    %v2906 = vmul.f32 %v2364, %v2900
    %v2907 = vmul.f32 %v2368, %v2896
    %v2908 = vmul.f32 %v2368, %v2900
    %v2909 = vmul.f32 %v2372, %v2896
    %v2910 = vmul.f32 %v2372, %v2900
    %v2911 = vmul.f32 %v2376, %v2896
    %v2912 = vmul.f32 %v2376, %v2900
    %v2913 = vmul.f32 %v2380, %v2896
    %v2914 = vmul.f32 %v2380, %v2900
    %v2915 = vmul.f32 %v2384, %v2896
    %v2916 = vmul.f32 %v2384, %v2900
    %v2917 = vmul.f32 %v2388, %v2896
    %v2918 = vmul.f32 %v2388, %v2900
    %v2919 = vmul.f32 %v2392, %v2896
    %v2920 = vmul.f32 %v2392, %v2900
    %v2921 = vmul.f32 %v2396, %v2896
    %v2922 = vmul.f32 %v2396, %v2900
    %v2923 = vmul.f32 %v2400, %v2896
    %v2924 = vmul.f32 %v2400, %v2900
    %v2925 = vmul.f32 %v2404, %v2896
    %v2926 = vmul.f32 %v2404, %v2900
    %v2927 = vmul.f32 %v2408, %v2896
    %v2928 = vmul.f32 %v2408, %v2900
    %v2929 = vmul.f32 %v2412, %v2896
    %v2930 = vmul.f32 %v2412, %v2900
    %v2931 = vmul.f32 %v2416, %v2896
    %v2932 = vmul.f32 %v2416, %v2900
    %v2933 = vmul.f32 %v2420, %v2896
    %v2934 = vmul.f32 %v2420, %v2900
    %v2935 = vmul.f32 %v2427, %v2896
    %v2936 = vmul.f32 %v2427, %v2900
    %v2937 = vmul.f32 %v2431, %v2896
    %v2938 = vmul.f32 %v2431, %v2900
    %v2939 = vmul.f32 %v2435, %v2896
    %v2940 = vmul.f32 %v2435, %v2900
    %v2941 = vmul.f32 %v2439, %v2896
    %v2942 = vmul.f32 %v2439, %v2900
    %v2943 = vmul.f32 %v2443, %v2896
    %v2944 = vmul.f32 %v2443, %v2900
    %v2945 = vmul.f32 %v2447, %v2896
    %v2946 = vmul.f32 %v2447, %v2900
    %v2947 = vmul.f32 %v2451, %v2896
    %v2948 = vmul.f32 %v2451, %v2900
    %v2949 = vmul.f32 %v2455, %v2896
    %v2950 = vmul.f32 %v2455, %v2900
    %v2951 = vmul.f32 %v2459, %v2896
    %v2952 = vmul.f32 %v2459, %v2900
    %v2953 = vmul.f32 %v2463, %v2896
    %v2954 = vmul.f32 %v2463, %v2900
    %v2955 = vmul.f32 %v2467, %v2896
    %v2956 = vmul.f32 %v2467, %v2900
    %v2957 = vmul.f32 %v2471, %v2896
    %v2958 = vmul.f32 %v2471, %v2900
    %v2959 = vmul.f32 %v2475, %v2896
    %v2960 = vmul.f32 %v2475, %v2900
    %v2961 = vmul.f32 %v2479, %v2896
    %v2962 = vmul.f32 %v2479, %v2900
    %v2963 = vmul.f32 %v2483, %v2896
    %v2964 = vmul.f32 %v2483, %v2900
    %v2965 = vmul.f32 %v2487, %v2896
    %v2966 = vmul.f32 %v2487, %v2900
    %v2967 = vmul.f32 %v2494, %v2896
    %v2968 = vmul.f32 %v2494, %v2900
    %v2969 = vmul.f32 %v2498, %v2896
    %v2970 = vmul.f32 %v2498, %v2900
    %v2971 = vmul.f32 %v2502, %v2896
    %v2972 = vmul.f32 %v2502, %v2900
    %v2973 = vmul.f32 %v2506, %v2896
    %v2974 = vmul.f32 %v2506, %v2900
    %v2975 = vmul.f32 %v2510, %v2896
    %v2976 = vmul.f32 %v2510, %v2900
    %v2977 = vmul.f32 %v2514, %v2896
    %v2978 = vmul.f32 %v2514, %v2900
    %v2979 = vmul.f32 %v2518, %v2896
    %v2980 = vmul.f32 %v2518, %v2900
    %v2981 = vmul.f32 %v2522, %v2896
    %v2982 = vmul.f32 %v2522, %v2900
    %v2983 = vmul.f32 %v2526, %v2896
    %v2984 = vmul.f32 %v2526, %v2900
    %v2985 = vmul.f32 %v2530, %v2896
    %v2986 = vmul.f32 %v2530, %v2900
    %v2987 = vmul.f32 %v2534, %v2896
    %v2988 = vmul.f32 %v2534, %v2900
    %v2989 = vmul.f32 %v2538, %v2896
    %v2990 = vmul.f32 %v2538, %v2900
    %v2991 = vmul.f32 %v2542, %v2896
    %v2992 = vmul.f32 %v2542, %v2900
    %v2993 = vmul.f32 %v2546, %v2896
    %v2994 = vmul.f32 %v2546, %v2900
    %v2995 = vmul.f32 %v2550, %v2896
    %v2996 = vmul.f32 %v2550, %v2900
    %v2997 = vmul.f32 %v2554, %v2896
    %v2998 = vmul.f32 %v2554, %v2900
    %v2999 = vmul.f32 %v2561, %v2896
    %v3000 = vmul.f32 %v2561, %v2900
    %v3001 = vmul.f32 %v2565, %v2896
    %v3002 = vmul.f32 %v2565, %v2900
    %v3003 = vmul.f32 %v2569, %v2896
    %v3004 = vmul.f32 %v2569, %v2900
    %v3005 = vmul.f32 %v2573, %v2896
    %v3006 = vmul.f32 %v2573, %v2900
    %v3007 = vmul.f32 %v2577, %v2896
    %v3008 = vmul.f32 %v2577, %v2900
    %v3009 = vmul.f32 %v2581, %v2896
    %v3010 = vmul.f32 %v2581, %v2900
    %v3011 = vmul.f32 %v2585, %v2896
    %v3012 = vmul.f32 %v2585, %v2900
    %v3013 = vmul.f32 %v2589, %v2896
    %v3014 = vmul.f32 %v2589, %v2900
    %v3015 = vmul.f32 %v2593, %v2896
    %v3016 = vmul.f32 %v2593, %v2900
    %v3017 = vmul.f32 %v2597, %v2896
    %v3018 = vmul.f32 %v2597, %v2900
    %v3019 = vmul.f32 %v2601, %v2896
    %v3020 = vmul.f32 %v2601, %v2900
    %v3021 = vmul.f32 %v2605, %v2896
    %v3022 = vmul.f32 %v2605, %v2900
    %v3023 = vmul.f32 %v2609, %v2896
    %v3024 = vmul.f32 %v2609, %v2900
    %v3025 = vmul.f32 %v2613, %v2896
    %v3026 = vmul.f32 %v2613, %v2900
    %v3027 = vmul.f32 %v2617, %v2896
    %v3028 = vmul.f32 %v2617, %v2900
    %v3029 = vmul.f32 %v2621, %v2896
    %v3030 = vmul.f32 %v2621, %v2900
    %v3031 = vmul.f32 %v2628, %v2896
    %v3032 = vmul.f32 %v2628, %v2900
    %v3033 = vmul.f32 %v2632, %v2896
    %v3034 = vmul.f32 %v2632, %v2900
    %v3035 = vmul.f32 %v2636, %v2896
    %v3036 = vmul.f32 %v2636, %v2900
    %v3037 = vmul.f32 %v2640, %v2896
    %v3038 = vmul.f32 %v2640, %v2900
    %v3039 = vmul.f32 %v2644, %v2896
    %v3040 = vmul.f32 %v2644, %v2900
    %v3041 = vmul.f32 %v2648, %v2896
    %v3042 = vmul.f32 %v2648, %v2900
    %v3043 = vmul.f32 %v2652, %v2896
    %v3044 = vmul.f32 %v2652, %v2900
    %v3045 = vmul.f32 %v2656, %v2896
    %v3046 = vmul.f32 %v2656, %v2900
    %v3047 = vmul.f32 %v2660, %v2896
    %v3048 = vmul.f32 %v2660, %v2900
    %v3049 = vmul.f32 %v2664, %v2896
    %v3050 = vmul.f32 %v2664, %v2900
    %v3051 = vmul.f32 %v2668, %v2896
    %v3052 = vmul.f32 %v2668, %v2900
    %v3053 = vmul.f32 %v2672, %v2896
    %v3054 = vmul.f32 %v2672, %v2900
    %v3055 = vmul.f32 %v2676, %v2896
    %v3056 = vmul.f32 %v2676, %v2900
    %v3057 = vmul.f32 %v2680, %v2896
    %v3058 = vmul.f32 %v2680, %v2900
    %v3059 = vmul.f32 %v2684, %v2896
    %v3060 = vmul.f32 %v2684, %v2900
    %v3061 = vmul.f32 %v2688, %v2896
    %v3062 = vmul.f32 %v2688, %v2900
    %v3063 = vmul.f32 %v2695, %v2896
    %v3064 = vmul.f32 %v2695, %v2900
    %v3065 = vmul.f32 %v2699, %v2896
    %v3066 = vmul.f32 %v2699, %v2900
    %v3067 = vmul.f32 %v2703, %v2896
    %v3068 = vmul.f32 %v2703, %v2900
    %v3069 = vmul.f32 %v2707, %v2896
    %v3070 = vmul.f32 %v2707, %v2900
    %v3071 = vmul.f32 %v2711, %v2896
    %v3072 = vmul.f32 %v2711, %v2900
    %v3073 = vmul.f32 %v2715, %v2896
    %v3074 = vmul.f32 %v2715, %v2900
    %v3075 = vmul.f32 %v2719, %v2896
    %v3076 = vmul.f32 %v2719, %v2900
    %v3077 = vmul.f32 %v2723, %v2896
    %v3078 = vmul.f32 %v2723, %v2900
    %v3079 = vmul.f32 %v2727, %v2896
    %v3080 = vmul.f32 %v2727, %v2900
    %v3081 = vmul.f32 %v2731, %v2896
    %v3082 = vmul.f32 %v2731, %v2900
    %v3083 = vmul.f32 %v2735, %v2896
    %v3084 = vmul.f32 %v2735, %v2900
    %v3085 = vmul.f32 %v2739, %v2896
    %v3086 = vmul.f32 %v2739, %v2900
    %v3087 = vmul.f32 %v2743, %v2896
    %v3088 = vmul.f32 %v2743, %v2900
    %v3089 = vmul.f32 %v2747, %v2896
    %v3090 = vmul.f32 %v2747, %v2900
    %v3091 = vmul.f32 %v2751, %v2896
    %v3092 = vmul.f32 %v2751, %v2900
    %v3093 = vmul.f32 %v2755, %v2896
    %v3094 = vmul.f32 %v2755, %v2900
    %v3095 = vmul.f32 %v2762, %v2896
    %v3096 = vmul.f32 %v2762, %v2900
    %v3097 = vmul.f32 %v2766, %v2896
    %v3098 = vmul.f32 %v2766, %v2900
    %v3099 = vmul.f32 %v2770, %v2896
    %v3100 = vmul.f32 %v2770, %v2900
    %v3101 = vmul.f32 %v2774, %v2896
    %v3102 = vmul.f32 %v2774, %v2900
    %v3103 = vmul.f32 %v2778, %v2896
    %v3104 = vmul.f32 %v2778, %v2900
    %v3105 = vmul.f32 %v2782, %v2896
    %v3106 = vmul.f32 %v2782, %v2900
    %v3107 = vmul.f32 %v2786, %v2896
    %v3108 = vmul.f32 %v2786, %v2900
    %v3109 = vmul.f32 %v2790, %v2896
    %v3110 = vmul.f32 %v2790, %v2900
    %v3111 = vmul.f32 %v2794, %v2896
    %v3112 = vmul.f32 %v2794, %v2900
    %v3113 = vmul.f32 %v2798, %v2896
    %v3114 = vmul.f32 %v2798, %v2900
    %v3115 = vmul.f32 %v2802, %v2896
    %v3116 = vmul.f32 %v2802, %v2900
    %v3117 = vmul.f32 %v2806, %v2896
    %v3118 = vmul.f32 %v2806, %v2900
    %v3119 = vmul.f32 %v2810, %v2896
    %v3120 = vmul.f32 %v2810, %v2900
    %v3121 = vmul.f32 %v2814, %v2896
    %v3122 = vmul.f32 %v2814, %v2900
    %v3123 = vmul.f32 %v2818, %v2896
    %v3124 = vmul.f32 %v2818, %v2900
    %v3125 = vmul.f32 %v2822, %v2896
    %v3126 = vmul.f32 %v2822, %v2900
    %v3127 = vmul.f32 %v2829, %v2896
    %v3128 = vmul.f32 %v2829, %v2900
    %v3129 = vmul.f32 %v2833, %v2896
    %v3130 = vmul.f32 %v2833, %v2900
    %v3131 = vmul.f32 %v2837, %v2896
    %v3132 = vmul.f32 %v2837, %v2900
    %v3133 = vmul.f32 %v2841, %v2896
    %v3134 = vmul.f32 %v2841, %v2900
    %v3135 = vmul.f32 %v2845, %v2896
    %v3136 = vmul.f32 %v2845, %v2900
    %v3137 = vmul.f32 %v2849, %v2896
    %v3138 = vmul.f32 %v2849, %v2900
    %v3139 = vmul.f32 %v2853, %v2896
    %v3140 = vmul.f32 %v2853, %v2900
    %v3141 = vmul.f32 %v2857, %v2896
    %v3142 = vmul.f32 %v2857, %v2900
    %v3143 = vmul.f32 %v2861, %v2896
    %v3144 = vmul.f32 %v2861, %v2900
    %v3145 = vmul.f32 %v2865, %v2896
    %v3146 = vmul.f32 %v2865, %v2900
    %v3147 = vmul.f32 %v2869, %v2896
    %v3148 = vmul.f32 %v2869, %v2900
    %v3149 = vmul.f32 %v2873, %v2896
    %v3150 = vmul.f32 %v2873, %v2900
    %v3151 = vmul.f32 %v2877, %v2896
    %v3152 = vmul.f32 %v2877, %v2900
    %v3153 = vmul.f32 %v2881, %v2896
    %v3154 = vmul.f32 %v2881, %v2900
    %v3155 = vmul.f32 %v2885, %v2896
    %v3156 = vmul.f32 %v2885, %v2900
    %v3157 = vmul.f32 %v2889, %v2896
    %v3158 = vmul.f32 %v2889, %v2900
    %v3159 = vadd.f32 %v2097, %v2903
    %v3160 = vadd.f32 %v2098, %v2904
    %v3161 = vadd.f32 %v2099, %v2905
    %v3162 = vadd.f32 %v2100, %v2906
    %v3163 = vadd.f32 %v2101, %v2907
    %v3164 = vadd.f32 %v2102, %v2908
    %v3165 = vadd.f32 %v2103, %v2909
    %v3166 = vadd.f32 %v2104, %v2910
    %v3167 = vadd.f32 %v2105, %v2911
    %v3168 = vadd.f32 %v2106, %v2912
    %v3169 = vadd.f32 %v2107, %v2913
    %v3170 = vadd.f32 %v2108, %v2914
    %v3171 = vadd.f32 %v2109, %v2915
    %v3172 = vadd.f32 %v2110, %v2916
    %v3173 = vadd.f32 %v2111, %v2917
    %v3174 = vadd.f32 %v2112, %v2918
    %v3175 = vadd.f32 %v2113, %v2919
    %v3176 = vadd.f32 %v2114, %v2920
    %v3177 = vadd.f32 %v2115, %v2921
    %v3178 = vadd.f32 %v2116, %v2922
    %v3179 = vadd.f32 %v2117, %v2923
    %v3180 = vadd.f32 %v2118, %v2924
    %v3181 = vadd.f32 %v2119, %v2925
    %v3182 = vadd.f32 %v2120, %v2926
    %v3183 = vadd.f32 %v2121, %v2927
    %v3184 = vadd.f32 %v2122, %v2928
    %v3185 = vadd.f32 %v2123, %v2929
    %v3186 = vadd.f32 %v2124, %v2930
    %v3187 = vadd.f32 %v2125, %v2931
    %v3188 = vadd.f32 %v2126, %v2932
    %v3189 = vadd.f32 %v2127, %v2933
    %v3190 = vadd.f32 %v2128, %v2934
    %v3191 = vadd.f32 %v2129, %v2935
    %v3192 = vadd.f32 %v2130, %v2936
    %v3193 = vadd.f32 %v2131, %v2937
    %v3194 = vadd.f32 %v2132, %v2938
    %v3195 = vadd.f32 %v2133, %v2939
    %v3196 = vadd.f32 %v2134, %v2940
    %v3197 = vadd.f32 %v2135, %v2941
    %v3198 = vadd.f32 %v2136, %v2942
    %v3199 = vadd.f32 %v2137, %v2943
    %v3200 = vadd.f32 %v2138, %v2944
    %v3201 = vadd.f32 %v2139, %v2945
    %v3202 = vadd.f32 %v2140, %v2946
    %v3203 = vadd.f32 %v2141, %v2947
    %v3204 = vadd.f32 %v2142, %v2948
    %v3205 = vadd.f32 %v2143, %v2949
    %v3206 = vadd.f32 %v2144, %v2950
    %v3207 = vadd.f32 %v2145, %v2951
    %v3208 = vadd.f32 %v2146, %v2952
    %v3209 = vadd.f32 %v2147, %v2953
    %v3210 = vadd.f32 %v2148, %v2954
    %v3211 = vadd.f32 %v2149, %v2955
    %v3212 = vadd.f32 %v2150, %v2956
    %v3213 = vadd.f32 %v2151, %v2957
    %v3214 = vadd.f32 %v2152, %v2958
    %v3215 = vadd.f32 %v2153, %v2959
    %v3216 = vadd.f32 %v2154, %v2960
    %v3217 = vadd.f32 %v2155, %v2961
    %v3218 = vadd.f32 %v2156, %v2962
    %v3219 = vadd.f32 %v2157, %v2963
    %v3220 = vadd.f32 %v2158, %v2964
    %v3221 = vadd.f32 %v2159, %v2965
    %v3222 = vadd.f32 %v2160, %v2966
    %v3223 = vadd.f32 %v2161, %v2967
    %v3224 = vadd.f32 %v2162, %v2968
    %v3225 = vadd.f32 %v2163, %v2969
    %v3226 = vadd.f32 %v2164, %v2970
    %v3227 = vadd.f32 %v2165, %v2971
    %v3228 = vadd.f32 %v2166, %v2972
    %v3229 = vadd.f32 %v2167, %v2973
    %v3230 = vadd.f32 %v2168, %v2974
    %v3231 = vadd.f32 %v2169, %v2975
    %v3232 = vadd.f32 %v2170, %v2976
    %v3233 = vadd.f32 %v2171, %v2977
    %v3234 = vadd.f32 %v2172, %v2978
    %v3235 = vadd.f32 %v2173, %v2979
    %v3236 = vadd.f32 %v2174, %v2980
    %v3237 = vadd.f32 %v2175, %v2981
    %v3238 = vadd.f32 %v2176, %v2982
    %v3239 = vadd.f32 %v2177, %v2983
    %v3240 = vadd.f32 %v2178, %v2984
    %v3241 = vadd.f32 %v2179, %v2985
    %v3242 = vadd.f32 %v2180, %v2986
    %v3243 = vadd.f32 %v2181, %v2987
    %v3244 = vadd.f32 %v2182, %v2988
    %v3245 = vadd.f32 %v2183, %v2989
    %v3246 = vadd.f32 %v2184, %v2990
    %v3247 = vadd.f32 %v2185, %v2991
    %v3248 = vadd.f32 %v2186, %v2992
    %v3249 = vadd.f32 %v2187, %v2993
    %v3250 = vadd.f32 %v2188, %v2994
    %v3251 = vadd.f32 %v2189, %v2995
    %v3252 = vadd.f32 %v2190, %v2996
    %v3253 = vadd.f32 %v2191, %v2997
    %v3254 = vadd.f32 %v2192, %v2998
    %v3255 = vadd.f32 %v2193, %v2999
    %v3256 = vadd.f32 %v2194, %v3000
    %v3257 = vadd.f32 %v2195, %v3001
    %v3258 = vadd.f32 %v2196, %v3002
    %v3259 = vadd.f32 %v2197, %v3003
    %v3260 = vadd.f32 %v2198, %v3004
    %v3261 = vadd.f32 %v2199, %v3005
    %v3262 = vadd.f32 %v2200, %v3006
    %v3263 = vadd.f32 %v2201, %v3007
    %v3264 = vadd.f32 %v2202, %v3008
    %v3265 = vadd.f32 %v2203, %v3009
    %v3266 = vadd.f32 %v2204, %v3010
    %v3267 = vadd.f32 %v2205, %v3011
    %v3268 = vadd.f32 %v2206, %v3012
    %v3269 = vadd.f32 %v2207, %v3013
    %v3270 = vadd.f32 %v2208, %v3014
    %v3271 = vadd.f32 %v2209, %v3015
    %v3272 = vadd.f32 %v2210, %v3016
    %v3273 = vadd.f32 %v2211, %v3017
    %v3274 = vadd.f32 %v2212, %v3018
    %v3275 = vadd.f32 %v2213, %v3019
    %v3276 = vadd.f32 %v2214, %v3020
    %v3277 = vadd.f32 %v2215, %v3021
    %v3278 = vadd.f32 %v2216, %v3022
    %v3279 = vadd.f32 %v2217, %v3023
    %v3280 = vadd.f32 %v2218, %v3024
    %v3281 = vadd.f32 %v2219, %v3025
    %v3282 = vadd.f32 %v2220, %v3026
    %v3283 = vadd.f32 %v2221, %v3027
    %v3284 = vadd.f32 %v2222, %v3028
    %v3285 = vadd.f32 %v2223, %v3029
    %v3286 = vadd.f32 %v2224, %v3030
    %v3287 = vadd.f32 %v2225, %v3031
    %v3288 = vadd.f32 %v2226, %v3032
    %v3289 = vadd.f32 %v2227, %v3033
    %v3290 = vadd.f32 %v2228, %v3034
    %v3291 = vadd.f32 %v2229, %v3035
    %v3292 = vadd.f32 %v2230, %v3036
    %v3293 = vadd.f32 %v2231, %v3037
    %v3294 = vadd.f32 %v2232, %v3038
    %v3295 = vadd.f32 %v2233, %v3039
    %v3296 = vadd.f32 %v2234, %v3040
    %v3297 = vadd.f32 %v2235, %v3041
    %v3298 = vadd.f32 %v2236, %v3042
    %v3299 = vadd.f32 %v2237, %v3043
    %v3300 = vadd.f32 %v2238, %v3044
    %v3301 = vadd.f32 %v2239, %v3045
    %v3302 = vadd.f32 %v2240, %v3046
    %v3303 = vadd.f32 %v2241, %v3047
    %v3304 = vadd.f32 %v2242, %v3048
    %v3305 = vadd.f32 %v2243, %v3049
    %v3306 = vadd.f32 %v2244, %v3050
    %v3307 = vadd.f32 %v2245, %v3051
    %v3308 = vadd.f32 %v2246, %v3052
    %v3309 = vadd.f32 %v2247, %v3053
    %v3310 = vadd.f32 %v2248, %v3054
    %v3311 = vadd.f32 %v2249, %v3055
    %v3312 = vadd.f32 %v2250, %v3056
    %v3313 = vadd.f32 %v2251, %v3057
    %v3314 = vadd.f32 %v2252, %v3058
    %v3315 = vadd.f32 %v2253, %v3059
    %v3316 = vadd.f32 %v2254, %v3060
    %v3317 = vadd.f32 %v2255, %v3061
    %v3318 = vadd.f32 %v2256, %v3062
    %v3319 = vadd.f32 %v2257, %v3063
    %v3320 = vadd.f32 %v2258, %v3064
    %v3321 = vadd.f32 %v2259, %v3065
    %v3322 = vadd.f32 %v2260, %v3066
    %v3323 = vadd.f32 %v2261, %v3067
    %v3324 = vadd.f32 %v2262, %v3068
    %v3325 = vadd.f32 %v2263, %v3069
    %v3326 = vadd.f32 %v2264, %v3070
    %v3327 = vadd.f32 %v2265, %v3071
    %v3328 = vadd.f32 %v2266, %v3072
    %v3329 = vadd.f32 %v2267, %v3073
    %v3330 = vadd.f32 %v2268, %v3074
    %v3331 = vadd.f32 %v2269, %v3075
    %v3332 = vadd.f32 %v2270, %v3076
    %v3333 = vadd.f32 %v2271, %v3077
    %v3334 = vadd.f32 %v2272, %v3078
    %v3335 = vadd.f32 %v2273, %v3079
    %v3336 = vadd.f32 %v2274, %v3080
    %v3337 = vadd.f32 %v2275, %v3081
    %v3338 = vadd.f32 %v2276, %v3082
    %v3339 = vadd.f32 %v2277, %v3083
    %v3340 = vadd.f32 %v2278, %v3084
    %v3341 = vadd.f32 %v2279, %v3085
    %v3342 = vadd.f32 %v2280, %v3086
    %v3343 = vadd.f32 %v2281, %v3087
    %v3344 = vadd.f32 %v2282, %v3088
    %v3345 = vadd.f32 %v2283, %v3089
    %v3346 = vadd.f32 %v2284, %v3090
    %v3347 = vadd.f32 %v2285, %v3091
    %v3348 = vadd.f32 %v2286, %v3092
    %v3349 = vadd.f32 %v2287, %v3093
    %v3350 = vadd.f32 %v2288, %v3094
    %v3351 = vadd.f32 %v2289, %v3095
    %v3352 = vadd.f32 %v2290, %v3096
    %v3353 = vadd.f32 %v2291, %v3097
    %v3354 = vadd.f32 %v2292, %v3098
    %v3355 = vadd.f32 %v2293, %v3099
    %v3356 = vadd.f32 %v2294, %v3100
    %v3357 = vadd.f32 %v2295, %v3101
    %v3358 = vadd.f32 %v2296, %v3102
    %v3359 = vadd.f32 %v2297, %v3103
    %v3360 = vadd.f32 %v2298, %v3104
    %v3361 = vadd.f32 %v2299, %v3105
    %v3362 = vadd.f32 %v2300, %v3106
    %v3363 = vadd.f32 %v2301, %v3107
    %v3364 = vadd.f32 %v2302, %v3108
    %v3365 = vadd.f32 %v2303, %v3109
    %v3366 = vadd.f32 %v2304, %v3110
    %v3367 = vadd.f32 %v2305, %v3111
    %v3368 = vadd.f32 %v2306, %v3112
    %v3369 = vadd.f32 %v2307, %v3113
    %v3370 = vadd.f32 %v2308, %v3114
    %v3371 = vadd.f32 %v2309, %v3115
    %v3372 = vadd.f32 %v2310, %v3116
    %v3373 = vadd.f32 %v2311, %v3117
    %v3374 = vadd.f32 %v2312, %v3118
    %v3375 = vadd.f32 %v2313, %v3119
    %v3376 = vadd.f32 %v2314, %v3120
    %v3377 = vadd.f32 %v2315, %v3121
    %v3378 = vadd.f32 %v2316, %v3122
    %v3379 = vadd.f32 %v2317, %v3123
    %v3380 = vadd.f32 %v2318, %v3124
    %v3381 = vadd.f32 %v2319, %v3125
    %v3382 = vadd.f32 %v2320, %v3126
    %v3383 = vadd.f32 %v2321, %v3127
    %v3384 = vadd.f32 %v2322, %v3128
    %v3385 = vadd.f32 %v2323, %v3129
    %v3386 = vadd.f32 %v2324, %v3130
    %v3387 = vadd.f32 %v2325, %v3131
    %v3388 = vadd.f32 %v2326, %v3132
    %v3389 = vadd.f32 %v2327, %v3133
    %v3390 = vadd.f32 %v2328, %v3134
    %v3391 = vadd.f32 %v2329, %v3135
    %v3392 = vadd.f32 %v2330, %v3136
    %v3393 = vadd.f32 %v2331, %v3137
    %v3394 = vadd.f32 %v2332, %v3138
    %v3395 = vadd.f32 %v2333, %v3139
    %v3396 = vadd.f32 %v2334, %v3140
    %v3397 = vadd.f32 %v2335, %v3141
    %v3398 = vadd.f32 %v2336, %v3142
    %v3399 = vadd.f32 %v2337, %v3143
    %v3400 = vadd.f32 %v2338, %v3144
    %v3401 = vadd.f32 %v2339, %v3145
    %v3402 = vadd.f32 %v2340, %v3146
    %v3403 = vadd.f32 %v2341, %v3147
    %v3404 = vadd.f32 %v2342, %v3148
    %v3405 = vadd.f32 %v2343, %v3149
    %v3406 = vadd.f32 %v2344, %v3150
    %v3407 = vadd.f32 %v2345, %v3151
    %v3408 = vadd.f32 %v2346, %v3152
    %v3409 = vadd.f32 %v2347, %v3153
    %v3410 = vadd.f32 %v2348, %v3154
    %v3411 = vadd.f32 %v2349, %v3155
    %v3412 = vadd.f32 %v2350, %v3156
    %v3413 = vadd.f32 %v2351, %v3157
    %v3414 = vadd.f32 %v2352, %v3158
    %3415 = vrot.lane.b32.xlu0 %v1289, 127
    %v3416 = vpop.permute.xlu0 %3415
    %v3417 = vsel %vm66, %v3416, 0.0
    %v3418 = vlaneseq
    %v3419 = vshrl.u32 %v3418, 7
    %v3420 = vsub.s32 0, %v3419
    %v3421 = vrot.slane %v3417, %v3420
    %3423 = vbcast.lane.b32.xlu0 %v3421, 256
    %v3424 = vpop.permute.xlu0 %3423
    %s3426 = sor.u32 256, 8
    %3427 = vbcast.lane.b32.xlu0 %v3421, %s3426
    %v3428 = vpop.permute.xlu0 %3427
    %s3430 = sor.u32 256, 16
    %3431 = vbcast.lane.b32.xlu0 %v3421, %s3430
    %v3432 = vpop.permute.xlu0 %3431
    %s3434 = sor.u32 256, 24
    %3435 = vbcast.lane.b32.xlu0 %v3421, %s3434
    %v3436 = vpop.permute.xlu0 %3435
    %s3438 = sor.u32 256, 32
    %3439 = vbcast.lane.b32.xlu0 %v3421, %s3438
    %v3440 = vpop.permute.xlu0 %3439
    %s3442 = sor.u32 256, 40
    %3443 = vbcast.lane.b32.xlu0 %v3421, %s3442
    %v3444 = vpop.permute.xlu0 %3443
    %s3446 = sor.u32 256, 48
    %3447 = vbcast.lane.b32.xlu0 %v3421, %s3446
    %v3448 = vpop.permute.xlu0 %3447
    %s3450 = sor.u32 256, 56
    %3451 = vbcast.lane.b32.xlu0 %v3421, %s3450
    %v3452 = vpop.permute.xlu0 %3451
    %s3454 = sor.u32 256, 64
    %3455 = vbcast.lane.b32.xlu0 %v3421, %s3454
    %v3456 = vpop.permute.xlu0 %3455
    %s3458 = sor.u32 256, 72
    %3459 = vbcast.lane.b32.xlu0 %v3421, %s3458
    %v3460 = vpop.permute.xlu0 %3459
    %s3462 = sor.u32 256, 80
    %3463 = vbcast.lane.b32.xlu0 %v3421, %s3462
    %v3464 = vpop.permute.xlu0 %3463
    %s3466 = sor.u32 256, 88
    %3467 = vbcast.lane.b32.xlu0 %v3421, %s3466
    %v3468 = vpop.permute.xlu0 %3467
    %s3470 = sor.u32 256, 96
    %3471 = vbcast.lane.b32.xlu0 %v3421, %s3470
    %v3472 = vpop.permute.xlu0 %3471
    %s3474 = sor.u32 256, 104
    %3475 = vbcast.lane.b32.xlu0 %v3421, %s3474
    %v3476 = vpop.permute.xlu0 %3475
    %s3478 = sor.u32 256, 112
    %3479 = vbcast.lane.b32.xlu0 %v3421, %s3478
    %v3480 = vpop.permute.xlu0 %3479
    %s3482 = sor.u32 256, 120
    %3483 = vbcast.lane.b32.xlu0 %v3421, %s3482
    %v3484 = vpop.permute.xlu0 %3483
    %v3485 = vlaneseq
    %v3486 = vshrl.u32 %v3485, 7
    %v3487 = vsub.s32 1, %v3486
    %v3488 = vrot.slane %v3417, %v3487
    %3490 = vbcast.lane.b32.xlu0 %v3488, 256
    %v3491 = vpop.permute.xlu0 %3490
    %s3493 = sor.u32 256, 8
    %3494 = vbcast.lane.b32.xlu0 %v3488, %s3493
    %v3495 = vpop.permute.xlu0 %3494
    %s3497 = sor.u32 256, 16
    %3498 = vbcast.lane.b32.xlu0 %v3488, %s3497
    %v3499 = vpop.permute.xlu0 %3498
    %s3501 = sor.u32 256, 24
    %3502 = vbcast.lane.b32.xlu0 %v3488, %s3501
    %v3503 = vpop.permute.xlu0 %3502
    %s3505 = sor.u32 256, 32
    %3506 = vbcast.lane.b32.xlu0 %v3488, %s3505
    %v3507 = vpop.permute.xlu0 %3506
    %s3509 = sor.u32 256, 40
    %3510 = vbcast.lane.b32.xlu0 %v3488, %s3509
    %v3511 = vpop.permute.xlu0 %3510
    %s3513 = sor.u32 256, 48
    %3514 = vbcast.lane.b32.xlu0 %v3488, %s3513
    %v3515 = vpop.permute.xlu0 %3514
    %s3517 = sor.u32 256, 56
    %3518 = vbcast.lane.b32.xlu0 %v3488, %s3517
    %v3519 = vpop.permute.xlu0 %3518
    %s3521 = sor.u32 256, 64
    %3522 = vbcast.lane.b32.xlu0 %v3488, %s3521
    %v3523 = vpop.permute.xlu0 %3522
    %s3525 = sor.u32 256, 72
    %3526 = vbcast.lane.b32.xlu0 %v3488, %s3525
    %v3527 = vpop.permute.xlu0 %3526
    %s3529 = sor.u32 256, 80
    %3530 = vbcast.lane.b32.xlu0 %v3488, %s3529
    %v3531 = vpop.permute.xlu0 %3530
    %s3533 = sor.u32 256, 88
    %3534 = vbcast.lane.b32.xlu0 %v3488, %s3533
    %v3535 = vpop.permute.xlu0 %3534
    %s3537 = sor.u32 256, 96
    %3538 = vbcast.lane.b32.xlu0 %v3488, %s3537
    %v3539 = vpop.permute.xlu0 %3538
    %s3541 = sor.u32 256, 104
    %3542 = vbcast.lane.b32.xlu0 %v3488, %s3541
    %v3543 = vpop.permute.xlu0 %3542
    %s3545 = sor.u32 256, 112
    %3546 = vbcast.lane.b32.xlu0 %v3488, %s3545
    %v3547 = vpop.permute.xlu0 %3546
    %s3549 = sor.u32 256, 120
    %3550 = vbcast.lane.b32.xlu0 %v3488, %s3549
    %v3551 = vpop.permute.xlu0 %3550
    %v3552 = vlaneseq
    %v3553 = vshrl.u32 %v3552, 7
    %v3554 = vsub.s32 2, %v3553
    %v3555 = vrot.slane %v3417, %v3554
    %3557 = vbcast.lane.b32.xlu0 %v3555, 256
    %v3558 = vpop.permute.xlu0 %3557
    %s3560 = sor.u32 256, 8
    %3561 = vbcast.lane.b32.xlu0 %v3555, %s3560
    %v3562 = vpop.permute.xlu0 %3561
    %s3564 = sor.u32 256, 16
    %3565 = vbcast.lane.b32.xlu0 %v3555, %s3564
    %v3566 = vpop.permute.xlu0 %3565
    %s3568 = sor.u32 256, 24
    %3569 = vbcast.lane.b32.xlu0 %v3555, %s3568
    %v3570 = vpop.permute.xlu0 %3569
    %s3572 = sor.u32 256, 32
    %3573 = vbcast.lane.b32.xlu0 %v3555, %s3572
    %v3574 = vpop.permute.xlu0 %3573
    %s3576 = sor.u32 256, 40
    %3577 = vbcast.lane.b32.xlu0 %v3555, %s3576
    %v3578 = vpop.permute.xlu0 %3577
    %s3580 = sor.u32 256, 48
    %3581 = vbcast.lane.b32.xlu0 %v3555, %s3580
    %v3582 = vpop.permute.xlu0 %3581
    %s3584 = sor.u32 256, 56
    %3585 = vbcast.lane.b32.xlu0 %v3555, %s3584
    %v3586 = vpop.permute.xlu0 %3585
    %s3588 = sor.u32 256, 64
    %3589 = vbcast.lane.b32.xlu0 %v3555, %s3588
    %v3590 = vpop.permute.xlu0 %3589
    %s3592 = sor.u32 256, 72
    %3593 = vbcast.lane.b32.xlu0 %v3555, %s3592
    %v3594 = vpop.permute.xlu0 %3593
    %s3596 = sor.u32 256, 80
    %3597 = vbcast.lane.b32.xlu0 %v3555, %s3596
    %v3598 = vpop.permute.xlu0 %3597
    %s3600 = sor.u32 256, 88
    %3601 = vbcast.lane.b32.xlu0 %v3555, %s3600
    %v3602 = vpop.permute.xlu0 %3601
    %s3604 = sor.u32 256, 96
    %3605 = vbcast.lane.b32.xlu0 %v3555, %s3604
    %v3606 = vpop.permute.xlu0 %3605
    %s3608 = sor.u32 256, 104
    %3609 = vbcast.lane.b32.xlu0 %v3555, %s3608
    %v3610 = vpop.permute.xlu0 %3609
    %s3612 = sor.u32 256, 112
    %3613 = vbcast.lane.b32.xlu0 %v3555, %s3612
    %v3614 = vpop.permute.xlu0 %3613
    %s3616 = sor.u32 256, 120
    %3617 = vbcast.lane.b32.xlu0 %v3555, %s3616
    %v3618 = vpop.permute.xlu0 %3617
    %v3619 = vlaneseq
    %v3620 = vshrl.u32 %v3619, 7
    %v3621 = vsub.s32 3, %v3620
    %v3622 = vrot.slane %v3417, %v3621
    %3624 = vbcast.lane.b32.xlu0 %v3622, 256
    %v3625 = vpop.permute.xlu0 %3624
    %s3627 = sor.u32 256, 8
    %3628 = vbcast.lane.b32.xlu0 %v3622, %s3627
    %v3629 = vpop.permute.xlu0 %3628
    %s3631 = sor.u32 256, 16
    %3632 = vbcast.lane.b32.xlu0 %v3622, %s3631
    %v3633 = vpop.permute.xlu0 %3632
    %s3635 = sor.u32 256, 24
    %3636 = vbcast.lane.b32.xlu0 %v3622, %s3635
    %v3637 = vpop.permute.xlu0 %3636
    %s3639 = sor.u32 256, 32
    %3640 = vbcast.lane.b32.xlu0 %v3622, %s3639
    %v3641 = vpop.permute.xlu0 %3640
    %s3643 = sor.u32 256, 40
    %3644 = vbcast.lane.b32.xlu0 %v3622, %s3643
    %v3645 = vpop.permute.xlu0 %3644
    %s3647 = sor.u32 256, 48
    %3648 = vbcast.lane.b32.xlu0 %v3622, %s3647
    %v3649 = vpop.permute.xlu0 %3648
    %s3651 = sor.u32 256, 56
    %3652 = vbcast.lane.b32.xlu0 %v3622, %s3651
    %v3653 = vpop.permute.xlu0 %3652
    %s3655 = sor.u32 256, 64
    %3656 = vbcast.lane.b32.xlu0 %v3622, %s3655
    %v3657 = vpop.permute.xlu0 %3656
    %s3659 = sor.u32 256, 72
    %3660 = vbcast.lane.b32.xlu0 %v3622, %s3659
    %v3661 = vpop.permute.xlu0 %3660
    %s3663 = sor.u32 256, 80
    %3664 = vbcast.lane.b32.xlu0 %v3622, %s3663
    %v3665 = vpop.permute.xlu0 %3664
    %s3667 = sor.u32 256, 88
    %3668 = vbcast.lane.b32.xlu0 %v3622, %s3667
    %v3669 = vpop.permute.xlu0 %3668
    %s3671 = sor.u32 256, 96
    %3672 = vbcast.lane.b32.xlu0 %v3622, %s3671
    %v3673 = vpop.permute.xlu0 %3672
    %s3675 = sor.u32 256, 104
    %3676 = vbcast.lane.b32.xlu0 %v3622, %s3675
    %v3677 = vpop.permute.xlu0 %3676
    %s3679 = sor.u32 256, 112
    %3680 = vbcast.lane.b32.xlu0 %v3622, %s3679
    %v3681 = vpop.permute.xlu0 %3680
    %s3683 = sor.u32 256, 120
    %3684 = vbcast.lane.b32.xlu0 %v3622, %s3683
    %v3685 = vpop.permute.xlu0 %3684
    %v3686 = vlaneseq
    %v3687 = vshrl.u32 %v3686, 7
    %v3688 = vsub.s32 4, %v3687
    %v3689 = vrot.slane %v3417, %v3688
    %3691 = vbcast.lane.b32.xlu0 %v3689, 256
    %v3692 = vpop.permute.xlu0 %3691
    %s3694 = sor.u32 256, 8
    %3695 = vbcast.lane.b32.xlu0 %v3689, %s3694
    %v3696 = vpop.permute.xlu0 %3695
    %s3698 = sor.u32 256, 16
    %3699 = vbcast.lane.b32.xlu0 %v3689, %s3698
    %v3700 = vpop.permute.xlu0 %3699
    %s3702 = sor.u32 256, 24
    %3703 = vbcast.lane.b32.xlu0 %v3689, %s3702
    %v3704 = vpop.permute.xlu0 %3703
    %s3706 = sor.u32 256, 32
    %3707 = vbcast.lane.b32.xlu0 %v3689, %s3706
    %v3708 = vpop.permute.xlu0 %3707
    %s3710 = sor.u32 256, 40
    %3711 = vbcast.lane.b32.xlu0 %v3689, %s3710
    %v3712 = vpop.permute.xlu0 %3711
    %s3714 = sor.u32 256, 48
    %3715 = vbcast.lane.b32.xlu0 %v3689, %s3714
    %v3716 = vpop.permute.xlu0 %3715
    %s3718 = sor.u32 256, 56
    %3719 = vbcast.lane.b32.xlu0 %v3689, %s3718
    %v3720 = vpop.permute.xlu0 %3719
    %s3722 = sor.u32 256, 64
    %3723 = vbcast.lane.b32.xlu0 %v3689, %s3722
    %v3724 = vpop.permute.xlu0 %3723
    %s3726 = sor.u32 256, 72
    %3727 = vbcast.lane.b32.xlu0 %v3689, %s3726
    %v3728 = vpop.permute.xlu0 %3727
    %s3730 = sor.u32 256, 80
    %3731 = vbcast.lane.b32.xlu0 %v3689, %s3730
    %v3732 = vpop.permute.xlu0 %3731
    %s3734 = sor.u32 256, 88
    %3735 = vbcast.lane.b32.xlu0 %v3689, %s3734
    %v3736 = vpop.permute.xlu0 %3735
    %s3738 = sor.u32 256, 96
    %3739 = vbcast.lane.b32.xlu0 %v3689, %s3738
    %v3740 = vpop.permute.xlu0 %3739
    %s3742 = sor.u32 256, 104
    %3743 = vbcast.lane.b32.xlu0 %v3689, %s3742
    %v3744 = vpop.permute.xlu0 %3743
    %s3746 = sor.u32 256, 112
    %3747 = vbcast.lane.b32.xlu0 %v3689, %s3746
    %v3748 = vpop.permute.xlu0 %3747
    %s3750 = sor.u32 256, 120
    %3751 = vbcast.lane.b32.xlu0 %v3689, %s3750
    %v3752 = vpop.permute.xlu0 %3751
    %v3753 = vlaneseq
    %v3754 = vshrl.u32 %v3753, 7
    %v3755 = vsub.s32 5, %v3754
    %v3756 = vrot.slane %v3417, %v3755
    %3758 = vbcast.lane.b32.xlu0 %v3756, 256
    %v3759 = vpop.permute.xlu0 %3758
    %s3761 = sor.u32 256, 8
    %3762 = vbcast.lane.b32.xlu0 %v3756, %s3761
    %v3763 = vpop.permute.xlu0 %3762
    %s3765 = sor.u32 256, 16
    %3766 = vbcast.lane.b32.xlu0 %v3756, %s3765
    %v3767 = vpop.permute.xlu0 %3766
    %s3769 = sor.u32 256, 24
    %3770 = vbcast.lane.b32.xlu0 %v3756, %s3769
    %v3771 = vpop.permute.xlu0 %3770
    %s3773 = sor.u32 256, 32
    %3774 = vbcast.lane.b32.xlu0 %v3756, %s3773
    %v3775 = vpop.permute.xlu0 %3774
    %s3777 = sor.u32 256, 40
    %3778 = vbcast.lane.b32.xlu0 %v3756, %s3777
    %v3779 = vpop.permute.xlu0 %3778
    %s3781 = sor.u32 256, 48
    %3782 = vbcast.lane.b32.xlu0 %v3756, %s3781
    %v3783 = vpop.permute.xlu0 %3782
    %s3785 = sor.u32 256, 56
    %3786 = vbcast.lane.b32.xlu0 %v3756, %s3785
    %v3787 = vpop.permute.xlu0 %3786
    %s3789 = sor.u32 256, 64
    %3790 = vbcast.lane.b32.xlu0 %v3756, %s3789
    %v3791 = vpop.permute.xlu0 %3790
    %s3793 = sor.u32 256, 72
    %3794 = vbcast.lane.b32.xlu0 %v3756, %s3793
    %v3795 = vpop.permute.xlu0 %3794
    %s3797 = sor.u32 256, 80
    %3798 = vbcast.lane.b32.xlu0 %v3756, %s3797
    %v3799 = vpop.permute.xlu0 %3798
    %s3801 = sor.u32 256, 88
    %3802 = vbcast.lane.b32.xlu0 %v3756, %s3801
    %v3803 = vpop.permute.xlu0 %3802
    %s3805 = sor.u32 256, 96
    %3806 = vbcast.lane.b32.xlu0 %v3756, %s3805
    %v3807 = vpop.permute.xlu0 %3806
    %s3809 = sor.u32 256, 104
    %3810 = vbcast.lane.b32.xlu0 %v3756, %s3809
    %v3811 = vpop.permute.xlu0 %3810
    %s3813 = sor.u32 256, 112
    %3814 = vbcast.lane.b32.xlu0 %v3756, %s3813
    %v3815 = vpop.permute.xlu0 %3814
    %s3817 = sor.u32 256, 120
    %3818 = vbcast.lane.b32.xlu0 %v3756, %s3817
    %v3819 = vpop.permute.xlu0 %3818
    %v3820 = vlaneseq
    %v3821 = vshrl.u32 %v3820, 7
    %v3822 = vsub.s32 6, %v3821
    %v3823 = vrot.slane %v3417, %v3822
    %3825 = vbcast.lane.b32.xlu0 %v3823, 256
    %v3826 = vpop.permute.xlu0 %3825
    %s3828 = sor.u32 256, 8
    %3829 = vbcast.lane.b32.xlu0 %v3823, %s3828
    %v3830 = vpop.permute.xlu0 %3829
    %s3832 = sor.u32 256, 16
    %3833 = vbcast.lane.b32.xlu0 %v3823, %s3832
    %v3834 = vpop.permute.xlu0 %3833
    %s3836 = sor.u32 256, 24
    %3837 = vbcast.lane.b32.xlu0 %v3823, %s3836
    %v3838 = vpop.permute.xlu0 %3837
    %s3840 = sor.u32 256, 32
    %3841 = vbcast.lane.b32.xlu0 %v3823, %s3840
    %v3842 = vpop.permute.xlu0 %3841
    %s3844 = sor.u32 256, 40
    %3845 = vbcast.lane.b32.xlu0 %v3823, %s3844
    %v3846 = vpop.permute.xlu0 %3845
    %s3848 = sor.u32 256, 48
    %3849 = vbcast.lane.b32.xlu0 %v3823, %s3848
    %v3850 = vpop.permute.xlu0 %3849
    %s3852 = sor.u32 256, 56
    %3853 = vbcast.lane.b32.xlu0 %v3823, %s3852
    %v3854 = vpop.permute.xlu0 %3853
    %s3856 = sor.u32 256, 64
    %3857 = vbcast.lane.b32.xlu0 %v3823, %s3856
    %v3858 = vpop.permute.xlu0 %3857
    %s3860 = sor.u32 256, 72
    %3861 = vbcast.lane.b32.xlu0 %v3823, %s3860
    %v3862 = vpop.permute.xlu0 %3861
    %s3864 = sor.u32 256, 80
    %3865 = vbcast.lane.b32.xlu0 %v3823, %s3864
    %v3866 = vpop.permute.xlu0 %3865
    %s3868 = sor.u32 256, 88
    %3869 = vbcast.lane.b32.xlu0 %v3823, %s3868
    %v3870 = vpop.permute.xlu0 %3869
    %s3872 = sor.u32 256, 96
    %3873 = vbcast.lane.b32.xlu0 %v3823, %s3872
    %v3874 = vpop.permute.xlu0 %3873
    %s3876 = sor.u32 256, 104
    %3877 = vbcast.lane.b32.xlu0 %v3823, %s3876
    %v3878 = vpop.permute.xlu0 %3877
    %s3880 = sor.u32 256, 112
    %3881 = vbcast.lane.b32.xlu0 %v3823, %s3880
    %v3882 = vpop.permute.xlu0 %3881
    %s3884 = sor.u32 256, 120
    %3885 = vbcast.lane.b32.xlu0 %v3823, %s3884
    %v3886 = vpop.permute.xlu0 %3885
    %v3887 = vlaneseq
    %v3888 = vshrl.u32 %v3887, 7
    %v3889 = vsub.s32 7, %v3888
    %v3890 = vrot.slane %v3417, %v3889
    %3892 = vbcast.lane.b32.xlu0 %v3890, 256
    %v3893 = vpop.permute.xlu0 %3892
    %s3895 = sor.u32 256, 8
    %3896 = vbcast.lane.b32.xlu0 %v3890, %s3895
    %v3897 = vpop.permute.xlu0 %3896
    %s3899 = sor.u32 256, 16
    %3900 = vbcast.lane.b32.xlu0 %v3890, %s3899
    %v3901 = vpop.permute.xlu0 %3900
    %s3903 = sor.u32 256, 24
    %3904 = vbcast.lane.b32.xlu0 %v3890, %s3903
    %v3905 = vpop.permute.xlu0 %3904
    %s3907 = sor.u32 256, 32
    %3908 = vbcast.lane.b32.xlu0 %v3890, %s3907
    %v3909 = vpop.permute.xlu0 %3908
    %s3911 = sor.u32 256, 40
    %3912 = vbcast.lane.b32.xlu0 %v3890, %s3911
    %v3913 = vpop.permute.xlu0 %3912
    %s3915 = sor.u32 256, 48
    %3916 = vbcast.lane.b32.xlu0 %v3890, %s3915
    %v3917 = vpop.permute.xlu0 %3916
    %s3919 = sor.u32 256, 56
    %3920 = vbcast.lane.b32.xlu0 %v3890, %s3919
    %v3921 = vpop.permute.xlu0 %3920
    %s3923 = sor.u32 256, 64
    %3924 = vbcast.lane.b32.xlu0 %v3890, %s3923
    %v3925 = vpop.permute.xlu0 %3924
    %s3927 = sor.u32 256, 72
    %3928 = vbcast.lane.b32.xlu0 %v3890, %s3927
    %v3929 = vpop.permute.xlu0 %3928
    %s3931 = sor.u32 256, 80
    %3932 = vbcast.lane.b32.xlu0 %v3890, %s3931
    %v3933 = vpop.permute.xlu0 %3932
    %s3935 = sor.u32 256, 88
    %3936 = vbcast.lane.b32.xlu0 %v3890, %s3935
    %v3937 = vpop.permute.xlu0 %3936
    %s3939 = sor.u32 256, 96
    %3940 = vbcast.lane.b32.xlu0 %v3890, %s3939
    %v3941 = vpop.permute.xlu0 %3940
    %s3943 = sor.u32 256, 104
    %3944 = vbcast.lane.b32.xlu0 %v3890, %s3943
    %v3945 = vpop.permute.xlu0 %3944
    %s3947 = sor.u32 256, 112
    %3948 = vbcast.lane.b32.xlu0 %v3890, %s3947
    %v3949 = vpop.permute.xlu0 %3948
    %s3951 = sor.u32 256, 120
    %3952 = vbcast.lane.b32.xlu0 %v3890, %s3951
    %v3953 = vpop.permute.xlu0 %3952
    %s3954 = scalar_lea.vmem %s10, 2
    %v3955 = vld [vmem:[%s3954] ss:$4 sm:$0x3]
    %v3957 = vlaneseq
    %v3958 = vshrl.u32 %v3957, 7
    %v3959 = vsub.s32 0, %v3958
    %v3960 = vrot.slane %v3955, %v3959
    %v3961 = vlaneseq
    %v3962 = vshrl.u32 %v3961, 7
    %v3963 = vsub.s32 1, %v3962
    %v3964 = vrot.slane %v3955, %v3963
    %v3967 = vmul.f32 %v3424, %v3960
    %v3968 = vmul.f32 %v3424, %v3964
    %v3969 = vmul.f32 %v3428, %v3960
    %v3970 = vmul.f32 %v3428, %v3964
    %v3971 = vmul.f32 %v3432, %v3960
    %v3972 = vmul.f32 %v3432, %v3964
    %v3973 = vmul.f32 %v3436, %v3960
    %v3974 = vmul.f32 %v3436, %v3964
    %v3975 = vmul.f32 %v3440, %v3960
    %v3976 = vmul.f32 %v3440, %v3964
    %v3977 = vmul.f32 %v3444, %v3960
    %v3978 = vmul.f32 %v3444, %v3964
    %v3979 = vmul.f32 %v3448, %v3960
    %v3980 = vmul.f32 %v3448, %v3964
    %v3981 = vmul.f32 %v3452, %v3960
    %v3982 = vmul.f32 %v3452, %v3964
    %v3983 = vmul.f32 %v3456, %v3960
    %v3984 = vmul.f32 %v3456, %v3964
    %v3985 = vmul.f32 %v3460, %v3960
    %v3986 = vmul.f32 %v3460, %v3964
    %v3987 = vmul.f32 %v3464, %v3960
    %v3988 = vmul.f32 %v3464, %v3964
    %v3989 = vmul.f32 %v3468, %v3960
    %v3990 = vmul.f32 %v3468, %v3964
    %v3991 = vmul.f32 %v3472, %v3960
    %v3992 = vmul.f32 %v3472, %v3964
    %v3993 = vmul.f32 %v3476, %v3960
    %v3994 = vmul.f32 %v3476, %v3964
    %v3995 = vmul.f32 %v3480, %v3960
    %v3996 = vmul.f32 %v3480, %v3964
    %v3997 = vmul.f32 %v3484, %v3960
    %v3998 = vmul.f32 %v3484, %v3964
    %v3999 = vmul.f32 %v3491, %v3960
    %v4000 = vmul.f32 %v3491, %v3964
    %v4001 = vmul.f32 %v3495, %v3960
    %v4002 = vmul.f32 %v3495, %v3964
    %v4003 = vmul.f32 %v3499, %v3960
    %v4004 = vmul.f32 %v3499, %v3964
    %v4005 = vmul.f32 %v3503, %v3960
    %v4006 = vmul.f32 %v3503, %v3964
    %v4007 = vmul.f32 %v3507, %v3960
    %v4008 = vmul.f32 %v3507, %v3964
    %v4009 = vmul.f32 %v3511, %v3960
    %v4010 = vmul.f32 %v3511, %v3964
    %v4011 = vmul.f32 %v3515, %v3960
    %v4012 = vmul.f32 %v3515, %v3964
    %v4013 = vmul.f32 %v3519, %v3960
    %v4014 = vmul.f32 %v3519, %v3964
    %v4015 = vmul.f32 %v3523, %v3960
    %v4016 = vmul.f32 %v3523, %v3964
    %v4017 = vmul.f32 %v3527, %v3960
    %v4018 = vmul.f32 %v3527, %v3964
    %v4019 = vmul.f32 %v3531, %v3960
    %v4020 = vmul.f32 %v3531, %v3964
    %v4021 = vmul.f32 %v3535, %v3960
    %v4022 = vmul.f32 %v3535, %v3964
    %v4023 = vmul.f32 %v3539, %v3960
    %v4024 = vmul.f32 %v3539, %v3964
    %v4025 = vmul.f32 %v3543, %v3960
    %v4026 = vmul.f32 %v3543, %v3964
    %v4027 = vmul.f32 %v3547, %v3960
    %v4028 = vmul.f32 %v3547, %v3964
    %v4029 = vmul.f32 %v3551, %v3960
    %v4030 = vmul.f32 %v3551, %v3964
    %v4031 = vmul.f32 %v3558, %v3960
    %v4032 = vmul.f32 %v3558, %v3964
    %v4033 = vmul.f32 %v3562, %v3960
    %v4034 = vmul.f32 %v3562, %v3964
    %v4035 = vmul.f32 %v3566, %v3960
    %v4036 = vmul.f32 %v3566, %v3964
    %v4037 = vmul.f32 %v3570, %v3960
    %v4038 = vmul.f32 %v3570, %v3964
    %v4039 = vmul.f32 %v3574, %v3960
    %v4040 = vmul.f32 %v3574, %v3964
    %v4041 = vmul.f32 %v3578, %v3960
    %v4042 = vmul.f32 %v3578, %v3964
    %v4043 = vmul.f32 %v3582, %v3960
    %v4044 = vmul.f32 %v3582, %v3964
    %v4045 = vmul.f32 %v3586, %v3960
    %v4046 = vmul.f32 %v3586, %v3964
    %v4047 = vmul.f32 %v3590, %v3960
    %v4048 = vmul.f32 %v3590, %v3964
    %v4049 = vmul.f32 %v3594, %v3960
    %v4050 = vmul.f32 %v3594, %v3964
    %v4051 = vmul.f32 %v3598, %v3960
    %v4052 = vmul.f32 %v3598, %v3964
    %v4053 = vmul.f32 %v3602, %v3960
    %v4054 = vmul.f32 %v3602, %v3964
    %v4055 = vmul.f32 %v3606, %v3960
    %v4056 = vmul.f32 %v3606, %v3964
    %v4057 = vmul.f32 %v3610, %v3960
    %v4058 = vmul.f32 %v3610, %v3964
    %v4059 = vmul.f32 %v3614, %v3960
    %v4060 = vmul.f32 %v3614, %v3964
    %v4061 = vmul.f32 %v3618, %v3960
    %v4062 = vmul.f32 %v3618, %v3964
    %v4063 = vmul.f32 %v3625, %v3960
    %v4064 = vmul.f32 %v3625, %v3964
    %v4065 = vmul.f32 %v3629, %v3960
    %v4066 = vmul.f32 %v3629, %v3964
    %v4067 = vmul.f32 %v3633, %v3960
    %v4068 = vmul.f32 %v3633, %v3964
    %v4069 = vmul.f32 %v3637, %v3960
    %v4070 = vmul.f32 %v3637, %v3964
    %v4071 = vmul.f32 %v3641, %v3960
    %v4072 = vmul.f32 %v3641, %v3964
    %v4073 = vmul.f32 %v3645, %v3960
    %v4074 = vmul.f32 %v3645, %v3964
    %v4075 = vmul.f32 %v3649, %v3960
    %v4076 = vmul.f32 %v3649, %v3964
    %v4077 = vmul.f32 %v3653, %v3960
    %v4078 = vmul.f32 %v3653, %v3964
    %v4079 = vmul.f32 %v3657, %v3960
    %v4080 = vmul.f32 %v3657, %v3964
    %v4081 = vmul.f32 %v3661, %v3960
    %v4082 = vmul.f32 %v3661, %v3964
    %v4083 = vmul.f32 %v3665, %v3960
    %v4084 = vmul.f32 %v3665, %v3964
    %v4085 = vmul.f32 %v3669, %v3960
    %v4086 = vmul.f32 %v3669, %v3964
    %v4087 = vmul.f32 %v3673, %v3960
    %v4088 = vmul.f32 %v3673, %v3964
    %v4089 = vmul.f32 %v3677, %v3960
    %v4090 = vmul.f32 %v3677, %v3964
    %v4091 = vmul.f32 %v3681, %v3960
    %v4092 = vmul.f32 %v3681, %v3964
    %v4093 = vmul.f32 %v3685, %v3960
    %v4094 = vmul.f32 %v3685, %v3964
    %v4095 = vmul.f32 %v3692, %v3960
    %v4096 = vmul.f32 %v3692, %v3964
    %v4097 = vmul.f32 %v3696, %v3960
    %v4098 = vmul.f32 %v3696, %v3964
    %v4099 = vmul.f32 %v3700, %v3960
    %v4100 = vmul.f32 %v3700, %v3964
    %v4101 = vmul.f32 %v3704, %v3960
    %v4102 = vmul.f32 %v3704, %v3964
    %v4103 = vmul.f32 %v3708, %v3960
    %v4104 = vmul.f32 %v3708, %v3964
    %v4105 = vmul.f32 %v3712, %v3960
    %v4106 = vmul.f32 %v3712, %v3964
    %v4107 = vmul.f32 %v3716, %v3960
    %v4108 = vmul.f32 %v3716, %v3964
    %v4109 = vmul.f32 %v3720, %v3960
    %v4110 = vmul.f32 %v3720, %v3964
    %v4111 = vmul.f32 %v3724, %v3960
    %v4112 = vmul.f32 %v3724, %v3964
    %v4113 = vmul.f32 %v3728, %v3960
    %v4114 = vmul.f32 %v3728, %v3964
    %v4115 = vmul.f32 %v3732, %v3960
    %v4116 = vmul.f32 %v3732, %v3964
    %v4117 = vmul.f32 %v3736, %v3960
    %v4118 = vmul.f32 %v3736, %v3964
    %v4119 = vmul.f32 %v3740, %v3960
    %v4120 = vmul.f32 %v3740, %v3964
    %v4121 = vmul.f32 %v3744, %v3960
    %v4122 = vmul.f32 %v3744, %v3964
    %v4123 = vmul.f32 %v3748, %v3960
    %v4124 = vmul.f32 %v3748, %v3964
    %v4125 = vmul.f32 %v3752, %v3960
    %v4126 = vmul.f32 %v3752, %v3964
    %v4127 = vmul.f32 %v3759, %v3960
    %v4128 = vmul.f32 %v3759, %v3964
    %v4129 = vmul.f32 %v3763, %v3960
    %v4130 = vmul.f32 %v3763, %v3964
    %v4131 = vmul.f32 %v3767, %v3960
    %v4132 = vmul.f32 %v3767, %v3964
    %v4133 = vmul.f32 %v3771, %v3960
    %v4134 = vmul.f32 %v3771, %v3964
    %v4135 = vmul.f32 %v3775, %v3960
    %v4136 = vmul.f32 %v3775, %v3964
    %v4137 = vmul.f32 %v3779, %v3960
    %v4138 = vmul.f32 %v3779, %v3964
    %v4139 = vmul.f32 %v3783, %v3960
    %v4140 = vmul.f32 %v3783, %v3964
    %v4141 = vmul.f32 %v3787, %v3960
    %v4142 = vmul.f32 %v3787, %v3964
    %v4143 = vmul.f32 %v3791, %v3960
    %v4144 = vmul.f32 %v3791, %v3964
    %v4145 = vmul.f32 %v3795, %v3960
    %v4146 = vmul.f32 %v3795, %v3964
    %v4147 = vmul.f32 %v3799, %v3960
    %v4148 = vmul.f32 %v3799, %v3964
    %v4149 = vmul.f32 %v3803, %v3960
    %v4150 = vmul.f32 %v3803, %v3964
    %v4151 = vmul.f32 %v3807, %v3960
    %v4152 = vmul.f32 %v3807, %v3964
    %v4153 = vmul.f32 %v3811, %v3960
    %v4154 = vmul.f32 %v3811, %v3964
    %v4155 = vmul.f32 %v3815, %v3960
    %v4156 = vmul.f32 %v3815, %v3964
    %v4157 = vmul.f32 %v3819, %v3960
    %v4158 = vmul.f32 %v3819, %v3964
    %v4159 = vmul.f32 %v3826, %v3960
    %v4160 = vmul.f32 %v3826, %v3964
    %v4161 = vmul.f32 %v3830, %v3960
    %v4162 = vmul.f32 %v3830, %v3964
    %v4163 = vmul.f32 %v3834, %v3960
    %v4164 = vmul.f32 %v3834, %v3964
    %v4165 = vmul.f32 %v3838, %v3960
    %v4166 = vmul.f32 %v3838, %v3964
    %v4167 = vmul.f32 %v3842, %v3960
    %v4168 = vmul.f32 %v3842, %v3964
    %v4169 = vmul.f32 %v3846, %v3960
    %v4170 = vmul.f32 %v3846, %v3964
    %v4171 = vmul.f32 %v3850, %v3960
    %v4172 = vmul.f32 %v3850, %v3964
    %v4173 = vmul.f32 %v3854, %v3960
    %v4174 = vmul.f32 %v3854, %v3964
    %v4175 = vmul.f32 %v3858, %v3960
    %v4176 = vmul.f32 %v3858, %v3964
    %v4177 = vmul.f32 %v3862, %v3960
    %v4178 = vmul.f32 %v3862, %v3964
    %v4179 = vmul.f32 %v3866, %v3960
    %v4180 = vmul.f32 %v3866, %v3964
    %v4181 = vmul.f32 %v3870, %v3960
    %v4182 = vmul.f32 %v3870, %v3964
    %v4183 = vmul.f32 %v3874, %v3960
    %v4184 = vmul.f32 %v3874, %v3964
    %v4185 = vmul.f32 %v3878, %v3960
    %v4186 = vmul.f32 %v3878, %v3964
    %v4187 = vmul.f32 %v3882, %v3960
    %v4188 = vmul.f32 %v3882, %v3964
    %v4189 = vmul.f32 %v3886, %v3960
    %v4190 = vmul.f32 %v3886, %v3964
    %v4191 = vmul.f32 %v3893, %v3960
    %v4192 = vmul.f32 %v3893, %v3964
    %v4193 = vmul.f32 %v3897, %v3960
    %v4194 = vmul.f32 %v3897, %v3964
    %v4195 = vmul.f32 %v3901, %v3960
    %v4196 = vmul.f32 %v3901, %v3964
    %v4197 = vmul.f32 %v3905, %v3960
    %v4198 = vmul.f32 %v3905, %v3964
    %v4199 = vmul.f32 %v3909, %v3960
    %v4200 = vmul.f32 %v3909, %v3964
    %v4201 = vmul.f32 %v3913, %v3960
    %v4202 = vmul.f32 %v3913, %v3964
    %v4203 = vmul.f32 %v3917, %v3960
    %v4204 = vmul.f32 %v3917, %v3964
    %v4205 = vmul.f32 %v3921, %v3960
    %v4206 = vmul.f32 %v3921, %v3964
    %v4207 = vmul.f32 %v3925, %v3960
    %v4208 = vmul.f32 %v3925, %v3964
    %v4209 = vmul.f32 %v3929, %v3960
    %v4210 = vmul.f32 %v3929, %v3964
    %v4211 = vmul.f32 %v3933, %v3960
    %v4212 = vmul.f32 %v3933, %v3964
    %v4213 = vmul.f32 %v3937, %v3960
    %v4214 = vmul.f32 %v3937, %v3964
    %v4215 = vmul.f32 %v3941, %v3960
    %v4216 = vmul.f32 %v3941, %v3964
    %v4217 = vmul.f32 %v3945, %v3960
    %v4218 = vmul.f32 %v3945, %v3964
    %v4219 = vmul.f32 %v3949, %v3960
    %v4220 = vmul.f32 %v3949, %v3964
    %v4221 = vmul.f32 %v3953, %v3960
    %v4222 = vmul.f32 %v3953, %v3964
    %v4223 = vadd.f32 %v3159, %v3967
    %v4224 = vadd.f32 %v3160, %v3968
    %v4225 = vadd.f32 %v3161, %v3969
    %v4226 = vadd.f32 %v3162, %v3970
    %v4227 = vadd.f32 %v3163, %v3971
    %v4228 = vadd.f32 %v3164, %v3972
    %v4229 = vadd.f32 %v3165, %v3973
    %v4230 = vadd.f32 %v3166, %v3974
    %v4231 = vadd.f32 %v3167, %v3975
    %v4232 = vadd.f32 %v3168, %v3976
    %v4233 = vadd.f32 %v3169, %v3977
    %v4234 = vadd.f32 %v3170, %v3978
    %v4235 = vadd.f32 %v3171, %v3979
    %v4236 = vadd.f32 %v3172, %v3980
    %v4237 = vadd.f32 %v3173, %v3981
    %v4238 = vadd.f32 %v3174, %v3982
    %v4239 = vadd.f32 %v3175, %v3983
    %v4240 = vadd.f32 %v3176, %v3984
    %v4241 = vadd.f32 %v3177, %v3985
    %v4242 = vadd.f32 %v3178, %v3986
    %v4243 = vadd.f32 %v3179, %v3987
    %v4244 = vadd.f32 %v3180, %v3988
    %v4245 = vadd.f32 %v3181, %v3989
    %v4246 = vadd.f32 %v3182, %v3990
    %v4247 = vadd.f32 %v3183, %v3991
    %v4248 = vadd.f32 %v3184, %v3992
    %v4249 = vadd.f32 %v3185, %v3993
    %v4250 = vadd.f32 %v3186, %v3994
    %v4251 = vadd.f32 %v3187, %v3995
    %v4252 = vadd.f32 %v3188, %v3996
    %v4253 = vadd.f32 %v3189, %v3997
    %v4254 = vadd.f32 %v3190, %v3998
    %v4255 = vadd.f32 %v3191, %v3999
    %v4256 = vadd.f32 %v3192, %v4000
    %v4257 = vadd.f32 %v3193, %v4001
    %v4258 = vadd.f32 %v3194, %v4002
    %v4259 = vadd.f32 %v3195, %v4003
    %v4260 = vadd.f32 %v3196, %v4004
    %v4261 = vadd.f32 %v3197, %v4005
    %v4262 = vadd.f32 %v3198, %v4006
    %v4263 = vadd.f32 %v3199, %v4007
    %v4264 = vadd.f32 %v3200, %v4008
    %v4265 = vadd.f32 %v3201, %v4009
    %v4266 = vadd.f32 %v3202, %v4010
    %v4267 = vadd.f32 %v3203, %v4011
    %v4268 = vadd.f32 %v3204, %v4012
    %v4269 = vadd.f32 %v3205, %v4013
    %v4270 = vadd.f32 %v3206, %v4014
    %v4271 = vadd.f32 %v3207, %v4015
    %v4272 = vadd.f32 %v3208, %v4016
    %v4273 = vadd.f32 %v3209, %v4017
    %v4274 = vadd.f32 %v3210, %v4018
    %v4275 = vadd.f32 %v3211, %v4019
    %v4276 = vadd.f32 %v3212, %v4020
    %v4277 = vadd.f32 %v3213, %v4021
    %v4278 = vadd.f32 %v3214, %v4022
    %v4279 = vadd.f32 %v3215, %v4023
    %v4280 = vadd.f32 %v3216, %v4024
    %v4281 = vadd.f32 %v3217, %v4025
    %v4282 = vadd.f32 %v3218, %v4026
    %v4283 = vadd.f32 %v3219, %v4027
    %v4284 = vadd.f32 %v3220, %v4028
    %v4285 = vadd.f32 %v3221, %v4029
    %v4286 = vadd.f32 %v3222, %v4030
    %v4287 = vadd.f32 %v3223, %v4031
    %v4288 = vadd.f32 %v3224, %v4032
    %v4289 = vadd.f32 %v3225, %v4033
    %v4290 = vadd.f32 %v3226, %v4034
    %v4291 = vadd.f32 %v3227, %v4035
    %v4292 = vadd.f32 %v3228, %v4036
    %v4293 = vadd.f32 %v3229, %v4037
    %v4294 = vadd.f32 %v3230, %v4038
    %v4295 = vadd.f32 %v3231, %v4039
    %v4296 = vadd.f32 %v3232, %v4040
    %v4297 = vadd.f32 %v3233, %v4041
    %v4298 = vadd.f32 %v3234, %v4042
    %v4299 = vadd.f32 %v3235, %v4043
    %v4300 = vadd.f32 %v3236, %v4044
    %v4301 = vadd.f32 %v3237, %v4045
    %v4302 = vadd.f32 %v3238, %v4046
    %v4303 = vadd.f32 %v3239, %v4047
    %v4304 = vadd.f32 %v3240, %v4048
    %v4305 = vadd.f32 %v3241, %v4049
    %v4306 = vadd.f32 %v3242, %v4050
    %v4307 = vadd.f32 %v3243, %v4051
    %v4308 = vadd.f32 %v3244, %v4052
    %v4309 = vadd.f32 %v3245, %v4053
    %v4310 = vadd.f32 %v3246, %v4054
    %v4311 = vadd.f32 %v3247, %v4055
    %v4312 = vadd.f32 %v3248, %v4056
    %v4313 = vadd.f32 %v3249, %v4057
    %v4314 = vadd.f32 %v3250, %v4058
    %v4315 = vadd.f32 %v3251, %v4059
    %v4316 = vadd.f32 %v3252, %v4060
    %v4317 = vadd.f32 %v3253, %v4061
    %v4318 = vadd.f32 %v3254, %v4062
    %v4319 = vadd.f32 %v3255, %v4063
    %v4320 = vadd.f32 %v3256, %v4064
    %v4321 = vadd.f32 %v3257, %v4065
    %v4322 = vadd.f32 %v3258, %v4066
    %v4323 = vadd.f32 %v3259, %v4067
    %v4324 = vadd.f32 %v3260, %v4068
    %v4325 = vadd.f32 %v3261, %v4069
    %v4326 = vadd.f32 %v3262, %v4070
    %v4327 = vadd.f32 %v3263, %v4071
    %v4328 = vadd.f32 %v3264, %v4072
    %v4329 = vadd.f32 %v3265, %v4073
    %v4330 = vadd.f32 %v3266, %v4074
    %v4331 = vadd.f32 %v3267, %v4075
    %v4332 = vadd.f32 %v3268, %v4076
    %v4333 = vadd.f32 %v3269, %v4077
    %v4334 = vadd.f32 %v3270, %v4078
    %v4335 = vadd.f32 %v3271, %v4079
    %v4336 = vadd.f32 %v3272, %v4080
    %v4337 = vadd.f32 %v3273, %v4081
    %v4338 = vadd.f32 %v3274, %v4082
    %v4339 = vadd.f32 %v3275, %v4083
    %v4340 = vadd.f32 %v3276, %v4084
    %v4341 = vadd.f32 %v3277, %v4085
    %v4342 = vadd.f32 %v3278, %v4086
    %v4343 = vadd.f32 %v3279, %v4087
    %v4344 = vadd.f32 %v3280, %v4088
    %v4345 = vadd.f32 %v3281, %v4089
    %v4346 = vadd.f32 %v3282, %v4090
    %v4347 = vadd.f32 %v3283, %v4091
    %v4348 = vadd.f32 %v3284, %v4092
    %v4349 = vadd.f32 %v3285, %v4093
    %v4350 = vadd.f32 %v3286, %v4094
    %v4351 = vadd.f32 %v3287, %v4095
    %v4352 = vadd.f32 %v3288, %v4096
    %v4353 = vadd.f32 %v3289, %v4097
    %v4354 = vadd.f32 %v3290, %v4098
    %v4355 = vadd.f32 %v3291, %v4099
    %v4356 = vadd.f32 %v3292, %v4100
    %v4357 = vadd.f32 %v3293, %v4101
    %v4358 = vadd.f32 %v3294, %v4102
    %v4359 = vadd.f32 %v3295, %v4103
    %v4360 = vadd.f32 %v3296, %v4104
    %v4361 = vadd.f32 %v3297, %v4105
    %v4362 = vadd.f32 %v3298, %v4106
    %v4363 = vadd.f32 %v3299, %v4107
    %v4364 = vadd.f32 %v3300, %v4108
    %v4365 = vadd.f32 %v3301, %v4109
    %v4366 = vadd.f32 %v3302, %v4110
    %v4367 = vadd.f32 %v3303, %v4111
    %v4368 = vadd.f32 %v3304, %v4112
    %v4369 = vadd.f32 %v3305, %v4113
    %v4370 = vadd.f32 %v3306, %v4114
    %v4371 = vadd.f32 %v3307, %v4115
    %v4372 = vadd.f32 %v3308, %v4116
    %v4373 = vadd.f32 %v3309, %v4117
    %v4374 = vadd.f32 %v3310, %v4118
    %v4375 = vadd.f32 %v3311, %v4119
    %v4376 = vadd.f32 %v3312, %v4120
    %v4377 = vadd.f32 %v3313, %v4121
    %v4378 = vadd.f32 %v3314, %v4122
    %v4379 = vadd.f32 %v3315, %v4123
    %v4380 = vadd.f32 %v3316, %v4124
    %v4381 = vadd.f32 %v3317, %v4125
    %v4382 = vadd.f32 %v3318, %v4126
    %v4383 = vadd.f32 %v3319, %v4127
    %v4384 = vadd.f32 %v3320, %v4128
    %v4385 = vadd.f32 %v3321, %v4129
    %v4386 = vadd.f32 %v3322, %v4130
    %v4387 = vadd.f32 %v3323, %v4131
    %v4388 = vadd.f32 %v3324, %v4132
    %v4389 = vadd.f32 %v3325, %v4133
    %v4390 = vadd.f32 %v3326, %v4134
    %v4391 = vadd.f32 %v3327, %v4135
    %v4392 = vadd.f32 %v3328, %v4136
    %v4393 = vadd.f32 %v3329, %v4137
    %v4394 = vadd.f32 %v3330, %v4138
    %v4395 = vadd.f32 %v3331, %v4139
    %v4396 = vadd.f32 %v3332, %v4140
    %v4397 = vadd.f32 %v3333, %v4141
    %v4398 = vadd.f32 %v3334, %v4142
    %v4399 = vadd.f32 %v3335, %v4143
    %v4400 = vadd.f32 %v3336, %v4144
    %v4401 = vadd.f32 %v3337, %v4145
    %v4402 = vadd.f32 %v3338, %v4146
    %v4403 = vadd.f32 %v3339, %v4147
    %v4404 = vadd.f32 %v3340, %v4148
    %v4405 = vadd.f32 %v3341, %v4149
    %v4406 = vadd.f32 %v3342, %v4150
    %v4407 = vadd.f32 %v3343, %v4151
    %v4408 = vadd.f32 %v3344, %v4152
    %v4409 = vadd.f32 %v3345, %v4153
    %v4410 = vadd.f32 %v3346, %v4154
    %v4411 = vadd.f32 %v3347, %v4155
    %v4412 = vadd.f32 %v3348, %v4156
    %v4413 = vadd.f32 %v3349, %v4157
    %v4414 = vadd.f32 %v3350, %v4158
    %v4415 = vadd.f32 %v3351, %v4159
    %v4416 = vadd.f32 %v3352, %v4160
    %v4417 = vadd.f32 %v3353, %v4161
    %v4418 = vadd.f32 %v3354, %v4162
    %v4419 = vadd.f32 %v3355, %v4163
    %v4420 = vadd.f32 %v3356, %v4164
    %v4421 = vadd.f32 %v3357, %v4165
    %v4422 = vadd.f32 %v3358, %v4166
    %v4423 = vadd.f32 %v3359, %v4167
    %v4424 = vadd.f32 %v3360, %v4168
    %v4425 = vadd.f32 %v3361, %v4169
    %v4426 = vadd.f32 %v3362, %v4170
    %v4427 = vadd.f32 %v3363, %v4171
    %v4428 = vadd.f32 %v3364, %v4172
    %v4429 = vadd.f32 %v3365, %v4173
    %v4430 = vadd.f32 %v3366, %v4174
    %v4431 = vadd.f32 %v3367, %v4175
    %v4432 = vadd.f32 %v3368, %v4176
    %v4433 = vadd.f32 %v3369, %v4177
    %v4434 = vadd.f32 %v3370, %v4178
    %v4435 = vadd.f32 %v3371, %v4179
    %v4436 = vadd.f32 %v3372, %v4180
    %v4437 = vadd.f32 %v3373, %v4181
    %v4438 = vadd.f32 %v3374, %v4182
    %v4439 = vadd.f32 %v3375, %v4183
    %v4440 = vadd.f32 %v3376, %v4184
    %v4441 = vadd.f32 %v3377, %v4185
    %v4442 = vadd.f32 %v3378, %v4186
    %v4443 = vadd.f32 %v3379, %v4187
    %v4444 = vadd.f32 %v3380, %v4188
    %v4445 = vadd.f32 %v3381, %v4189
    %v4446 = vadd.f32 %v3382, %v4190
    %v4447 = vadd.f32 %v3383, %v4191
    %v4448 = vadd.f32 %v3384, %v4192
    %v4449 = vadd.f32 %v3385, %v4193
    %v4450 = vadd.f32 %v3386, %v4194
    %v4451 = vadd.f32 %v3387, %v4195
    %v4452 = vadd.f32 %v3388, %v4196
    %v4453 = vadd.f32 %v3389, %v4197
    %v4454 = vadd.f32 %v3390, %v4198
    %v4455 = vadd.f32 %v3391, %v4199
    %v4456 = vadd.f32 %v3392, %v4200
    %v4457 = vadd.f32 %v3393, %v4201
    %v4458 = vadd.f32 %v3394, %v4202
    %v4459 = vadd.f32 %v3395, %v4203
    %v4460 = vadd.f32 %v3396, %v4204
    %v4461 = vadd.f32 %v3397, %v4205
    %v4462 = vadd.f32 %v3398, %v4206
    %v4463 = vadd.f32 %v3399, %v4207
    %v4464 = vadd.f32 %v3400, %v4208
    %v4465 = vadd.f32 %v3401, %v4209
    %v4466 = vadd.f32 %v3402, %v4210
    %v4467 = vadd.f32 %v3403, %v4211
    %v4468 = vadd.f32 %v3404, %v4212
    %v4469 = vadd.f32 %v3405, %v4213
    %v4470 = vadd.f32 %v3406, %v4214
    %v4471 = vadd.f32 %v3407, %v4215
    %v4472 = vadd.f32 %v3408, %v4216
    %v4473 = vadd.f32 %v3409, %v4217
    %v4474 = vadd.f32 %v3410, %v4218
    %v4475 = vadd.f32 %v3411, %v4219
    %v4476 = vadd.f32 %v3412, %v4220
    %v4477 = vadd.f32 %v3413, %v4221
    %v4478 = vadd.f32 %v3414, %v4222
    %v4479 = vpack.c.bf16 %v1284, %v1284
    %v4480 = vld [vmem:[%s11] sm:$0xff]
    %v4481 = vld [vmem:[%s11 + $0x8] sm:$0xff]
    %v4482 = vld [vmem:[%s11 + $0x10] sm:$0xff]
    %v4483 = vld [vmem:[%s11 + $0x18] sm:$0xff]
    %v4484 = vld [vmem:[%s11 + $0x20] sm:$0xff]
    %v4485 = vld [vmem:[%s11 + $0x28] sm:$0xff]
    %v4486 = vld [vmem:[%s11 + $0x30] sm:$0xff]
    %v4487 = vld [vmem:[%s11 + $0x38] sm:$0xff]
    %v4488 = vld [vmem:[%s11 + $0x40] sm:$0xff]
    %v4489 = vld [vmem:[%s11 + $0x48] sm:$0xff]
    %v4490 = vld [vmem:[%s11 + $0x50] sm:$0xff]
    %v4491 = vld [vmem:[%s11 + $0x58] sm:$0xff]
    %v4492 = vld [vmem:[%s11 + $0x60] sm:$0xff]
    %v4493 = vld [vmem:[%s11 + $0x68] sm:$0xff]
    %v4494 = vld [vmem:[%s11 + $0x70] sm:$0xff]
    %v4495 = vld [vmem:[%s11 + $0x78] sm:$0xff]
    %v4496 = vld [vmem:[%s12] sm:$0x3]
    %v4498 = vlaneseq
    %v4499 = vshrl.u32 %v4498, 7
    %v4500 = vsub.s32 0, %v4499
    %v4501 = vrot.slane %v4496, %v4500
    %v4502 = vlaneseq
    %v4503 = vshrl.u32 %v4502, 7
    %v4504 = vsub.s32 1, %v4503
    %v4505 = vrot.slane %v4496, %v4504
    %v4524 = vunpack.c.l.b16 %v4480
    %v4525 = vunpack.c.h.b16 %v4480
    %v4526 = vunpack.c.l.b16 %v4481
    %v4527 = vunpack.c.h.b16 %v4481
    %v4528 = vunpack.c.l.b16 %v4482
    %v4529 = vunpack.c.h.b16 %v4482
    %v4530 = vunpack.c.l.b16 %v4483
    %v4531 = vunpack.c.h.b16 %v4483
    %v4532 = vunpack.c.l.b16 %v4484
    %v4533 = vunpack.c.h.b16 %v4484
    %v4534 = vunpack.c.l.b16 %v4485
    %v4535 = vunpack.c.h.b16 %v4485
    %v4536 = vunpack.c.l.b16 %v4486
    %v4537 = vunpack.c.h.b16 %v4486
    %v4538 = vunpack.c.l.b16 %v4487
    %v4539 = vunpack.c.h.b16 %v4487
    %v4540 = vunpack.c.l.b16 %v4488
    %v4541 = vunpack.c.h.b16 %v4488
    %v4542 = vunpack.c.l.b16 %v4489
    %v4543 = vunpack.c.h.b16 %v4489
    %v4544 = vunpack.c.l.b16 %v4490
    %v4545 = vunpack.c.h.b16 %v4490
    %v4546 = vunpack.c.l.b16 %v4491
    %v4547 = vunpack.c.h.b16 %v4491
    %v4548 = vunpack.c.l.b16 %v4492
    %v4549 = vunpack.c.h.b16 %v4492
    %v4550 = vunpack.c.l.b16 %v4493
    %v4551 = vunpack.c.h.b16 %v4493
    %v4552 = vunpack.c.l.b16 %v4494
    %v4553 = vunpack.c.h.b16 %v4494
    %v4554 = vunpack.c.l.b16 %v4495
    %v4555 = vunpack.c.h.b16 %v4495
    %v4556 = vpack.c.b16 %v4526, %v4524
    %v4557 = vpack.c.b16 %v4527, %v4525
    %v4558 = vpack.c.b16 %v4530, %v4528
    %v4559 = vpack.c.b16 %v4531, %v4529
    %v4560 = vpack.c.b16 %v4534, %v4532
    %v4561 = vpack.c.b16 %v4535, %v4533
    %v4562 = vpack.c.b16 %v4538, %v4536
    %v4563 = vpack.c.b16 %v4539, %v4537
    %v4564 = vpack.c.b16 %v4542, %v4540
    %v4565 = vpack.c.b16 %v4543, %v4541
    %v4566 = vpack.c.b16 %v4546, %v4544
    %v4567 = vpack.c.b16 %v4547, %v4545
    %v4568 = vpack.c.b16 %v4550, %v4548
    %v4569 = vpack.c.b16 %v4551, %v4549
    %v4570 = vpack.c.b16 %v4554, %v4552
    %v4571 = vpack.c.b16 %v4555, %v4553
    %4588 = vmatprep.subr.bf16.mxu0 %v4557
    %4589 = vmatpush1.bf16.msra.mxu0 %v4556
    %4590 = vmatprep.subr.bf16.mxu0 %v4559
    %4591 = vmatpush1.bf16.msra.mxu0 %v4558
    %4592 = vmatprep.subr.bf16.mxu0 %v4561
    %4593 = vmatpush1.bf16.msra.mxu0 %v4560
    %4594 = vmatprep.subr.bf16.mxu0 %v4563
    %4595 = vmatpush1.bf16.msra.mxu0 %v4562
    %4596 = vmatprep.subr.bf16.mxu0 %v4565
    %4597 = vmatpush1.bf16.msra.mxu0 %v4564
    %4598 = vmatprep.subr.bf16.mxu0 %v4567
    %4599 = vmatpush1.bf16.msra.mxu0 %v4566
    %4600 = vmatprep.subr.bf16.mxu0 %v4569
    %4601 = vmatpush1.bf16.msra.mxu0 %v4568
    %4602 = vmatprep.subr.bf16.mxu0 %v4571
    %4603 = vmatpush1.bf16.msra.mxu0 %v4570
    %4604 = vmatprep.subr.bf16.mxu0 0
    %4605 = vmatpush1.bf16.msra.mxu0 0
    %4606 = vmatprep.subr.bf16.mxu0 0
    %4607 = vmatpush1.bf16.msra.mxu0 0
    %4608 = vmatprep.subr.bf16.mxu0 0
    %4609 = vmatpush1.bf16.msra.mxu0 0
    %4610 = vmatprep.subr.bf16.mxu0 0
    %4611 = vmatpush1.bf16.msra.mxu0 0
    %4612 = vmatprep.subr.bf16.mxu0 0
    %4613 = vmatpush1.bf16.msra.mxu0 0
    %4614 = vmatprep.subr.bf16.mxu0 0
    %4615 = vmatpush1.bf16.msra.mxu0 0
    %4616 = vmatprep.subr.bf16.mxu0 0
    %4617 = vmatpush1.bf16.msra.mxu0 0
    %4618 = vmatprep.subr.bf16.mxu0 0
    %4619 = vmatpush1.bf16.msra.mxu0 0
    %4620 = vmatprep.mubr.bf16.mxu0 0
    %4621 = vmatmul.mubr.bf16.gmra.mrb[0].mxu0 %v4479
    %v4622 = vpop.f32.mrb[0].mxu0
    %v4623 = vadd.f32 %v4501, %v4622
    %v4624 = vpop.f32.mrb[0].mxu0
    %v4625 = vadd.f32 %v4505, %v4624
    %v4626 = vpop.f32.mrb[0].mxu0
    %v4627 = vpop.f32.mrb[0].mxu0
    %4628 = vdwg.mxu0
    %v4631 = vcombine.low %v4623, %v4625
    %v4632 = vcombine.high %v4623, %v4625
    %v4634 = vunpack.c.l.s4 1966171168
    %v4635 = vunpack.c.0.s8 %v4634
    %v4636 = vlaneseq
    %v4637 = vshrl.u32 %v4636, 7
    %v4638 = vsub.s32 %v4635, %v4637
    %v4639 = vrot.slane %v4631, %v4638
    %v4641 = vunpack.c.l.s4 1966171168
    %v4642 = vunpack.c.0.s8 %v4641
    %v4643 = vlaneseq
    %v4644 = vshrl.u32 %v4643, 7
    %v4645 = vsub.s32 %v4642, %v4644
    %v4646 = vrot.slane %v4632, %v4645
    %v4647 = vcombine.high %v4639, %v4639
    %v4648 = vcombine.high %v4646, %v4646
    %v4650 = vunpack.c.l.s4 1966171168
    %v4651 = vunpack.c.0.s8 %v4650
    %v4652 = vlaneseq
    %v4653 = vshrl.u32 %v4652, 7
    %v4654 = vsub.s32 %v4651, %v4653
    %v4655 = vrot.slane %v4639, %v4654
    %v4657 = vunpack.c.l.s4 1966171168
    %v4658 = vunpack.c.0.s8 %v4657
    %v4659 = vlaneseq
    %v4660 = vshrl.u32 %v4659, 7
    %v4661 = vsub.s32 %v4658, %v4660
    %v4662 = vrot.slane %v4646, %v4661
    %v4664 = vunpack.c.l.s4 1966171168
    %v4665 = vunpack.c.0.s8 %v4664
    %v4666 = vlaneseq
    %v4667 = vshrl.u32 %v4666, 7
    %v4668 = vsub.s32 %v4665, %v4667
    %v4669 = vrot.slane %v4647, %v4668
    %v4671 = vunpack.c.l.s4 1966171168
    %v4672 = vunpack.c.0.s8 %v4671
    %v4673 = vlaneseq
    %v4674 = vshrl.u32 %v4673, 7
    %v4675 = vsub.s32 %v4672, %v4674
    %v4676 = vrot.slane %v4648, %v4675
    %v4677 = vcombine.high %v4655, %v4655
    %v4678 = vcombine.high %v4662, %v4662
    %v4679 = vcombine.high %v4669, %v4669
    %v4680 = vcombine.high %v4676, %v4676
    %v4681 = vld [vmem:[%s2] sm:$0xff]
    %v4682 = vld [vmem:[%s2 + $0x8] sm:$0xff]
    %v4683 = vld [vmem:[%s2 + $0x10] sm:$0xff]
    %v4684 = vld [vmem:[%s2 + $0x18] sm:$0xff]
    %v4685 = vld [vmem:[%s2 + $0x20] sm:$0xff]
    %v4686 = vld [vmem:[%s2 + $0x28] sm:$0xff]
    %v4687 = vld [vmem:[%s2 + $0x30] sm:$0xff]
    %v4688 = vld [vmem:[%s2 + $0x38] sm:$0xff]
    %v4689 = vld [vmem:[%s2 + $0x40] sm:$0xff]
    %v4690 = vld [vmem:[%s2 + $0x48] sm:$0xff]
    %v4691 = vld [vmem:[%s2 + $0x50] sm:$0xff]
    %v4692 = vld [vmem:[%s2 + $0x58] sm:$0xff]
    %v4693 = vld [vmem:[%s2 + $0x60] sm:$0xff]
    %v4694 = vld [vmem:[%s2 + $0x68] sm:$0xff]
    %v4695 = vld [vmem:[%s2 + $0x70] sm:$0xff]
    %v4696 = vld [vmem:[%s2 + $0x78] sm:$0xff]
    %v4697 = vld [vmem:[%s2 + $0x80] sm:$0xff]
    %v4698 = vld [vmem:[%s2 + $0x88] sm:$0xff]
    %v4699 = vld [vmem:[%s2 + $0x90] sm:$0xff]
    %v4700 = vld [vmem:[%s2 + $0x98] sm:$0xff]
    %v4701 = vld [vmem:[%s2 + $0xa0] sm:$0xff]
    %v4702 = vld [vmem:[%s2 + $0xa8] sm:$0xff]
    %v4703 = vld [vmem:[%s2 + $0xb0] sm:$0xff]
    %v4704 = vld [vmem:[%s2 + $0xb8] sm:$0xff]
    %v4705 = vld [vmem:[%s2 + $0xc0] sm:$0xff]
    %v4706 = vld [vmem:[%s2 + $0xc8] sm:$0xff]
    %v4707 = vld [vmem:[%s2 + $0xd0] sm:$0xff]
    %v4708 = vld [vmem:[%s2 + $0xd8] sm:$0xff]
    %v4709 = vld [vmem:[%s2 + $0xe0] sm:$0xff]
    %v4710 = vld [vmem:[%s2 + $0xe8] sm:$0xff]
    %v4711 = vld [vmem:[%s2 + $0xf0] sm:$0xff]
    %v4712 = vld [vmem:[%s2 + $0xf8] sm:$0xff]
    %v4713 = vld [vmem:[%s2 + $0x100] sm:$0xff]
    %v4714 = vld [vmem:[%s2 + $0x108] sm:$0xff]
    %v4715 = vld [vmem:[%s2 + $0x110] sm:$0xff]
    %v4716 = vld [vmem:[%s2 + $0x118] sm:$0xff]
    %v4717 = vld [vmem:[%s2 + $0x120] sm:$0xff]
    %v4718 = vld [vmem:[%s2 + $0x128] sm:$0xff]
    %v4719 = vld [vmem:[%s2 + $0x130] sm:$0xff]
    %v4720 = vld [vmem:[%s2 + $0x138] sm:$0xff]
    %v4721 = vld [vmem:[%s2 + $0x140] sm:$0xff]
    %v4722 = vld [vmem:[%s2 + $0x148] sm:$0xff]
    %v4723 = vld [vmem:[%s2 + $0x150] sm:$0xff]
    %v4724 = vld [vmem:[%s2 + $0x158] sm:$0xff]
    %v4725 = vld [vmem:[%s2 + $0x160] sm:$0xff]
    %v4726 = vld [vmem:[%s2 + $0x168] sm:$0xff]
    %v4727 = vld [vmem:[%s2 + $0x170] sm:$0xff]
    %v4728 = vld [vmem:[%s2 + $0x178] sm:$0xff]
    %v4729 = vld [vmem:[%s2 + $0x180] sm:$0xff]
    %v4730 = vld [vmem:[%s2 + $0x188] sm:$0xff]
    %v4731 = vld [vmem:[%s2 + $0x190] sm:$0xff]
    %v4732 = vld [vmem:[%s2 + $0x198] sm:$0xff]
    %v4733 = vld [vmem:[%s2 + $0x1a0] sm:$0xff]
    %v4734 = vld [vmem:[%s2 + $0x1a8] sm:$0xff]
    %v4735 = vld [vmem:[%s2 + $0x1b0] sm:$0xff]
    %v4736 = vld [vmem:[%s2 + $0x1b8] sm:$0xff]
    %v4737 = vld [vmem:[%s2 + $0x1c0] sm:$0xff]
    %v4738 = vld [vmem:[%s2 + $0x1c8] sm:$0xff]
    %v4739 = vld [vmem:[%s2 + $0x1d0] sm:$0xff]
    %v4740 = vld [vmem:[%s2 + $0x1d8] sm:$0xff]
    %v4741 = vld [vmem:[%s2 + $0x1e0] sm:$0xff]
    %v4742 = vld [vmem:[%s2 + $0x1e8] sm:$0xff]
    %v4743 = vld [vmem:[%s2 + $0x1f0] sm:$0xff]
    %v4744 = vld [vmem:[%s2 + $0x1f8] sm:$0xff]
    %v4745 = vld [vmem:[%s2 + $0x200] sm:$0xff]
    %v4746 = vld [vmem:[%s2 + $0x208] sm:$0xff]
    %v4747 = vld [vmem:[%s2 + $0x210] sm:$0xff]
    %v4748 = vld [vmem:[%s2 + $0x218] sm:$0xff]
    %v4749 = vld [vmem:[%s2 + $0x220] sm:$0xff]
    %v4750 = vld [vmem:[%s2 + $0x228] sm:$0xff]
    %v4751 = vld [vmem:[%s2 + $0x230] sm:$0xff]
    %v4752 = vld [vmem:[%s2 + $0x238] sm:$0xff]
    %v4753 = vld [vmem:[%s2 + $0x240] sm:$0xff]
    %v4754 = vld [vmem:[%s2 + $0x248] sm:$0xff]
    %v4755 = vld [vmem:[%s2 + $0x250] sm:$0xff]
    %v4756 = vld [vmem:[%s2 + $0x258] sm:$0xff]
    %v4757 = vld [vmem:[%s2 + $0x260] sm:$0xff]
    %v4758 = vld [vmem:[%s2 + $0x268] sm:$0xff]
    %v4759 = vld [vmem:[%s2 + $0x270] sm:$0xff]
    %v4760 = vld [vmem:[%s2 + $0x278] sm:$0xff]
    %v4761 = vld [vmem:[%s2 + $0x280] sm:$0xff]
    %v4762 = vld [vmem:[%s2 + $0x288] sm:$0xff]
    %v4763 = vld [vmem:[%s2 + $0x290] sm:$0xff]
    %v4764 = vld [vmem:[%s2 + $0x298] sm:$0xff]
    %v4765 = vld [vmem:[%s2 + $0x2a0] sm:$0xff]
    %v4766 = vld [vmem:[%s2 + $0x2a8] sm:$0xff]
    %v4767 = vld [vmem:[%s2 + $0x2b0] sm:$0xff]
    %v4768 = vld [vmem:[%s2 + $0x2b8] sm:$0xff]
    %v4769 = vld [vmem:[%s2 + $0x2c0] sm:$0xff]
    %v4770 = vld [vmem:[%s2 + $0x2c8] sm:$0xff]
    %v4771 = vld [vmem:[%s2 + $0x2d0] sm:$0xff]
    %v4772 = vld [vmem:[%s2 + $0x2d8] sm:$0xff]
    %v4773 = vld [vmem:[%s2 + $0x2e0] sm:$0xff]
    %v4774 = vld [vmem:[%s2 + $0x2e8] sm:$0xff]
    %v4775 = vld [vmem:[%s2 + $0x2f0] sm:$0xff]
    %v4776 = vld [vmem:[%s2 + $0x2f8] sm:$0xff]
    %v4777 = vld [vmem:[%s2 + $0x300] sm:$0xff]
    %v4778 = vld [vmem:[%s2 + $0x308] sm:$0xff]
    %v4779 = vld [vmem:[%s2 + $0x310] sm:$0xff]
    %v4780 = vld [vmem:[%s2 + $0x318] sm:$0xff]
    %v4781 = vld [vmem:[%s2 + $0x320] sm:$0xff]
    %v4782 = vld [vmem:[%s2 + $0x328] sm:$0xff]
    %v4783 = vld [vmem:[%s2 + $0x330] sm:$0xff]
    %v4784 = vld [vmem:[%s2 + $0x338] sm:$0xff]
    %v4785 = vld [vmem:[%s2 + $0x340] sm:$0xff]
    %v4786 = vld [vmem:[%s2 + $0x348] sm:$0xff]
    %v4787 = vld [vmem:[%s2 + $0x350] sm:$0xff]
    %v4788 = vld [vmem:[%s2 + $0x358] sm:$0xff]
    %v4789 = vld [vmem:[%s2 + $0x360] sm:$0xff]
    %v4790 = vld [vmem:[%s2 + $0x368] sm:$0xff]
    %v4791 = vld [vmem:[%s2 + $0x370] sm:$0xff]
    %v4792 = vld [vmem:[%s2 + $0x378] sm:$0xff]
    %v4793 = vld [vmem:[%s2 + $0x380] sm:$0xff]
    %v4794 = vld [vmem:[%s2 + $0x388] sm:$0xff]
    %v4795 = vld [vmem:[%s2 + $0x390] sm:$0xff]
    %v4796 = vld [vmem:[%s2 + $0x398] sm:$0xff]
    %v4797 = vld [vmem:[%s2 + $0x3a0] sm:$0xff]
    %v4798 = vld [vmem:[%s2 + $0x3a8] sm:$0xff]
    %v4799 = vld [vmem:[%s2 + $0x3b0] sm:$0xff]
    %v4800 = vld [vmem:[%s2 + $0x3b8] sm:$0xff]
    %v4801 = vld [vmem:[%s2 + $0x3c0] sm:$0xff]
    %v4802 = vld [vmem:[%s2 + $0x3c8] sm:$0xff]
    %v4803 = vld [vmem:[%s2 + $0x3d0] sm:$0xff]
    %v4804 = vld [vmem:[%s2 + $0x3d8] sm:$0xff]
    %v4805 = vld [vmem:[%s2 + $0x3e0] sm:$0xff]
    %v4806 = vld [vmem:[%s2 + $0x3e8] sm:$0xff]
    %v4807 = vld [vmem:[%s2 + $0x3f0] sm:$0xff]
    %v4808 = vld [vmem:[%s2 + $0x3f8] sm:$0xff]
    %v4809 = vunpack.c.l.bf16 %v4681
    %v4810 = vunpack.c.h.bf16 %v4681
    %v4811 = vunpack.c.l.bf16 %v4682
    %v4812 = vunpack.c.h.bf16 %v4682
    %v4813 = vunpack.c.l.bf16 %v4683
    %v4814 = vunpack.c.h.bf16 %v4683
    %v4815 = vunpack.c.l.bf16 %v4684
    %v4816 = vunpack.c.h.bf16 %v4684
    %v4817 = vunpack.c.l.bf16 %v4685
    %v4818 = vunpack.c.h.bf16 %v4685
    %v4819 = vunpack.c.l.bf16 %v4686
    %v4820 = vunpack.c.h.bf16 %v4686
    %v4821 = vunpack.c.l.bf16 %v4687
    %v4822 = vunpack.c.h.bf16 %v4687
    %v4823 = vunpack.c.l.bf16 %v4688
    %v4824 = vunpack.c.h.bf16 %v4688
    %v4825 = vunpack.c.l.bf16 %v4689
    %v4826 = vunpack.c.h.bf16 %v4689
    %v4827 = vunpack.c.l.bf16 %v4690
    %v4828 = vunpack.c.h.bf16 %v4690
    %v4829 = vunpack.c.l.bf16 %v4691
    %v4830 = vunpack.c.h.bf16 %v4691
    %v4831 = vunpack.c.l.bf16 %v4692
    %v4832 = vunpack.c.h.bf16 %v4692
    %v4833 = vunpack.c.l.bf16 %v4693
    %v4834 = vunpack.c.h.bf16 %v4693
    %v4835 = vunpack.c.l.bf16 %v4694
    %v4836 = vunpack.c.h.bf16 %v4694
    %v4837 = vunpack.c.l.bf16 %v4695
    %v4838 = vunpack.c.h.bf16 %v4695
    %v4839 = vunpack.c.l.bf16 %v4696
    %v4840 = vunpack.c.h.bf16 %v4696
    %v4841 = vunpack.c.l.bf16 %v4697
    %v4842 = vunpack.c.h.bf16 %v4697
    %v4843 = vunpack.c.l.bf16 %v4698
    %v4844 = vunpack.c.h.bf16 %v4698
    %v4845 = vunpack.c.l.bf16 %v4699
    %v4846 = vunpack.c.h.bf16 %v4699
    %v4847 = vunpack.c.l.bf16 %v4700
    %v4848 = vunpack.c.h.bf16 %v4700
    %v4849 = vunpack.c.l.bf16 %v4701
    %v4850 = vunpack.c.h.bf16 %v4701
    %v4851 = vunpack.c.l.bf16 %v4702
    %v4852 = vunpack.c.h.bf16 %v4702
    %v4853 = vunpack.c.l.bf16 %v4703
    %v4854 = vunpack.c.h.bf16 %v4703
    %v4855 = vunpack.c.l.bf16 %v4704
    %v4856 = vunpack.c.h.bf16 %v4704
    %v4857 = vunpack.c.l.bf16 %v4705
    %v4858 = vunpack.c.h.bf16 %v4705
    %v4859 = vunpack.c.l.bf16 %v4706
    %v4860 = vunpack.c.h.bf16 %v4706
    %v4861 = vunpack.c.l.bf16 %v4707
    %v4862 = vunpack.c.h.bf16 %v4707
    %v4863 = vunpack.c.l.bf16 %v4708
    %v4864 = vunpack.c.h.bf16 %v4708
    %v4865 = vunpack.c.l.bf16 %v4709
    %v4866 = vunpack.c.h.bf16 %v4709
    %v4867 = vunpack.c.l.bf16 %v4710
    %v4868 = vunpack.c.h.bf16 %v4710
    %v4869 = vunpack.c.l.bf16 %v4711
    %v4870 = vunpack.c.h.bf16 %v4711
    %v4871 = vunpack.c.l.bf16 %v4712
    %v4872 = vunpack.c.h.bf16 %v4712
    %v4873 = vunpack.c.l.bf16 %v4713
    %v4874 = vunpack.c.h.bf16 %v4713
    %v4875 = vunpack.c.l.bf16 %v4714
    %v4876 = vunpack.c.h.bf16 %v4714
    %v4877 = vunpack.c.l.bf16 %v4715
    %v4878 = vunpack.c.h.bf16 %v4715
    %v4879 = vunpack.c.l.bf16 %v4716
    %v4880 = vunpack.c.h.bf16 %v4716
    %v4881 = vunpack.c.l.bf16 %v4717
    %v4882 = vunpack.c.h.bf16 %v4717
    %v4883 = vunpack.c.l.bf16 %v4718
    %v4884 = vunpack.c.h.bf16 %v4718
    %v4885 = vunpack.c.l.bf16 %v4719
    %v4886 = vunpack.c.h.bf16 %v4719
    %v4887 = vunpack.c.l.bf16 %v4720
    %v4888 = vunpack.c.h.bf16 %v4720
    %v4889 = vunpack.c.l.bf16 %v4721
    %v4890 = vunpack.c.h.bf16 %v4721
    %v4891 = vunpack.c.l.bf16 %v4722
    %v4892 = vunpack.c.h.bf16 %v4722
    %v4893 = vunpack.c.l.bf16 %v4723
    %v4894 = vunpack.c.h.bf16 %v4723
    %v4895 = vunpack.c.l.bf16 %v4724
    %v4896 = vunpack.c.h.bf16 %v4724
    %v4897 = vunpack.c.l.bf16 %v4725
    %v4898 = vunpack.c.h.bf16 %v4725
    %v4899 = vunpack.c.l.bf16 %v4726
    %v4900 = vunpack.c.h.bf16 %v4726
    %v4901 = vunpack.c.l.bf16 %v4727
    %v4902 = vunpack.c.h.bf16 %v4727
    %v4903 = vunpack.c.l.bf16 %v4728
    %v4904 = vunpack.c.h.bf16 %v4728
    %v4905 = vunpack.c.l.bf16 %v4729
    %v4906 = vunpack.c.h.bf16 %v4729
    %v4907 = vunpack.c.l.bf16 %v4730
    %v4908 = vunpack.c.h.bf16 %v4730
    %v4909 = vunpack.c.l.bf16 %v4731
    %v4910 = vunpack.c.h.bf16 %v4731
    %v4911 = vunpack.c.l.bf16 %v4732
    %v4912 = vunpack.c.h.bf16 %v4732
    %v4913 = vunpack.c.l.bf16 %v4733
    %v4914 = vunpack.c.h.bf16 %v4733
    %v4915 = vunpack.c.l.bf16 %v4734
    %v4916 = vunpack.c.h.bf16 %v4734
    %v4917 = vunpack.c.l.bf16 %v4735
    %v4918 = vunpack.c.h.bf16 %v4735
    %v4919 = vunpack.c.l.bf16 %v4736
    %v4920 = vunpack.c.h.bf16 %v4736
    %v4921 = vunpack.c.l.bf16 %v4737
    %v4922 = vunpack.c.h.bf16 %v4737
    %v4923 = vunpack.c.l.bf16 %v4738
    %v4924 = vunpack.c.h.bf16 %v4738
    %v4925 = vunpack.c.l.bf16 %v4739
    %v4926 = vunpack.c.h.bf16 %v4739
    %v4927 = vunpack.c.l.bf16 %v4740
    %v4928 = vunpack.c.h.bf16 %v4740
    %v4929 = vunpack.c.l.bf16 %v4741
    %v4930 = vunpack.c.h.bf16 %v4741
    %v4931 = vunpack.c.l.bf16 %v4742
    %v4932 = vunpack.c.h.bf16 %v4742
    %v4933 = vunpack.c.l.bf16 %v4743
    %v4934 = vunpack.c.h.bf16 %v4743
    %v4935 = vunpack.c.l.bf16 %v4744
    %v4936 = vunpack.c.h.bf16 %v4744
    %v4937 = vunpack.c.l.bf16 %v4745
    %v4938 = vunpack.c.h.bf16 %v4745
    %v4939 = vunpack.c.l.bf16 %v4746
    %v4940 = vunpack.c.h.bf16 %v4746
    %v4941 = vunpack.c.l.bf16 %v4747
    %v4942 = vunpack.c.h.bf16 %v4747
    %v4943 = vunpack.c.l.bf16 %v4748
    %v4944 = vunpack.c.h.bf16 %v4748
    %v4945 = vunpack.c.l.bf16 %v4749
    %v4946 = vunpack.c.h.bf16 %v4749
    %v4947 = vunpack.c.l.bf16 %v4750
    %v4948 = vunpack.c.h.bf16 %v4750
    %v4949 = vunpack.c.l.bf16 %v4751
    %v4950 = vunpack.c.h.bf16 %v4751
    %v4951 = vunpack.c.l.bf16 %v4752
    %v4952 = vunpack.c.h.bf16 %v4752
    %v4953 = vunpack.c.l.bf16 %v4753
    %v4954 = vunpack.c.h.bf16 %v4753
    %v4955 = vunpack.c.l.bf16 %v4754
    %v4956 = vunpack.c.h.bf16 %v4754
    %v4957 = vunpack.c.l.bf16 %v4755
    %v4958 = vunpack.c.h.bf16 %v4755
    %v4959 = vunpack.c.l.bf16 %v4756
    %v4960 = vunpack.c.h.bf16 %v4756
    %v4961 = vunpack.c.l.bf16 %v4757
    %v4962 = vunpack.c.h.bf16 %v4757
    %v4963 = vunpack.c.l.bf16 %v4758
    %v4964 = vunpack.c.h.bf16 %v4758
    %v4965 = vunpack.c.l.bf16 %v4759
    %v4966 = vunpack.c.h.bf16 %v4759
    %v4967 = vunpack.c.l.bf16 %v4760
    %v4968 = vunpack.c.h.bf16 %v4760
    %v4969 = vunpack.c.l.bf16 %v4761
    %v4970 = vunpack.c.h.bf16 %v4761
    %v4971 = vunpack.c.l.bf16 %v4762
    %v4972 = vunpack.c.h.bf16 %v4762
    %v4973 = vunpack.c.l.bf16 %v4763
    %v4974 = vunpack.c.h.bf16 %v4763
    %v4975 = vunpack.c.l.bf16 %v4764
    %v4976 = vunpack.c.h.bf16 %v4764
    %v4977 = vunpack.c.l.bf16 %v4765
    %v4978 = vunpack.c.h.bf16 %v4765
    %v4979 = vunpack.c.l.bf16 %v4766
    %v4980 = vunpack.c.h.bf16 %v4766
    %v4981 = vunpack.c.l.bf16 %v4767
    %v4982 = vunpack.c.h.bf16 %v4767
    %v4983 = vunpack.c.l.bf16 %v4768
    %v4984 = vunpack.c.h.bf16 %v4768
    %v4985 = vunpack.c.l.bf16 %v4769
    %v4986 = vunpack.c.h.bf16 %v4769
    %v4987 = vunpack.c.l.bf16 %v4770
    %v4988 = vunpack.c.h.bf16 %v4770
    %v4989 = vunpack.c.l.bf16 %v4771
    %v4990 = vunpack.c.h.bf16 %v4771
    %v4991 = vunpack.c.l.bf16 %v4772
    %v4992 = vunpack.c.h.bf16 %v4772
    %v4993 = vunpack.c.l.bf16 %v4773
    %v4994 = vunpack.c.h.bf16 %v4773
    %v4995 = vunpack.c.l.bf16 %v4774
    %v4996 = vunpack.c.h.bf16 %v4774
    %v4997 = vunpack.c.l.bf16 %v4775
    %v4998 = vunpack.c.h.bf16 %v4775
    %v4999 = vunpack.c.l.bf16 %v4776
    %v5000 = vunpack.c.h.bf16 %v4776
    %v5001 = vunpack.c.l.bf16 %v4777
    %v5002 = vunpack.c.h.bf16 %v4777
    %v5003 = vunpack.c.l.bf16 %v4778
    %v5004 = vunpack.c.h.bf16 %v4778
    %v5005 = vunpack.c.l.bf16 %v4779
    %v5006 = vunpack.c.h.bf16 %v4779
    %v5007 = vunpack.c.l.bf16 %v4780
    %v5008 = vunpack.c.h.bf16 %v4780
    %v5009 = vunpack.c.l.bf16 %v4781
    %v5010 = vunpack.c.h.bf16 %v4781
    %v5011 = vunpack.c.l.bf16 %v4782
    %v5012 = vunpack.c.h.bf16 %v4782
    %v5013 = vunpack.c.l.bf16 %v4783
    %v5014 = vunpack.c.h.bf16 %v4783
    %v5015 = vunpack.c.l.bf16 %v4784
    %v5016 = vunpack.c.h.bf16 %v4784
    %v5017 = vunpack.c.l.bf16 %v4785
    %v5018 = vunpack.c.h.bf16 %v4785
    %v5019 = vunpack.c.l.bf16 %v4786
    %v5020 = vunpack.c.h.bf16 %v4786
    %v5021 = vunpack.c.l.bf16 %v4787
    %v5022 = vunpack.c.h.bf16 %v4787
    %v5023 = vunpack.c.l.bf16 %v4788
    %v5024 = vunpack.c.h.bf16 %v4788
    %v5025 = vunpack.c.l.bf16 %v4789
    %v5026 = vunpack.c.h.bf16 %v4789
    %v5027 = vunpack.c.l.bf16 %v4790
    %v5028 = vunpack.c.h.bf16 %v4790
    %v5029 = vunpack.c.l.bf16 %v4791
    %v5030 = vunpack.c.h.bf16 %v4791
    %v5031 = vunpack.c.l.bf16 %v4792
    %v5032 = vunpack.c.h.bf16 %v4792
    %v5033 = vunpack.c.l.bf16 %v4793
    %v5034 = vunpack.c.h.bf16 %v4793
    %v5035 = vunpack.c.l.bf16 %v4794
    %v5036 = vunpack.c.h.bf16 %v4794
    %v5037 = vunpack.c.l.bf16 %v4795
    %v5038 = vunpack.c.h.bf16 %v4795
    %v5039 = vunpack.c.l.bf16 %v4796
    %v5040 = vunpack.c.h.bf16 %v4796
    %v5041 = vunpack.c.l.bf16 %v4797
    %v5042 = vunpack.c.h.bf16 %v4797
    %v5043 = vunpack.c.l.bf16 %v4798
    %v5044 = vunpack.c.h.bf16 %v4798
    %v5045 = vunpack.c.l.bf16 %v4799
    %v5046 = vunpack.c.h.bf16 %v4799
    %v5047 = vunpack.c.l.bf16 %v4800
    %v5048 = vunpack.c.h.bf16 %v4800
    %v5049 = vunpack.c.l.bf16 %v4801
    %v5050 = vunpack.c.h.bf16 %v4801
    %v5051 = vunpack.c.l.bf16 %v4802
    %v5052 = vunpack.c.h.bf16 %v4802
    %v5053 = vunpack.c.l.bf16 %v4803
    %v5054 = vunpack.c.h.bf16 %v4803
    %v5055 = vunpack.c.l.bf16 %v4804
    %v5056 = vunpack.c.h.bf16 %v4804
    %v5057 = vunpack.c.l.bf16 %v4805
    %v5058 = vunpack.c.h.bf16 %v4805
    %v5059 = vunpack.c.l.bf16 %v4806
    %v5060 = vunpack.c.h.bf16 %v4806
    %v5061 = vunpack.c.l.bf16 %v4807
    %v5062 = vunpack.c.h.bf16 %v4807
    %v5063 = vunpack.c.l.bf16 %v4808
    %v5064 = vunpack.c.h.bf16 %v4808
    %v5065 = vlaneseq
    %v5066 = vshrl.u32 %v5065, 7
    %v5067 = vsub.s32 0, %v5066
    %v5068 = vrot.slane %v4655, %v5067
    %v5069 = vlaneseq
    %v5070 = vshrl.u32 %v5069, 7
    %v5071 = vsub.s32 1, %v5070
    %v5072 = vrot.slane %v4655, %v5071
    %v5073 = vlaneseq
    %v5074 = vshrl.u32 %v5073, 7
    %v5075 = vsub.s32 0, %v5074
    %v5076 = vrot.slane %v4669, %v5075
    %v5077 = vlaneseq
    %v5078 = vshrl.u32 %v5077, 7
    %v5079 = vsub.s32 1, %v5078
    %v5080 = vrot.slane %v4669, %v5079
    %v5081 = vlaneseq
    %v5082 = vshrl.u32 %v5081, 7
    %v5083 = vsub.s32 0, %v5082
    %v5084 = vrot.slane %v4677, %v5083
    %v5085 = vlaneseq
    %v5086 = vshrl.u32 %v5085, 7
    %v5087 = vsub.s32 1, %v5086
    %v5088 = vrot.slane %v4677, %v5087
    %v5089 = vlaneseq
    %v5090 = vshrl.u32 %v5089, 7
    %v5091 = vsub.s32 0, %v5090
    %v5092 = vrot.slane %v4679, %v5091
    %v5093 = vlaneseq
    %v5094 = vshrl.u32 %v5093, 7
    %v5095 = vsub.s32 1, %v5094
    %v5096 = vrot.slane %v4679, %v5095
    %v5097 = vlaneseq
    %v5098 = vshrl.u32 %v5097, 7
    %v5099 = vsub.s32 0, %v5098
    %v5100 = vrot.slane %v4662, %v5099
    %v5101 = vlaneseq
    %v5102 = vshrl.u32 %v5101, 7
    %v5103 = vsub.s32 1, %v5102
    %v5104 = vrot.slane %v4662, %v5103
    %v5105 = vlaneseq
    %v5106 = vshrl.u32 %v5105, 7
    %v5107 = vsub.s32 0, %v5106
    %v5108 = vrot.slane %v4676, %v5107
    %v5109 = vlaneseq
    %v5110 = vshrl.u32 %v5109, 7
    %v5111 = vsub.s32 1, %v5110
    %v5112 = vrot.slane %v4676, %v5111
    %v5113 = vlaneseq
    %v5114 = vshrl.u32 %v5113, 7
    %v5115 = vsub.s32 0, %v5114
    %v5116 = vrot.slane %v4678, %v5115
    %v5117 = vlaneseq
    %v5118 = vshrl.u32 %v5117, 7
    %v5119 = vsub.s32 1, %v5118
    %v5120 = vrot.slane %v4678, %v5119
    %v5121 = vlaneseq
    %v5122 = vshrl.u32 %v5121, 7
    %v5123 = vsub.s32 0, %v5122
    %v5124 = vrot.slane %v4680, %v5123
    %v5125 = vlaneseq
    %v5126 = vshrl.u32 %v5125, 7
    %v5127 = vsub.s32 1, %v5126
    %v5128 = vrot.slane %v4680, %v5127
    %v5145 = vadd.f32 %v5068, %v4809
    %v5146 = vadd.f32 %v5072, %v4810
    %v5147 = vadd.f32 %v5068, %v4811
    %v5148 = vadd.f32 %v5072, %v4812
    %v5149 = vadd.f32 %v5068, %v4813
    %v5150 = vadd.f32 %v5072, %v4814
    %v5151 = vadd.f32 %v5068, %v4815
    %v5152 = vadd.f32 %v5072, %v4816
    %v5153 = vadd.f32 %v5068, %v4817
    %v5154 = vadd.f32 %v5072, %v4818
    %v5155 = vadd.f32 %v5068, %v4819
    %v5156 = vadd.f32 %v5072, %v4820
    %v5157 = vadd.f32 %v5068, %v4821
    %v5158 = vadd.f32 %v5072, %v4822
    %v5159 = vadd.f32 %v5068, %v4823
    %v5160 = vadd.f32 %v5072, %v4824
    %v5161 = vadd.f32 %v5068, %v4825
    %v5162 = vadd.f32 %v5072, %v4826
    %v5163 = vadd.f32 %v5068, %v4827
    %v5164 = vadd.f32 %v5072, %v4828
    %v5165 = vadd.f32 %v5068, %v4829
    %v5166 = vadd.f32 %v5072, %v4830
    %v5167 = vadd.f32 %v5068, %v4831
    %v5168 = vadd.f32 %v5072, %v4832
    %v5169 = vadd.f32 %v5068, %v4833
    %v5170 = vadd.f32 %v5072, %v4834
    %v5171 = vadd.f32 %v5068, %v4835
    %v5172 = vadd.f32 %v5072, %v4836
    %v5173 = vadd.f32 %v5068, %v4837
    %v5174 = vadd.f32 %v5072, %v4838
    %v5175 = vadd.f32 %v5068, %v4839
    %v5176 = vadd.f32 %v5072, %v4840
    %v5177 = vadd.f32 %v5076, %v4841
    %v5178 = vadd.f32 %v5080, %v4842
    %v5179 = vadd.f32 %v5076, %v4843
    %v5180 = vadd.f32 %v5080, %v4844
    %v5181 = vadd.f32 %v5076, %v4845
    %v5182 = vadd.f32 %v5080, %v4846
    %v5183 = vadd.f32 %v5076, %v4847
    %v5184 = vadd.f32 %v5080, %v4848
    %v5185 = vadd.f32 %v5076, %v4849
    %v5186 = vadd.f32 %v5080, %v4850
    %v5187 = vadd.f32 %v5076, %v4851
    %v5188 = vadd.f32 %v5080, %v4852
    %v5189 = vadd.f32 %v5076, %v4853
    %v5190 = vadd.f32 %v5080, %v4854
    %v5191 = vadd.f32 %v5076, %v4855
    %v5192 = vadd.f32 %v5080, %v4856
    %v5193 = vadd.f32 %v5076, %v4857
    %v5194 = vadd.f32 %v5080, %v4858
    %v5195 = vadd.f32 %v5076, %v4859
    %v5196 = vadd.f32 %v5080, %v4860
    %v5197 = vadd.f32 %v5076, %v4861
    %v5198 = vadd.f32 %v5080, %v4862
    %v5199 = vadd.f32 %v5076, %v4863
    %v5200 = vadd.f32 %v5080, %v4864
    %v5201 = vadd.f32 %v5076, %v4865
    %v5202 = vadd.f32 %v5080, %v4866
    %v5203 = vadd.f32 %v5076, %v4867
    %v5204 = vadd.f32 %v5080, %v4868
    %v5205 = vadd.f32 %v5076, %v4869
    %v5206 = vadd.f32 %v5080, %v4870
    %v5207 = vadd.f32 %v5076, %v4871
    %v5208 = vadd.f32 %v5080, %v4872
    %v5209 = vadd.f32 %v5084, %v4873
    %v5210 = vadd.f32 %v5088, %v4874
    %v5211 = vadd.f32 %v5084, %v4875
    %v5212 = vadd.f32 %v5088, %v4876
    %v5213 = vadd.f32 %v5084, %v4877
    %v5214 = vadd.f32 %v5088, %v4878
    %v5215 = vadd.f32 %v5084, %v4879
    %v5216 = vadd.f32 %v5088, %v4880
    %v5217 = vadd.f32 %v5084, %v4881
    %v5218 = vadd.f32 %v5088, %v4882
    %v5219 = vadd.f32 %v5084, %v4883
    %v5220 = vadd.f32 %v5088, %v4884
    %v5221 = vadd.f32 %v5084, %v4885
    %v5222 = vadd.f32 %v5088, %v4886
    %v5223 = vadd.f32 %v5084, %v4887
    %v5224 = vadd.f32 %v5088, %v4888
    %v5225 = vadd.f32 %v5084, %v4889
    %v5226 = vadd.f32 %v5088, %v4890
    %v5227 = vadd.f32 %v5084, %v4891
    %v5228 = vadd.f32 %v5088, %v4892
    %v5229 = vadd.f32 %v5084, %v4893
    %v5230 = vadd.f32 %v5088, %v4894
    %v5231 = vadd.f32 %v5084, %v4895
    %v5232 = vadd.f32 %v5088, %v4896
    %v5233 = vadd.f32 %v5084, %v4897
    %v5234 = vadd.f32 %v5088, %v4898
    %v5235 = vadd.f32 %v5084, %v4899
    %v5236 = vadd.f32 %v5088, %v4900
    %v5237 = vadd.f32 %v5084, %v4901
    %v5238 = vadd.f32 %v5088, %v4902
    %v5239 = vadd.f32 %v5084, %v4903
    %v5240 = vadd.f32 %v5088, %v4904
    %v5241 = vadd.f32 %v5092, %v4905
    %v5242 = vadd.f32 %v5096, %v4906
    %v5243 = vadd.f32 %v5092, %v4907
    %v5244 = vadd.f32 %v5096, %v4908
    %v5245 = vadd.f32 %v5092, %v4909
    %v5246 = vadd.f32 %v5096, %v4910
    %v5247 = vadd.f32 %v5092, %v4911
    %v5248 = vadd.f32 %v5096, %v4912
    %v5249 = vadd.f32 %v5092, %v4913
    %v5250 = vadd.f32 %v5096, %v4914
    %v5251 = vadd.f32 %v5092, %v4915
    %v5252 = vadd.f32 %v5096, %v4916
    %v5253 = vadd.f32 %v5092, %v4917
    %v5254 = vadd.f32 %v5096, %v4918
    %v5255 = vadd.f32 %v5092, %v4919
    %v5256 = vadd.f32 %v5096, %v4920
    %v5257 = vadd.f32 %v5092, %v4921
    %v5258 = vadd.f32 %v5096, %v4922
    %v5259 = vadd.f32 %v5092, %v4923
    %v5260 = vadd.f32 %v5096, %v4924
    %v5261 = vadd.f32 %v5092, %v4925
    %v5262 = vadd.f32 %v5096, %v4926
    %v5263 = vadd.f32 %v5092, %v4927
    %v5264 = vadd.f32 %v5096, %v4928
    %v5265 = vadd.f32 %v5092, %v4929
    %v5266 = vadd.f32 %v5096, %v4930
    %v5267 = vadd.f32 %v5092, %v4931
    %v5268 = vadd.f32 %v5096, %v4932
    %v5269 = vadd.f32 %v5092, %v4933
    %v5270 = vadd.f32 %v5096, %v4934
    %v5271 = vadd.f32 %v5092, %v4935
    %v5272 = vadd.f32 %v5096, %v4936
    %v5273 = vadd.f32 %v5100, %v4937
    %v5274 = vadd.f32 %v5104, %v4938
    %v5275 = vadd.f32 %v5100, %v4939
    %v5276 = vadd.f32 %v5104, %v4940
    %v5277 = vadd.f32 %v5100, %v4941
    %v5278 = vadd.f32 %v5104, %v4942
    %v5279 = vadd.f32 %v5100, %v4943
    %v5280 = vadd.f32 %v5104, %v4944
    %v5281 = vadd.f32 %v5100, %v4945
    %v5282 = vadd.f32 %v5104, %v4946
    %v5283 = vadd.f32 %v5100, %v4947
    %v5284 = vadd.f32 %v5104, %v4948
    %v5285 = vadd.f32 %v5100, %v4949
    %v5286 = vadd.f32 %v5104, %v4950
    %v5287 = vadd.f32 %v5100, %v4951
    %v5288 = vadd.f32 %v5104, %v4952
    %v5289 = vadd.f32 %v5100, %v4953
    %v5290 = vadd.f32 %v5104, %v4954
    %v5291 = vadd.f32 %v5100, %v4955
    %v5292 = vadd.f32 %v5104, %v4956
    %v5293 = vadd.f32 %v5100, %v4957
    %v5294 = vadd.f32 %v5104, %v4958
    %v5295 = vadd.f32 %v5100, %v4959
    %v5296 = vadd.f32 %v5104, %v4960
    %v5297 = vadd.f32 %v5100, %v4961
    %v5298 = vadd.f32 %v5104, %v4962
    %v5299 = vadd.f32 %v5100, %v4963
    %v5300 = vadd.f32 %v5104, %v4964
    %v5301 = vadd.f32 %v5100, %v4965
    %v5302 = vadd.f32 %v5104, %v4966
    %v5303 = vadd.f32 %v5100, %v4967
    %v5304 = vadd.f32 %v5104, %v4968
    %v5305 = vadd.f32 %v5108, %v4969
    %v5306 = vadd.f32 %v5112, %v4970
    %v5307 = vadd.f32 %v5108, %v4971
    %v5308 = vadd.f32 %v5112, %v4972
    %v5309 = vadd.f32 %v5108, %v4973
    %v5310 = vadd.f32 %v5112, %v4974
    %v5311 = vadd.f32 %v5108, %v4975
    %v5312 = vadd.f32 %v5112, %v4976
    %v5313 = vadd.f32 %v5108, %v4977
    %v5314 = vadd.f32 %v5112, %v4978
    %v5315 = vadd.f32 %v5108, %v4979
    %v5316 = vadd.f32 %v5112, %v4980
    %v5317 = vadd.f32 %v5108, %v4981
    %v5318 = vadd.f32 %v5112, %v4982
    %v5319 = vadd.f32 %v5108, %v4983
    %v5320 = vadd.f32 %v5112, %v4984
    %v5321 = vadd.f32 %v5108, %v4985
    %v5322 = vadd.f32 %v5112, %v4986
    %v5323 = vadd.f32 %v5108, %v4987
    %v5324 = vadd.f32 %v5112, %v4988
    %v5325 = vadd.f32 %v5108, %v4989
    %v5326 = vadd.f32 %v5112, %v4990
    %v5327 = vadd.f32 %v5108, %v4991
    %v5328 = vadd.f32 %v5112, %v4992
    %v5329 = vadd.f32 %v5108, %v4993
    %v5330 = vadd.f32 %v5112, %v4994
    %v5331 = vadd.f32 %v5108, %v4995
    %v5332 = vadd.f32 %v5112, %v4996
    %v5333 = vadd.f32 %v5108, %v4997
    %v5334 = vadd.f32 %v5112, %v4998
    %v5335 = vadd.f32 %v5108, %v4999
    %v5336 = vadd.f32 %v5112, %v5000
    %v5337 = vadd.f32 %v5116, %v5001
    %v5338 = vadd.f32 %v5120, %v5002
    %v5339 = vadd.f32 %v5116, %v5003
    %v5340 = vadd.f32 %v5120, %v5004
    %v5341 = vadd.f32 %v5116, %v5005
    %v5342 = vadd.f32 %v5120, %v5006
    %v5343 = vadd.f32 %v5116, %v5007
    %v5344 = vadd.f32 %v5120, %v5008
    %v5345 = vadd.f32 %v5116, %v5009
    %v5346 = vadd.f32 %v5120, %v5010
    %v5347 = vadd.f32 %v5116, %v5011
    %v5348 = vadd.f32 %v5120, %v5012
    %v5349 = vadd.f32 %v5116, %v5013
    %v5350 = vadd.f32 %v5120, %v5014
    %v5351 = vadd.f32 %v5116, %v5015
    %v5352 = vadd.f32 %v5120, %v5016
    %v5353 = vadd.f32 %v5116, %v5017
    %v5354 = vadd.f32 %v5120, %v5018
    %v5355 = vadd.f32 %v5116, %v5019
    %v5356 = vadd.f32 %v5120, %v5020
    %v5357 = vadd.f32 %v5116, %v5021
    %v5358 = vadd.f32 %v5120, %v5022
    %v5359 = vadd.f32 %v5116, %v5023
    %v5360 = vadd.f32 %v5120, %v5024
    %v5361 = vadd.f32 %v5116, %v5025
    %v5362 = vadd.f32 %v5120, %v5026
    %v5363 = vadd.f32 %v5116, %v5027
    %v5364 = vadd.f32 %v5120, %v5028
    %v5365 = vadd.f32 %v5116, %v5029
    %v5366 = vadd.f32 %v5120, %v5030
    %v5367 = vadd.f32 %v5116, %v5031
    %v5368 = vadd.f32 %v5120, %v5032
    %v5369 = vadd.f32 %v5124, %v5033
    %v5370 = vadd.f32 %v5128, %v5034
    %v5371 = vadd.f32 %v5124, %v5035
    %v5372 = vadd.f32 %v5128, %v5036
    %v5373 = vadd.f32 %v5124, %v5037
    %v5374 = vadd.f32 %v5128, %v5038
    %v5375 = vadd.f32 %v5124, %v5039
    %v5376 = vadd.f32 %v5128, %v5040
    %v5377 = vadd.f32 %v5124, %v5041
    %v5378 = vadd.f32 %v5128, %v5042
    %v5379 = vadd.f32 %v5124, %v5043
    %v5380 = vadd.f32 %v5128, %v5044
    %v5381 = vadd.f32 %v5124, %v5045
    %v5382 = vadd.f32 %v5128, %v5046
    %v5383 = vadd.f32 %v5124, %v5047
    %v5384 = vadd.f32 %v5128, %v5048
    %v5385 = vadd.f32 %v5124, %v5049
    %v5386 = vadd.f32 %v5128, %v5050
    %v5387 = vadd.f32 %v5124, %v5051
    %v5388 = vadd.f32 %v5128, %v5052
    %v5389 = vadd.f32 %v5124, %v5053
    %v5390 = vadd.f32 %v5128, %v5054
    %v5391 = vadd.f32 %v5124, %v5055
    %v5392 = vadd.f32 %v5128, %v5056
    %v5393 = vadd.f32 %v5124, %v5057
    %v5394 = vadd.f32 %v5128, %v5058
    %v5395 = vadd.f32 %v5124, %v5059
    %v5396 = vadd.f32 %v5128, %v5060
    %v5397 = vadd.f32 %v5124, %v5061
    %v5398 = vadd.f32 %v5128, %v5062
    %v5399 = vadd.f32 %v5124, %v5063
    %v5400 = vadd.f32 %v5128, %v5064
    %v5401 = vadd.f32 %v5145, %v4223
    %v5402 = vadd.f32 %v5146, %v4224
    %v5403 = vadd.f32 %v5147, %v4225
    %v5404 = vadd.f32 %v5148, %v4226
    %v5405 = vadd.f32 %v5149, %v4227
    %v5406 = vadd.f32 %v5150, %v4228
    %v5407 = vadd.f32 %v5151, %v4229
    %v5408 = vadd.f32 %v5152, %v4230
    %v5409 = vadd.f32 %v5153, %v4231
    %v5410 = vadd.f32 %v5154, %v4232
    %v5411 = vadd.f32 %v5155, %v4233
    %v5412 = vadd.f32 %v5156, %v4234
    %v5413 = vadd.f32 %v5157, %v4235
    %v5414 = vadd.f32 %v5158, %v4236
    %v5415 = vadd.f32 %v5159, %v4237
    %v5416 = vadd.f32 %v5160, %v4238
    %v5417 = vadd.f32 %v5161, %v4239
    %v5418 = vadd.f32 %v5162, %v4240
    %v5419 = vadd.f32 %v5163, %v4241
    %v5420 = vadd.f32 %v5164, %v4242
    %v5421 = vadd.f32 %v5165, %v4243
    %v5422 = vadd.f32 %v5166, %v4244
    %v5423 = vadd.f32 %v5167, %v4245
    %v5424 = vadd.f32 %v5168, %v4246
    %v5425 = vadd.f32 %v5169, %v4247
    %v5426 = vadd.f32 %v5170, %v4248
    %v5427 = vadd.f32 %v5171, %v4249
    %v5428 = vadd.f32 %v5172, %v4250
    %v5429 = vadd.f32 %v5173, %v4251
    %v5430 = vadd.f32 %v5174, %v4252
    %v5431 = vadd.f32 %v5175, %v4253
    %v5432 = vadd.f32 %v5176, %v4254
    %v5433 = vadd.f32 %v5177, %v4255
    %v5434 = vadd.f32 %v5178, %v4256
    %v5435 = vadd.f32 %v5179, %v4257
    %v5436 = vadd.f32 %v5180, %v4258
    %v5437 = vadd.f32 %v5181, %v4259
    %v5438 = vadd.f32 %v5182, %v4260
    %v5439 = vadd.f32 %v5183, %v4261
    %v5440 = vadd.f32 %v5184, %v4262
    %v5441 = vadd.f32 %v5185, %v4263
    %v5442 = vadd.f32 %v5186, %v4264
    %v5443 = vadd.f32 %v5187, %v4265
    %v5444 = vadd.f32 %v5188, %v4266
    %v5445 = vadd.f32 %v5189, %v4267
    %v5446 = vadd.f32 %v5190, %v4268
    %v5447 = vadd.f32 %v5191, %v4269
    %v5448 = vadd.f32 %v5192, %v4270
    %v5449 = vadd.f32 %v5193, %v4271
    %v5450 = vadd.f32 %v5194, %v4272
    %v5451 = vadd.f32 %v5195, %v4273
    %v5452 = vadd.f32 %v5196, %v4274
    %v5453 = vadd.f32 %v5197, %v4275
    %v5454 = vadd.f32 %v5198, %v4276
    %v5455 = vadd.f32 %v5199, %v4277
    %v5456 = vadd.f32 %v5200, %v4278
    %v5457 = vadd.f32 %v5201, %v4279
    %v5458 = vadd.f32 %v5202, %v4280
    %v5459 = vadd.f32 %v5203, %v4281
    %v5460 = vadd.f32 %v5204, %v4282
    %v5461 = vadd.f32 %v5205, %v4283
    %v5462 = vadd.f32 %v5206, %v4284
    %v5463 = vadd.f32 %v5207, %v4285
    %v5464 = vadd.f32 %v5208, %v4286
    %v5465 = vadd.f32 %v5209, %v4287
    %v5466 = vadd.f32 %v5210, %v4288
    %v5467 = vadd.f32 %v5211, %v4289
    %v5468 = vadd.f32 %v5212, %v4290
    %v5469 = vadd.f32 %v5213, %v4291
    %v5470 = vadd.f32 %v5214, %v4292
    %v5471 = vadd.f32 %v5215, %v4293
    %v5472 = vadd.f32 %v5216, %v4294
    %v5473 = vadd.f32 %v5217, %v4295
    %v5474 = vadd.f32 %v5218, %v4296
    %v5475 = vadd.f32 %v5219, %v4297
    %v5476 = vadd.f32 %v5220, %v4298
    %v5477 = vadd.f32 %v5221, %v4299
    %v5478 = vadd.f32 %v5222, %v4300
    %v5479 = vadd.f32 %v5223, %v4301
    %v5480 = vadd.f32 %v5224, %v4302
    %v5481 = vadd.f32 %v5225, %v4303
    %v5482 = vadd.f32 %v5226, %v4304
    %v5483 = vadd.f32 %v5227, %v4305
    %v5484 = vadd.f32 %v5228, %v4306
    %v5485 = vadd.f32 %v5229, %v4307
    %v5486 = vadd.f32 %v5230, %v4308
    %v5487 = vadd.f32 %v5231, %v4309
    %v5488 = vadd.f32 %v5232, %v4310
    %v5489 = vadd.f32 %v5233, %v4311
    %v5490 = vadd.f32 %v5234, %v4312
    %v5491 = vadd.f32 %v5235, %v4313
    %v5492 = vadd.f32 %v5236, %v4314
    %v5493 = vadd.f32 %v5237, %v4315
    %v5494 = vadd.f32 %v5238, %v4316
    %v5495 = vadd.f32 %v5239, %v4317
    %v5496 = vadd.f32 %v5240, %v4318
    %v5497 = vadd.f32 %v5241, %v4319
    %v5498 = vadd.f32 %v5242, %v4320
    %v5499 = vadd.f32 %v5243, %v4321
    %v5500 = vadd.f32 %v5244, %v4322
    %v5501 = vadd.f32 %v5245, %v4323
    %v5502 = vadd.f32 %v5246, %v4324
    %v5503 = vadd.f32 %v5247, %v4325
    %v5504 = vadd.f32 %v5248, %v4326
    %v5505 = vadd.f32 %v5249, %v4327
    %v5506 = vadd.f32 %v5250, %v4328
    %v5507 = vadd.f32 %v5251, %v4329
    %v5508 = vadd.f32 %v5252, %v4330
    %v5509 = vadd.f32 %v5253, %v4331
    %v5510 = vadd.f32 %v5254, %v4332
    %v5511 = vadd.f32 %v5255, %v4333
    %v5512 = vadd.f32 %v5256, %v4334
    %v5513 = vadd.f32 %v5257, %v4335
    %v5514 = vadd.f32 %v5258, %v4336
    %v5515 = vadd.f32 %v5259, %v4337
    %v5516 = vadd.f32 %v5260, %v4338
    %v5517 = vadd.f32 %v5261, %v4339
    %v5518 = vadd.f32 %v5262, %v4340
    %v5519 = vadd.f32 %v5263, %v4341
    %v5520 = vadd.f32 %v5264, %v4342
    %v5521 = vadd.f32 %v5265, %v4343
    %v5522 = vadd.f32 %v5266, %v4344
    %v5523 = vadd.f32 %v5267, %v4345
    %v5524 = vadd.f32 %v5268, %v4346
    %v5525 = vadd.f32 %v5269, %v4347
    %v5526 = vadd.f32 %v5270, %v4348
    %v5527 = vadd.f32 %v5271, %v4349
    %v5528 = vadd.f32 %v5272, %v4350
    %v5529 = vadd.f32 %v5273, %v4351
    %v5530 = vadd.f32 %v5274, %v4352
    %v5531 = vadd.f32 %v5275, %v4353
    %v5532 = vadd.f32 %v5276, %v4354
    %v5533 = vadd.f32 %v5277, %v4355
    %v5534 = vadd.f32 %v5278, %v4356
    %v5535 = vadd.f32 %v5279, %v4357
    %v5536 = vadd.f32 %v5280, %v4358
    %v5537 = vadd.f32 %v5281, %v4359
    %v5538 = vadd.f32 %v5282, %v4360
    %v5539 = vadd.f32 %v5283, %v4361
    %v5540 = vadd.f32 %v5284, %v4362
    %v5541 = vadd.f32 %v5285, %v4363
    %v5542 = vadd.f32 %v5286, %v4364
    %v5543 = vadd.f32 %v5287, %v4365
    %v5544 = vadd.f32 %v5288, %v4366
    %v5545 = vadd.f32 %v5289, %v4367
    %v5546 = vadd.f32 %v5290, %v4368
    %v5547 = vadd.f32 %v5291, %v4369
    %v5548 = vadd.f32 %v5292, %v4370
    %v5549 = vadd.f32 %v5293, %v4371
    %v5550 = vadd.f32 %v5294, %v4372
    %v5551 = vadd.f32 %v5295, %v4373
    %v5552 = vadd.f32 %v5296, %v4374
    %v5553 = vadd.f32 %v5297, %v4375
    %v5554 = vadd.f32 %v5298, %v4376
    %v5555 = vadd.f32 %v5299, %v4377
    %v5556 = vadd.f32 %v5300, %v4378
    %v5557 = vadd.f32 %v5301, %v4379
    %v5558 = vadd.f32 %v5302, %v4380
    %v5559 = vadd.f32 %v5303, %v4381
    %v5560 = vadd.f32 %v5304, %v4382
    %v5561 = vadd.f32 %v5305, %v4383
    %v5562 = vadd.f32 %v5306, %v4384
    %v5563 = vadd.f32 %v5307, %v4385
    %v5564 = vadd.f32 %v5308, %v4386
    %v5565 = vadd.f32 %v5309, %v4387
    %v5566 = vadd.f32 %v5310, %v4388
    %v5567 = vadd.f32 %v5311, %v4389
    %v5568 = vadd.f32 %v5312, %v4390
    %v5569 = vadd.f32 %v5313, %v4391
    %v5570 = vadd.f32 %v5314, %v4392
    %v5571 = vadd.f32 %v5315, %v4393
    %v5572 = vadd.f32 %v5316, %v4394
    %v5573 = vadd.f32 %v5317, %v4395
    %v5574 = vadd.f32 %v5318, %v4396
    %v5575 = vadd.f32 %v5319, %v4397
    %v5576 = vadd.f32 %v5320, %v4398
    %v5577 = vadd.f32 %v5321, %v4399
    %v5578 = vadd.f32 %v5322, %v4400
    %v5579 = vadd.f32 %v5323, %v4401
    %v5580 = vadd.f32 %v5324, %v4402
    %v5581 = vadd.f32 %v5325, %v4403
    %v5582 = vadd.f32 %v5326, %v4404
    %v5583 = vadd.f32 %v5327, %v4405
    %v5584 = vadd.f32 %v5328, %v4406
    %v5585 = vadd.f32 %v5329, %v4407
    %v5586 = vadd.f32 %v5330, %v4408
    %v5587 = vadd.f32 %v5331, %v4409
    %v5588 = vadd.f32 %v5332, %v4410
    %v5589 = vadd.f32 %v5333, %v4411
    %v5590 = vadd.f32 %v5334, %v4412
    %v5591 = vadd.f32 %v5335, %v4413
    %v5592 = vadd.f32 %v5336, %v4414
    %v5593 = vadd.f32 %v5337, %v4415
    %v5594 = vadd.f32 %v5338, %v4416
    %v5595 = vadd.f32 %v5339, %v4417
    %v5596 = vadd.f32 %v5340, %v4418
    %v5597 = vadd.f32 %v5341, %v4419
    %v5598 = vadd.f32 %v5342, %v4420
    %v5599 = vadd.f32 %v5343, %v4421
    %v5600 = vadd.f32 %v5344, %v4422
    %v5601 = vadd.f32 %v5345, %v4423
    %v5602 = vadd.f32 %v5346, %v4424
    %v5603 = vadd.f32 %v5347, %v4425
    %v5604 = vadd.f32 %v5348, %v4426
    %v5605 = vadd.f32 %v5349, %v4427
    %v5606 = vadd.f32 %v5350, %v4428
    %v5607 = vadd.f32 %v5351, %v4429
    %v5608 = vadd.f32 %v5352, %v4430
    %v5609 = vadd.f32 %v5353, %v4431
    %v5610 = vadd.f32 %v5354, %v4432
    %v5611 = vadd.f32 %v5355, %v4433
    %v5612 = vadd.f32 %v5356, %v4434
    %v5613 = vadd.f32 %v5357, %v4435
    %v5614 = vadd.f32 %v5358, %v4436
    %v5615 = vadd.f32 %v5359, %v4437
    %v5616 = vadd.f32 %v5360, %v4438
    %v5617 = vadd.f32 %v5361, %v4439
    %v5618 = vadd.f32 %v5362, %v4440
    %v5619 = vadd.f32 %v5363, %v4441
    %v5620 = vadd.f32 %v5364, %v4442
    %v5621 = vadd.f32 %v5365, %v4443
    %v5622 = vadd.f32 %v5366, %v4444
    %v5623 = vadd.f32 %v5367, %v4445
    %v5624 = vadd.f32 %v5368, %v4446
    %v5625 = vadd.f32 %v5369, %v4447
    %v5626 = vadd.f32 %v5370, %v4448
    %v5627 = vadd.f32 %v5371, %v4449
    %v5628 = vadd.f32 %v5372, %v4450
    %v5629 = vadd.f32 %v5373, %v4451
    %v5630 = vadd.f32 %v5374, %v4452
    %v5631 = vadd.f32 %v5375, %v4453
    %v5632 = vadd.f32 %v5376, %v4454
    %v5633 = vadd.f32 %v5377, %v4455
    %v5634 = vadd.f32 %v5378, %v4456
    %v5635 = vadd.f32 %v5379, %v4457
    %v5636 = vadd.f32 %v5380, %v4458
    %v5637 = vadd.f32 %v5381, %v4459
    %v5638 = vadd.f32 %v5382, %v4460
    %v5639 = vadd.f32 %v5383, %v4461
    %v5640 = vadd.f32 %v5384, %v4462
    %v5641 = vadd.f32 %v5385, %v4463
    %v5642 = vadd.f32 %v5386, %v4464
    %v5643 = vadd.f32 %v5387, %v4465
    %v5644 = vadd.f32 %v5388, %v4466
    %v5645 = vadd.f32 %v5389, %v4467
    %v5646 = vadd.f32 %v5390, %v4468
    %v5647 = vadd.f32 %v5391, %v4469
    %v5648 = vadd.f32 %v5392, %v4470
    %v5649 = vadd.f32 %v5393, %v4471
    %v5650 = vadd.f32 %v5394, %v4472
    %v5651 = vadd.f32 %v5395, %v4473
    %v5652 = vadd.f32 %v5396, %v4474
    %v5653 = vadd.f32 %v5397, %v4475
    %v5654 = vadd.f32 %v5398, %v4476
    %v5655 = vadd.f32 %v5399, %v4477
    %v5656 = vadd.f32 %v5400, %v4478
    %v5657 = vtanh.pop %v5401
    %v5658 = vtanh.pop %v5402
    %v5659 = vtanh.pop %v5403
    %v5660 = vtanh.pop %v5404
    %v5661 = vtanh.pop %v5405
    %v5662 = vtanh.pop %v5406
    %v5663 = vtanh.pop %v5407
    %v5664 = vtanh.pop %v5408
    %v5665 = vtanh.pop %v5409
    %v5666 = vtanh.pop %v5410
    %v5667 = vtanh.pop %v5411
    %v5668 = vtanh.pop %v5412
    %v5669 = vtanh.pop %v5413
    %v5670 = vtanh.pop %v5414
    %v5671 = vtanh.pop %v5415
    %v5672 = vtanh.pop %v5416
    %v5673 = vtanh.pop %v5417
    %v5674 = vtanh.pop %v5418
    %v5675 = vtanh.pop %v5419
    %v5676 = vtanh.pop %v5420
    %v5677 = vtanh.pop %v5421
    %v5678 = vtanh.pop %v5422
    %v5679 = vtanh.pop %v5423
    %v5680 = vtanh.pop %v5424
    %v5681 = vtanh.pop %v5425
    %v5682 = vtanh.pop %v5426
    %v5683 = vtanh.pop %v5427
    %v5684 = vtanh.pop %v5428
    %v5685 = vtanh.pop %v5429
    %v5686 = vtanh.pop %v5430
    %v5687 = vtanh.pop %v5431
    %v5688 = vtanh.pop %v5432
    %v5689 = vtanh.pop %v5433
    %v5690 = vtanh.pop %v5434
    %v5691 = vtanh.pop %v5435
    %v5692 = vtanh.pop %v5436
    %v5693 = vtanh.pop %v5437
    %v5694 = vtanh.pop %v5438
    %v5695 = vtanh.pop %v5439
    %v5696 = vtanh.pop %v5440
    %v5697 = vtanh.pop %v5441
    %v5698 = vtanh.pop %v5442
    %v5699 = vtanh.pop %v5443
    %v5700 = vtanh.pop %v5444
    %v5701 = vtanh.pop %v5445
    %v5702 = vtanh.pop %v5446
    %v5703 = vtanh.pop %v5447
    %v5704 = vtanh.pop %v5448
    %v5705 = vtanh.pop %v5449
    %v5706 = vtanh.pop %v5450
    %v5707 = vtanh.pop %v5451
    %v5708 = vtanh.pop %v5452
    %v5709 = vtanh.pop %v5453
    %v5710 = vtanh.pop %v5454
    %v5711 = vtanh.pop %v5455
    %v5712 = vtanh.pop %v5456
    %v5713 = vtanh.pop %v5457
    %v5714 = vtanh.pop %v5458
    %v5715 = vtanh.pop %v5459
    %v5716 = vtanh.pop %v5460
    %v5717 = vtanh.pop %v5461
    %v5718 = vtanh.pop %v5462
    %v5719 = vtanh.pop %v5463
    %v5720 = vtanh.pop %v5464
    %v5721 = vtanh.pop %v5465
    %v5722 = vtanh.pop %v5466
    %v5723 = vtanh.pop %v5467
    %v5724 = vtanh.pop %v5468
    %v5725 = vtanh.pop %v5469
    %v5726 = vtanh.pop %v5470
    %v5727 = vtanh.pop %v5471
    %v5728 = vtanh.pop %v5472
    %v5729 = vtanh.pop %v5473
    %v5730 = vtanh.pop %v5474
    %v5731 = vtanh.pop %v5475
    %v5732 = vtanh.pop %v5476
    %v5733 = vtanh.pop %v5477
    %v5734 = vtanh.pop %v5478
    %v5735 = vtanh.pop %v5479
    %v5736 = vtanh.pop %v5480
    %v5737 = vtanh.pop %v5481
    %v5738 = vtanh.pop %v5482
    %v5739 = vtanh.pop %v5483
    %v5740 = vtanh.pop %v5484
    %v5741 = vtanh.pop %v5485
    %v5742 = vtanh.pop %v5486
    %v5743 = vtanh.pop %v5487
    %v5744 = vtanh.pop %v5488
    %v5745 = vtanh.pop %v5489
    %v5746 = vtanh.pop %v5490
    %v5747 = vtanh.pop %v5491
    %v5748 = vtanh.pop %v5492
    %v5749 = vtanh.pop %v5493
    %v5750 = vtanh.pop %v5494
    %v5751 = vtanh.pop %v5495
    %v5752 = vtanh.pop %v5496
    %v5753 = vtanh.pop %v5497
    %v5754 = vtanh.pop %v5498
    %v5755 = vtanh.pop %v5499
    %v5756 = vtanh.pop %v5500
    %v5757 = vtanh.pop %v5501
    %v5758 = vtanh.pop %v5502
    %v5759 = vtanh.pop %v5503
    %v5760 = vtanh.pop %v5504
    %v5761 = vtanh.pop %v5505
    %v5762 = vtanh.pop %v5506
    %v5763 = vtanh.pop %v5507
    %v5764 = vtanh.pop %v5508
    %v5765 = vtanh.pop %v5509
    %v5766 = vtanh.pop %v5510
    %v5767 = vtanh.pop %v5511
    %v5768 = vtanh.pop %v5512
    %v5769 = vtanh.pop %v5513
    %v5770 = vtanh.pop %v5514
    %v5771 = vtanh.pop %v5515
    %v5772 = vtanh.pop %v5516
    %v5773 = vtanh.pop %v5517
    %v5774 = vtanh.pop %v5518
    %v5775 = vtanh.pop %v5519
    %v5776 = vtanh.pop %v5520
    %v5777 = vtanh.pop %v5521
    %v5778 = vtanh.pop %v5522
    %v5779 = vtanh.pop %v5523
    %v5780 = vtanh.pop %v5524
    %v5781 = vtanh.pop %v5525
    %v5782 = vtanh.pop %v5526
    %v5783 = vtanh.pop %v5527
    %v5784 = vtanh.pop %v5528
    %v5785 = vtanh.pop %v5529
    %v5786 = vtanh.pop %v5530
    %v5787 = vtanh.pop %v5531
    %v5788 = vtanh.pop %v5532
    %v5789 = vtanh.pop %v5533
    %v5790 = vtanh.pop %v5534
    %v5791 = vtanh.pop %v5535
    %v5792 = vtanh.pop %v5536
    %v5793 = vtanh.pop %v5537
    %v5794 = vtanh.pop %v5538
    %v5795 = vtanh.pop %v5539
    %v5796 = vtanh.pop %v5540
    %v5797 = vtanh.pop %v5541
    %v5798 = vtanh.pop %v5542
    %v5799 = vtanh.pop %v5543
    %v5800 = vtanh.pop %v5544
    %v5801 = vtanh.pop %v5545
    %v5802 = vtanh.pop %v5546
    %v5803 = vtanh.pop %v5547
    %v5804 = vtanh.pop %v5548
    %v5805 = vtanh.pop %v5549
    %v5806 = vtanh.pop %v5550
    %v5807 = vtanh.pop %v5551
    %v5808 = vtanh.pop %v5552
    %v5809 = vtanh.pop %v5553
    %v5810 = vtanh.pop %v5554
    %v5811 = vtanh.pop %v5555
    %v5812 = vtanh.pop %v5556
    %v5813 = vtanh.pop %v5557
    %v5814 = vtanh.pop %v5558
    %v5815 = vtanh.pop %v5559
    %v5816 = vtanh.pop %v5560
    %v5817 = vtanh.pop %v5561
    %v5818 = vtanh.pop %v5562
    %v5819 = vtanh.pop %v5563
    %v5820 = vtanh.pop %v5564
    %v5821 = vtanh.pop %v5565
    %v5822 = vtanh.pop %v5566
    %v5823 = vtanh.pop %v5567
    %v5824 = vtanh.pop %v5568
    %v5825 = vtanh.pop %v5569
    %v5826 = vtanh.pop %v5570
    %v5827 = vtanh.pop %v5571
    %v5828 = vtanh.pop %v5572
    %v5829 = vtanh.pop %v5573
    %v5830 = vtanh.pop %v5574
    %v5831 = vtanh.pop %v5575
    %v5832 = vtanh.pop %v5576
    %v5833 = vtanh.pop %v5577
    %v5834 = vtanh.pop %v5578
    %v5835 = vtanh.pop %v5579
    %v5836 = vtanh.pop %v5580
    %v5837 = vtanh.pop %v5581
    %v5838 = vtanh.pop %v5582
    %v5839 = vtanh.pop %v5583
    %v5840 = vtanh.pop %v5584
    %v5841 = vtanh.pop %v5585
    %v5842 = vtanh.pop %v5586
    %v5843 = vtanh.pop %v5587
    %v5844 = vtanh.pop %v5588
    %v5845 = vtanh.pop %v5589
    %v5846 = vtanh.pop %v5590
    %v5847 = vtanh.pop %v5591
    %v5848 = vtanh.pop %v5592
    %v5849 = vtanh.pop %v5593
    %v5850 = vtanh.pop %v5594
    %v5851 = vtanh.pop %v5595
    %v5852 = vtanh.pop %v5596
    %v5853 = vtanh.pop %v5597
    %v5854 = vtanh.pop %v5598
    %v5855 = vtanh.pop %v5599
    %v5856 = vtanh.pop %v5600
    %v5857 = vtanh.pop %v5601
    %v5858 = vtanh.pop %v5602
    %v5859 = vtanh.pop %v5603
    %v5860 = vtanh.pop %v5604
    %v5861 = vtanh.pop %v5605
    %v5862 = vtanh.pop %v5606
    %v5863 = vtanh.pop %v5607
    %v5864 = vtanh.pop %v5608
    %v5865 = vtanh.pop %v5609
    %v5866 = vtanh.pop %v5610
    %v5867 = vtanh.pop %v5611
    %v5868 = vtanh.pop %v5612
    %v5869 = vtanh.pop %v5613
    %v5870 = vtanh.pop %v5614
    %v5871 = vtanh.pop %v5615
    %v5872 = vtanh.pop %v5616
    %v5873 = vtanh.pop %v5617
    %v5874 = vtanh.pop %v5618
    %v5875 = vtanh.pop %v5619
    %v5876 = vtanh.pop %v5620
    %v5877 = vtanh.pop %v5621
    %v5878 = vtanh.pop %v5622
    %v5879 = vtanh.pop %v5623
    %v5880 = vtanh.pop %v5624
    %v5881 = vtanh.pop %v5625
    %v5882 = vtanh.pop %v5626
    %v5883 = vtanh.pop %v5627
    %v5884 = vtanh.pop %v5628
    %v5885 = vtanh.pop %v5629
    %v5886 = vtanh.pop %v5630
    %v5887 = vtanh.pop %v5631
    %v5888 = vtanh.pop %v5632
    %v5889 = vtanh.pop %v5633
    %v5890 = vtanh.pop %v5634
    %v5891 = vtanh.pop %v5635
    %v5892 = vtanh.pop %v5636
    %v5893 = vtanh.pop %v5637
    %v5894 = vtanh.pop %v5638
    %v5895 = vtanh.pop %v5639
    %v5896 = vtanh.pop %v5640
    %v5897 = vtanh.pop %v5641
    %v5898 = vtanh.pop %v5642
    %v5899 = vtanh.pop %v5643
    %v5900 = vtanh.pop %v5644
    %v5901 = vtanh.pop %v5645
    %v5902 = vtanh.pop %v5646
    %v5903 = vtanh.pop %v5647
    %v5904 = vtanh.pop %v5648
    %v5905 = vtanh.pop %v5649
    %v5906 = vtanh.pop %v5650
    %v5907 = vtanh.pop %v5651
    %v5908 = vtanh.pop %v5652
    %v5909 = vtanh.pop %v5653
    %v5910 = vtanh.pop %v5654
    %v5911 = vtanh.pop %v5655
    %v5912 = vtanh.pop %v5656
    %v5913 = vld [vmem:[%s13] sm:$0x3]
    %v5915 = vlaneseq
    %v5916 = vshrl.u32 %v5915, 7
    %v5917 = vsub.s32 0, %v5916
    %v5918 = vrot.slane %v5913, %v5917
    %v5919 = vlaneseq
    %v5920 = vshrl.u32 %v5919, 7
    %v5921 = vsub.s32 1, %v5920
    %v5922 = vrot.slane %v5913, %v5921
    %5925 = vmatprep.subr.mxu0 %v5658
    %5926 = vmatpush1.xpose.msra.mxu0 %v5657
    %5927 = vmatprep.subr.mxu0 %v5660
    %5928 = vmatpush1.xpose.msra.mxu0 %v5659
    %5929 = vmatprep.subr.mxu0 %v5662
    %5930 = vmatpush1.xpose.msra.mxu0 %v5661
    %5931 = vmatprep.subr.mxu0 %v5664
    %5932 = vmatpush1.xpose.msra.mxu0 %v5663
    %5933 = vmatprep.subr.mxu0 %v5666
    %5934 = vmatpush1.xpose.msra.mxu0 %v5665
    %5935 = vmatprep.subr.mxu0 %v5668
    %5936 = vmatpush1.xpose.msra.mxu0 %v5667
    %5937 = vmatprep.subr.mxu0 %v5670
    %5938 = vmatpush1.xpose.msra.mxu0 %v5669
    %5939 = vmatprep.subr.mxu0 %v5672
    %5940 = vmatpush1.xpose.msra.mxu0 %v5671
    %5941 = vmatprep.subr.mxu0 %v5674
    %5942 = vmatpush1.xpose.msra.mxu0 %v5673
    %5943 = vmatprep.subr.mxu0 %v5676
    %5944 = vmatpush1.xpose.msra.mxu0 %v5675
    %5945 = vmatprep.subr.mxu0 %v5678
    %5946 = vmatpush1.xpose.msra.mxu0 %v5677
    %5947 = vmatprep.subr.mxu0 %v5680
    %5948 = vmatpush1.xpose.msra.mxu0 %v5679
    %5949 = vmatprep.subr.mxu0 %v5682
    %5950 = vmatpush1.xpose.msra.mxu0 %v5681
    %5951 = vmatprep.subr.mxu0 %v5684
    %5952 = vmatpush1.xpose.msra.mxu0 %v5683
    %5953 = vmatprep.subr.mxu0 %v5686
    %5954 = vmatpush1.xpose.msra.mxu0 %v5685
    %5955 = vmatprep.subr.mxu0 %v5688
    %5956 = vmatpush1.xpose.msra.mxu0 %v5687
    %5957 = vmatprep.subr.mxu0 0.0
    %5958 = vmatpush1.xpose.msra.mxu0 0.0
    %5959 = vmatprep.subr.mxu0 0.0
    %5960 = vmatpush1.xpose.msra.mxu0 0.0
    %5961 = vmatprep.subr.mxu0 0.0
    %5962 = vmatpush1.xpose.msra.mxu0 0.0
    %5963 = vmatprep.subr.mxu0 0.0
    %5964 = vmatpush1.xpose.msra.mxu0 0.0
    %5965 = vmatprep.subr.mxu0 0.0
    %5966 = vmatpush1.xpose.msra.mxu0 0.0
    %5967 = vmatprep.subr.mxu0 0.0
    %5968 = vmatpush1.xpose.msra.mxu0 0.0
    %5969 = vmatprep.subr.mxu0 0.0
    %5970 = vmatpush1.xpose.msra.mxu0 0.0
    %5971 = vmatprep.subr.mxu0 0.0
    %5972 = vmatpush1.xpose.msra.mxu0 0.0
    %5973 = vmatprep.subr.mxu0 0.0
    %5974 = vmatpush1.xpose.msra.mxu0 0.0
    %5975 = vmatprep.subr.mxu0 0.0
    %5976 = vmatpush1.xpose.msra.mxu0 0.0
    %5977 = vmatprep.subr.mxu0 0.0
    %5978 = vmatpush1.xpose.msra.mxu0 0.0
    %5979 = vmatprep.subr.mxu0 0.0
    %5980 = vmatpush1.xpose.msra.mxu0 0.0
    %5981 = vmatprep.subr.mxu0 0.0
    %5982 = vmatpush1.xpose.msra.mxu0 0.0
    %5983 = vmatprep.subr.mxu0 0.0
    %5984 = vmatpush1.xpose.msra.mxu0 0.0
    %5985 = vmatprep.subr.mxu0 0.0
    %5986 = vmatpush1.xpose.msra.mxu0 0.0
    %5987 = vmatprep.subr.mxu0 0.0
    %5988 = vmatpush1.xpose.msra.mxu0 0.0
    %5989 = vmatprep.mubr.f32.mxu0 %v5922
    %5990 = vmatmul.mubr.f32.gmra.mrb[0].mxu0 %v5918
    %v5991 = vpop.f32.mrb[0].mxu0
    %v5992 = vadd.f32 0.0, %v5991
    %v5993 = vpop.f32.mrb[0].mxu0
    %5994 = vdwg.mxu0
    %5995 = vmatprep.subr.mxu0 %v5690
    %5996 = vmatpush1.xpose.msra.mxu0 %v5689
    %5997 = vmatprep.subr.mxu0 %v5692
    %5998 = vmatpush1.xpose.msra.mxu0 %v5691
    %5999 = vmatprep.subr.mxu0 %v5694
    %6000 = vmatpush1.xpose.msra.mxu0 %v5693
    %6001 = vmatprep.subr.mxu0 %v5696
    %6002 = vmatpush1.xpose.msra.mxu0 %v5695
    %6003 = vmatprep.subr.mxu0 %v5698
    %6004 = vmatpush1.xpose.msra.mxu0 %v5697
    %6005 = vmatprep.subr.mxu0 %v5700
    %6006 = vmatpush1.xpose.msra.mxu0 %v5699
    %6007 = vmatprep.subr.mxu0 %v5702
    %6008 = vmatpush1.xpose.msra.mxu0 %v5701
    %6009 = vmatprep.subr.mxu0 %v5704
    %6010 = vmatpush1.xpose.msra.mxu0 %v5703
    %6011 = vmatprep.subr.mxu0 %v5706
    %6012 = vmatpush1.xpose.msra.mxu0 %v5705
    %6013 = vmatprep.subr.mxu0 %v5708
    %6014 = vmatpush1.xpose.msra.mxu0 %v5707
    %6015 = vmatprep.subr.mxu0 %v5710
    %6016 = vmatpush1.xpose.msra.mxu0 %v5709
    %6017 = vmatprep.subr.mxu0 %v5712
    %6018 = vmatpush1.xpose.msra.mxu0 %v5711
    %6019 = vmatprep.subr.mxu0 %v5714
    %6020 = vmatpush1.xpose.msra.mxu0 %v5713
    %6021 = vmatprep.subr.mxu0 %v5716
    %6022 = vmatpush1.xpose.msra.mxu0 %v5715
    %6023 = vmatprep.subr.mxu0 %v5718
    %6024 = vmatpush1.xpose.msra.mxu0 %v5717
    %6025 = vmatprep.subr.mxu0 %v5720
    %6026 = vmatpush1.xpose.msra.mxu0 %v5719
    %6027 = vmatprep.subr.mxu0 0.0
    %6028 = vmatpush1.xpose.msra.mxu0 0.0
    %6029 = vmatprep.subr.mxu0 0.0
    %6030 = vmatpush1.xpose.msra.mxu0 0.0
    %6031 = vmatprep.subr.mxu0 0.0
    %6032 = vmatpush1.xpose.msra.mxu0 0.0
    %6033 = vmatprep.subr.mxu0 0.0
    %6034 = vmatpush1.xpose.msra.mxu0 0.0
    %6035 = vmatprep.subr.mxu0 0.0
    %6036 = vmatpush1.xpose.msra.mxu0 0.0
    %6037 = vmatprep.subr.mxu0 0.0
    %6038 = vmatpush1.xpose.msra.mxu0 0.0
    %6039 = vmatprep.subr.mxu0 0.0
    %6040 = vmatpush1.xpose.msra.mxu0 0.0
    %6041 = vmatprep.subr.mxu0 0.0
    %6042 = vmatpush1.xpose.msra.mxu0 0.0
    %6043 = vmatprep.subr.mxu0 0.0
    %6044 = vmatpush1.xpose.msra.mxu0 0.0
    %6045 = vmatprep.subr.mxu0 0.0
    %6046 = vmatpush1.xpose.msra.mxu0 0.0
    %6047 = vmatprep.subr.mxu0 0.0
    %6048 = vmatpush1.xpose.msra.mxu0 0.0
    %6049 = vmatprep.subr.mxu0 0.0
    %6050 = vmatpush1.xpose.msra.mxu0 0.0
    %6051 = vmatprep.subr.mxu0 0.0
    %6052 = vmatpush1.xpose.msra.mxu0 0.0
    %6053 = vmatprep.subr.mxu0 0.0
    %6054 = vmatpush1.xpose.msra.mxu0 0.0
    %6055 = vmatprep.subr.mxu0 0.0
    %6056 = vmatpush1.xpose.msra.mxu0 0.0
    %6057 = vmatprep.subr.mxu0 0.0
    %6058 = vmatpush1.xpose.msra.mxu0 0.0
    %6059 = vmatprep.mubr.f32.mxu0 %v5922
    %6060 = vmatmul.mubr.f32.gmra.mrb[0].mxu0 %v5918
    %v6061 = vpop.f32.mrb[0].mxu0
    %v6062 = vadd.f32 0.0, %v6061
    %v6063 = vpop.f32.mrb[0].mxu0
    %6064 = vdwg.mxu0
    %6065 = vmatprep.subr.mxu0 %v5722
    %6066 = vmatpush1.xpose.msra.mxu0 %v5721
    %6067 = vmatprep.subr.mxu0 %v5724
    %6068 = vmatpush1.xpose.msra.mxu0 %v5723
    %6069 = vmatprep.subr.mxu0 %v5726
    %6070 = vmatpush1.xpose.msra.mxu0 %v5725
    %6071 = vmatprep.subr.mxu0 %v5728
    %6072 = vmatpush1.xpose.msra.mxu0 %v5727
    %6073 = vmatprep.subr.mxu0 %v5730
    %6074 = vmatpush1.xpose.msra.mxu0 %v5729
    %6075 = vmatprep.subr.mxu0 %v5732
    %6076 = vmatpush1.xpose.msra.mxu0 %v5731
    %6077 = vmatprep.subr.mxu0 %v5734
    %6078 = vmatpush1.xpose.msra.mxu0 %v5733
    %6079 = vmatprep.subr.mxu0 %v5736
    %6080 = vmatpush1.xpose.msra.mxu0 %v5735
    %6081 = vmatprep.subr.mxu0 %v5738
    %6082 = vmatpush1.xpose.msra.mxu0 %v5737
    %6083 = vmatprep.subr.mxu0 %v5740
    %6084 = vmatpush1.xpose.msra.mxu0 %v5739
    %6085 = vmatprep.subr.mxu0 %v5742
    %6086 = vmatpush1.xpose.msra.mxu0 %v5741
    %6087 = vmatprep.subr.mxu0 %v5744
    %6088 = vmatpush1.xpose.msra.mxu0 %v5743
    %6089 = vmatprep.subr.mxu0 %v5746
    %6090 = vmatpush1.xpose.msra.mxu0 %v5745
    %6091 = vmatprep.subr.mxu0 %v5748
    %6092 = vmatpush1.xpose.msra.mxu0 %v5747
    %6093 = vmatprep.subr.mxu0 %v5750
    %6094 = vmatpush1.xpose.msra.mxu0 %v5749
    %6095 = vmatprep.subr.mxu0 %v5752
    %6096 = vmatpush1.xpose.msra.mxu0 %v5751
    %6097 = vmatprep.subr.mxu0 0.0
    %6098 = vmatpush1.xpose.msra.mxu0 0.0
    %6099 = vmatprep.subr.mxu0 0.0
    %6100 = vmatpush1.xpose.msra.mxu0 0.0
    %6101 = vmatprep.subr.mxu0 0.0
    %6102 = vmatpush1.xpose.msra.mxu0 0.0
    %6103 = vmatprep.subr.mxu0 0.0
    %6104 = vmatpush1.xpose.msra.mxu0 0.0
    %6105 = vmatprep.subr.mxu0 0.0
    %6106 = vmatpush1.xpose.msra.mxu0 0.0
    %6107 = vmatprep.subr.mxu0 0.0
    %6108 = vmatpush1.xpose.msra.mxu0 0.0
    %6109 = vmatprep.subr.mxu0 0.0
    %6110 = vmatpush1.xpose.msra.mxu0 0.0
    %6111 = vmatprep.subr.mxu0 0.0
    %6112 = vmatpush1.xpose.msra.mxu0 0.0
    %6113 = vmatprep.subr.mxu0 0.0
    %6114 = vmatpush1.xpose.msra.mxu0 0.0
    %6115 = vmatprep.subr.mxu0 0.0
    %6116 = vmatpush1.xpose.msra.mxu0 0.0
    %6117 = vmatprep.subr.mxu0 0.0
    %6118 = vmatpush1.xpose.msra.mxu0 0.0
    %6119 = vmatprep.subr.mxu0 0.0
    %6120 = vmatpush1.xpose.msra.mxu0 0.0
    %6121 = vmatprep.subr.mxu0 0.0
    %6122 = vmatpush1.xpose.msra.mxu0 0.0
    %6123 = vmatprep.subr.mxu0 0.0
    %6124 = vmatpush1.xpose.msra.mxu0 0.0
    %6125 = vmatprep.subr.mxu0 0.0
    %6126 = vmatpush1.xpose.msra.mxu0 0.0
    %6127 = vmatprep.subr.mxu0 0.0
    %6128 = vmatpush1.xpose.msra.mxu0 0.0
    %6129 = vmatprep.mubr.f32.mxu0 %v5922
    %6130 = vmatmul.mubr.f32.gmra.mrb[0].mxu0 %v5918
    %v6131 = vpop.f32.mrb[0].mxu0
    %v6132 = vadd.f32 0.0, %v6131
    %v6133 = vpop.f32.mrb[0].mxu0
    %6134 = vdwg.mxu0
    %6135 = vmatprep.subr.mxu0 %v5754
    %6136 = vmatpush1.xpose.msra.mxu0 %v5753
    %6137 = vmatprep.subr.mxu0 %v5756
    %6138 = vmatpush1.xpose.msra.mxu0 %v5755
    %6139 = vmatprep.subr.mxu0 %v5758
    %6140 = vmatpush1.xpose.msra.mxu0 %v5757
    %6141 = vmatprep.subr.mxu0 %v5760
    %6142 = vmatpush1.xpose.msra.mxu0 %v5759
    %6143 = vmatprep.subr.mxu0 %v5762
    %6144 = vmatpush1.xpose.msra.mxu0 %v5761
    %6145 = vmatprep.subr.mxu0 %v5764
    %6146 = vmatpush1.xpose.msra.mxu0 %v5763
    %6147 = vmatprep.subr.mxu0 %v5766
    %6148 = vmatpush1.xpose.msra.mxu0 %v5765
    %6149 = vmatprep.subr.mxu0 %v5768
    %6150 = vmatpush1.xpose.msra.mxu0 %v5767
    %6151 = vmatprep.subr.mxu0 %v5770
    %6152 = vmatpush1.xpose.msra.mxu0 %v5769
    %6153 = vmatprep.subr.mxu0 %v5772
    %6154 = vmatpush1.xpose.msra.mxu0 %v5771
    %6155 = vmatprep.subr.mxu0 %v5774
    %6156 = vmatpush1.xpose.msra.mxu0 %v5773
    %6157 = vmatprep.subr.mxu0 %v5776
    %6158 = vmatpush1.xpose.msra.mxu0 %v5775
    %6159 = vmatprep.subr.mxu0 %v5778
    %6160 = vmatpush1.xpose.msra.mxu0 %v5777
    %6161 = vmatprep.subr.mxu0 %v5780
    %6162 = vmatpush1.xpose.msra.mxu0 %v5779
    %6163 = vmatprep.subr.mxu0 %v5782
    %6164 = vmatpush1.xpose.msra.mxu0 %v5781
    %6165 = vmatprep.subr.mxu0 %v5784
    %6166 = vmatpush1.xpose.msra.mxu0 %v5783
    %6167 = vmatprep.subr.mxu0 0.0
    %6168 = vmatpush1.xpose.msra.mxu0 0.0
    %6169 = vmatprep.subr.mxu0 0.0
    %6170 = vmatpush1.xpose.msra.mxu0 0.0
    %6171 = vmatprep.subr.mxu0 0.0
    %6172 = vmatpush1.xpose.msra.mxu0 0.0
    %6173 = vmatprep.subr.mxu0 0.0
    %6174 = vmatpush1.xpose.msra.mxu0 0.0
    %6175 = vmatprep.subr.mxu0 0.0
    %6176 = vmatpush1.xpose.msra.mxu0 0.0
    %6177 = vmatprep.subr.mxu0 0.0
    %6178 = vmatpush1.xpose.msra.mxu0 0.0
    %6179 = vmatprep.subr.mxu0 0.0
    %6180 = vmatpush1.xpose.msra.mxu0 0.0
    %6181 = vmatprep.subr.mxu0 0.0
    %6182 = vmatpush1.xpose.msra.mxu0 0.0
    %6183 = vmatprep.subr.mxu0 0.0
    %6184 = vmatpush1.xpose.msra.mxu0 0.0
    %6185 = vmatprep.subr.mxu0 0.0
    %6186 = vmatpush1.xpose.msra.mxu0 0.0
    %6187 = vmatprep.subr.mxu0 0.0
    %6188 = vmatpush1.xpose.msra.mxu0 0.0
    %6189 = vmatprep.subr.mxu0 0.0
    %6190 = vmatpush1.xpose.msra.mxu0 0.0
    %6191 = vmatprep.subr.mxu0 0.0
    %6192 = vmatpush1.xpose.msra.mxu0 0.0
    %6193 = vmatprep.subr.mxu0 0.0
    %6194 = vmatpush1.xpose.msra.mxu0 0.0
    %6195 = vmatprep.subr.mxu0 0.0
    %6196 = vmatpush1.xpose.msra.mxu0 0.0
    %6197 = vmatprep.subr.mxu0 0.0
    %6198 = vmatpush1.xpose.msra.mxu0 0.0
    %6199 = vmatprep.mubr.f32.mxu0 %v5922
    %6200 = vmatmul.mubr.f32.gmra.mrb[0].mxu0 %v5918
    %v6201 = vpop.f32.mrb[0].mxu0
    %v6202 = vadd.f32 0.0, %v6201
    %v6203 = vpop.f32.mrb[0].mxu0
    %6204 = vdwg.mxu0
    %6205 = vmatprep.subr.mxu0 %v5786
    %6206 = vmatpush1.xpose.msra.mxu0 %v5785
    %6207 = vmatprep.subr.mxu0 %v5788
    %6208 = vmatpush1.xpose.msra.mxu0 %v5787
    %6209 = vmatprep.subr.mxu0 %v5790
    %6210 = vmatpush1.xpose.msra.mxu0 %v5789
    %6211 = vmatprep.subr.mxu0 %v5792
    %6212 = vmatpush1.xpose.msra.mxu0 %v5791
    %6213 = vmatprep.subr.mxu0 %v5794
    %6214 = vmatpush1.xpose.msra.mxu0 %v5793
    %6215 = vmatprep.subr.mxu0 %v5796
    %6216 = vmatpush1.xpose.msra.mxu0 %v5795
    %6217 = vmatprep.subr.mxu0 %v5798
    %6218 = vmatpush1.xpose.msra.mxu0 %v5797
    %6219 = vmatprep.subr.mxu0 %v5800
    %6220 = vmatpush1.xpose.msra.mxu0 %v5799
    %6221 = vmatprep.subr.mxu0 %v5802
    %6222 = vmatpush1.xpose.msra.mxu0 %v5801
    %6223 = vmatprep.subr.mxu0 %v5804
    %6224 = vmatpush1.xpose.msra.mxu0 %v5803
    %6225 = vmatprep.subr.mxu0 %v5806
    %6226 = vmatpush1.xpose.msra.mxu0 %v5805
    %6227 = vmatprep.subr.mxu0 %v5808
    %6228 = vmatpush1.xpose.msra.mxu0 %v5807
    %6229 = vmatprep.subr.mxu0 %v5810
    %6230 = vmatpush1.xpose.msra.mxu0 %v5809
    %6231 = vmatprep.subr.mxu0 %v5812
    %6232 = vmatpush1.xpose.msra.mxu0 %v5811
    %6233 = vmatprep.subr.mxu0 %v5814
    %6234 = vmatpush1.xpose.msra.mxu0 %v5813
    %6235 = vmatprep.subr.mxu0 %v5816
    %6236 = vmatpush1.xpose.msra.mxu0 %v5815
    %6237 = vmatprep.subr.mxu0 0.0
    %6238 = vmatpush1.xpose.msra.mxu0 0.0
    %6239 = vmatprep.subr.mxu0 0.0
    %6240 = vmatpush1.xpose.msra.mxu0 0.0
    %6241 = vmatprep.subr.mxu0 0.0
    %6242 = vmatpush1.xpose.msra.mxu0 0.0
    %6243 = vmatprep.subr.mxu0 0.0
    %6244 = vmatpush1.xpose.msra.mxu0 0.0
    %6245 = vmatprep.subr.mxu0 0.0
    %6246 = vmatpush1.xpose.msra.mxu0 0.0
    %6247 = vmatprep.subr.mxu0 0.0
    %6248 = vmatpush1.xpose.msra.mxu0 0.0
    %6249 = vmatprep.subr.mxu0 0.0
    %6250 = vmatpush1.xpose.msra.mxu0 0.0
    %6251 = vmatprep.subr.mxu0 0.0
    %6252 = vmatpush1.xpose.msra.mxu0 0.0
    %6253 = vmatprep.subr.mxu0 0.0
    %6254 = vmatpush1.xpose.msra.mxu0 0.0
    %6255 = vmatprep.subr.mxu0 0.0
    %6256 = vmatpush1.xpose.msra.mxu0 0.0
    %6257 = vmatprep.subr.mxu0 0.0
    %6258 = vmatpush1.xpose.msra.mxu0 0.0
    %6259 = vmatprep.subr.mxu0 0.0
    %6260 = vmatpush1.xpose.msra.mxu0 0.0
    %6261 = vmatprep.subr.mxu0 0.0
    %6262 = vmatpush1.xpose.msra.mxu0 0.0
    %6263 = vmatprep.subr.mxu0 0.0
    %6264 = vmatpush1.xpose.msra.mxu0 0.0
    %6265 = vmatprep.subr.mxu0 0.0
    %6266 = vmatpush1.xpose.msra.mxu0 0.0
    %6267 = vmatprep.subr.mxu0 0.0
    %6268 = vmatpush1.xpose.msra.mxu0 0.0
    %6269 = vmatprep.mubr.f32.mxu0 %v5922
    %6270 = vmatmul.mubr.f32.gmra.mrb[0].mxu0 %v5918
    %v6271 = vpop.f32.mrb[0].mxu0
    %v6272 = vadd.f32 0.0, %v6271
    %v6273 = vpop.f32.mrb[0].mxu0
    %6274 = vdwg.mxu0
    %6275 = vmatprep.subr.mxu0 %v5818
    %6276 = vmatpush1.xpose.msra.mxu0 %v5817
    %6277 = vmatprep.subr.mxu0 %v5820
    %6278 = vmatpush1.xpose.msra.mxu0 %v5819
    %6279 = vmatprep.subr.mxu0 %v5822
    %6280 = vmatpush1.xpose.msra.mxu0 %v5821
    %6281 = vmatprep.subr.mxu0 %v5824
    %6282 = vmatpush1.xpose.msra.mxu0 %v5823
    %6283 = vmatprep.subr.mxu0 %v5826
    %6284 = vmatpush1.xpose.msra.mxu0 %v5825
    %6285 = vmatprep.subr.mxu0 %v5828
    %6286 = vmatpush1.xpose.msra.mxu0 %v5827
    %6287 = vmatprep.subr.mxu0 %v5830
    %6288 = vmatpush1.xpose.msra.mxu0 %v5829
    %6289 = vmatprep.subr.mxu0 %v5832
    %6290 = vmatpush1.xpose.msra.mxu0 %v5831
    %6291 = vmatprep.subr.mxu0 %v5834
    %6292 = vmatpush1.xpose.msra.mxu0 %v5833
    %6293 = vmatprep.subr.mxu0 %v5836
    %6294 = vmatpush1.xpose.msra.mxu0 %v5835
    %6295 = vmatprep.subr.mxu0 %v5838
    %6296 = vmatpush1.xpose.msra.mxu0 %v5837
    %6297 = vmatprep.subr.mxu0 %v5840
    %6298 = vmatpush1.xpose.msra.mxu0 %v5839
    %6299 = vmatprep.subr.mxu0 %v5842
    %6300 = vmatpush1.xpose.msra.mxu0 %v5841
    %6301 = vmatprep.subr.mxu0 %v5844
    %6302 = vmatpush1.xpose.msra.mxu0 %v5843
    %6303 = vmatprep.subr.mxu0 %v5846
    %6304 = vmatpush1.xpose.msra.mxu0 %v5845
    %6305 = vmatprep.subr.mxu0 %v5848
    %6306 = vmatpush1.xpose.msra.mxu0 %v5847
    %6307 = vmatprep.subr.mxu0 0.0
    %6308 = vmatpush1.xpose.msra.mxu0 0.0
    %6309 = vmatprep.subr.mxu0 0.0
    %6310 = vmatpush1.xpose.msra.mxu0 0.0
    %6311 = vmatprep.subr.mxu0 0.0
    %6312 = vmatpush1.xpose.msra.mxu0 0.0
    %6313 = vmatprep.subr.mxu0 0.0
    %6314 = vmatpush1.xpose.msra.mxu0 0.0
    %6315 = vmatprep.subr.mxu0 0.0
    %6316 = vmatpush1.xpose.msra.mxu0 0.0
    %6317 = vmatprep.subr.mxu0 0.0
    %6318 = vmatpush1.xpose.msra.mxu0 0.0
    %6319 = vmatprep.subr.mxu0 0.0
    %6320 = vmatpush1.xpose.msra.mxu0 0.0
    %6321 = vmatprep.subr.mxu0 0.0
    %6322 = vmatpush1.xpose.msra.mxu0 0.0
    %6323 = vmatprep.subr.mxu0 0.0
    %6324 = vmatpush1.xpose.msra.mxu0 0.0
    %6325 = vmatprep.subr.mxu0 0.0
    %6326 = vmatpush1.xpose.msra.mxu0 0.0
    %6327 = vmatprep.subr.mxu0 0.0
    %6328 = vmatpush1.xpose.msra.mxu0 0.0
    %6329 = vmatprep.subr.mxu0 0.0
    %6330 = vmatpush1.xpose.msra.mxu0 0.0
    %6331 = vmatprep.subr.mxu0 0.0
    %6332 = vmatpush1.xpose.msra.mxu0 0.0
    %6333 = vmatprep.subr.mxu0 0.0
    %6334 = vmatpush1.xpose.msra.mxu0 0.0
    %6335 = vmatprep.subr.mxu0 0.0
    %6336 = vmatpush1.xpose.msra.mxu0 0.0
    %6337 = vmatprep.subr.mxu0 0.0
    %6338 = vmatpush1.xpose.msra.mxu0 0.0
    %6339 = vmatprep.mubr.f32.mxu0 %v5922
    %6340 = vmatmul.mubr.f32.gmra.mrb[0].mxu0 %v5918
    %v6341 = vpop.f32.mrb[0].mxu0
    %v6342 = vadd.f32 0.0, %v6341
    %v6343 = vpop.f32.mrb[0].mxu0
    %6344 = vdwg.mxu0
    %6345 = vmatprep.subr.mxu0 %v5850
    %6346 = vmatpush1.xpose.msra.mxu0 %v5849
    %6347 = vmatprep.subr.mxu0 %v5852
    %6348 = vmatpush1.xpose.msra.mxu0 %v5851
    %6349 = vmatprep.subr.mxu0 %v5854
    %6350 = vmatpush1.xpose.msra.mxu0 %v5853
    %6351 = vmatprep.subr.mxu0 %v5856
    %6352 = vmatpush1.xpose.msra.mxu0 %v5855
    %6353 = vmatprep.subr.mxu0 %v5858
    %6354 = vmatpush1.xpose.msra.mxu0 %v5857
    %6355 = vmatprep.subr.mxu0 %v5860
    %6356 = vmatpush1.xpose.msra.mxu0 %v5859
    %6357 = vmatprep.subr.mxu0 %v5862
    %6358 = vmatpush1.xpose.msra.mxu0 %v5861
    %6359 = vmatprep.subr.mxu0 %v5864
    %6360 = vmatpush1.xpose.msra.mxu0 %v5863
    %6361 = vmatprep.subr.mxu0 %v5866
    %6362 = vmatpush1.xpose.msra.mxu0 %v5865
    %6363 = vmatprep.subr.mxu0 %v5868
    %6364 = vmatpush1.xpose.msra.mxu0 %v5867
    %6365 = vmatprep.subr.mxu0 %v5870
    %6366 = vmatpush1.xpose.msra.mxu0 %v5869
    %6367 = vmatprep.subr.mxu0 %v5872
    %6368 = vmatpush1.xpose.msra.mxu0 %v5871
    %6369 = vmatprep.subr.mxu0 %v5874
    %6370 = vmatpush1.xpose.msra.mxu0 %v5873
    %6371 = vmatprep.subr.mxu0 %v5876
    %6372 = vmatpush1.xpose.msra.mxu0 %v5875
    %6373 = vmatprep.subr.mxu0 %v5878
    %6374 = vmatpush1.xpose.msra.mxu0 %v5877
    %6375 = vmatprep.subr.mxu0 %v5880
    %6376 = vmatpush1.xpose.msra.mxu0 %v5879
    %6377 = vmatprep.subr.mxu0 0.0
    %6378 = vmatpush1.xpose.msra.mxu0 0.0
    %6379 = vmatprep.subr.mxu0 0.0
    %6380 = vmatpush1.xpose.msra.mxu0 0.0
    %6381 = vmatprep.subr.mxu0 0.0
    %6382 = vmatpush1.xpose.msra.mxu0 0.0
    %6383 = vmatprep.subr.mxu0 0.0
    %6384 = vmatpush1.xpose.msra.mxu0 0.0
    %6385 = vmatprep.subr.mxu0 0.0
    %6386 = vmatpush1.xpose.msra.mxu0 0.0
    %6387 = vmatprep.subr.mxu0 0.0
    %6388 = vmatpush1.xpose.msra.mxu0 0.0
    %6389 = vmatprep.subr.mxu0 0.0
    %6390 = vmatpush1.xpose.msra.mxu0 0.0
    %6391 = vmatprep.subr.mxu0 0.0
    %6392 = vmatpush1.xpose.msra.mxu0 0.0
    %6393 = vmatprep.subr.mxu0 0.0
    %6394 = vmatpush1.xpose.msra.mxu0 0.0
    %6395 = vmatprep.subr.mxu0 0.0
    %6396 = vmatpush1.xpose.msra.mxu0 0.0
    %6397 = vmatprep.subr.mxu0 0.0
    %6398 = vmatpush1.xpose.msra.mxu0 0.0
    %6399 = vmatprep.subr.mxu0 0.0
    %6400 = vmatpush1.xpose.msra.mxu0 0.0
    %6401 = vmatprep.subr.mxu0 0.0
    %6402 = vmatpush1.xpose.msra.mxu0 0.0
    %6403 = vmatprep.subr.mxu0 0.0
    %6404 = vmatpush1.xpose.msra.mxu0 0.0
    %6405 = vmatprep.subr.mxu0 0.0
    %6406 = vmatpush1.xpose.msra.mxu0 0.0
    %6407 = vmatprep.subr.mxu0 0.0
    %6408 = vmatpush1.xpose.msra.mxu0 0.0
    %6409 = vmatprep.mubr.f32.mxu0 %v5922
    %6410 = vmatmul.mubr.f32.gmra.mrb[0].mxu0 %v5918
    %v6411 = vpop.f32.mrb[0].mxu0
    %v6412 = vadd.f32 0.0, %v6411
    %v6413 = vpop.f32.mrb[0].mxu0
    %6414 = vdwg.mxu0
    %6415 = vmatprep.subr.mxu0 %v5882
    %6416 = vmatpush1.xpose.msra.mxu0 %v5881
    %6417 = vmatprep.subr.mxu0 %v5884
    %6418 = vmatpush1.xpose.msra.mxu0 %v5883
    %6419 = vmatprep.subr.mxu0 %v5886
    %6420 = vmatpush1.xpose.msra.mxu0 %v5885
    %6421 = vmatprep.subr.mxu0 %v5888
    %6422 = vmatpush1.xpose.msra.mxu0 %v5887
    %6423 = vmatprep.subr.mxu0 %v5890
    %6424 = vmatpush1.xpose.msra.mxu0 %v5889
    %6425 = vmatprep.subr.mxu0 %v5892
    %6426 = vmatpush1.xpose.msra.mxu0 %v5891
    %6427 = vmatprep.subr.mxu0 %v5894
    %6428 = vmatpush1.xpose.msra.mxu0 %v5893
    %6429 = vmatprep.subr.mxu0 %v5896
    %6430 = vmatpush1.xpose.msra.mxu0 %v5895
    %6431 = vmatprep.subr.mxu0 %v5898
    %6432 = vmatpush1.xpose.msra.mxu0 %v5897
    %6433 = vmatprep.subr.mxu0 %v5900
    %6434 = vmatpush1.xpose.msra.mxu0 %v5899
    %6435 = vmatprep.subr.mxu0 %v5902
    %6436 = vmatpush1.xpose.msra.mxu0 %v5901
    %6437 = vmatprep.subr.mxu0 %v5904
    %6438 = vmatpush1.xpose.msra.mxu0 %v5903
    %6439 = vmatprep.subr.mxu0 %v5906
    %6440 = vmatpush1.xpose.msra.mxu0 %v5905
    %6441 = vmatprep.subr.mxu0 %v5908
    %6442 = vmatpush1.xpose.msra.mxu0 %v5907
    %6443 = vmatprep.subr.mxu0 %v5910
    %6444 = vmatpush1.xpose.msra.mxu0 %v5909
    %6445 = vmatprep.subr.mxu0 %v5912
    %6446 = vmatpush1.xpose.msra.mxu0 %v5911
    %6447 = vmatprep.subr.mxu0 0.0
    %6448 = vmatpush1.xpose.msra.mxu0 0.0
    %6449 = vmatprep.subr.mxu0 0.0
    %6450 = vmatpush1.xpose.msra.mxu0 0.0
    %6451 = vmatprep.subr.mxu0 0.0
    %6452 = vmatpush1.xpose.msra.mxu0 0.0
    %6453 = vmatprep.subr.mxu0 0.0
    %6454 = vmatpush1.xpose.msra.mxu0 0.0
    %6455 = vmatprep.subr.mxu0 0.0
    %6456 = vmatpush1.xpose.msra.mxu0 0.0
    %6457 = vmatprep.subr.mxu0 0.0
    %6458 = vmatpush1.xpose.msra.mxu0 0.0
    %6459 = vmatprep.subr.mxu0 0.0
    %6460 = vmatpush1.xpose.msra.mxu0 0.0
    %6461 = vmatprep.subr.mxu0 0.0
    %6462 = vmatpush1.xpose.msra.mxu0 0.0
    %6463 = vmatprep.subr.mxu0 0.0
    %6464 = vmatpush1.xpose.msra.mxu0 0.0
    %6465 = vmatprep.subr.mxu0 0.0
    %6466 = vmatpush1.xpose.msra.mxu0 0.0
    %6467 = vmatprep.subr.mxu0 0.0
    %6468 = vmatpush1.xpose.msra.mxu0 0.0
    %6469 = vmatprep.subr.mxu0 0.0
    %6470 = vmatpush1.xpose.msra.mxu0 0.0
    %6471 = vmatprep.subr.mxu0 0.0
    %6472 = vmatpush1.xpose.msra.mxu0 0.0
    %6473 = vmatprep.subr.mxu0 0.0
    %6474 = vmatpush1.xpose.msra.mxu0 0.0
    %6475 = vmatprep.subr.mxu0 0.0
    %6476 = vmatpush1.xpose.msra.mxu0 0.0
    %6477 = vmatprep.subr.mxu0 0.0
    %6478 = vmatpush1.xpose.msra.mxu0 0.0
    %6479 = vmatprep.mubr.f32.mxu0 %v5922
    %6480 = vmatmul.mubr.f32.gmra.mrb[0].mxu0 %v5918
    %v6481 = vpop.f32.mrb[0].mxu0
    %v6482 = vadd.f32 0.0, %v6481
    %v6483 = vpop.f32.mrb[0].mxu0
    %6484 = vdwg.mxu0
    %v6485 = vld [vmem:[%s3] sm:$0xff]
    %v6487 = vrot.slane %v6485, 1
    %v6488 = vrot.slane %v6485, 2
    %v6489 = vrot.slane %v6485, 3
    %v6490 = vrot.slane %v6485, 4
    %v6491 = vrot.slane %v6485, 5
    %v6492 = vrot.slane %v6485, 6
    %v6493 = vrot.slane %v6485, 7
    %v6502 = vadd.f32 %v5992, %v6485
    %v6503 = vadd.f32 %v6062, %v6487
    %v6504 = vadd.f32 %v6132, %v6488
    %v6505 = vadd.f32 %v6202, %v6489
    %v6506 = vadd.f32 %v6272, %v6490
    %v6507 = vadd.f32 %v6342, %v6491
    %v6508 = vadd.f32 %v6412, %v6492
    %v6509 = vadd.f32 %v6482, %v6493
    %v6518 = vrot.slane %v6503, 7
    %vm6519 = vcmask 1041409
    %v6520 = vsel %vm6519, %v6518, %v6502
    %v6521 = vrot.slane %v6504, 6
    %vm6522 = vcmask 1042434
    %v6523 = vsel %vm6522, %v6521, %v6520
    %v6524 = vrot.slane %v6505, 5
    %vm6525 = vcmask 1043459
    %v6526 = vsel %vm6525, %v6524, %v6523
    %v6527 = vrot.slane %v6506, 4
    %vm6528 = vcmask 1044484
    %v6529 = vsel %vm6528, %v6527, %v6526
    %v6530 = vrot.slane %v6507, 3
    %vm6531 = vcmask 1045509
    %v6532 = vsel %vm6531, %v6530, %v6529
    %v6533 = vrot.slane %v6508, 2
    %vm6534 = vcmask 1046534
    %v6535 = vsel %vm6534, %v6533, %v6532
    %v6536 = vrot.slane %v6509, 1
    %vm6537 = vcmask 1047559
    %v6538 = vsel %vm6537, %v6536, %v6535
    %6540 = vmax.xlane.f32.xlu0 %v6538
    %v6541 = vpop.xlane.xlu0 %6540
    %v6543 = vrot.slane %v6541, 1
    %v6544 = vrot.slane %v6541, 2
    %v6545 = vrot.slane %v6541, 3
    %v6546 = vrot.slane %v6541, 4
    %v6547 = vrot.slane %v6541, 5
    %v6548 = vrot.slane %v6541, 6
    %v6549 = vrot.slane %v6541, 7
    %v6558 = vsub.f32 %v6502, %v6541
    %v6559 = vsub.f32 %v6503, %v6543
    %v6560 = vsub.f32 %v6504, %v6544
    %v6561 = vsub.f32 %v6505, %v6545
    %v6562 = vsub.f32 %v6506, %v6546
    %v6563 = vsub.f32 %v6507, %v6547
    %v6564 = vsub.f32 %v6508, %v6548
    %v6565 = vsub.f32 %v6509, %v6549
    %v6566 = vmul.f32 %v6558, 1.442695
    %v6567 = vpow.pop %v6566
    %v6568 = vmul.f32 %v6559, 1.442695
    %v6569 = vpow.pop %v6568
    %v6570 = vmul.f32 %v6560, 1.442695
    %v6571 = vpow.pop %v6570
    %v6572 = vmul.f32 %v6561, 1.442695
    %v6573 = vpow.pop %v6572
    %v6574 = vmul.f32 %v6562, 1.442695
    %v6575 = vpow.pop %v6574
    %v6576 = vmul.f32 %v6563, 1.442695
    %v6577 = vpow.pop %v6576
    %v6578 = vmul.f32 %v6564, 1.442695
    %v6579 = vpow.pop %v6578
    %v6580 = vmul.f32 %v6565, 1.442695
    %v6581 = vpow.pop %v6580
    %v6590 = vrot.slane %v6569, 7
    %v6591 = vsel %vm6519, %v6590, %v6567
    %v6592 = vrot.slane %v6571, 6
    %v6593 = vsel %vm6522, %v6592, %v6591
    %v6594 = vrot.slane %v6573, 5
    %v6595 = vsel %vm6525, %v6594, %v6593
    %v6596 = vrot.slane %v6575, 4
    %v6597 = vsel %vm6528, %v6596, %v6595
    %v6598 = vrot.slane %v6577, 3
    %v6599 = vsel %vm6531, %v6598, %v6597
    %v6600 = vrot.slane %v6579, 2
    %v6601 = vsel %vm6534, %v6600, %v6599
    %v6602 = vrot.slane %v6581, 1
    %v6603 = vsel %vm6537, %v6602, %v6601
    %6605 = vadd.xlane.f32.xlu0 %v6603
    %v6606 = vpop.xlane.xlu0 %6605
    %v6608 = vrot.slane %v6606, 1
    %v6609 = vrot.slane %v6606, 2
    %v6610 = vrot.slane %v6606, 3
    %v6611 = vrot.slane %v6606, 4
    %v6612 = vrot.slane %v6606, 5
    %v6613 = vrot.slane %v6606, 6
    %v6614 = vrot.slane %v6606, 7
    %v6623 = vrcp.pop %v6606
    %v6624 = vmul.f32 %v6567, %v6623
    %v6625 = vrcp.pop %v6608
    %v6626 = vmul.f32 %v6569, %v6625
    %v6627 = vrcp.pop %v6609
    %v6628 = vmul.f32 %v6571, %v6627
    %v6629 = vrcp.pop %v6610
    %v6630 = vmul.f32 %v6573, %v6629
    %v6631 = vrcp.pop %v6611
    %v6632 = vmul.f32 %v6575, %v6631
    %v6633 = vrcp.pop %v6612
    %v6634 = vmul.f32 %v6577, %v6633
    %v6635 = vrcp.pop %v6613
    %v6636 = vmul.f32 %v6579, %v6635
    %v6637 = vrcp.pop %v6614
    %v6638 = vmul.f32 %v6581, %v6637
    %v6639 = vpack.c.bf16 %v6624, %v6624
    %v6640 = vpack.c.bf16 %v6626, %v6626
    %v6641 = vpack.c.bf16 %v6628, %v6628
    %v6642 = vpack.c.bf16 %v6630, %v6630
    %v6643 = vpack.c.bf16 %v6632, %v6632
    %v6644 = vpack.c.bf16 %v6634, %v6634
    %v6645 = vpack.c.bf16 %v6636, %v6636
    %v6646 = vpack.c.bf16 %v6638, %v6638
    %v6647 = vld [vmem:[%s1] sm:$0xf]
    %v6648 = vld [vmem:[%s1 + $0x4] sm:$0xf]
    %v6649 = vld [vmem:[%s1 + $0x8] sm:$0xf]
    %v6650 = vld [vmem:[%s1 + $0xc] sm:$0xf]
    %v6651 = vld [vmem:[%s1 + $0x10] sm:$0xf]
    %v6652 = vld [vmem:[%s1 + $0x14] sm:$0xf]
    %v6653 = vld [vmem:[%s1 + $0x18] sm:$0xf]
    %v6654 = vld [vmem:[%s1 + $0x1c] sm:$0xf]
    %v6655 = vld [vmem:[%s1 + $0x20] sm:$0xf]
    %v6656 = vld [vmem:[%s1 + $0x24] sm:$0xf]
    %v6657 = vld [vmem:[%s1 + $0x28] sm:$0xf]
    %v6658 = vld [vmem:[%s1 + $0x2c] sm:$0xf]
    %v6659 = vld [vmem:[%s1 + $0x30] sm:$0xf]
    %v6660 = vld [vmem:[%s1 + $0x34] sm:$0xf]
    %v6661 = vld [vmem:[%s1 + $0x38] sm:$0xf]
    %v6662 = vld [vmem:[%s1 + $0x3c] sm:$0xf]
    %v6663 = vld [vmem:[%s1 + $0x40] sm:$0xf]
    %v6664 = vld [vmem:[%s1 + $0x44] sm:$0xf]
    %v6665 = vld [vmem:[%s1 + $0x48] sm:$0xf]
    %v6666 = vld [vmem:[%s1 + $0x4c] sm:$0xf]
    %v6667 = vld [vmem:[%s1 + $0x50] sm:$0xf]
    %v6668 = vld [vmem:[%s1 + $0x54] sm:$0xf]
    %v6669 = vld [vmem:[%s1 + $0x58] sm:$0xf]
    %v6670 = vld [vmem:[%s1 + $0x5c] sm:$0xf]
    %v6671 = vld [vmem:[%s1 + $0x60] sm:$0xf]
    %v6672 = vld [vmem:[%s1 + $0x64] sm:$0xf]
    %v6673 = vld [vmem:[%s1 + $0x68] sm:$0xf]
    %v6674 = vld [vmem:[%s1 + $0x6c] sm:$0xf]
    %v6675 = vld [vmem:[%s1 + $0x70] sm:$0xf]
    %v6676 = vld [vmem:[%s1 + $0x74] sm:$0xf]
    %v6677 = vld [vmem:[%s1 + $0x78] sm:$0xf]
    %v6678 = vld [vmem:[%s1 + $0x7c] sm:$0xf]
    %v6679 = vld [vmem:[%s1 + $0x80] sm:$0xf]
    %v6680 = vld [vmem:[%s1 + $0x84] sm:$0xf]
    %v6681 = vld [vmem:[%s1 + $0x88] sm:$0xf]
    %v6682 = vld [vmem:[%s1 + $0x8c] sm:$0xf]
    %v6683 = vld [vmem:[%s1 + $0x90] sm:$0xf]
    %v6684 = vld [vmem:[%s1 + $0x94] sm:$0xf]
    %v6685 = vld [vmem:[%s1 + $0x98] sm:$0xf]
    %v6686 = vld [vmem:[%s1 + $0x9c] sm:$0xf]
    %v6687 = vld [vmem:[%s1 + $0xa0] sm:$0xf]
    %v6688 = vld [vmem:[%s1 + $0xa4] sm:$0xf]
    %v6689 = vld [vmem:[%s1 + $0xa8] sm:$0xf]
    %v6690 = vld [vmem:[%s1 + $0xac] sm:$0xf]
    %v6691 = vld [vmem:[%s1 + $0xb0] sm:$0xf]
    %v6692 = vld [vmem:[%s1 + $0xb4] sm:$0xf]
    %v6693 = vld [vmem:[%s1 + $0xb8] sm:$0xf]
    %v6694 = vld [vmem:[%s1 + $0xbc] sm:$0xf]
    %v6695 = vld [vmem:[%s1 + $0xc0] sm:$0xf]
    %v6696 = vld [vmem:[%s1 + $0xc4] sm:$0xf]
    %v6697 = vld [vmem:[%s1 + $0xc8] sm:$0xf]
    %v6698 = vld [vmem:[%s1 + $0xcc] sm:$0xf]
    %v6699 = vld [vmem:[%s1 + $0xd0] sm:$0xf]
    %v6700 = vld [vmem:[%s1 + $0xd4] sm:$0xf]
    %v6701 = vld [vmem:[%s1 + $0xd8] sm:$0xf]
    %v6702 = vld [vmem:[%s1 + $0xdc] sm:$0xf]
    %v6703 = vld [vmem:[%s1 + $0xe0] sm:$0xf]
    %v6704 = vld [vmem:[%s1 + $0xe4] sm:$0xf]
    %v6705 = vld [vmem:[%s1 + $0xe8] sm:$0xf]
    %v6706 = vld [vmem:[%s1 + $0xec] sm:$0xf]
    %v6707 = vld [vmem:[%s1 + $0xf0] sm:$0xf]
    %v6708 = vld [vmem:[%s1 + $0xf4] sm:$0xf]
    %v6709 = vld [vmem:[%s1 + $0xf8] sm:$0xf]
    %v6710 = vld [vmem:[%s1 + $0xfc] sm:$0xf]
    %v6711 = vld [vmem:[%s1 + $0x100] sm:$0xf]
    %v6712 = vld [vmem:[%s1 + $0x104] sm:$0xf]
    %v6713 = vld [vmem:[%s1 + $0x108] sm:$0xf]
    %v6714 = vld [vmem:[%s1 + $0x10c] sm:$0xf]
    %v6715 = vld [vmem:[%s1 + $0x110] sm:$0xf]
    %v6716 = vld [vmem:[%s1 + $0x114] sm:$0xf]
    %v6717 = vld [vmem:[%s1 + $0x118] sm:$0xf]
    %v6718 = vld [vmem:[%s1 + $0x11c] sm:$0xf]
    %v6719 = vld [vmem:[%s1 + $0x120] sm:$0xf]
    %v6720 = vld [vmem:[%s1 + $0x124] sm:$0xf]
    %v6721 = vld [vmem:[%s1 + $0x128] sm:$0xf]
    %v6722 = vld [vmem:[%s1 + $0x12c] sm:$0xf]
    %v6723 = vld [vmem:[%s1 + $0x130] sm:$0xf]
    %v6724 = vld [vmem:[%s1 + $0x134] sm:$0xf]
    %v6725 = vld [vmem:[%s1 + $0x138] sm:$0xf]
    %v6726 = vld [vmem:[%s1 + $0x13c] sm:$0xf]
    %v6727 = vld [vmem:[%s1 + $0x140] sm:$0xf]
    %v6728 = vld [vmem:[%s1 + $0x144] sm:$0xf]
    %v6729 = vld [vmem:[%s1 + $0x148] sm:$0xf]
    %v6730 = vld [vmem:[%s1 + $0x14c] sm:$0xf]
    %v6731 = vld [vmem:[%s1 + $0x150] sm:$0xf]
    %v6732 = vld [vmem:[%s1 + $0x154] sm:$0xf]
    %v6733 = vld [vmem:[%s1 + $0x158] sm:$0xf]
    %v6734 = vld [vmem:[%s1 + $0x15c] sm:$0xf]
    %v6735 = vld [vmem:[%s1 + $0x160] sm:$0xf]
    %v6736 = vld [vmem:[%s1 + $0x164] sm:$0xf]
    %v6737 = vld [vmem:[%s1 + $0x168] sm:$0xf]
    %v6738 = vld [vmem:[%s1 + $0x16c] sm:$0xf]
    %v6739 = vld [vmem:[%s1 + $0x170] sm:$0xf]
    %v6740 = vld [vmem:[%s1 + $0x174] sm:$0xf]
    %v6741 = vld [vmem:[%s1 + $0x178] sm:$0xf]
    %v6742 = vld [vmem:[%s1 + $0x17c] sm:$0xf]
    %v6743 = vld [vmem:[%s1 + $0x180] sm:$0xf]
    %v6744 = vld [vmem:[%s1 + $0x184] sm:$0xf]
    %v6745 = vld [vmem:[%s1 + $0x188] sm:$0xf]
    %v6746 = vld [vmem:[%s1 + $0x18c] sm:$0xf]
    %v6747 = vld [vmem:[%s1 + $0x190] sm:$0xf]
    %v6748 = vld [vmem:[%s1 + $0x194] sm:$0xf]
    %v6749 = vld [vmem:[%s1 + $0x198] sm:$0xf]
    %v6750 = vld [vmem:[%s1 + $0x19c] sm:$0xf]
    %v6751 = vld [vmem:[%s1 + $0x1a0] sm:$0xf]
    %v6752 = vld [vmem:[%s1 + $0x1a4] sm:$0xf]
    %v6753 = vld [vmem:[%s1 + $0x1a8] sm:$0xf]
    %v6754 = vld [vmem:[%s1 + $0x1ac] sm:$0xf]
    %v6755 = vld [vmem:[%s1 + $0x1b0] sm:$0xf]
    %v6756 = vld [vmem:[%s1 + $0x1b4] sm:$0xf]
    %v6757 = vld [vmem:[%s1 + $0x1b8] sm:$0xf]
    %v6758 = vld [vmem:[%s1 + $0x1bc] sm:$0xf]
    %v6759 = vld [vmem:[%s1 + $0x1c0] sm:$0xf]
    %v6760 = vld [vmem:[%s1 + $0x1c4] sm:$0xf]
    %v6761 = vld [vmem:[%s1 + $0x1c8] sm:$0xf]
    %v6762 = vld [vmem:[%s1 + $0x1cc] sm:$0xf]
    %v6763 = vld [vmem:[%s1 + $0x1d0] sm:$0xf]
    %v6764 = vld [vmem:[%s1 + $0x1d4] sm:$0xf]
    %v6765 = vld [vmem:[%s1 + $0x1d8] sm:$0xf]
    %v6766 = vld [vmem:[%s1 + $0x1dc] sm:$0xf]
    %v6767 = vld [vmem:[%s1 + $0x1e0] sm:$0xf]
    %v6768 = vld [vmem:[%s1 + $0x1e4] sm:$0xf]
    %v6769 = vld [vmem:[%s1 + $0x1e8] sm:$0xf]
    %v6770 = vld [vmem:[%s1 + $0x1ec] sm:$0xf]
    %v6771 = vld [vmem:[%s1 + $0x1f0] sm:$0xf]
    %v6772 = vld [vmem:[%s1 + $0x1f4] sm:$0xf]
    %v6773 = vld [vmem:[%s1 + $0x1f8] sm:$0xf]
    %v6774 = vld [vmem:[%s1 + $0x1fc] sm:$0xf]
    %v6791 = vunpack.c.l.b16 %v6647
    %v6792 = vunpack.c.l.b16 %v6648
    %v6793 = vunpack.c.l.b16 %v6649
    %v6794 = vunpack.c.l.b16 %v6650
    %v6795 = vunpack.c.l.b16 %v6651
    %v6796 = vunpack.c.l.b16 %v6652
    %v6797 = vunpack.c.l.b16 %v6653
    %v6798 = vunpack.c.l.b16 %v6654
    %v6799 = vunpack.c.l.b16 %v6655
    %v6800 = vunpack.c.l.b16 %v6656
    %v6801 = vunpack.c.l.b16 %v6657
    %v6802 = vunpack.c.l.b16 %v6658
    %v6803 = vunpack.c.l.b16 %v6659
    %v6804 = vunpack.c.l.b16 %v6660
    %v6805 = vunpack.c.l.b16 %v6661
    %v6806 = vunpack.c.l.b16 %v6662
    %v6807 = vpack.c.b16 %v6792, %v6791
    %v6808 = vpack.c.b16 %v6794, %v6793
    %v6809 = vpack.c.b16 %v6796, %v6795
    %v6810 = vpack.c.b16 %v6798, %v6797
    %v6811 = vpack.c.b16 %v6800, %v6799
    %v6812 = vpack.c.b16 %v6802, %v6801
    %v6813 = vpack.c.b16 %v6804, %v6803
    %v6814 = vpack.c.b16 %v6806, %v6805
    %6823 = vmatprep.subr.bf16.mxu0 0
    %6824 = vmatpush1.bf16.msra.mxu0 %v6807
    %6825 = vmatprep.subr.bf16.mxu0 0
    %6826 = vmatpush1.bf16.msra.mxu0 %v6808
    %6827 = vmatprep.subr.bf16.mxu0 0
    %6828 = vmatpush1.bf16.msra.mxu0 %v6809
    %6829 = vmatprep.subr.bf16.mxu0 0
    %6830 = vmatpush1.bf16.msra.mxu0 %v6810
    %6831 = vmatprep.subr.bf16.mxu0 0
    %6832 = vmatpush1.bf16.msra.mxu0 %v6811
    %6833 = vmatprep.subr.bf16.mxu0 0
    %6834 = vmatpush1.bf16.msra.mxu0 %v6812
    %6835 = vmatprep.subr.bf16.mxu0 0
    %6836 = vmatpush1.bf16.msra.mxu0 %v6813
    %6837 = vmatprep.subr.bf16.mxu0 0
    %6838 = vmatpush1.bf16.msra.mxu0 %v6814
    %6839 = vmatprep.subr.bf16.mxu0 0
    %6840 = vmatpush1.bf16.msra.mxu0 0
    %6841 = vmatprep.subr.bf16.mxu0 0
    %6842 = vmatpush1.bf16.msra.mxu0 0
    %6843 = vmatprep.subr.bf16.mxu0 0
    %6844 = vmatpush1.bf16.msra.mxu0 0
    %6845 = vmatprep.subr.bf16.mxu0 0
    %6846 = vmatpush1.bf16.msra.mxu0 0
    %6847 = vmatprep.subr.bf16.mxu0 0
    %6848 = vmatpush1.bf16.msra.mxu0 0
    %6849 = vmatprep.subr.bf16.mxu0 0
    %6850 = vmatpush1.bf16.msra.mxu0 0
    %6851 = vmatprep.subr.bf16.mxu0 0
    %6852 = vmatpush1.bf16.msra.mxu0 0
    %6853 = vmatprep.subr.bf16.mxu0 0
    %6854 = vmatpush1.bf16.msra.mxu0 0
    %6855 = vmatprep.mubr.bf16.mxu0 0
    %6856 = vmatmul.mubr.bf16.gmra.mrb[0].mxu0 %v6639
    %v6857 = vpop.f32.mrb[0].mxu0
    %v6858 = vadd.f32 0.0, %v6857
    %v6859 = vpop.f32.mrb[0].mxu0
    %v6860 = vpop.f32.mrb[0].mxu0
    %v6861 = vpop.f32.mrb[0].mxu0
    %6862 = vdwg.mxu0
    %v6879 = vunpack.c.l.b16 %v6663
    %v6880 = vunpack.c.l.b16 %v6664
    %v6881 = vunpack.c.l.b16 %v6665
    %v6882 = vunpack.c.l.b16 %v6666
    %v6883 = vunpack.c.l.b16 %v6667
    %v6884 = vunpack.c.l.b16 %v6668
    %v6885 = vunpack.c.l.b16 %v6669
    %v6886 = vunpack.c.l.b16 %v6670
    %v6887 = vunpack.c.l.b16 %v6671
    %v6888 = vunpack.c.l.b16 %v6672
    %v6889 = vunpack.c.l.b16 %v6673
    %v6890 = vunpack.c.l.b16 %v6674
    %v6891 = vunpack.c.l.b16 %v6675
    %v6892 = vunpack.c.l.b16 %v6676
    %v6893 = vunpack.c.l.b16 %v6677
    %v6894 = vunpack.c.l.b16 %v6678
    %v6895 = vpack.c.b16 %v6880, %v6879
    %v6896 = vpack.c.b16 %v6882, %v6881
    %v6897 = vpack.c.b16 %v6884, %v6883
    %v6898 = vpack.c.b16 %v6886, %v6885
    %v6899 = vpack.c.b16 %v6888, %v6887
    %v6900 = vpack.c.b16 %v6890, %v6889
    %v6901 = vpack.c.b16 %v6892, %v6891
    %v6902 = vpack.c.b16 %v6894, %v6893
    %6911 = vmatprep.subr.bf16.mxu0 0
    %6912 = vmatpush1.bf16.msra.mxu0 %v6895
    %6913 = vmatprep.subr.bf16.mxu0 0
    %6914 = vmatpush1.bf16.msra.mxu0 %v6896
    %6915 = vmatprep.subr.bf16.mxu0 0
    %6916 = vmatpush1.bf16.msra.mxu0 %v6897
    %6917 = vmatprep.subr.bf16.mxu0 0
    %6918 = vmatpush1.bf16.msra.mxu0 %v6898
    %6919 = vmatprep.subr.bf16.mxu0 0
    %6920 = vmatpush1.bf16.msra.mxu0 %v6899
    %6921 = vmatprep.subr.bf16.mxu0 0
    %6922 = vmatpush1.bf16.msra.mxu0 %v6900
    %6923 = vmatprep.subr.bf16.mxu0 0
    %6924 = vmatpush1.bf16.msra.mxu0 %v6901
    %6925 = vmatprep.subr.bf16.mxu0 0
    %6926 = vmatpush1.bf16.msra.mxu0 %v6902
    %6927 = vmatprep.subr.bf16.mxu0 0
    %6928 = vmatpush1.bf16.msra.mxu0 0
    %6929 = vmatprep.subr.bf16.mxu0 0
    %6930 = vmatpush1.bf16.msra.mxu0 0
    %6931 = vmatprep.subr.bf16.mxu0 0
    %6932 = vmatpush1.bf16.msra.mxu0 0
    %6933 = vmatprep.subr.bf16.mxu0 0
    %6934 = vmatpush1.bf16.msra.mxu0 0
    %6935 = vmatprep.subr.bf16.mxu0 0
    %6936 = vmatpush1.bf16.msra.mxu0 0
    %6937 = vmatprep.subr.bf16.mxu0 0
    %6938 = vmatpush1.bf16.msra.mxu0 0
    %6939 = vmatprep.subr.bf16.mxu0 0
    %6940 = vmatpush1.bf16.msra.mxu0 0
    %6941 = vmatprep.subr.bf16.mxu0 0
    %6942 = vmatpush1.bf16.msra.mxu0 0
    %6943 = vmatprep.mubr.bf16.mxu0 0
    %6944 = vmatmul.mubr.bf16.gmra.mrb[0].mxu0 %v6640
    %v6945 = vpop.f32.mrb[0].mxu0
    %v6946 = vadd.f32 0.0, %v6945
    %v6947 = vpop.f32.mrb[0].mxu0
    %v6948 = vpop.f32.mrb[0].mxu0
    %v6949 = vpop.f32.mrb[0].mxu0
    %6950 = vdwg.mxu0
    %v6967 = vunpack.c.l.b16 %v6679
    %v6968 = vunpack.c.l.b16 %v6680
    %v6969 = vunpack.c.l.b16 %v6681
    %v6970 = vunpack.c.l.b16 %v6682
    %v6971 = vunpack.c.l.b16 %v6683
    %v6972 = vunpack.c.l.b16 %v6684
    %v6973 = vunpack.c.l.b16 %v6685
    %v6974 = vunpack.c.l.b16 %v6686
    %v6975 = vunpack.c.l.b16 %v6687
    %v6976 = vunpack.c.l.b16 %v6688
    %v6977 = vunpack.c.l.b16 %v6689
    %v6978 = vunpack.c.l.b16 %v6690
    %v6979 = vunpack.c.l.b16 %v6691
    %v6980 = vunpack.c.l.b16 %v6692
    %v6981 = vunpack.c.l.b16 %v6693
    %v6982 = vunpack.c.l.b16 %v6694
    %v6983 = vpack.c.b16 %v6968, %v6967
    %v6984 = vpack.c.b16 %v6970, %v6969
    %v6985 = vpack.c.b16 %v6972, %v6971
    %v6986 = vpack.c.b16 %v6974, %v6973
    %v6987 = vpack.c.b16 %v6976, %v6975
    %v6988 = vpack.c.b16 %v6978, %v6977
    %v6989 = vpack.c.b16 %v6980, %v6979
    %v6990 = vpack.c.b16 %v6982, %v6981
    %6999 = vmatprep.subr.bf16.mxu0 0
    %7000 = vmatpush1.bf16.msra.mxu0 %v6983
    %7001 = vmatprep.subr.bf16.mxu0 0
    %7002 = vmatpush1.bf16.msra.mxu0 %v6984
    %7003 = vmatprep.subr.bf16.mxu0 0
    %7004 = vmatpush1.bf16.msra.mxu0 %v6985
    %7005 = vmatprep.subr.bf16.mxu0 0
    %7006 = vmatpush1.bf16.msra.mxu0 %v6986
    %7007 = vmatprep.subr.bf16.mxu0 0
    %7008 = vmatpush1.bf16.msra.mxu0 %v6987
    %7009 = vmatprep.subr.bf16.mxu0 0
    %7010 = vmatpush1.bf16.msra.mxu0 %v6988
    %7011 = vmatprep.subr.bf16.mxu0 0
    %7012 = vmatpush1.bf16.msra.mxu0 %v6989
    %7013 = vmatprep.subr.bf16.mxu0 0
    %7014 = vmatpush1.bf16.msra.mxu0 %v6990
    %7015 = vmatprep.subr.bf16.mxu0 0
    %7016 = vmatpush1.bf16.msra.mxu0 0
    %7017 = vmatprep.subr.bf16.mxu0 0
    %7018 = vmatpush1.bf16.msra.mxu0 0
    %7019 = vmatprep.subr.bf16.mxu0 0
    %7020 = vmatpush1.bf16.msra.mxu0 0
    %7021 = vmatprep.subr.bf16.mxu0 0
    %7022 = vmatpush1.bf16.msra.mxu0 0
    %7023 = vmatprep.subr.bf16.mxu0 0
    %7024 = vmatpush1.bf16.msra.mxu0 0
    %7025 = vmatprep.subr.bf16.mxu0 0
    %7026 = vmatpush1.bf16.msra.mxu0 0
    %7027 = vmatprep.subr.bf16.mxu0 0
    %7028 = vmatpush1.bf16.msra.mxu0 0
    %7029 = vmatprep.subr.bf16.mxu0 0
    %7030 = vmatpush1.bf16.msra.mxu0 0
    %7031 = vmatprep.mubr.bf16.mxu0 0
    %7032 = vmatmul.mubr.bf16.gmra.mrb[0].mxu0 %v6641
    %v7033 = vpop.f32.mrb[0].mxu0
    %v7034 = vadd.f32 0.0, %v7033
    %v7035 = vpop.f32.mrb[0].mxu0
    %v7036 = vpop.f32.mrb[0].mxu0
    %v7037 = vpop.f32.mrb[0].mxu0
    %7038 = vdwg.mxu0
    %v7055 = vunpack.c.l.b16 %v6695
    %v7056 = vunpack.c.l.b16 %v6696
    %v7057 = vunpack.c.l.b16 %v6697
    %v7058 = vunpack.c.l.b16 %v6698
    %v7059 = vunpack.c.l.b16 %v6699
    %v7060 = vunpack.c.l.b16 %v6700
    %v7061 = vunpack.c.l.b16 %v6701
    %v7062 = vunpack.c.l.b16 %v6702
    %v7063 = vunpack.c.l.b16 %v6703
    %v7064 = vunpack.c.l.b16 %v6704
    %v7065 = vunpack.c.l.b16 %v6705
    %v7066 = vunpack.c.l.b16 %v6706
    %v7067 = vunpack.c.l.b16 %v6707
    %v7068 = vunpack.c.l.b16 %v6708
    %v7069 = vunpack.c.l.b16 %v6709
    %v7070 = vunpack.c.l.b16 %v6710
    %v7071 = vpack.c.b16 %v7056, %v7055
    %v7072 = vpack.c.b16 %v7058, %v7057
    %v7073 = vpack.c.b16 %v7060, %v7059
    %v7074 = vpack.c.b16 %v7062, %v7061
    %v7075 = vpack.c.b16 %v7064, %v7063
    %v7076 = vpack.c.b16 %v7066, %v7065
    %v7077 = vpack.c.b16 %v7068, %v7067
    %v7078 = vpack.c.b16 %v7070, %v7069
    %7087 = vmatprep.subr.bf16.mxu0 0
    %7088 = vmatpush1.bf16.msra.mxu0 %v7071
    %7089 = vmatprep.subr.bf16.mxu0 0
    %7090 = vmatpush1.bf16.msra.mxu0 %v7072
    %7091 = vmatprep.subr.bf16.mxu0 0
    %7092 = vmatpush1.bf16.msra.mxu0 %v7073
    %7093 = vmatprep.subr.bf16.mxu0 0
    %7094 = vmatpush1.bf16.msra.mxu0 %v7074
    %7095 = vmatprep.subr.bf16.mxu0 0
    %7096 = vmatpush1.bf16.msra.mxu0 %v7075
    %7097 = vmatprep.subr.bf16.mxu0 0
    %7098 = vmatpush1.bf16.msra.mxu0 %v7076
    %7099 = vmatprep.subr.bf16.mxu0 0
    %7100 = vmatpush1.bf16.msra.mxu0 %v7077
    %7101 = vmatprep.subr.bf16.mxu0 0
    %7102 = vmatpush1.bf16.msra.mxu0 %v7078
    %7103 = vmatprep.subr.bf16.mxu0 0
    %7104 = vmatpush1.bf16.msra.mxu0 0
    %7105 = vmatprep.subr.bf16.mxu0 0
    %7106 = vmatpush1.bf16.msra.mxu0 0
    %7107 = vmatprep.subr.bf16.mxu0 0
    %7108 = vmatpush1.bf16.msra.mxu0 0
    %7109 = vmatprep.subr.bf16.mxu0 0
    %7110 = vmatpush1.bf16.msra.mxu0 0
    %7111 = vmatprep.subr.bf16.mxu0 0
    %7112 = vmatpush1.bf16.msra.mxu0 0
    %7113 = vmatprep.subr.bf16.mxu0 0
    %7114 = vmatpush1.bf16.msra.mxu0 0
    %7115 = vmatprep.subr.bf16.mxu0 0
    %7116 = vmatpush1.bf16.msra.mxu0 0
    %7117 = vmatprep.subr.bf16.mxu0 0
    %7118 = vmatpush1.bf16.msra.mxu0 0
    %7119 = vmatprep.mubr.bf16.mxu0 0
    %7120 = vmatmul.mubr.bf16.gmra.mrb[0].mxu0 %v6642
    %v7121 = vpop.f32.mrb[0].mxu0
    %v7122 = vadd.f32 0.0, %v7121
    %v7123 = vpop.f32.mrb[0].mxu0
    %v7124 = vpop.f32.mrb[0].mxu0
    %v7125 = vpop.f32.mrb[0].mxu0
    %7126 = vdwg.mxu0
    %v7143 = vunpack.c.l.b16 %v6711
    %v7144 = vunpack.c.l.b16 %v6712
    %v7145 = vunpack.c.l.b16 %v6713
    %v7146 = vunpack.c.l.b16 %v6714
    %v7147 = vunpack.c.l.b16 %v6715
    %v7148 = vunpack.c.l.b16 %v6716
    %v7149 = vunpack.c.l.b16 %v6717
    %v7150 = vunpack.c.l.b16 %v6718
    %v7151 = vunpack.c.l.b16 %v6719
    %v7152 = vunpack.c.l.b16 %v6720
    %v7153 = vunpack.c.l.b16 %v6721
    %v7154 = vunpack.c.l.b16 %v6722
    %v7155 = vunpack.c.l.b16 %v6723
    %v7156 = vunpack.c.l.b16 %v6724
    %v7157 = vunpack.c.l.b16 %v6725
    %v7158 = vunpack.c.l.b16 %v6726
    %v7159 = vpack.c.b16 %v7144, %v7143
    %v7160 = vpack.c.b16 %v7146, %v7145
    %v7161 = vpack.c.b16 %v7148, %v7147
    %v7162 = vpack.c.b16 %v7150, %v7149
    %v7163 = vpack.c.b16 %v7152, %v7151
    %v7164 = vpack.c.b16 %v7154, %v7153
    %v7165 = vpack.c.b16 %v7156, %v7155
    %v7166 = vpack.c.b16 %v7158, %v7157
    %7175 = vmatprep.subr.bf16.mxu0 0
    %7176 = vmatpush1.bf16.msra.mxu0 %v7159
    %7177 = vmatprep.subr.bf16.mxu0 0
    %7178 = vmatpush1.bf16.msra.mxu0 %v7160
    %7179 = vmatprep.subr.bf16.mxu0 0
    %7180 = vmatpush1.bf16.msra.mxu0 %v7161
    %7181 = vmatprep.subr.bf16.mxu0 0
    %7182 = vmatpush1.bf16.msra.mxu0 %v7162
    %7183 = vmatprep.subr.bf16.mxu0 0
    %7184 = vmatpush1.bf16.msra.mxu0 %v7163
    %7185 = vmatprep.subr.bf16.mxu0 0
    %7186 = vmatpush1.bf16.msra.mxu0 %v7164
    %7187 = vmatprep.subr.bf16.mxu0 0
    %7188 = vmatpush1.bf16.msra.mxu0 %v7165
    %7189 = vmatprep.subr.bf16.mxu0 0
    %7190 = vmatpush1.bf16.msra.mxu0 %v7166
    %7191 = vmatprep.subr.bf16.mxu0 0
    %7192 = vmatpush1.bf16.msra.mxu0 0
    %7193 = vmatprep.subr.bf16.mxu0 0
    %7194 = vmatpush1.bf16.msra.mxu0 0
    %7195 = vmatprep.subr.bf16.mxu0 0
    %7196 = vmatpush1.bf16.msra.mxu0 0
    %7197 = vmatprep.subr.bf16.mxu0 0
    %7198 = vmatpush1.bf16.msra.mxu0 0
    %7199 = vmatprep.subr.bf16.mxu0 0
    %7200 = vmatpush1.bf16.msra.mxu0 0
    %7201 = vmatprep.subr.bf16.mxu0 0
    %7202 = vmatpush1.bf16.msra.mxu0 0
    %7203 = vmatprep.subr.bf16.mxu0 0
    %7204 = vmatpush1.bf16.msra.mxu0 0
    %7205 = vmatprep.subr.bf16.mxu0 0
    %7206 = vmatpush1.bf16.msra.mxu0 0
    %7207 = vmatprep.mubr.bf16.mxu0 0
    %7208 = vmatmul.mubr.bf16.gmra.mrb[0].mxu0 %v6643
    %v7209 = vpop.f32.mrb[0].mxu0
    %v7210 = vadd.f32 0.0, %v7209
    %v7211 = vpop.f32.mrb[0].mxu0
    %v7212 = vpop.f32.mrb[0].mxu0
    %v7213 = vpop.f32.mrb[0].mxu0
    %7214 = vdwg.mxu0
    %v7231 = vunpack.c.l.b16 %v6727
    %v7232 = vunpack.c.l.b16 %v6728
    %v7233 = vunpack.c.l.b16 %v6729
    %v7234 = vunpack.c.l.b16 %v6730
    %v7235 = vunpack.c.l.b16 %v6731
    %v7236 = vunpack.c.l.b16 %v6732
    %v7237 = vunpack.c.l.b16 %v6733
    %v7238 = vunpack.c.l.b16 %v6734
    %v7239 = vunpack.c.l.b16 %v6735
    %v7240 = vunpack.c.l.b16 %v6736
    %v7241 = vunpack.c.l.b16 %v6737
    %v7242 = vunpack.c.l.b16 %v6738
    %v7243 = vunpack.c.l.b16 %v6739
    %v7244 = vunpack.c.l.b16 %v6740
    %v7245 = vunpack.c.l.b16 %v6741
    %v7246 = vunpack.c.l.b16 %v6742
    %v7247 = vpack.c.b16 %v7232, %v7231
    %v7248 = vpack.c.b16 %v7234, %v7233
    %v7249 = vpack.c.b16 %v7236, %v7235
    %v7250 = vpack.c.b16 %v7238, %v7237
    %v7251 = vpack.c.b16 %v7240, %v7239
    %v7252 = vpack.c.b16 %v7242, %v7241
    %v7253 = vpack.c.b16 %v7244, %v7243
    %v7254 = vpack.c.b16 %v7246, %v7245
    %7263 = vmatprep.subr.bf16.mxu0 0
    %7264 = vmatpush1.bf16.msra.mxu0 %v7247
    %7265 = vmatprep.subr.bf16.mxu0 0
    %7266 = vmatpush1.bf16.msra.mxu0 %v7248
    %7267 = vmatprep.subr.bf16.mxu0 0
    %7268 = vmatpush1.bf16.msra.mxu0 %v7249
    %7269 = vmatprep.subr.bf16.mxu0 0
    %7270 = vmatpush1.bf16.msra.mxu0 %v7250
    %7271 = vmatprep.subr.bf16.mxu0 0
    %7272 = vmatpush1.bf16.msra.mxu0 %v7251
    %7273 = vmatprep.subr.bf16.mxu0 0
    %7274 = vmatpush1.bf16.msra.mxu0 %v7252
    %7275 = vmatprep.subr.bf16.mxu0 0
    %7276 = vmatpush1.bf16.msra.mxu0 %v7253
    %7277 = vmatprep.subr.bf16.mxu0 0
    %7278 = vmatpush1.bf16.msra.mxu0 %v7254
    %7279 = vmatprep.subr.bf16.mxu0 0
    %7280 = vmatpush1.bf16.msra.mxu0 0
    %7281 = vmatprep.subr.bf16.mxu0 0
    %7282 = vmatpush1.bf16.msra.mxu0 0
    %7283 = vmatprep.subr.bf16.mxu0 0
    %7284 = vmatpush1.bf16.msra.mxu0 0
    %7285 = vmatprep.subr.bf16.mxu0 0
    %7286 = vmatpush1.bf16.msra.mxu0 0
    %7287 = vmatprep.subr.bf16.mxu0 0
    %7288 = vmatpush1.bf16.msra.mxu0 0
    %7289 = vmatprep.subr.bf16.mxu0 0
    %7290 = vmatpush1.bf16.msra.mxu0 0
    %7291 = vmatprep.subr.bf16.mxu0 0
    %7292 = vmatpush1.bf16.msra.mxu0 0
    %7293 = vmatprep.subr.bf16.mxu0 0
    %7294 = vmatpush1.bf16.msra.mxu0 0
    %7295 = vmatprep.mubr.bf16.mxu0 0
    %7296 = vmatmul.mubr.bf16.gmra.mrb[0].mxu0 %v6644
    %v7297 = vpop.f32.mrb[0].mxu0
    %v7298 = vadd.f32 0.0, %v7297
    %v7299 = vpop.f32.mrb[0].mxu0
    %v7300 = vpop.f32.mrb[0].mxu0
    %v7301 = vpop.f32.mrb[0].mxu0
    %7302 = vdwg.mxu0
    %v7319 = vunpack.c.l.b16 %v6743
    %v7320 = vunpack.c.l.b16 %v6744
    %v7321 = vunpack.c.l.b16 %v6745
    %v7322 = vunpack.c.l.b16 %v6746
    %v7323 = vunpack.c.l.b16 %v6747
    %v7324 = vunpack.c.l.b16 %v6748
    %v7325 = vunpack.c.l.b16 %v6749
    %v7326 = vunpack.c.l.b16 %v6750
    %v7327 = vunpack.c.l.b16 %v6751
    %v7328 = vunpack.c.l.b16 %v6752
    %v7329 = vunpack.c.l.b16 %v6753
    %v7330 = vunpack.c.l.b16 %v6754
    %v7331 = vunpack.c.l.b16 %v6755
    %v7332 = vunpack.c.l.b16 %v6756
    %v7333 = vunpack.c.l.b16 %v6757
    %v7334 = vunpack.c.l.b16 %v6758
    %v7335 = vpack.c.b16 %v7320, %v7319
    %v7336 = vpack.c.b16 %v7322, %v7321
    %v7337 = vpack.c.b16 %v7324, %v7323
    %v7338 = vpack.c.b16 %v7326, %v7325
    %v7339 = vpack.c.b16 %v7328, %v7327
    %v7340 = vpack.c.b16 %v7330, %v7329
    %v7341 = vpack.c.b16 %v7332, %v7331
    %v7342 = vpack.c.b16 %v7334, %v7333
    %7351 = vmatprep.subr.bf16.mxu0 0
    %7352 = vmatpush1.bf16.msra.mxu0 %v7335
    %7353 = vmatprep.subr.bf16.mxu0 0
    %7354 = vmatpush1.bf16.msra.mxu0 %v7336
    %7355 = vmatprep.subr.bf16.mxu0 0
    %7356 = vmatpush1.bf16.msra.mxu0 %v7337
    %7357 = vmatprep.subr.bf16.mxu0 0
    %7358 = vmatpush1.bf16.msra.mxu0 %v7338
    %7359 = vmatprep.subr.bf16.mxu0 0
    %7360 = vmatpush1.bf16.msra.mxu0 %v7339
    %7361 = vmatprep.subr.bf16.mxu0 0
    %7362 = vmatpush1.bf16.msra.mxu0 %v7340
    %7363 = vmatprep.subr.bf16.mxu0 0
    %7364 = vmatpush1.bf16.msra.mxu0 %v7341
    %7365 = vmatprep.subr.bf16.mxu0 0
    %7366 = vmatpush1.bf16.msra.mxu0 %v7342
    %7367 = vmatprep.subr.bf16.mxu0 0
    %7368 = vmatpush1.bf16.msra.mxu0 0
    %7369 = vmatprep.subr.bf16.mxu0 0
    %7370 = vmatpush1.bf16.msra.mxu0 0
    %7371 = vmatprep.subr.bf16.mxu0 0
    %7372 = vmatpush1.bf16.msra.mxu0 0
    %7373 = vmatprep.subr.bf16.mxu0 0
    %7374 = vmatpush1.bf16.msra.mxu0 0
    %7375 = vmatprep.subr.bf16.mxu0 0
    %7376 = vmatpush1.bf16.msra.mxu0 0
    %7377 = vmatprep.subr.bf16.mxu0 0
    %7378 = vmatpush1.bf16.msra.mxu0 0
    %7379 = vmatprep.subr.bf16.mxu0 0
    %7380 = vmatpush1.bf16.msra.mxu0 0
    %7381 = vmatprep.subr.bf16.mxu0 0
    %7382 = vmatpush1.bf16.msra.mxu0 0
    %7383 = vmatprep.mubr.bf16.mxu0 0
    %7384 = vmatmul.mubr.bf16.gmra.mrb[0].mxu0 %v6645
    %v7385 = vpop.f32.mrb[0].mxu0
    %v7386 = vadd.f32 0.0, %v7385
    %v7387 = vpop.f32.mrb[0].mxu0
    %v7388 = vpop.f32.mrb[0].mxu0
    %v7389 = vpop.f32.mrb[0].mxu0
    %7390 = vdwg.mxu0
    %v7407 = vunpack.c.l.b16 %v6759
    %v7408 = vunpack.c.l.b16 %v6760
    %v7409 = vunpack.c.l.b16 %v6761
    %v7410 = vunpack.c.l.b16 %v6762
    %v7411 = vunpack.c.l.b16 %v6763
    %v7412 = vunpack.c.l.b16 %v6764
    %v7413 = vunpack.c.l.b16 %v6765
    %v7414 = vunpack.c.l.b16 %v6766
    %v7415 = vunpack.c.l.b16 %v6767
    %v7416 = vunpack.c.l.b16 %v6768
    %v7417 = vunpack.c.l.b16 %v6769
    %v7418 = vunpack.c.l.b16 %v6770
    %v7419 = vunpack.c.l.b16 %v6771
    %v7420 = vunpack.c.l.b16 %v6772
    %v7421 = vunpack.c.l.b16 %v6773
    %v7422 = vunpack.c.l.b16 %v6774
    %v7423 = vpack.c.b16 %v7408, %v7407
    %v7424 = vpack.c.b16 %v7410, %v7409
    %v7425 = vpack.c.b16 %v7412, %v7411
    %v7426 = vpack.c.b16 %v7414, %v7413
    %v7427 = vpack.c.b16 %v7416, %v7415
    %v7428 = vpack.c.b16 %v7418, %v7417
    %v7429 = vpack.c.b16 %v7420, %v7419
    %v7430 = vpack.c.b16 %v7422, %v7421
    %7439 = vmatprep.subr.bf16.mxu0 0
    %7440 = vmatpush1.bf16.msra.mxu0 %v7423
    %7441 = vmatprep.subr.bf16.mxu0 0
    %7442 = vmatpush1.bf16.msra.mxu0 %v7424
    %7443 = vmatprep.subr.bf16.mxu0 0
    %7444 = vmatpush1.bf16.msra.mxu0 %v7425
    %7445 = vmatprep.subr.bf16.mxu0 0
    %7446 = vmatpush1.bf16.msra.mxu0 %v7426
    %7447 = vmatprep.subr.bf16.mxu0 0
    %7448 = vmatpush1.bf16.msra.mxu0 %v7427
    %7449 = vmatprep.subr.bf16.mxu0 0
    %7450 = vmatpush1.bf16.msra.mxu0 %v7428
    %7451 = vmatprep.subr.bf16.mxu0 0
    %7452 = vmatpush1.bf16.msra.mxu0 %v7429
    %7453 = vmatprep.subr.bf16.mxu0 0
    %7454 = vmatpush1.bf16.msra.mxu0 %v7430
    %7455 = vmatprep.subr.bf16.mxu0 0
    %7456 = vmatpush1.bf16.msra.mxu0 0
    %7457 = vmatprep.subr.bf16.mxu0 0
    %7458 = vmatpush1.bf16.msra.mxu0 0
    %7459 = vmatprep.subr.bf16.mxu0 0
    %7460 = vmatpush1.bf16.msra.mxu0 0
    %7461 = vmatprep.subr.bf16.mxu0 0
    %7462 = vmatpush1.bf16.msra.mxu0 0
    %7463 = vmatprep.subr.bf16.mxu0 0
    %7464 = vmatpush1.bf16.msra.mxu0 0
    %7465 = vmatprep.subr.bf16.mxu0 0
    %7466 = vmatpush1.bf16.msra.mxu0 0
    %7467 = vmatprep.subr.bf16.mxu0 0
    %7468 = vmatpush1.bf16.msra.mxu0 0
    %7469 = vmatprep.subr.bf16.mxu0 0
    %7470 = vmatpush1.bf16.msra.mxu0 0
    %7471 = vmatprep.mubr.bf16.mxu0 0
    %7472 = vmatmul.mubr.bf16.gmra.mrb[0].mxu0 %v6646
    %v7473 = vpop.f32.mrb[0].mxu0
    %v7474 = vadd.f32 0.0, %v7473
    %v7475 = vpop.f32.mrb[0].mxu0
    %v7476 = vpop.f32.mrb[0].mxu0
    %v7477 = vpop.f32.mrb[0].mxu0
    %7478 = vdwg.mxu0
    %v7487 = vrot.slane %v6626, 7
    %v7488 = vsel %vm6519, %v7487, %v6624
    %v7489 = vrot.slane %v6628, 6
    %v7490 = vsel %vm6522, %v7489, %v7488
    %v7491 = vrot.slane %v6630, 5
    %v7492 = vsel %vm6525, %v7491, %v7490
    %v7493 = vrot.slane %v6632, 4
    %v7494 = vsel %vm6528, %v7493, %v7492
    %v7495 = vrot.slane %v6634, 3
    %v7496 = vsel %vm6531, %v7495, %v7494
    %v7497 = vrot.slane %v6636, 2
    %v7498 = vsel %vm6534, %v7497, %v7496
    %v7499 = vrot.slane %v6638, 1
    %v7500 = vsel %vm6537, %v7499, %v7498
    %7502 = vst [vmem:[#allocation5] sm:$0xff] %v7500
    %v7511 = vrot.slane %v6946, 7
    %v7512 = vsel %vm6519, %v7511, %v6858
    %v7513 = vrot.slane %v7034, 6
    %v7514 = vsel %vm6522, %v7513, %v7512
    %v7515 = vrot.slane %v7122, 5
    %v7516 = vsel %vm6525, %v7515, %v7514
    %v7517 = vrot.slane %v7210, 4
    %v7518 = vsel %vm6528, %v7517, %v7516
    %v7519 = vrot.slane %v7298, 3
    %v7520 = vsel %vm6531, %v7519, %v7518
    %v7521 = vrot.slane %v7386, 2
    %v7522 = vsel %vm6534, %v7521, %v7520
    %v7523 = vrot.slane %v7474, 1
    %v7524 = vsel %vm6537, %v7523, %v7522
    %7526 = vst [vmem:[#allocation4] sm:$0xff] %v7524
    %v7528 = vrot.slane %v1284, 1
    %v7529 = vrot.slane %v1284, 2
    %v7530 = vrot.slane %v1284, 3
    %v7531 = vrot.slane %v1284, 4
    %v7532 = vrot.slane %v1284, 5
    %v7533 = vrot.slane %v1284, 6
    %v7534 = vrot.slane %v1284, 7
    %v7543 = vadd.f32 %v6858, %v1284
    %v7544 = vadd.f32 %v6946, %v7528
    %v7545 = vadd.f32 %v7034, %v7529
    %v7546 = vadd.f32 %v7122, %v7530
    %v7547 = vadd.f32 %v7210, %v7531
    %v7548 = vadd.f32 %v7298, %v7532
    %v7549 = vadd.f32 %v7386, %v7533
    %v7550 = vadd.f32 %v7474, %v7534
    %v7559 = vrot.slane %v7544, 7
    %v7560 = vsel %vm6519, %v7559, %v7543
    %v7561 = vrot.slane %v7545, 6
    %v7562 = vsel %vm6522, %v7561, %v7560
    %v7563 = vrot.slane %v7546, 5
    %v7564 = vsel %vm6525, %v7563, %v7562
    %v7565 = vrot.slane %v7547, 4
    %v7566 = vsel %vm6528, %v7565, %v7564
    %v7567 = vrot.slane %v7548, 3
    %v7568 = vsel %vm6531, %v7567, %v7566
    %v7569 = vrot.slane %v7549, 2
    %v7570 = vsel %vm6534, %v7569, %v7568
    %v7571 = vrot.slane %v7550, 1
    %v7572 = vsel %vm6537, %v7571, %v7570
    %s7574 = smul.u32 %s68, 8
    %s7575 = scalar_lea.vmem %s14, %s7574
    %7576 = vst [vmem:[%s7575] sm:$0xff] %v7572
  $region62: #{seq2seq_forward.2} parent=0 // loop_footer
    %s72 = sadd.s32 1, %s68
  $region63: #{seq2seq_forward.2} parent=0 // loop_footer_branch
    %67 = sbr.rel target = $region59
  $region64: #{seq2seq_forward.2} parent=0 // loop_exit
    _
  // Predicated region
  $region65: #{seq2seq_forward.2} parent=0 // pred_check
    _
  $region66: #{seq2seq_forward.2} parent=0 // pred_check_branch
    %7578 = sbr.rel (0) target = $region68
  $region67: #{seq2seq_forward.2} parent=0 // pred_region
    _
  $region68: #{seq2seq_forward.2} parent=0 // pred_fallthru
    _
  // Predicated region
  $region69: #{seq2seq_forward.2} parent=0 // pred_check
    _
  $region70: #{seq2seq_forward.2} parent=0 // pred_check_branch
    %7580 = sbr.rel (0) target = $region72
  $region71: #{seq2seq_forward.2} parent=0 // pred_region
    _
  $region72: #{seq2seq_forward.2} parent=0 // pred_fallthru
    _

</llo_original>
